<compile_context>
chip_gen: v6e
topology: v6e:2x2x1
jax: 0.10.0
libtpu: 0.0.40
codegen_flags: <defaults>
</compile_context>

<pallas_src>
import functools
import math

import jax
import jax.numpy as jnp
from jax import lax
from jax.experimental import pallas as pl
from jax.experimental.pallas import tpu as pltpu

BN_EPS = 1e-5
BN_SCALE = 1.0 / math.sqrt(1.0 + BN_EPS)  # eval-mode BN with default running stats

PRIMITIVES = (
    "none",
    "max_pool_3x3",
    "avg_pool_3x3",
    "skip_connect",
    "sep_conv_3x3",
    "sep_conv_5x5",
    "dil_conv_3x3",
    "dil_conv_5x5",
)

VMEM_LIMIT = 32 * 1024 * 1024  # safe on v5e/v6e (128 MiB phys) and v7x (64 MiB phys)


def _round_up(x, m):
    return (x + m - 1) // m * m


# ---------------------------------------------------------------------------- Pallas: tiled MXU matmul

def _matmul_kernel_single(a_ref, b_ref, o_ref, *, relu_a):
    a = a_ref[...]
    if relu_a:
        a = jnp.maximum(a, 0)
    o_ref[...] = jnp.dot(a, b_ref[...], preferred_element_type=jnp.float32)


def _matmul_kernel_multi(a_ref, b_ref, o_ref, acc_ref, *, relu_a):
    @pl.when(pl.program_id(2) == 0)
    def _():
        acc_ref[...] = jnp.zeros_like(acc_ref)

    a = a_ref[...]
    if relu_a:
        a = jnp.maximum(a, 0)
    acc_ref[...] += jnp.dot(a, b_ref[...], preferred_element_type=jnp.float32)

    @pl.when(pl.program_id(2) == pl.num_programs(2) - 1)
    def _():
        o_ref[...] = acc_ref[...]


def _matmul_dims(M, K, N):
    # Small dims -> a single full-dim block (no host padding / no wasted HBM traffic).
    # Large dims -> fixed tiles (bf16-friendly), padded with jnp.pad to the tile multiple.
    if M <= 256:
        tm = _round_up(M, 16)  # 16: bf16 sublane packing
        Mp = tm
    else:
        tm = 256
        Mp = _round_up(M, tm)
    if K <= 512:
        tk, Kp = K, K
    else:
        tk = 512
        Kp = _round_up(K, tk)
    if N <= 256:
        tn, Np = N, N
    else:
        tn = 256
        Np = _round_up(N, tn)
    return Mp, Kp, Np, tm, tk, tn


@functools.lru_cache(maxsize=None)
def _get_matmul_call(Mp, Kp, Np, tm, tk, tn, relu_a):
    nk = Kp // tk
    if nk == 1:
        kernel = functools.partial(_matmul_kernel_single, relu_a=relu_a)
        scratch = []
    else:
        kernel = functools.partial(_matmul_kernel_multi, relu_a=relu_a)
        scratch = [pltpu.VMEM((tm, tn), jnp.float32)]
    return pl.pallas_call(
        kernel,
        out_shape=jax.ShapeDtypeStruct((Mp, Np), jnp.float32),
        grid_spec=pltpu.PrefetchScalarGridSpec(
            num_scalar_prefetch=0,
            grid=(Mp // tm, Np // tn, nk),
            in_specs=[
                pl.BlockSpec((tm, tk), lambda i, j, k: (i, k)),
                pl.BlockSpec((tk, tn), lambda i, j, k: (k, j)),
            ],
            out_specs=pl.BlockSpec((tm, tn), lambda i, j, k: (i, j)),
            scratch_shapes=scratch,
        ),
        compiler_params=pltpu.CompilerParams(
            dimension_semantics=("parallel", "parallel", "arbitrary"),
            vmem_limit_bytes=VMEM_LIMIT,
        ),
    )


def pallas_matmul(a, b, relu_a=False):
    """(M, K) @ (K, N) -> (M, N) f32. bf16 operands, f32 MXU accumulation.
    Optionally fuses ReLU on `a` inside the kernel (ReLU is elementwise, so relu(patches)
    == patches(relu(x)) and relu(0-padding) == 0)."""
    M, K = a.shape
    K2, N = b.shape
    assert K == K2
    Mp, Kp, Np, tm, tk, tn = _matmul_dims(M, K, N)
    a = a.astype(jnp.bfloat16)
    b = b.astype(jnp.bfloat16)
    if (Mp, Kp) != (M, K):
        a = jnp.pad(a, ((0, Mp - M), (0, Kp - K)))
    if (Kp, Np) != (K, N):
        b = jnp.pad(b, ((0, Kp - K), (0, Np - N)))
    out = _get_matmul_call(Mp, Kp, Np, tm, tk, tn, bool(relu_a))(a, b)
    if (Mp, Np) != (M, N):
        out = out[:M, :N]
    return out


# ---------------------------------------------------------------------------- Pallas: depthwise conv

def _dw_kernel(p_ref, w_ref, o_ref, *, relu_in):
    # p_ref: (KK, TP, L) bf16 patch tiles, w_ref: (KK, 1, L) f32 taps, o_ref: (TP, L) f32
    acc = jnp.zeros(o_ref.shape, jnp.float32)
    for k in range(p_ref.shape[0]):  # KK is small (9 or 25): unrolled
        x = p_ref[k].astype(jnp.float32)
        if relu_in:
            x = jnp.maximum(x, 0.0)
        acc = acc + x * w_ref[k]
    o_ref[...] = acc


def _dw_tile(KK, P, L):
    # keep one (KK, TP, L) bf16 input block comfortably inside VMEM (double-buffered)
    budget = 2 * 1024 * 1024
    tp = max(16, (budget // (KK * L * 2)) // 16 * 16)
    if P <= tp:
        return P, P  # full-dim block, no padding
    tp = min(tp, 512)
    return tp, _round_up(P, tp)


@functools.lru_cache(maxsize=None)
def _get_dw_call(KK, Pp, L, TP, relu_in):
    kernel = functools.partial(_dw_kernel, relu_in=relu_in)
    return pl.pallas_call(
        kernel,
        out_shape=jax.ShapeDtypeStruct((Pp, L), jnp.float32),
        grid_spec=pltpu.PrefetchScalarGridSpec(
            num_scalar_prefetch=0,
            grid=(Pp // TP,),
            in_specs=[
                pl.BlockSpec((KK, TP, L), lambda i: (0, i, 0)),
                pl.BlockSpec((KK, 1, L), lambda i: (0, 0, 0)),
            ],
            out_specs=pl.BlockSpec((TP, L), lambda i: (i, 0)),
            scratch_shapes=[],
        ),
        compiler_params=pltpu.CompilerParams(
            dimension_semantics=("parallel",),
            vmem_limit_bytes=VMEM_LIMIT,
        ),
    )


# ---------------------------------------------------------------------------- conv helpers (JAX glue)

def im2col_slices(x, kh, kw, stride, padding, dilation):
    # x: (N, H, W, C) -> list of kh*kw shifted windows, each (N, Ho, Wo, C)
    N, H, W, C = x.shape
    xp = jnp.pad(x, ((0, 0), (padding, padding), (padding, padding), (0, 0)))
    Ho = (H + 2 * padding - dilation * (kh - 1) - 1) // stride + 1
    Wo = (W + 2 * padding - dilation * (kw - 1) - 1) // stride + 1
    cols = []
    for i in range(kh):
        for j in range(kw):
            hi, wj = i * dilation, j * dilation
            cols.append(
                xp[:, hi: hi + (Ho - 1) * stride + 1: stride,
                      wj: wj + (Wo - 1) * stride + 1: stride, :]
            )
    return cols, Ho, Wo


def conv2d(x, w, stride=1, padding=0, dilation=1, relu_input=False):
    # x: NHWC, w: (Cout, Cin, kh, kw) PyTorch layout, bias=False
    Cout, Cin, kh, kw = w.shape
    if kh == 1 and kw == 1 and padding == 0 and dilation == 1:
        if stride > 1:
            x = x[:, ::stride, ::stride, :]
        N, H, W, _ = x.shape
        out = pallas_matmul(x.reshape(-1, Cin), jnp.transpose(w[:, :, 0, 0]),
                            relu_a=relu_input)
        return out.reshape(N, H, W, Cout)
    cols, Ho, Wo = im2col_slices(x, kh, kw, stride, padding, dilation)
    N = x.shape[0]
    a = jnp.stack(cols, axis=3).reshape(N * Ho * Wo, kh * kw * Cin)
    wmat = jnp.transpose(w, (2, 3, 1, 0)).reshape(kh * kw * Cin, Cout)
    out = pallas_matmul(a, wmat, relu_a=relu_input)
    return out.reshape(N, Ho, Wo, Cout)


def depthwise_conv2d(x, w, stride, padding, dilation, relu_input=False):
    # w: (C, 1, kh, kw), groups == C.  Lane dim of the kernel is Wo*C (lane-dense).
    C, _, kh, kw = w.shape
    cols, Ho, Wo = im2col_slices(x, kh, kw, stride, padding, dilation)
    N = x.shape[0]
    KK = kh * kw
    P, L = N * Ho, Wo * C
    # tap axis leading at stack time -> no HBM transpose of the patch tensor
    patches = jnp.stack(cols, axis=0).reshape(KK, P, L).astype(jnp.bfloat16)
    wv = jnp.transpose(w[:, 0], (1, 2, 0)).reshape(KK, C)          # (KK, C), tap-major
    wv = jnp.tile(wv, (1, Wo)).reshape(KK, 1, L).astype(jnp.float32)
    TP, Pp = _dw_tile(KK, P, L)
    if Pp != P:
        patches = jnp.pad(patches, ((0, 0), (0, Pp - P), (0, 0)))
    out = _get_dw_call(KK, Pp, L, TP, bool(relu_input))(patches, wv)
    if Pp != P:
        out = out[:P]
    return out.reshape(N, Ho, Wo, C)


def max_pool_3x3(x, stride):
    # TODO(synk): 3x3 pooling stays as lax.reduce_window (cheap vs. the conv hot path).
    init = jnp.array(-jnp.inf, x.dtype)
    return lax.reduce_window(x, init, lax.max, (1, 3, 3, 1), (1, stride, stride, 1),
                             ((0, 0), (1, 1), (1, 1), (0, 0)))


def avg_pool_3x3(x, stride):
    # count_include_pad=False semantics
    zero = jnp.array(0.0, x.dtype)
    s = lax.reduce_window(x, zero, lax.add, (1, 3, 3, 1), (1, stride, stride, 1),
                          ((0, 0), (1, 1), (1, 1), (0, 0)))
    cnt = lax.reduce_window(jnp.ones_like(x[..., :1]), zero, lax.add, (1, 3, 3, 1),
                            (1, stride, stride, 1), ((0, 0), (1, 1), (1, 1), (0, 0)))
    return s / cnt


def factorized_reduce(x, w1, w2):
    # ReLU fused into the 1x1 convs, BN scale folded into the weights (beta=0).
    o1 = conv2d(x, w1 * BN_SCALE, stride=2, relu_input=True)
    o2 = conv2d(x[:, 1:, 1:, :], w2 * BN_SCALE, stride=2, relu_input=True)
    return jnp.concatenate([o1, o2], axis=-1)


def relu_conv_bn(x, w):
    return conv2d(x, w * BN_SCALE, stride=1, padding=0, relu_input=True)


# ---------------------------------------------------------------------------- DARTS primitives

def apply_primitive(name, p, x, stride):
    if name == "max_pool_3x3":
        return max_pool_3x3(x, stride) * BN_SCALE       # BN(eval, default stats) = scalar
    if name == "avg_pool_3x3":
        return avg_pool_3x3(x, stride) * BN_SCALE
    if name == "skip_connect":
        if stride == 1:
            return x                                    # Identity + Dropout(p=0.0) -> no-op
        return factorized_reduce(x, p["w1"], p["w2"])
    if name.startswith("sep_conv"):
        k = 3 if name.endswith("3x3") else 5
        pad = k // 2
        y = depthwise_conv2d(x, p["dw1"], stride, pad, 1, relu_input=True)
        y = conv2d(y, p["pw1"] * BN_SCALE)              # BN folded into pointwise weight
        y = depthwise_conv2d(y, p["dw2"], 1, pad, 1, relu_input=True)
        return conv2d(y, p["pw2"] * BN_SCALE)
    if name.startswith("dil_conv"):
        k = 3 if name.endswith("3x3") else 5
        dil = 2
        pad = dil * (k // 2)
        y = depthwise_conv2d(x, p["dw"], stride, pad, dil, relu_input=True)
        return conv2d(y, p["pw"] * BN_SCALE)
    raise ValueError(name)


def mixed_op(edge, x, w_edge):
    out = None
    for k, (name, stride, p) in enumerate(edge):
        if name == "none":                              # Zero op: contributes w*0, skip
            continue
        y = w_edge[k] * apply_primitive(name, p, x, stride)
        out = y if out is None else out + y
    return out


def darts_weight_unpack(weight, n_nodes):
    w_dag, start = [], 0
    for i in range(n_nodes):
        end = start + 2 + i
        w_dag.append(weight[start:end])
        start = end
    return w_dag


# ---------------------------------------------------------------------------- parameter construction

class ParamGen:
    def __init__(self, seed=0):
        self._key = jax.random.PRNGKey(seed)
        self._i = 0

    def normal(self, shape, scale=0.1):
        self._i += 1
        return scale * jax.random.normal(jax.random.fold_in(self._key, self._i), shape, jnp.float32)


def init_op_params(pg, name, C, stride):
    if name in ("none", "max_pool_3x3", "avg_pool_3x3"):
        return {}
    if name == "skip_connect":
        if stride == 1:
            return {}
        return {"w1": pg.normal((C // 2, C, 1, 1)), "w2": pg.normal((C // 2, C, 1, 1))}
    k = 3 if name.endswith("3x3") else 5
    if name.startswith("sep_conv"):
        return {
            "dw1": pg.normal((C, 1, k, k)), "pw1": pg.normal((C, C, 1, 1)),
            "dw2": pg.normal((C, 1, k, k)), "pw2": pg.normal((C, C, 1, 1)),
        }
    if name.startswith("dil_conv"):
        return {"dw": pg.normal((C, 1, k, k)), "pw": pg.normal((C, C, 1, 1))}
    raise ValueError(name)


def build_cell(pg, n_nodes, C_pp, C_p, C, reduction_p, reduction):
    cell = {"reduction": reduction, "n_nodes": n_nodes, "C": C}
    if reduction_p:
        cell["pre0"] = {"type": "fr", "w1": pg.normal((C // 2, C_pp, 1, 1)),
                        "w2": pg.normal((C // 2, C_pp, 1, 1))}
    else:
        cell["pre0"] = {"type": "rcb", "w": pg.normal((C, C_pp, 1, 1))}
    cell["pre1"] = {"type": "rcb", "w": pg.normal((C, C_p, 1, 1))}
    dag = []
    for i in range(n_nodes):
        node = []
        for j in range(2 + i):
            stride = 2 if reduction and j < 2 else 1
            edge = [(name, stride, init_op_params(pg, name, C, stride)) for name in PRIMITIVES]
            node.append(edge)
        dag.append(node)
    cell["dag"] = dag
    return cell


def build_pdarts_cnn(pg, C_in, C, n_classes, n_layers, n_nodes):
    stem_multiplier = 3
    C_cur = stem_multiplier * C
    params = {
        "stem_conv": pg.normal((C_cur, C_in, 3, 3)),
        "stem_bn_gamma": jnp.ones((C_cur,), jnp.float32),
        "stem_bn_beta": jnp.zeros((C_cur,), jnp.float32),
    }
    C_pp, C_p, C_cur = C_cur, C_cur, C
    reduction_p = False
    cells = []
    for i in range(n_layers):
        if i in [n_layers // 3, 2 * n_layers // 3]:
            C_cur *= 2
            reduction = True
        else:
            reduction = False
        cells.append(build_cell(pg, n_nodes, C_pp, C_p, C_cur, reduction_p, reduction))
        reduction_p = reduction
        C_pp, C_p = C_p, C_cur * n_nodes
    params["cells"] = cells
    params["linear_w"] = pg.normal((n_classes, C_p))
    params["linear_b"] = jnp.zeros((n_classes,), jnp.float32)
    return params, C_p


# ---------------------------------------------------------------------------- forward

def cell_forward(cell, s0, s1, weights):
    if cell["pre0"]["type"] == "fr":
        s0 = factorized_reduce(s0, cell["pre0"]["w1"], cell["pre0"]["w2"])
    else:
        s0 = relu_conv_bn(s0, cell["pre0"]["w"])
    s1 = relu_conv_bn(s1, cell["pre1"]["w"])
    states = [s0, s1]
    w_dag = darts_weight_unpack(weights, cell["n_nodes"])
    for node, w_list in zip(cell["dag"], w_dag):
        s_cur = None
        for j, edge in enumerate(node):
            y = mixed_op(edge, states[j], w_list[j])
            s_cur = y if s_cur is None else s_cur + y
        states.append(s_cur)
    return jnp.concatenate(states[2:], axis=-1)


def pdarts_cnn_forward(params, x_nchw, sample, num_edges):
    # NCHW input (PyTorch convention) -> NHWC internally
    x = jnp.transpose(x_nchw, (0, 2, 3, 1)).astype(jnp.float32)
    # stem: conv3x3 with eval-mode BN folded in (scale = gamma/sqrt(var+eps), bias = beta)
    w_stem = params["stem_conv"] * (params["stem_bn_gamma"] * BN_SCALE)[:, None, None, None]
    s = conv2d(x, w_stem, stride=1, padding=1) + params["stem_bn_beta"]
    s0 = s1 = s
    for cell in params["cells"]:
        w = sample[num_edges:] if cell["reduction"] else sample[:num_edges]
        s0, s1 = s1, cell_forward(cell, s0, s1, w)
    out = jnp.mean(s1, axis=(1, 2))  # AdaptiveAvgPool2d(1) + flatten -> (N, C_p)
    logits = pallas_matmul(out, jnp.transpose(params["linear_w"])) + params["linear_b"][None, :]
    return logits


# ---------------------------------------------------------------------------- main

if __name__ == "__main__":
    C_in, C, n_classes, n_layers, n_nodes = 3, 8, 10, 3, 2
    num_edges = sum(range(2, n_nodes + 2))       # 5
    all_edges = 2 * num_edges                    # 10
    n_ops = len(PRIMITIVES)                      # 8

    pg = ParamGen(seed=0)
    params, C_p = build_pdarts_cnn(pg, C_in, C, n_classes, n_layers, n_nodes)

    key = jax.random.PRNGKey(0)
    kx, ks = jax.random.split(key)
    x = jax.random.normal(kx, (2, C_in, 16, 16), jnp.float32)               # NCHW like PyTorch
    sample = jax.nn.softmax(jax.random.normal(ks, (all_edges, n_ops)), -1)  # architecture weights

    # jit the whole forward so the JAX glue (im2col slices, pooling, weighted sums) fuses and
    # dispatch overhead of the many small pallas_calls disappears.
    forward = jax.jit(functools.partial(pdarts_cnn_forward, params, num_edges=num_edges))

    logits = forward(x, sample)
    logits = jax.block_until_ready(logits)
    assert logits.shape == (2, n_classes)
    assert bool(jnp.all(jnp.isfinite(logits)))
    print("KERNEL_OK")
</pallas_src>

<mosaic_0001>
module attributes {stable_mosaic.version = 11 : i64} {
  func.func @_matmul_kernel_single(%arg0: i32, %arg1: i32, %arg2: i32, %arg3: memref<256x27xbf16, #tpu.memory_space<vmem>>, %arg4: memref<27x24xbf16, #tpu.memory_space<vmem>>, %arg5: memref<256x24xf32, #tpu.memory_space<vmem>>) attributes {dimension_semantics = [#tpu.dimension_semantics<parallel>, #tpu.dimension_semantics<parallel>, #tpu.dimension_semantics<arbitrary>], iteration_bounds = array<i64: 2, 1, 1>, scalar_prefetch = 0 : i64, scratch_operands = 0 : i64, tpu.core_type = #tpu.core_type<tc>, window_params = [{transform_indices = @transform_0, window_bounds = array<i64: 256, 27>}, {transform_indices = @transform_1, window_bounds = array<i64: 27, 24>}, {transform_indices = @transform_2, window_bounds = array<i64: 256, 24>}]} {
    %c0 = arith.constant 0 : index
    %c0_0 = arith.constant 0 : index
    %0 = vector.load %arg3[%c0, %c0_0] : memref<256x27xbf16, #tpu.memory_space<vmem>>, vector<256x27xbf16>
    %c0_1 = arith.constant 0 : index
    %c0_2 = arith.constant 0 : index
    %1 = vector.load %arg4[%c0_1, %c0_2] : memref<27x24xbf16, #tpu.memory_space<vmem>>, vector<27x24xbf16>
    %cst = arith.constant dense<0.000000e+00> : vector<256x24xf32>
    %2 = tpu.matmul %0, %1, %cst {dimension_numbers = #tpu.dot_dimension_numbers<[1], [0], [0], [1], [0, 0, 1, 1], [], []>} : vector<256x27xbf16>, vector<27x24xbf16>, vector<256x24xf32> -> vector<256x24xf32>
    %c0_3 = arith.constant 0 : index
    %c0_4 = arith.constant 0 : index
    %3 = vector.load %arg5[%c0_3, %c0_4] : memref<256x24xf32, #tpu.memory_space<vmem>>, vector<256x24xf32>
    tpu.vector_store %arg5[%c0_3, %c0_4], %2 {strides = array<i32>} : memref<256x24xf32, #tpu.memory_space<vmem>>, vector<256x24xf32>,
    return
  }
  func.func @transform_0(%arg0: i32, %arg1: i32, %arg2: i32) -> (i32, i32) {
    %c0_i32 = arith.constant 0 : i32
    return %arg0, %arg2 : i32, i32
  }
  func.func @transform_1(%arg0: i32, %arg1: i32, %arg2: i32) -> (i32, i32) {
    %c0_i32 = arith.constant 0 : i32
    return %arg2, %arg1 : i32, i32
  }
  func.func @transform_2(%arg0: i32, %arg1: i32, %arg2: i32) -> (i32, i32) {
    %c0_i32 = arith.constant 0 : i32
    return %arg0, %arg1 : i32, i32
  }
}

module attributes {stable_mosaic.version = 11 : i64} {
  func.func @_matmul_kernel_single(%arg0: i32, %arg1: i32, %arg2: i32, %arg3: memref<256x24xbf16, #tpu.memory_space<vmem>>, %arg4: memref<24x8xbf16, #tpu.memory_space<vmem>>, %arg5: memref<256x8xf32, #tpu.memory_space<vmem>>) attributes {dimension_semantics = [#tpu.dimension_semantics<parallel>, #tpu.dimension_semantics<parallel>, #tpu.dimension_semantics<arbitrary>], iteration_bounds = array<i64: 2, 1, 1>, scalar_prefetch = 0 : i64, scratch_operands = 0 : i64, tpu.core_type = #tpu.core_type<tc>, window_params = [{transform_indices = @transform_0, window_bounds = array<i64: 256, 24>}, {transform_indices = @transform_1, window_bounds = array<i64: 24, 8>}, {transform_indices = @transform_2, window_bounds = array<i64: 256, 8>}]} {
    %c0 = arith.constant 0 : index
    %c0_0 = arith.constant 0 : index
    %0 = vector.load %arg3[%c0, %c0_0] : memref<256x24xbf16, #tpu.memory_space<vmem>>, vector<256x24xbf16>
    %cst = arith.constant 0.000000e+00 : bf16
    %1 = vector.broadcast %cst : bf16 to vector<256x24xbf16>
    %2 = arith.maximumf %0, %1 : vector<256x24xbf16>
    %c0_1 = arith.constant 0 : index
    %c0_2 = arith.constant 0 : index
    %3 = vector.load %arg4[%c0_1, %c0_2] : memref<24x8xbf16, #tpu.memory_space<vmem>>, vector<24x8xbf16>
    %cst_3 = arith.constant dense<0.000000e+00> : vector<256x8xf32>
    %4 = tpu.matmul %2, %3, %cst_3 {dimension_numbers = #tpu.dot_dimension_numbers<[1], [0], [0], [1], [0, 0, 1, 1], [], []>} : vector<256x24xbf16>, vector<24x8xbf16>, vector<256x8xf32> -> vector<256x8xf32>
    %c0_4 = arith.constant 0 : index
    %c0_5 = arith.constant 0 : index
    %5 = vector.load %arg5[%c0_4, %c0_5] : memref<256x8xf32, #tpu.memory_space<vmem>>, vector<256x8xf32>
    tpu.vector_store %arg5[%c0_4, %c0_5], %4 {strides = array<i32>} : memref<256x8xf32, #tpu.memory_space<vmem>>, vector<256x8xf32>,
    return
  }
  func.func @transform_0(%arg0: i32, %arg1: i32, %arg2: i32) -> (i32, i32) {
    %c0_i32 = arith.constant 0 : i32
    return %arg0, %arg2 : i32, i32
  }
  func.func @transform_1(%arg0: i32, %arg1: i32, %arg2: i32) -> (i32, i32) {
    %c0_i32 = arith.constant 0 : i32
    return %arg2, %arg1 : i32, i32
  }
  func.func @transform_2(%arg0: i32, %arg1: i32, %arg2: i32) -> (i32, i32) {
    %c0_i32 = arith.constant 0 : i32
    return %arg0, %arg1 : i32, i32
  }
}

module attributes {stable_mosaic.version = 11 : i64} {
  func.func @_matmul_kernel_single(%arg0: i32, %arg1: i32, %arg2: i32, %arg3: memref<256x24xbf16, #tpu.memory_space<vmem>>, %arg4: memref<24x16xbf16, #tpu.memory_space<vmem>>, %arg5: memref<256x16xf32, #tpu.memory_space<vmem>>) attributes {dimension_semantics = [#tpu.dimension_semantics<parallel>, #tpu.dimension_semantics<parallel>, #tpu.dimension_semantics<arbitrary>], iteration_bounds = array<i64: 2, 1, 1>, scalar_prefetch = 0 : i64, scratch_operands = 0 : i64, tpu.core_type = #tpu.core_type<tc>, window_params = [{transform_indices = @transform_0, window_bounds = array<i64: 256, 24>}, {transform_indices = @transform_1, window_bounds = array<i64: 24, 16>}, {transform_indices = @transform_2, window_bounds = array<i64: 256, 16>}]} {
    %c0 = arith.constant 0 : index
    %c0_0 = arith.constant 0 : index
    %0 = vector.load %arg3[%c0, %c0_0] : memref<256x24xbf16, #tpu.memory_space<vmem>>, vector<256x24xbf16>
    %cst = arith.constant 0.000000e+00 : bf16
    %1 = vector.broadcast %cst : bf16 to vector<256x24xbf16>
    %2 = arith.maximumf %0, %1 : vector<256x24xbf16>
    %c0_1 = arith.constant 0 : index
    %c0_2 = arith.constant 0 : index
    %3 = vector.load %arg4[%c0_1, %c0_2] : memref<24x16xbf16, #tpu.memory_space<vmem>>, vector<24x16xbf16>
    %cst_3 = arith.constant dense<0.000000e+00> : vector<256x16xf32>
    %4 = tpu.matmul %2, %3, %cst_3 {dimension_numbers = #tpu.dot_dimension_numbers<[1], [0], [0], [1], [0, 0, 1, 1], [], []>} : vector<256x24xbf16>, vector<24x16xbf16>, vector<256x16xf32> -> vector<256x16xf32>
    %c0_4 = arith.constant 0 : index
    %c0_5 = arith.constant 0 : index
    %5 = vector.load %arg5[%c0_4, %c0_5] : memref<256x16xf32, #tpu.memory_space<vmem>>, vector<256x16xf32>
    tpu.vector_store %arg5[%c0_4, %c0_5], %4 {strides = array<i32>} : memref<256x16xf32, #tpu.memory_space<vmem>>, vector<256x16xf32>,
    return
  }
  func.func @transform_0(%arg0: i32, %arg1: i32, %arg2: i32) -> (i32, i32) {
    %c0_i32 = arith.constant 0 : i32
    return %arg0, %arg2 : i32, i32
  }
  func.func @transform_1(%arg0: i32, %arg1: i32, %arg2: i32) -> (i32, i32) {
    %c0_i32 = arith.constant 0 : i32
    return %arg2, %arg1 : i32, i32
  }
  func.func @transform_2(%arg0: i32, %arg1: i32, %arg2: i32) -> (i32, i32) {
    %c0_i32 = arith.constant 0 : i32
    return %arg0, %arg1 : i32, i32
  }
}

module attributes {stable_mosaic.version = 11 : i64} {
  func.func @_matmul_kernel_single(%arg0: i32, %arg1: i32, %arg2: i32, %arg3: memref<128x16xbf16, #tpu.memory_space<vmem>>, %arg4: memref<16x8xbf16, #tpu.memory_space<vmem>>, %arg5: memref<128x8xf32, #tpu.memory_space<vmem>>) attributes {dimension_semantics = [#tpu.dimension_semantics<parallel>, #tpu.dimension_semantics<parallel>, #tpu.dimension_semantics<arbitrary>], iteration_bounds = array<i64: 1, 1, 1>, scalar_prefetch = 0 : i64, scratch_operands = 0 : i64, tpu.core_type = #tpu.core_type<tc>, window_params = [{transform_indices = @transform_0, window_bounds = array<i64: 128, 16>}, {transform_indices = @transform_1, window_bounds = array<i64: 16, 8>}, {transform_indices = @transform_2, window_bounds = array<i64: 128, 8>}]} {
    %c0 = arith.constant 0 : index
    %c0_0 = arith.constant 0 : index
    %0 = vector.load %arg3[%c0, %c0_0] : memref<128x16xbf16, #tpu.memory_space<vmem>>, vector<128x16xbf16>
    %cst = arith.constant 0.000000e+00 : bf16
    %1 = vector.broadcast %cst : bf16 to vector<128x16xbf16>
    %2 = arith.maximumf %0, %1 : vector<128x16xbf16>
    %c0_1 = arith.constant 0 : index
    %c0_2 = arith.constant 0 : index
    %3 = vector.load %arg4[%c0_1, %c0_2] : memref<16x8xbf16, #tpu.memory_space<vmem>>, vector<16x8xbf16>
    %cst_3 = arith.constant dense<0.000000e+00> : vector<128x8xf32>
    %4 = tpu.matmul %2, %3, %cst_3 {dimension_numbers = #tpu.dot_dimension_numbers<[1], [0], [0], [1], [0, 0, 1, 1], [], []>} : vector<128x16xbf16>, vector<16x8xbf16>, vector<128x8xf32> -> vector<128x8xf32>
    %c0_4 = arith.constant 0 : index
    %c0_5 = arith.constant 0 : index
    %5 = vector.load %arg5[%c0_4, %c0_5] : memref<128x8xf32, #tpu.memory_space<vmem>>, vector<128x8xf32>
    tpu.vector_store %arg5[%c0_4, %c0_5], %4 {strides = array<i32>} : memref<128x8xf32, #tpu.memory_space<vmem>>, vector<128x8xf32>,
    return
  }
  func.func @transform_0(%arg0: i32, %arg1: i32, %arg2: i32) -> (i32, i32) {
    %c0_i32 = arith.constant 0 : i32
    return %arg0, %arg2 : i32, i32
  }
  func.func @transform_1(%arg0: i32, %arg1: i32, %arg2: i32) -> (i32, i32) {
    %c0_i32 = arith.constant 0 : i32
    return %arg2, %arg1 : i32, i32
  }
  func.func @transform_2(%arg0: i32, %arg1: i32, %arg2: i32) -> (i32, i32) {
    %c0_i32 = arith.constant 0 : i32
    return %arg0, %arg1 : i32, i32
  }
}

module attributes {stable_mosaic.version = 11 : i64} {
  func.func @_dw_kernel(%arg0: i32, %arg1: memref<9x16x128xbf16, #tpu.memory_space<vmem>>, %arg2: memref<9x1x128xf32, #tpu.memory_space<vmem>>, %arg3: memref<16x128xf32, #tpu.memory_space<vmem>>) attributes {dimension_semantics = [#tpu.dimension_semantics<parallel>], iteration_bounds = array<i64: 1>, scalar_prefetch = 0 : i64, scratch_operands = 0 : i64, tpu.core_type = #tpu.core_type<tc>, window_params = [{transform_indices = @transform_0, window_bounds = array<i64: 9, 16, 128>}, {pipeline_mode = #tpu.pipeline_mode<synchronous>, transform_indices = @transform_1, window_bounds = array<i64: 9, 1, 128>}, {transform_indices = @transform_2, window_bounds = array<i64: 16, 128>}]} {
    %cst = arith.constant 0.000000e+00 : f32
    %0 = vector.broadcast %cst : f32 to vector<16x128xf32>
    %c0 = arith.constant 0 : index
    %c0_0 = arith.constant 0 : index
    %c0_1 = arith.constant 0 : index
    %1 = vector.load %arg1[%c0, %c0_0, %c0_1] : memref<9x16x128xbf16, #tpu.memory_space<vmem>>, vector<1x16x128xbf16>
    %2 = vector.shape_cast %1 : vector<1x16x128xbf16> to vector<16x128xbf16>
    %3 = arith.extf %2 : vector<16x128xbf16> to vector<16x128xf32>
    %cst_2 = arith.constant 0.000000e+00 : f32
    %4 = vector.broadcast %cst_2 : f32 to vector<16x128xf32>
    %5 = arith.maximumf %3, %4 : vector<16x128xf32>
    %c0_3 = arith.constant 0 : index
    %c0_4 = arith.constant 0 : index
    %c0_5 = arith.constant 0 : index
    %6 = vector.load %arg2[%c0_3, %c0_4, %c0_5] : memref<9x1x128xf32, #tpu.memory_space<vmem>>, vector<1x1x128xf32>
    %7 = vector.shape_cast %6 : vector<1x1x128xf32> to vector<1x128xf32>
    %8 = vector.broadcast %7 : vector<1x128xf32> to vector<16x128xf32>
    %9 = arith.mulf %5, %8 : vector<16x128xf32>
    %10 = arith.addf %0, %9 : vector<16x128xf32>
    %c1 = arith.constant 1 : index
    %c0_6 = arith.constant 0 : index
    %c0_7 = arith.constant 0 : index
    %11 = vector.load %arg1[%c1, %c0_6, %c0_7] : memref<9x16x128xbf16, #tpu.memory_space<vmem>>, vector<1x16x128xbf16>
    %12 = vector.shape_cast %11 : vector<1x16x128xbf16> to vector<16x128xbf16>
    %13 = arith.extf %12 : vector<16x128xbf16> to vector<16x128xf32>
    %cst_8 = arith.constant 0.000000e+00 : f32
    %14 = vector.broadcast %cst_8 : f32 to vector<16x128xf32>
    %15 = arith.maximumf %13, %14 : vector<16x128xf32>
    %c1_9 = arith.constant 1 : index
    %c0_10 = arith.constant 0 : index
    %c0_11 = arith.constant 0 : index
    %16 = vector.load %arg2[%c1_9, %c0_10, %c0_11] : memref<9x1x128xf32, #tpu.memory_space<vmem>>, vector<1x1x128xf32>
    %17 = vector.shape_cast %16 : vector<1x1x128xf32> to vector<1x128xf32>
    %18 = vector.broadcast %17 : vector<1x128xf32> to vector<16x128xf32>
    %19 = arith.mulf %15, %18 : vector<16x128xf32>
    %20 = arith.addf %10, %19 : vector<16x128xf32>
    %c2 = arith.constant 2 : index
    %c0_12 = arith.constant 0 : index
    %c0_13 = arith.constant 0 : index
    %21 = vector.load %arg1[%c2, %c0_12, %c0_13] : memref<9x16x128xbf16, #tpu.memory_space<vmem>>, vector<1x16x128xbf16>
    %22 = vector.shape_cast %21 : vector<1x16x128xbf16> to vector<16x128xbf16>
    %23 = arith.extf %22 : vector<16x128xbf16> to vector<16x128xf32>
    %cst_14 = arith.constant 0.000000e+00 : f32
    %24 = vector.broadcast %cst_14 : f32 to vector<16x128xf32>
    %25 = arith.maximumf %23, %24 : vector<16x128xf32>
    %c2_15 = arith.constant 2 : index
    %c0_16 = arith.constant 0 : index
    %c0_17 = arith.constant 0 : index
    %26 = vector.load %arg2[%c2_15, %c0_16, %c0_17] : memref<9x1x128xf32, #tpu.memory_space<vmem>>, vector<1x1x128xf32>
    %27 = vector.shape_cast %26 : vector<1x1x128xf32> to vector<1x128xf32>
    %28 = vector.broadcast %27 : vector<1x128xf32> to vector<16x128xf32>
    %29 = arith.mulf %25, %28 : vector<16x128xf32>
    %30 = arith.addf %20, %29 : vector<16x128xf32>
    %c3 = arith.constant 3 : index
    %c0_18 = arith.constant 0 : index
    %c0_19 = arith.constant 0 : index
    %31 = vector.load %arg1[%c3, %c0_18, %c0_19] : memref<9x16x128xbf16, #tpu.memory_space<vmem>>, vector<1x16x128xbf16>
    %32 = vector.shape_cast %31 : vector<1x16x128xbf16> to vector<16x128xbf16>
    %33 = arith.extf %32 : vector<16x128xbf16> to vector<16x128xf32>
    %cst_20 = arith.constant 0.000000e+00 : f32
    %34 = vector.broadcast %cst_20 : f32 to vector<16x128xf32>
    %35 = arith.maximumf %33, %34 : vector<16x128xf32>
    %c3_21 = arith.constant 3 : index
    %c0_22 = arith.constant 0 : index
    %c0_23 = arith.constant 0 : index
    %36 = vector.load %arg2[%c3_21, %c0_22, %c0_23] : memref<9x1x128xf32, #tpu.memory_space<vmem>>, vector<1x1x128xf32>
    %37 = vector.shape_cast %36 : vector<1x1x128xf32> to vector<1x128xf32>
    %38 = vector.broadcast %37 : vector<1x128xf32> to vector<16x128xf32>
    %39 = arith.mulf %35, %38 : vector<16x128xf32>
    %40 = arith.addf %30, %39 : vector<16x128xf32>
    %c4 = arith.constant 4 : index
    %c0_24 = arith.constant 0 : index
    %c0_25 = arith.constant 0 : index
    %41 = vector.load %arg1[%c4, %c0_24, %c0_25] : memref<9x16x128xbf16, #tpu.memory_space<vmem>>, vector<1x16x128xbf16>
    %42 = vector.shape_cast %41 : vector<1x16x128xbf16> to vector<16x128xbf16>
    %43 = arith.extf %42 : vector<16x128xbf16> to vector<16x128xf32>
    %cst_26 = arith.constant 0.000000e+00 : f32
    %44 = vector.broadcast %cst_26 : f32 to vector<16x128xf32>
    %45 = arith.maximumf %43, %44 : vector<16x128xf32>
    %c4_27 = arith.constant 4 : index
    %c0_28 = arith.constant 0 : index
    %c0_29 = arith.constant 0 : index
    %46 = vector.load %arg2[%c4_27, %c0_28, %c0_29] : memref<9x1x128xf32, #tpu.memory_space<vmem>>, vector<1x1x128xf32>
    %47 = vector.shape_cast %46 : vector<1x1x128xf32> to vector<1x128xf32>
    %48 = vector.broadcast %47 : vector<1x128xf32> to vector<16x128xf32>
    %49 = arith.mulf %45, %48 : vector<16x128xf32>
    %50 = arith.addf %40, %49 : vector<16x128xf32>
    %c5 = arith.constant 5 : index
    %c0_30 = arith.constant 0 : index
    %c0_31 = arith.constant 0 : index
    %51 = vector.load %arg1[%c5, %c0_30, %c0_31] : memref<9x16x128xbf16, #tpu.memory_space<vmem>>, vector<1x16x128xbf16>
    %52 = vector.shape_cast %51 : vector<1x16x128xbf16> to vector<16x128xbf16>
    %53 = arith.extf %52 : vector<16x128xbf16> to vector<16x128xf32>
    %cst_32 = arith.constant 0.000000e+00 : f32
    %54 = vector.broadcast %cst_32 : f32 to vector<16x128xf32>
    %55 = arith.maximumf %53, %54 : vector<16x128xf32>
    %c5_33 = arith.constant 5 : index
    %c0_34 = arith.constant 0 : index
    %c0_35 = arith.constant 0 : index
    %56 = vector.load %arg2[%c5_33, %c0_34, %c0_35] : memref<9x1x128xf32, #tpu.memory_space<vmem>>, vector<1x1x128xf32>
    %57 = vector.shape_cast %56 : vector<1x1x128xf32> to vector<1x128xf32>
    %58 = vector.broadcast %57 : vector<1x128xf32> to vector<16x128xf32>
    %59 = arith.mulf %55, %58 : vector<16x128xf32>
    %60 = arith.addf %50, %59 : vector<16x128xf32>
    %c6 = arith.constant 6 : index
    %c0_36 = arith.constant 0 : index
    %c0_37 = arith.constant 0 : index
    %61 = vector.load %arg1[%c6, %c0_36, %c0_37] : memref<9x16x128xbf16, #tpu.memory_space<vmem>>, vector<1x16x128xbf16>
    %62 = vector.shape_cast %61 : vector<1x16x128xbf16> to vector<16x128xbf16>
    %63 = arith.extf %62 : vector<16x128xbf16> to vector<16x128xf32>
    %cst_38 = arith.constant 0.000000e+00 : f32
    %64 = vector.broadcast %cst_38 : f32 to vector<16x128xf32>
    %65 = arith.maximumf %63, %64 : vector<16x128xf32>
    %c6_39 = arith.constant 6 : index
    %c0_40 = arith.constant 0 : index
    %c0_41 = arith.constant 0 : index
    %66 = vector.load %arg2[%c6_39, %c0_40, %c0_41] : memref<9x1x128xf32, #tpu.memory_space<vmem>>, vector<1x1x128xf32>
    %67 = vector.shape_cast %66 : vector<1x1x128xf32> to vector<1x128xf32>
    %68 = vector.broadcast %67 : vector<1x128xf32> to vector<16x128xf32>
    %69 = arith.mulf %65, %68 : vector<16x128xf32>
    %70 = arith.addf %60, %69 : vector<16x128xf32>
    %c7 = arith.constant 7 : index
    %c0_42 = arith.constant 0 : index
    %c0_43 = arith.constant 0 : index
    %71 = vector.load %arg1[%c7, %c0_42, %c0_43] : memref<9x16x128xbf16, #tpu.memory_space<vmem>>, vector<1x16x128xbf16>
    %72 = vector.shape_cast %71 : vector<1x16x128xbf16> to vector<16x128xbf16>
    %73 = arith.extf %72 : vector<16x128xbf16> to vector<16x128xf32>
    %cst_44 = arith.constant 0.000000e+00 : f32
    %74 = vector.broadcast %cst_44 : f32 to vector<16x128xf32>
    %75 = arith.maximumf %73, %74 : vector<16x128xf32>
    %c7_45 = arith.constant 7 : index
    %c0_46 = arith.constant 0 : index
    %c0_47 = arith.constant 0 : index
    %76 = vector.load %arg2[%c7_45, %c0_46, %c0_47] : memref<9x1x128xf32, #tpu.memory_space<vmem>>, vector<1x1x128xf32>
    %77 = vector.shape_cast %76 : vector<1x1x128xf32> to vector<1x128xf32>
    %78 = vector.broadcast %77 : vector<1x128xf32> to vector<16x128xf32>
    %79 = arith.mulf %75, %78 : vector<16x128xf32>
    %80 = arith.addf %70, %79 : vector<16x128xf32>
    %c8 = arith.constant 8 : index
    %c0_48 = arith.constant 0 : index
    %c0_49 = arith.constant 0 : index
    %81 = vector.load %arg1[%c8, %c0_48, %c0_49] : memref<9x16x128xbf16, #tpu.memory_space<vmem>>, vector<1x16x128xbf16>
    %82 = vector.shape_cast %81 : vector<1x16x128xbf16> to vector<16x128xbf16>
    %83 = arith.extf %82 : vector<16x128xbf16> to vector<16x128xf32>
    %cst_50 = arith.constant 0.000000e+00 : f32
    %84 = vector.broadcast %cst_50 : f32 to vector<16x128xf32>
    %85 = arith.maximumf %83, %84 : vector<16x128xf32>
    %c8_51 = arith.constant 8 : index
    %c0_52 = arith.constant 0 : index
    %c0_53 = arith.constant 0 : index
    %86 = vector.load %arg2[%c8_51, %c0_52, %c0_53] : memref<9x1x128xf32, #tpu.memory_space<vmem>>, vector<1x1x128xf32>
    %87 = vector.shape_cast %86 : vector<1x1x128xf32> to vector<1x128xf32>
    %88 = vector.broadcast %87 : vector<1x128xf32> to vector<16x128xf32>
    %89 = arith.mulf %85, %88 : vector<16x128xf32>
    %90 = arith.addf %80, %89 : vector<16x128xf32>
    %c0_54 = arith.constant 0 : index
    %c0_55 = arith.constant 0 : index
    %91 = vector.load %arg3[%c0_54, %c0_55] : memref<16x128xf32, #tpu.memory_space<vmem>>, vector<16x128xf32>
    tpu.vector_store %arg3[%c0_54, %c0_55], %90 {strides = array<i32>} : memref<16x128xf32, #tpu.memory_space<vmem>>, vector<16x128xf32>,
    return
  }
  func.func @transform_0(%arg0: i32) -> (i32, i32, i32) {
    %c0_i32 = arith.constant 0 : i32
    %c0_i32_0 = arith.constant 0 : i32
    %c0_i32_1 = arith.constant 0 : i32
    return %c0_i32, %arg0, %c0_i32_0 : i32, i32, i32
  }
  func.func @transform_1(%arg0: i32) -> (i32, i32, i32) {
    %c0_i32 = arith.constant 0 : i32
    %c0_i32_0 = arith.constant 0 : i32
    %c0_i32_1 = arith.constant 0 : i32
    %c0_i32_2 = arith.constant 0 : i32
    return %c0_i32, %c0_i32_0, %c0_i32_1 : i32, i32, i32
  }
  func.func @transform_2(%arg0: i32) -> (i32, i32) {
    %c0_i32 = arith.constant 0 : i32
    %c0_i32_0 = arith.constant 0 : i32
    return %arg0, %c0_i32 : i32, i32
  }
}

module attributes {stable_mosaic.version = 11 : i64} {
  func.func @_matmul_kernel_single(%arg0: i32, %arg1: i32, %arg2: i32, %arg3: memref<128x16xbf16, #tpu.memory_space<vmem>>, %arg4: memref<16x16xbf16, #tpu.memory_space<vmem>>, %arg5: memref<128x16xf32, #tpu.memory_space<vmem>>) attributes {dimension_semantics = [#tpu.dimension_semantics<parallel>, #tpu.dimension_semantics<parallel>, #tpu.dimension_semantics<arbitrary>], iteration_bounds = array<i64: 1, 1, 1>, scalar_prefetch = 0 : i64, scratch_operands = 0 : i64, tpu.core_type = #tpu.core_type<tc>, window_params = [{transform_indices = @transform_0, window_bounds = array<i64: 128, 16>}, {transform_indices = @transform_1, window_bounds = array<i64: 16, 16>}, {transform_indices = @transform_2, window_bounds = array<i64: 128, 16>}]} {
    %c0 = arith.constant 0 : index
    %c0_0 = arith.constant 0 : index
    %0 = vector.load %arg3[%c0, %c0_0] : memref<128x16xbf16, #tpu.memory_space<vmem>>, vector<128x16xbf16>
    %c0_1 = arith.constant 0 : index
    %c0_2 = arith.constant 0 : index
    %1 = vector.load %arg4[%c0_1, %c0_2] : memref<16x16xbf16, #tpu.memory_space<vmem>>, vector<16x16xbf16>
    %cst = arith.constant dense<0.000000e+00> : vector<128x16xf32>
    %2 = tpu.matmul %0, %1, %cst {dimension_numbers = #tpu.dot_dimension_numbers<[1], [0], [0], [1], [0, 0, 1, 1], [], []>} : vector<128x16xbf16>, vector<16x16xbf16>, vector<128x16xf32> -> vector<128x16xf32>
    %c0_3 = arith.constant 0 : index
    %c0_4 = arith.constant 0 : index
    %3 = vector.load %arg5[%c0_3, %c0_4] : memref<128x16xf32, #tpu.memory_space<vmem>>, vector<128x16xf32>
    tpu.vector_store %arg5[%c0_3, %c0_4], %2 {strides = array<i32>} : memref<128x16xf32, #tpu.memory_space<vmem>>, vector<128x16xf32>,
    return
  }
  func.func @transform_0(%arg0: i32, %arg1: i32, %arg2: i32) -> (i32, i32) {
    %c0_i32 = arith.constant 0 : i32
    return %arg0, %arg2 : i32, i32
  }
  func.func @transform_1(%arg0: i32, %arg1: i32, %arg2: i32) -> (i32, i32) {
    %c0_i32 = arith.constant 0 : i32
    return %arg2, %arg1 : i32, i32
  }
  func.func @transform_2(%arg0: i32, %arg1: i32, %arg2: i32) -> (i32, i32) {
    %c0_i32 = arith.constant 0 : i32
    return %arg0, %arg1 : i32, i32
  }
}

module attributes {stable_mosaic.version = 11 : i64} {
  func.func @_dw_kernel(%arg0: i32, %arg1: memref<25x16x128xbf16, #tpu.memory_space<vmem>>, %arg2: memref<25x1x128xf32, #tpu.memory_space<vmem>>, %arg3: memref<16x128xf32, #tpu.memory_space<vmem>>) attributes {dimension_semantics = [#tpu.dimension_semantics<parallel>], iteration_bounds = array<i64: 1>, scalar_prefetch = 0 : i64, scratch_operands = 0 : i64, tpu.core_type = #tpu.core_type<tc>, window_params = [{transform_indices = @transform_0, window_bounds = array<i64: 25, 16, 128>}, {pipeline_mode = #tpu.pipeline_mode<synchronous>, transform_indices = @transform_1, window_bounds = array<i64: 25, 1, 128>}, {transform_indices = @transform_2, window_bounds = array<i64: 16, 128>}]} {
    %cst = arith.constant 0.000000e+00 : f32
    %0 = vector.broadcast %cst : f32 to vector<16x128xf32>
    %c0 = arith.constant 0 : index
    %c0_0 = arith.constant 0 : index
    %c0_1 = arith.constant 0 : index
    %1 = vector.load %arg1[%c0, %c0_0, %c0_1] : memref<25x16x128xbf16, #tpu.memory_space<vmem>>, vector<1x16x128xbf16>
    %2 = vector.shape_cast %1 : vector<1x16x128xbf16> to vector<16x128xbf16>
    %3 = arith.extf %2 : vector<16x128xbf16> to vector<16x128xf32>
    %cst_2 = arith.constant 0.000000e+00 : f32
    %4 = vector.broadcast %cst_2 : f32 to vector<16x128xf32>
    %5 = arith.maximumf %3, %4 : vector<16x128xf32>
    %c0_3 = arith.constant 0 : index
    %c0_4 = arith.constant 0 : index
    %c0_5 = arith.constant 0 : index
    %6 = vector.load %arg2[%c0_3, %c0_4, %c0_5] : memref<25x1x128xf32, #tpu.memory_space<vmem>>, vector<1x1x128xf32>
    %7 = vector.shape_cast %6 : vector<1x1x128xf32> to vector<1x128xf32>
    %8 = vector.broadcast %7 : vector<1x128xf32> to vector<16x128xf32>
    %9 = arith.mulf %5, %8 : vector<16x128xf32>
    %10 = arith.addf %0, %9 : vector<16x128xf32>
    %c1 = arith.constant 1 : index
    %c0_6 = arith.constant 0 : index
    %c0_7 = arith.constant 0 : index
    %11 = vector.load %arg1[%c1, %c0_6, %c0_7] : memref<25x16x128xbf16, #tpu.memory_space<vmem>>, vector<1x16x128xbf16>
    %12 = vector.shape_cast %11 : vector<1x16x128xbf16> to vector<16x128xbf16>
    %13 = arith.extf %12 : vector<16x128xbf16> to vector<16x128xf32>
    %cst_8 = arith.constant 0.000000e+00 : f32
    %14 = vector.broadcast %cst_8 : f32 to vector<16x128xf32>
    %15 = arith.maximumf %13, %14 : vector<16x128xf32>
    %c1_9 = arith.constant 1 : index
    %c0_10 = arith.constant 0 : index
    %c0_11 = arith.constant 0 : index
    %16 = vector.load %arg2[%c1_9, %c0_10, %c0_11] : memref<25x1x128xf32, #tpu.memory_space<vmem>>, vector<1x1x128xf32>
    %17 = vector.shape_cast %16 : vector<1x1x128xf32> to vector<1x128xf32>
    %18 = vector.broadcast %17 : vector<1x128xf32> to vector<16x128xf32>
    %19 = arith.mulf %15, %18 : vector<16x128xf32>
    %20 = arith.addf %10, %19 : vector<16x128xf32>
    %c2 = arith.constant 2 : index
    %c0_12 = arith.constant 0 : index
    %c0_13 = arith.constant 0 : index
    %21 = vector.load %arg1[%c2, %c0_12, %c0_13] : memref<25x16x128xbf16, #tpu.memory_space<vmem>>, vector<1x16x128xbf16>
    %22 = vector.shape_cast %21 : vector<1x16x128xbf16> to vector<16x128xbf16>
    %23 = arith.extf %22 : vector<16x128xbf16> to vector<16x128xf32>
    %cst_14 = arith.constant 0.000000e+00 : f32
    %24 = vector.broadcast %cst_14 : f32 to vector<16x128xf32>
    %25 = arith.maximumf %23, %24 : vector<16x128xf32>
    %c2_15 = arith.constant 2 : index
    %c0_16 = arith.constant 0 : index
    %c0_17 = arith.constant 0 : index
    %26 = vector.load %arg2[%c2_15, %c0_16, %c0_17] : memref<25x1x128xf32, #tpu.memory_space<vmem>>, vector<1x1x128xf32>
    %27 = vector.shape_cast %26 : vector<1x1x128xf32> to vector<1x128xf32>
    %28 = vector.broadcast %27 : vector<1x128xf32> to vector<16x128xf32>
    %29 = arith.mulf %25, %28 : vector<16x128xf32>
    %30 = arith.addf %20, %29 : vector<16x128xf32>
    %c3 = arith.constant 3 : index
    %c0_18 = arith.constant 0 : index
    %c0_19 = arith.constant 0 : index
    %31 = vector.load %arg1[%c3, %c0_18, %c0_19] : memref<25x16x128xbf16, #tpu.memory_space<vmem>>, vector<1x16x128xbf16>
    %32 = vector.shape_cast %31 : vector<1x16x128xbf16> to vector<16x128xbf16>
    %33 = arith.extf %32 : vector<16x128xbf16> to vector<16x128xf32>
    %cst_20 = arith.constant 0.000000e+00 : f32
    %34 = vector.broadcast %cst_20 : f32 to vector<16x128xf32>
    %35 = arith.maximumf %33, %34 : vector<16x128xf32>
    %c3_21 = arith.constant 3 : index
    %c0_22 = arith.constant 0 : index
    %c0_23 = arith.constant 0 : index
    %36 = vector.load %arg2[%c3_21, %c0_22, %c0_23] : memref<25x1x128xf32, #tpu.memory_space<vmem>>, vector<1x1x128xf32>
    %37 = vector.shape_cast %36 : vector<1x1x128xf32> to vector<1x128xf32>
    %38 = vector.broadcast %37 : vector<1x128xf32> to vector<16x128xf32>
    %39 = arith.mulf %35, %38 : vector<16x128xf32>
    %40 = arith.addf %30, %39 : vector<16x128xf32>
    %c4 = arith.constant 4 : index
    %c0_24 = arith.constant 0 : index
    %c0_25 = arith.constant 0 : index
    %41 = vector.load %arg1[%c4, %c0_24, %c0_25] : memref<25x16x128xbf16, #tpu.memory_space<vmem>>, vector<1x16x128xbf16>
    %42 = vector.shape_cast %41 : vector<1x16x128xbf16> to vector<16x128xbf16>
    %43 = arith.extf %42 : vector<16x128xbf16> to vector<16x128xf32>
    %cst_26 = arith.constant 0.000000e+00 : f32
    %44 = vector.broadcast %cst_26 : f32 to vector<16x128xf32>
    %45 = arith.maximumf %43, %44 : vector<16x128xf32>
    %c4_27 = arith.constant 4 : index
    %c0_28 = arith.constant 0 : index
    %c0_29 = arith.constant 0 : index
    %46 = vector.load %arg2[%c4_27, %c0_28, %c0_29] : memref<25x1x128xf32, #tpu.memory_space<vmem>>, vector<1x1x128xf32>
    %47 = vector.shape_cast %46 : vector<1x1x128xf32> to vector<1x128xf32>
    %48 = vector.broadcast %47 : vector<1x128xf32> to vector<16x128xf32>
    %49 = arith.mulf %45, %48 : vector<16x128xf32>
    %50 = arith.addf %40, %49 : vector<16x128xf32>
    %c5 = arith.constant 5 : index
    %c0_30 = arith.constant 0 : index
    %c0_31 = arith.constant 0 : index
    %51 = vector.load %arg1[%c5, %c0_30, %c0_31] : memref<25x16x128xbf16, #tpu.memory_space<vmem>>, vector<1x16x128xbf16>
    %52 = vector.shape_cast %51 : vector<1x16x128xbf16> to vector<16x128xbf16>
    %53 = arith.extf %52 : vector<16x128xbf16> to vector<16x128xf32>
    %cst_32 = arith.constant 0.000000e+00 : f32
    %54 = vector.broadcast %cst_32 : f32 to vector<16x128xf32>
    %55 = arith.maximumf %53, %54 : vector<16x128xf32>
    %c5_33 = arith.constant 5 : index
    %c0_34 = arith.constant 0 : index
    %c0_35 = arith.constant 0 : index
    %56 = vector.load %arg2[%c5_33, %c0_34, %c0_35] : memref<25x1x128xf32, #tpu.memory_space<vmem>>, vector<1x1x128xf32>
    %57 = vector.shape_cast %56 : vector<1x1x128xf32> to vector<1x128xf32>
    %58 = vector.broadcast %57 : vector<1x128xf32> to vector<16x128xf32>
    %59 = arith.mulf %55, %58 : vector<16x128xf32>
    %60 = arith.addf %50, %59 : vector<16x128xf32>
    %c6 = arith.constant 6 : index
    %c0_36 = arith.constant 0 : index
    %c0_37 = arith.constant 0 : index
    %61 = vector.load %arg1[%c6, %c0_36, %c0_37] : memref<25x16x128xbf16, #tpu.memory_space<vmem>>, vector<1x16x128xbf16>
    %62 = vector.shape_cast %61 : vector<1x16x128xbf16> to vector<16x128xbf16>
    %63 = arith.extf %62 : vector<16x128xbf16> to vector<16x128xf32>
    %cst_38 = arith.constant 0.000000e+00 : f32
    %64 = vector.broadcast %cst_38 : f32 to vector<16x128xf32>
    %65 = arith.maximumf %63, %64 : vector<16x128xf32>
    %c6_39 = arith.constant 6 : index
    %c0_40 = arith.constant 0 : index
    %c0_41 = arith.constant 0 : index
    %66 = vector.load %arg2[%c6_39, %c0_40, %c0_41] : memref<25x1x128xf32, #tpu.memory_space<vmem>>, vector<1x1x128xf32>
    %67 = vector.shape_cast %66 : vector<1x1x128xf32> to vector<1x128xf32>
    %68 = vector.broadcast %67 : vector<1x128xf32> to vector<16x128xf32>
    %69 = arith.mulf %65, %68 : vector<16x128xf32>
    %70 = arith.addf %60, %69 : vector<16x128xf32>
    %c7 = arith.constant 7 : index
    %c0_42 = arith.constant 0 : index
    %c0_43 = arith.constant 0 : index
    %71 = vector.load %arg1[%c7, %c0_42, %c0_43] : memref<25x16x128xbf16, #tpu.memory_space<vmem>>, vector<1x16x128xbf16>
    %72 = vector.shape_cast %71 : vector<1x16x128xbf16> to vector<16x128xbf16>
    %73 = arith.extf %72 : vector<16x128xbf16> to vector<16x128xf32>
    %cst_44 = arith.constant 0.000000e+00 : f32
    %74 = vector.broadcast %cst_44 : f32 to vector<16x128xf32>
    %75 = arith.maximumf %73, %74 : vector<16x128xf32>
    %c7_45 = arith.constant 7 : index
    %c0_46 = arith.constant 0 : index
    %c0_47 = arith.constant 0 : index
    %76 = vector.load %arg2[%c7_45, %c0_46, %c0_47] : memref<25x1x128xf32, #tpu.memory_space<vmem>>, vector<1x1x128xf32>
    %77 = vector.shape_cast %76 : vector<1x1x128xf32> to vector<1x128xf32>
    %78 = vector.broadcast %77 : vector<1x128xf32> to vector<16x128xf32>
    %79 = arith.mulf %75, %78 : vector<16x128xf32>
    %80 = arith.addf %70, %79 : vector<16x128xf32>
    %c8 = arith.constant 8 : index
    %c0_48 = arith.constant 0 : index
    %c0_49 = arith.constant 0 : index
    %81 = vector.load %arg1[%c8, %c0_48, %c0_49] : memref<25x16x128xbf16, #tpu.memory_space<vmem>>, vector<1x16x128xbf16>
    %82 = vector.shape_cast %81 : vector<1x16x128xbf16> to vector<16x128xbf16>
    %83 = arith.extf %82 : vector<16x128xbf16> to vector<16x128xf32>
    %cst_50 = arith.constant 0.000000e+00 : f32
    %84 = vector.broadcast %cst_50 : f32 to vector<16x128xf32>
    %85 = arith.maximumf %83, %84 : vector<16x128xf32>
    %c8_51 = arith.constant 8 : index
    %c0_52 = arith.constant 0 : index
    %c0_53 = arith.constant 0 : index
    %86 = vector.load %arg2[%c8_51, %c0_52, %c0_53] : memref<25x1x128xf32, #tpu.memory_space<vmem>>, vector<1x1x128xf32>
    %87 = vector.shape_cast %86 : vector<1x1x128xf32> to vector<1x128xf32>
    %88 = vector.broadcast %87 : vector<1x128xf32> to vector<16x128xf32>
    %89 = arith.mulf %85, %88 : vector<16x128xf32>
    %90 = arith.addf %80, %89 : vector<16x128xf32>
    %c9 = arith.constant 9 : index
    %c0_54 = arith.constant 0 : index
    %c0_55 = arith.constant 0 : index
    %91 = vector.load %arg1[%c9, %c0_54, %c0_55] : memref<25x16x128xbf16, #tpu.memory_space<vmem>>, vector<1x16x128xbf16>
    %92 = vector.shape_cast %91 : vector<1x16x128xbf16> to vector<16x128xbf16>
    %93 = arith.extf %92 : vector<16x128xbf16> to vector<16x128xf32>
    %cst_56 = arith.constant 0.000000e+00 : f32
    %94 = vector.broadcast %cst_56 : f32 to vector<16x128xf32>
    %95 = arith.maximumf %93, %94 : vector<16x128xf32>
    %c9_57 = arith.constant 9 : index
    %c0_58 = arith.constant 0 : index
    %c0_59 = arith.constant 0 : index
    %96 = vector.load %arg2[%c9_57, %c0_58, %c0_59] : memref<25x1x128xf32, #tpu.memory_space<vmem>>, vector<1x1x128xf32>
    %97 = vector.shape_cast %96 : vector<1x1x128xf32> to vector<1x128xf32>
    %98 = vector.broadcast %97 : vector<1x128xf32> to vector<16x128xf32>
    %99 = arith.mulf %95, %98 : vector<16x128xf32>
    %100 = arith.addf %90, %99 : vector<16x128xf32>
    %c10 = arith.constant 10 : index
    %c0_60 = arith.constant 0 : index
    %c0_61 = arith.constant 0 : index
    %101 = vector.load %arg1[%c10, %c0_60, %c0_61] : memref<25x16x128xbf16, #tpu.memory_space<vmem>>, vector<1x16x128xbf16>
    %102 = vector.shape_cast %101 : vector<1x16x128xbf16> to vector<16x128xbf16>
    %103 = arith.extf %102 : vector<16x128xbf16> to vector<16x128xf32>
    %cst_62 = arith.constant 0.000000e+00 : f32
    %104 = vector.broadcast %cst_62 : f32 to vector<16x128xf32>
    %105 = arith.maximumf %103, %104 : vector<16x128xf32>
    %c10_63 = arith.constant 10 : index
    %c0_64 = arith.constant 0 : index
    %c0_65 = arith.constant 0 : index
    %106 = vector.load %arg2[%c10_63, %c0_64, %c0_65] : memref<25x1x128xf32, #tpu.memory_space<vmem>>, vector<1x1x128xf32>
    %107 = vector.shape_cast %106 : vector<1x1x128xf32> to vector<1x128xf32>
    %108 = vector.broadcast %107 : vector<1x128xf32> to vector<16x128xf32>
    %109 = arith.mulf %105, %108 : vector<16x128xf32>
    %110 = arith.addf %100, %109 : vector<16x128xf32>
    %c11 = arith.constant 11 : index
    %c0_66 = arith.constant 0 : index
    %c0_67 = arith.constant 0 : index
    %111 = vector.load %arg1[%c11, %c0_66, %c0_67] : memref<25x16x128xbf16, #tpu.memory_space<vmem>>, vector<1x16x128xbf16>
    %112 = vector.shape_cast %111 : vector<1x16x128xbf16> to vector<16x128xbf16>
    %113 = arith.extf %112 : vector<16x128xbf16> to vector<16x128xf32>
    %cst_68 = arith.constant 0.000000e+00 : f32
    %114 = vector.broadcast %cst_68 : f32 to vector<16x128xf32>
    %115 = arith.maximumf %113, %114 : vector<16x128xf32>
    %c11_69 = arith.constant 11 : index
    %c0_70 = arith.constant 0 : index
    %c0_71 = arith.constant 0 : index
    %116 = vector.load %arg2[%c11_69, %c0_70, %c0_71] : memref<25x1x128xf32, #tpu.memory_space<vmem>>, vector<1x1x128xf32>
    %117 = vector.shape_cast %116 : vector<1x1x128xf32> to vector<1x128xf32>
    %118 = vector.broadcast %117 : vector<1x128xf32> to vector<16x128xf32>
    %119 = arith.mulf %115, %118 : vector<16x128xf32>
    %120 = arith.addf %110, %119 : vector<16x128xf32>
    %c12 = arith.constant 12 : index
    %c0_72 = arith.constant 0 : index
    %c0_73 = arith.constant 0 : index
    %121 = vector.load %arg1[%c12, %c0_72, %c0_73] : memref<25x16x128xbf16, #tpu.memory_space<vmem>>, vector<1x16x128xbf16>
    %122 = vector.shape_cast %121 : vector<1x16x128xbf16> to vector<16x128xbf16>
    %123 = arith.extf %122 : vector<16x128xbf16> to vector<16x128xf32>
    %cst_74 = arith.constant 0.000000e+00 : f32
    %124 = vector.broadcast %cst_74 : f32 to vector<16x128xf32>
    %125 = arith.maximumf %123, %124 : vector<16x128xf32>
    %c12_75 = arith.constant 12 : index
    %c0_76 = arith.constant 0 : index
    %c0_77 = arith.constant 0 : index
    %126 = vector.load %arg2[%c12_75, %c0_76, %c0_77] : memref<25x1x128xf32, #tpu.memory_space<vmem>>, vector<1x1x128xf32>
    %127 = vector.shape_cast %126 : vector<1x1x128xf32> to vector<1x128xf32>
    %128 = vector.broadcast %127 : vector<1x128xf32> to vector<16x128xf32>
    %129 = arith.mulf %125, %128 : vector<16x128xf32>
    %130 = arith.addf %120, %129 : vector<16x128xf32>
    %c13 = arith.constant 13 : index
    %c0_78 = arith.constant 0 : index
    %c0_79 = arith.constant 0 : index
    %131 = vector.load %arg1[%c13, %c0_78, %c0_79] : memref<25x16x128xbf16, #tpu.memory_space<vmem>>, vector<1x16x128xbf16>
    %132 = vector.shape_cast %131 : vector<1x16x128xbf16> to vector<16x128xbf16>
    %133 = arith.extf %132 : vector<16x128xbf16> to vector<16x128xf32>
    %cst_80 = arith.constant 0.000000e+00 : f32
    %134 = vector.broadcast %cst_80 : f32 to vector<16x128xf32>
    %135 = arith.maximumf %133, %134 : vector<16x128xf32>
    %c13_81 = arith.constant 13 : index
    %c0_82 = arith.constant 0 : index
    %c0_83 = arith.constant 0 : index
    %136 = vector.load %arg2[%c13_81, %c0_82, %c0_83] : memref<25x1x128xf32, #tpu.memory_space<vmem>>, vector<1x1x128xf32>
    %137 = vector.shape_cast %136 : vector<1x1x128xf32> to vector<1x128xf32>
    %138 = vector.broadcast %137 : vector<1x128xf32> to vector<16x128xf32>
    %139 = arith.mulf %135, %138 : vector<16x128xf32>
    %140 = arith.addf %130, %139 : vector<16x128xf32>
    %c14 = arith.constant 14 : index
    %c0_84 = arith.constant 0 : index
    %c0_85 = arith.constant 0 : index
    %141 = vector.load %arg1[%c14, %c0_84, %c0_85] : memref<25x16x128xbf16, #tpu.memory_space<vmem>>, vector<1x16x128xbf16>
    %142 = vector.shape_cast %141 : vector<1x16x128xbf16> to vector<16x128xbf16>
    %143 = arith.extf %142 : vector<16x128xbf16> to vector<16x128xf32>
    %cst_86 = arith.constant 0.000000e+00 : f32
    %144 = vector.broadcast %cst_86 : f32 to vector<16x128xf32>
    %145 = arith.maximumf %143, %144 : vector<16x128xf32>
    %c14_87 = arith.constant 14 : index
    %c0_88 = arith.constant 0 : index
    %c0_89 = arith.constant 0 : index
    %146 = vector.load %arg2[%c14_87, %c0_88, %c0_89] : memref<25x1x128xf32, #tpu.memory_space<vmem>>, vector<1x1x128xf32>
    %147 = vector.shape_cast %146 : vector<1x1x128xf32> to vector<1x128xf32>
    %148 = vector.broadcast %147 : vector<1x128xf32> to vector<16x128xf32>
    %149 = arith.mulf %145, %148 : vector<16x128xf32>
    %150 = arith.addf %140, %149 : vector<16x128xf32>
    %c15 = arith.constant 15 : index
    %c0_90 = arith.constant 0 : index
    %c0_91 = arith.constant 0 : index
    %151 = vector.load %arg1[%c15, %c0_90, %c0_91] : memref<25x16x128xbf16, #tpu.memory_space<vmem>>, vector<1x16x128xbf16>
    %152 = vector.shape_cast %151 : vector<1x16x128xbf16> to vector<16x128xbf16>
    %153 = arith.extf %152 : vector<16x128xbf16> to vector<16x128xf32>
    %cst_92 = arith.constant 0.000000e+00 : f32
    %154 = vector.broadcast %cst_92 : f32 to vector<16x128xf32>
    %155 = arith.maximumf %153, %154 : vector<16x128xf32>
    %c15_93 = arith.constant 15 : index
    %c0_94 = arith.constant 0 : index
    %c0_95 = arith.constant 0 : index
    %156 = vector.load %arg2[%c15_93, %c0_94, %c0_95] : memref<25x1x128xf32, #tpu.memory_space<vmem>>, vector<1x1x128xf32>
    %157 = vector.shape_cast %156 : vector<1x1x128xf32> to vector<1x128xf32>
    %158 = vector.broadcast %157 : vector<1x128xf32> to vector<16x128xf32>
    %159 = arith.mulf %155, %158 : vector<16x128xf32>
    %160 = arith.addf %150, %159 : vector<16x128xf32>
    %c16 = arith.constant 16 : index
    %c0_96 = arith.constant 0 : index
    %c0_97 = arith.constant 0 : index
    %161 = vector.load %arg1[%c16, %c0_96, %c0_97] : memref<25x16x128xbf16, #tpu.memory_space<vmem>>, vector<1x16x128xbf16>
    %162 = vector.shape_cast %161 : vector<1x16x128xbf16> to vector<16x128xbf16>
    %163 = arith.extf %162 : vector<16x128xbf16> to vector<16x128xf32>
    %cst_98 = arith.constant 0.000000e+00 : f32
    %164 = vector.broadcast %cst_98 : f32 to vector<16x128xf32>
    %165 = arith.maximumf %163, %164 : vector<16x128xf32>
    %c16_99 = arith.constant 16 : index
    %c0_100 = arith.constant 0 : index
    %c0_101 = arith.constant 0 : index
    %166 = vector.load %arg2[%c16_99, %c0_100, %c0_101] : memref<25x1x128xf32, #tpu.memory_space<vmem>>, vector<1x1x128xf32>
    %167 = vector.shape_cast %166 : vector<1x1x128xf32> to vector<1x128xf32>
    %168 = vector.broadcast %167 : vector<1x128xf32> to vector<16x128xf32>
    %169 = arith.mulf %165, %168 : vector<16x128xf32>
    %170 = arith.addf %160, %169 : vector<16x128xf32>
    %c17 = arith.constant 17 : index
    %c0_102 = arith.constant 0 : index
    %c0_103 = arith.constant 0 : index
    %171 = vector.load %arg1[%c17, %c0_102, %c0_103] : memref<25x16x128xbf16, #tpu.memory_space<vmem>>, vector<1x16x128xbf16>
    %172 = vector.shape_cast %171 : vector<1x16x128xbf16> to vector<16x128xbf16>
    %173 = arith.extf %172 : vector<16x128xbf16> to vector<16x128xf32>
    %cst_104 = arith.constant 0.000000e+00 : f32
    %174 = vector.broadcast %cst_104 : f32 to vector<16x128xf32>
    %175 = arith.maximumf %173, %174 : vector<16x128xf32>
    %c17_105 = arith.constant 17 : index
    %c0_106 = arith.constant 0 : index
    %c0_107 = arith.constant 0 : index
    %176 = vector.load %arg2[%c17_105, %c0_106, %c0_107] : memref<25x1x128xf32, #tpu.memory_space<vmem>>, vector<1x1x128xf32>
    %177 = vector.shape_cast %176 : vector<1x1x128xf32> to vector<1x128xf32>
    %178 = vector.broadcast %177 : vector<1x128xf32> to vector<16x128xf32>
    %179 = arith.mulf %175, %178 : vector<16x128xf32>
    %180 = arith.addf %170, %179 : vector<16x128xf32>
    %c18 = arith.constant 18 : index
    %c0_108 = arith.constant 0 : index
    %c0_109 = arith.constant 0 : index
    %181 = vector.load %arg1[%c18, %c0_108, %c0_109] : memref<25x16x128xbf16, #tpu.memory_space<vmem>>, vector<1x16x128xbf16>
    %182 = vector.shape_cast %181 : vector<1x16x128xbf16> to vector<16x128xbf16>
    %183 = arith.extf %182 : vector<16x128xbf16> to vector<16x128xf32>
    %cst_110 = arith.constant 0.000000e+00 : f32
    %184 = vector.broadcast %cst_110 : f32 to vector<16x128xf32>
    %185 = arith.maximumf %183, %184 : vector<16x128xf32>
    %c18_111 = arith.constant 18 : index
    %c0_112 = arith.constant 0 : index
    %c0_113 = arith.constant 0 : index
    %186 = vector.load %arg2[%c18_111, %c0_112, %c0_113] : memref<25x1x128xf32, #tpu.memory_space<vmem>>, vector<1x1x128xf32>
    %187 = vector.shape_cast %186 : vector<1x1x128xf32> to vector<1x128xf32>
    %188 = vector.broadcast %187 : vector<1x128xf32> to vector<16x128xf32>
    %189 = arith.mulf %185, %188 : vector<16x128xf32>
    %190 = arith.addf %180, %189 : vector<16x128xf32>
    %c19 = arith.constant 19 : index
    %c0_114 = arith.constant 0 : index
    %c0_115 = arith.constant 0 : index
    %191 = vector.load %arg1[%c19, %c0_114, %c0_115] : memref<25x16x128xbf16, #tpu.memory_space<vmem>>, vector<1x16x128xbf16>
    %192 = vector.shape_cast %191 : vector<1x16x128xbf16> to vector<16x128xbf16>
    %193 = arith.extf %192 : vector<16x128xbf16> to vector<16x128xf32>
    %cst_116 = arith.constant 0.000000e+00 : f32
    %194 = vector.broadcast %cst_116 : f32 to vector<16x128xf32>
    %195 = arith.maximumf %193, %194 : vector<16x128xf32>
    %c19_117 = arith.constant 19 : index
    %c0_118 = arith.constant 0 : index
    %c0_119 = arith.constant 0 : index
    %196 = vector.load %arg2[%c19_117, %c0_118, %c0_119] : memref<25x1x128xf32, #tpu.memory_space<vmem>>, vector<1x1x128xf32>
    %197 = vector.shape_cast %196 : vector<1x1x128xf32> to vector<1x128xf32>
    %198 = vector.broadcast %197 : vector<1x128xf32> to vector<16x128xf32>
    %199 = arith.mulf %195, %198 : vector<16x128xf32>
    %200 = arith.addf %190, %199 : vector<16x128xf32>
    %c20 = arith.constant 20 : index
    %c0_120 = arith.constant 0 : index
    %c0_121 = arith.constant 0 : index
    %201 = vector.load %arg1[%c20, %c0_120, %c0_121] : memref<25x16x128xbf16, #tpu.memory_space<vmem>>, vector<1x16x128xbf16>
    %202 = vector.shape_cast %201 : vector<1x16x128xbf16> to vector<16x128xbf16>
    %203 = arith.extf %202 : vector<16x128xbf16> to vector<16x128xf32>
    %cst_122 = arith.constant 0.000000e+00 : f32
    %204 = vector.broadcast %cst_122 : f32 to vector<16x128xf32>
    %205 = arith.maximumf %203, %204 : vector<16x128xf32>
    %c20_123 = arith.constant 20 : index
    %c0_124 = arith.constant 0 : index
    %c0_125 = arith.constant 0 : index
    %206 = vector.load %arg2[%c20_123, %c0_124, %c0_125] : memref<25x1x128xf32, #tpu.memory_space<vmem>>, vector<1x1x128xf32>
    %207 = vector.shape_cast %206 : vector<1x1x128xf32> to vector<1x128xf32>
    %208 = vector.broadcast %207 : vector<1x128xf32> to vector<16x128xf32>
    %209 = arith.mulf %205, %208 : vector<16x128xf32>
    %210 = arith.addf %200, %209 : vector<16x128xf32>
    %c21 = arith.constant 21 : index
    %c0_126 = arith.constant 0 : index
    %c0_127 = arith.constant 0 : index
    %211 = vector.load %arg1[%c21, %c0_126, %c0_127] : memref<25x16x128xbf16, #tpu.memory_space<vmem>>, vector<1x16x128xbf16>
    %212 = vector.shape_cast %211 : vector<1x16x128xbf16> to vector<16x128xbf16>
    %213 = arith.extf %212 : vector<16x128xbf16> to vector<16x128xf32>
    %cst_128 = arith.constant 0.000000e+00 : f32
    %214 = vector.broadcast %cst_128 : f32 to vector<16x128xf32>
    %215 = arith.maximumf %213, %214 : vector<16x128xf32>
    %c21_129 = arith.constant 21 : index
    %c0_130 = arith.constant 0 : index
    %c0_131 = arith.constant 0 : index
    %216 = vector.load %arg2[%c21_129, %c0_130, %c0_131] : memref<25x1x128xf32, #tpu.memory_space<vmem>>, vector<1x1x128xf32>
    %217 = vector.shape_cast %216 : vector<1x1x128xf32> to vector<1x128xf32>
    %218 = vector.broadcast %217 : vector<1x128xf32> to vector<16x128xf32>
    %219 = arith.mulf %215, %218 : vector<16x128xf32>
    %220 = arith.addf %210, %219 : vector<16x128xf32>
    %c22 = arith.constant 22 : index
    %c0_132 = arith.constant 0 : index
    %c0_133 = arith.constant 0 : index
    %221 = vector.load %arg1[%c22, %c0_132, %c0_133] : memref<25x16x128xbf16, #tpu.memory_space<vmem>>, vector<1x16x128xbf16>
    %222 = vector.shape_cast %221 : vector<1x16x128xbf16> to vector<16x128xbf16>
    %223 = arith.extf %222 : vector<16x128xbf16> to vector<16x128xf32>
    %cst_134 = arith.constant 0.000000e+00 : f32
    %224 = vector.broadcast %cst_134 : f32 to vector<16x128xf32>
    %225 = arith.maximumf %223, %224 : vector<16x128xf32>
    %c22_135 = arith.constant 22 : index
    %c0_136 = arith.constant 0 : index
    %c0_137 = arith.constant 0 : index
    %226 = vector.load %arg2[%c22_135, %c0_136, %c0_137] : memref<25x1x128xf32, #tpu.memory_space<vmem>>, vector<1x1x128xf32>
    %227 = vector.shape_cast %226 : vector<1x1x128xf32> to vector<1x128xf32>
    %228 = vector.broadcast %227 : vector<1x128xf32> to vector<16x128xf32>
    %229 = arith.mulf %225, %228 : vector<16x128xf32>
    %230 = arith.addf %220, %229 : vector<16x128xf32>
    %c23 = arith.constant 23 : index
    %c0_138 = arith.constant 0 : index
    %c0_139 = arith.constant 0 : index
    %231 = vector.load %arg1[%c23, %c0_138, %c0_139] : memref<25x16x128xbf16, #tpu.memory_space<vmem>>, vector<1x16x128xbf16>
    %232 = vector.shape_cast %231 : vector<1x16x128xbf16> to vector<16x128xbf16>
    %233 = arith.extf %232 : vector<16x128xbf16> to vector<16x128xf32>
    %cst_140 = arith.constant 0.000000e+00 : f32
    %234 = vector.broadcast %cst_140 : f32 to vector<16x128xf32>
    %235 = arith.maximumf %233, %234 : vector<16x128xf32>
    %c23_141 = arith.constant 23 : index
    %c0_142 = arith.constant 0 : index
    %c0_143 = arith.constant 0 : index
    %236 = vector.load %arg2[%c23_141, %c0_142, %c0_143] : memref<25x1x128xf32, #tpu.memory_space<vmem>>, vector<1x1x128xf32>
    %237 = vector.shape_cast %236 : vector<1x1x128xf32> to vector<1x128xf32>
    %238 = vector.broadcast %237 : vector<1x128xf32> to vector<16x128xf32>
    %239 = arith.mulf %235, %238 : vector<16x128xf32>
    %240 = arith.addf %230, %239 : vector<16x128xf32>
    %c24 = arith.constant 24 : index
    %c0_144 = arith.constant 0 : index
    %c0_145 = arith.constant 0 : index
    %241 = vector.load %arg1[%c24, %c0_144, %c0_145] : memref<25x16x128xbf16, #tpu.memory_space<vmem>>, vector<1x16x128xbf16>
    %242 = vector.shape_cast %241 : vector<1x16x128xbf16> to vector<16x128xbf16>
    %243 = arith.extf %242 : vector<16x128xbf16> to vector<16x128xf32>
    %cst_146 = arith.constant 0.000000e+00 : f32
    %244 = vector.broadcast %cst_146 : f32 to vector<16x128xf32>
    %245 = arith.maximumf %243, %244 : vector<16x128xf32>
    %c24_147 = arith.constant 24 : index
    %c0_148 = arith.constant 0 : index
    %c0_149 = arith.constant 0 : index
    %246 = vector.load %arg2[%c24_147, %c0_148, %c0_149] : memref<25x1x128xf32, #tpu.memory_space<vmem>>, vector<1x1x128xf32>
    %247 = vector.shape_cast %246 : vector<1x1x128xf32> to vector<1x128xf32>
    %248 = vector.broadcast %247 : vector<1x128xf32> to vector<16x128xf32>
    %249 = arith.mulf %245, %248 : vector<16x128xf32>
    %250 = arith.addf %240, %249 : vector<16x128xf32>
    %c0_150 = arith.constant 0 : index
    %c0_151 = arith.constant 0 : index
    %251 = vector.load %arg3[%c0_150, %c0_151] : memref<16x128xf32, #tpu.memory_space<vmem>>, vector<16x128xf32>
    tpu.vector_store %arg3[%c0_150, %c0_151], %250 {strides = array<i32>} : memref<16x128xf32, #tpu.memory_space<vmem>>, vector<16x128xf32>,
    return
  }
  func.func @transform_0(%arg0: i32) -> (i32, i32, i32) {
    %c0_i32 = arith.constant 0 : i32
    %c0_i32_0 = arith.constant 0 : i32
    %c0_i32_1 = arith.constant 0 : i32
    return %c0_i32, %arg0, %c0_i32_0 : i32, i32, i32
  }
  func.func @transform_1(%arg0: i32) -> (i32, i32, i32) {
    %c0_i32 = arith.constant 0 : i32
    %c0_i32_0 = arith.constant 0 : i32
    %c0_i32_1 = arith.constant 0 : i32
    %c0_i32_2 = arith.constant 0 : i32
    return %c0_i32, %c0_i32_0, %c0_i32_1 : i32, i32, i32
  }
  func.func @transform_2(%arg0: i32) -> (i32, i32) {
    %c0_i32 = arith.constant 0 : i32
    %c0_i32_0 = arith.constant 0 : i32
    return %arg0, %c0_i32 : i32, i32
  }
}

module attributes {stable_mosaic.version = 11 : i64} {
  func.func @_dw_kernel(%arg0: i32, %arg1: memref<25x32x128xbf16, #tpu.memory_space<vmem>>, %arg2: memref<25x1x128xf32, #tpu.memory_space<vmem>>, %arg3: memref<32x128xf32, #tpu.memory_space<vmem>>) attributes {dimension_semantics = [#tpu.dimension_semantics<parallel>], iteration_bounds = array<i64: 1>, scalar_prefetch = 0 : i64, scratch_operands = 0 : i64, tpu.core_type = #tpu.core_type<tc>, window_params = [{transform_indices = @transform_0, window_bounds = array<i64: 25, 32, 128>}, {pipeline_mode = #tpu.pipeline_mode<synchronous>, transform_indices = @transform_1, window_bounds = array<i64: 25, 1, 128>}, {transform_indices = @transform_2, window_bounds = array<i64: 32, 128>}]} {
    %cst = arith.constant 0.000000e+00 : f32
    %0 = vector.broadcast %cst : f32 to vector<32x128xf32>
    %c0 = arith.constant 0 : index
    %c0_0 = arith.constant 0 : index
    %c0_1 = arith.constant 0 : index
    %1 = vector.load %arg1[%c0, %c0_0, %c0_1] : memref<25x32x128xbf16, #tpu.memory_space<vmem>>, vector<1x32x128xbf16>
    %2 = vector.shape_cast %1 : vector<1x32x128xbf16> to vector<32x128xbf16>
    %3 = arith.extf %2 : vector<32x128xbf16> to vector<32x128xf32>
    %cst_2 = arith.constant 0.000000e+00 : f32
    %4 = vector.broadcast %cst_2 : f32 to vector<32x128xf32>
    %5 = arith.maximumf %3, %4 : vector<32x128xf32>
    %c0_3 = arith.constant 0 : index
    %c0_4 = arith.constant 0 : index
    %c0_5 = arith.constant 0 : index
    %6 = vector.load %arg2[%c0_3, %c0_4, %c0_5] : memref<25x1x128xf32, #tpu.memory_space<vmem>>, vector<1x1x128xf32>
    %7 = vector.shape_cast %6 : vector<1x1x128xf32> to vector<1x128xf32>
    %8 = vector.broadcast %7 : vector<1x128xf32> to vector<32x128xf32>
    %9 = arith.mulf %5, %8 : vector<32x128xf32>
    %10 = arith.addf %0, %9 : vector<32x128xf32>
    %c1 = arith.constant 1 : index
    %c0_6 = arith.constant 0 : index
    %c0_7 = arith.constant 0 : index
    %11 = vector.load %arg1[%c1, %c0_6, %c0_7] : memref<25x32x128xbf16, #tpu.memory_space<vmem>>, vector<1x32x128xbf16>
    %12 = vector.shape_cast %11 : vector<1x32x128xbf16> to vector<32x128xbf16>
    %13 = arith.extf %12 : vector<32x128xbf16> to vector<32x128xf32>
    %cst_8 = arith.constant 0.000000e+00 : f32
    %14 = vector.broadcast %cst_8 : f32 to vector<32x128xf32>
    %15 = arith.maximumf %13, %14 : vector<32x128xf32>
    %c1_9 = arith.constant 1 : index
    %c0_10 = arith.constant 0 : index
    %c0_11 = arith.constant 0 : index
    %16 = vector.load %arg2[%c1_9, %c0_10, %c0_11] : memref<25x1x128xf32, #tpu.memory_space<vmem>>, vector<1x1x128xf32>
    %17 = vector.shape_cast %16 : vector<1x1x128xf32> to vector<1x128xf32>
    %18 = vector.broadcast %17 : vector<1x128xf32> to vector<32x128xf32>
    %19 = arith.mulf %15, %18 : vector<32x128xf32>
    %20 = arith.addf %10, %19 : vector<32x128xf32>
    %c2 = arith.constant 2 : index
    %c0_12 = arith.constant 0 : index
    %c0_13 = arith.constant 0 : index
    %21 = vector.load %arg1[%c2, %c0_12, %c0_13] : memref<25x32x128xbf16, #tpu.memory_space<vmem>>, vector<1x32x128xbf16>
    %22 = vector.shape_cast %21 : vector<1x32x128xbf16> to vector<32x128xbf16>
    %23 = arith.extf %22 : vector<32x128xbf16> to vector<32x128xf32>
    %cst_14 = arith.constant 0.000000e+00 : f32
    %24 = vector.broadcast %cst_14 : f32 to vector<32x128xf32>
    %25 = arith.maximumf %23, %24 : vector<32x128xf32>
    %c2_15 = arith.constant 2 : index
    %c0_16 = arith.constant 0 : index
    %c0_17 = arith.constant 0 : index
    %26 = vector.load %arg2[%c2_15, %c0_16, %c0_17] : memref<25x1x128xf32, #tpu.memory_space<vmem>>, vector<1x1x128xf32>
    %27 = vector.shape_cast %26 : vector<1x1x128xf32> to vector<1x128xf32>
    %28 = vector.broadcast %27 : vector<1x128xf32> to vector<32x128xf32>
    %29 = arith.mulf %25, %28 : vector<32x128xf32>
    %30 = arith.addf %20, %29 : vector<32x128xf32>
    %c3 = arith.constant 3 : index
    %c0_18 = arith.constant 0 : index
    %c0_19 = arith.constant 0 : index
    %31 = vector.load %arg1[%c3, %c0_18, %c0_19] : memref<25x32x128xbf16, #tpu.memory_space<vmem>>, vector<1x32x128xbf16>
    %32 = vector.shape_cast %31 : vector<1x32x128xbf16> to vector<32x128xbf16>
    %33 = arith.extf %32 : vector<32x128xbf16> to vector<32x128xf32>
    %cst_20 = arith.constant 0.000000e+00 : f32
    %34 = vector.broadcast %cst_20 : f32 to vector<32x128xf32>
    %35 = arith.maximumf %33, %34 : vector<32x128xf32>
    %c3_21 = arith.constant 3 : index
    %c0_22 = arith.constant 0 : index
    %c0_23 = arith.constant 0 : index
    %36 = vector.load %arg2[%c3_21, %c0_22, %c0_23] : memref<25x1x128xf32, #tpu.memory_space<vmem>>, vector<1x1x128xf32>
    %37 = vector.shape_cast %36 : vector<1x1x128xf32> to vector<1x128xf32>
    %38 = vector.broadcast %37 : vector<1x128xf32> to vector<32x128xf32>
    %39 = arith.mulf %35, %38 : vector<32x128xf32>
    %40 = arith.addf %30, %39 : vector<32x128xf32>
    %c4 = arith.constant 4 : index
    %c0_24 = arith.constant 0 : index
    %c0_25 = arith.constant 0 : index
    %41 = vector.load %arg1[%c4, %c0_24, %c0_25] : memref<25x32x128xbf16, #tpu.memory_space<vmem>>, vector<1x32x128xbf16>
    %42 = vector.shape_cast %41 : vector<1x32x128xbf16> to vector<32x128xbf16>
    %43 = arith.extf %42 : vector<32x128xbf16> to vector<32x128xf32>
    %cst_26 = arith.constant 0.000000e+00 : f32
    %44 = vector.broadcast %cst_26 : f32 to vector<32x128xf32>
    %45 = arith.maximumf %43, %44 : vector<32x128xf32>
    %c4_27 = arith.constant 4 : index
    %c0_28 = arith.constant 0 : index
    %c0_29 = arith.constant 0 : index
    %46 = vector.load %arg2[%c4_27, %c0_28, %c0_29] : memref<25x1x128xf32, #tpu.memory_space<vmem>>, vector<1x1x128xf32>
    %47 = vector.shape_cast %46 : vector<1x1x128xf32> to vector<1x128xf32>
    %48 = vector.broadcast %47 : vector<1x128xf32> to vector<32x128xf32>
    %49 = arith.mulf %45, %48 : vector<32x128xf32>
    %50 = arith.addf %40, %49 : vector<32x128xf32>
    %c5 = arith.constant 5 : index
    %c0_30 = arith.constant 0 : index
    %c0_31 = arith.constant 0 : index
    %51 = vector.load %arg1[%c5, %c0_30, %c0_31] : memref<25x32x128xbf16, #tpu.memory_space<vmem>>, vector<1x32x128xbf16>
    %52 = vector.shape_cast %51 : vector<1x32x128xbf16> to vector<32x128xbf16>
    %53 = arith.extf %52 : vector<32x128xbf16> to vector<32x128xf32>
    %cst_32 = arith.constant 0.000000e+00 : f32
    %54 = vector.broadcast %cst_32 : f32 to vector<32x128xf32>
    %55 = arith.maximumf %53, %54 : vector<32x128xf32>
    %c5_33 = arith.constant 5 : index
    %c0_34 = arith.constant 0 : index
    %c0_35 = arith.constant 0 : index
    %56 = vector.load %arg2[%c5_33, %c0_34, %c0_35] : memref<25x1x128xf32, #tpu.memory_space<vmem>>, vector<1x1x128xf32>
    %57 = vector.shape_cast %56 : vector<1x1x128xf32> to vector<1x128xf32>
    %58 = vector.broadcast %57 : vector<1x128xf32> to vector<32x128xf32>
    %59 = arith.mulf %55, %58 : vector<32x128xf32>
    %60 = arith.addf %50, %59 : vector<32x128xf32>
    %c6 = arith.constant 6 : index
    %c0_36 = arith.constant 0 : index
    %c0_37 = arith.constant 0 : index
    %61 = vector.load %arg1[%c6, %c0_36, %c0_37] : memref<25x32x128xbf16, #tpu.memory_space<vmem>>, vector<1x32x128xbf16>
    %62 = vector.shape_cast %61 : vector<1x32x128xbf16> to vector<32x128xbf16>
    %63 = arith.extf %62 : vector<32x128xbf16> to vector<32x128xf32>
    %cst_38 = arith.constant 0.000000e+00 : f32
    %64 = vector.broadcast %cst_38 : f32 to vector<32x128xf32>
    %65 = arith.maximumf %63, %64 : vector<32x128xf32>
    %c6_39 = arith.constant 6 : index
    %c0_40 = arith.constant 0 : index
    %c0_41 = arith.constant 0 : index
    %66 = vector.load %arg2[%c6_39, %c0_40, %c0_41] : memref<25x1x128xf32, #tpu.memory_space<vmem>>, vector<1x1x128xf32>
    %67 = vector.shape_cast %66 : vector<1x1x128xf32> to vector<1x128xf32>
    %68 = vector.broadcast %67 : vector<1x128xf32> to vector<32x128xf32>
    %69 = arith.mulf %65, %68 : vector<32x128xf32>
    %70 = arith.addf %60, %69 : vector<32x128xf32>
    %c7 = arith.constant 7 : index
    %c0_42 = arith.constant 0 : index
    %c0_43 = arith.constant 0 : index
    %71 = vector.load %arg1[%c7, %c0_42, %c0_43] : memref<25x32x128xbf16, #tpu.memory_space<vmem>>, vector<1x32x128xbf16>
    %72 = vector.shape_cast %71 : vector<1x32x128xbf16> to vector<32x128xbf16>
    %73 = arith.extf %72 : vector<32x128xbf16> to vector<32x128xf32>
    %cst_44 = arith.constant 0.000000e+00 : f32
    %74 = vector.broadcast %cst_44 : f32 to vector<32x128xf32>
    %75 = arith.maximumf %73, %74 : vector<32x128xf32>
    %c7_45 = arith.constant 7 : index
    %c0_46 = arith.constant 0 : index
    %c0_47 = arith.constant 0 : index
    %76 = vector.load %arg2[%c7_45, %c0_46, %c0_47] : memref<25x1x128xf32, #tpu.memory_space<vmem>>, vector<1x1x128xf32>
    %77 = vector.shape_cast %76 : vector<1x1x128xf32> to vector<1x128xf32>
    %78 = vector.broadcast %77 : vector<1x128xf32> to vector<32x128xf32>
    %79 = arith.mulf %75, %78 : vector<32x128xf32>
    %80 = arith.addf %70, %79 : vector<32x128xf32>
    %c8 = arith.constant 8 : index
    %c0_48 = arith.constant 0 : index
    %c0_49 = arith.constant 0 : index
    %81 = vector.load %arg1[%c8, %c0_48, %c0_49] : memref<25x32x128xbf16, #tpu.memory_space<vmem>>, vector<1x32x128xbf16>
    %82 = vector.shape_cast %81 : vector<1x32x128xbf16> to vector<32x128xbf16>
    %83 = arith.extf %82 : vector<32x128xbf16> to vector<32x128xf32>
    %cst_50 = arith.constant 0.000000e+00 : f32
    %84 = vector.broadcast %cst_50 : f32 to vector<32x128xf32>
    %85 = arith.maximumf %83, %84 : vector<32x128xf32>
    %c8_51 = arith.constant 8 : index
    %c0_52 = arith.constant 0 : index
    %c0_53 = arith.constant 0 : index
    %86 = vector.load %arg2[%c8_51, %c0_52, %c0_53] : memref<25x1x128xf32, #tpu.memory_space<vmem>>, vector<1x1x128xf32>
    %87 = vector.shape_cast %86 : vector<1x1x128xf32> to vector<1x128xf32>
    %88 = vector.broadcast %87 : vector<1x128xf32> to vector<32x128xf32>
    %89 = arith.mulf %85, %88 : vector<32x128xf32>
    %90 = arith.addf %80, %89 : vector<32x128xf32>
    %c9 = arith.constant 9 : index
    %c0_54 = arith.constant 0 : index
    %c0_55 = arith.constant 0 : index
    %91 = vector.load %arg1[%c9, %c0_54, %c0_55] : memref<25x32x128xbf16, #tpu.memory_space<vmem>>, vector<1x32x128xbf16>
    %92 = vector.shape_cast %91 : vector<1x32x128xbf16> to vector<32x128xbf16>
    %93 = arith.extf %92 : vector<32x128xbf16> to vector<32x128xf32>
    %cst_56 = arith.constant 0.000000e+00 : f32
    %94 = vector.broadcast %cst_56 : f32 to vector<32x128xf32>
    %95 = arith.maximumf %93, %94 : vector<32x128xf32>
    %c9_57 = arith.constant 9 : index
    %c0_58 = arith.constant 0 : index
    %c0_59 = arith.constant 0 : index
    %96 = vector.load %arg2[%c9_57, %c0_58, %c0_59] : memref<25x1x128xf32, #tpu.memory_space<vmem>>, vector<1x1x128xf32>
    %97 = vector.shape_cast %96 : vector<1x1x128xf32> to vector<1x128xf32>
    %98 = vector.broadcast %97 : vector<1x128xf32> to vector<32x128xf32>
    %99 = arith.mulf %95, %98 : vector<32x128xf32>
    %100 = arith.addf %90, %99 : vector<32x128xf32>
    %c10 = arith.constant 10 : index
    %c0_60 = arith.constant 0 : index
    %c0_61 = arith.constant 0 : index
    %101 = vector.load %arg1[%c10, %c0_60, %c0_61] : memref<25x32x128xbf16, #tpu.memory_space<vmem>>, vector<1x32x128xbf16>
    %102 = vector.shape_cast %101 : vector<1x32x128xbf16> to vector<32x128xbf16>
    %103 = arith.extf %102 : vector<32x128xbf16> to vector<32x128xf32>
    %cst_62 = arith.constant 0.000000e+00 : f32
    %104 = vector.broadcast %cst_62 : f32 to vector<32x128xf32>
    %105 = arith.maximumf %103, %104 : vector<32x128xf32>
    %c10_63 = arith.constant 10 : index
    %c0_64 = arith.constant 0 : index
    %c0_65 = arith.constant 0 : index
    %106 = vector.load %arg2[%c10_63, %c0_64, %c0_65] : memref<25x1x128xf32, #tpu.memory_space<vmem>>, vector<1x1x128xf32>
    %107 = vector.shape_cast %106 : vector<1x1x128xf32> to vector<1x128xf32>
    %108 = vector.broadcast %107 : vector<1x128xf32> to vector<32x128xf32>
    %109 = arith.mulf %105, %108 : vector<32x128xf32>
    %110 = arith.addf %100, %109 : vector<32x128xf32>
    %c11 = arith.constant 11 : index
    %c0_66 = arith.constant 0 : index
    %c0_67 = arith.constant 0 : index
    %111 = vector.load %arg1[%c11, %c0_66, %c0_67] : memref<25x32x128xbf16, #tpu.memory_space<vmem>>, vector<1x32x128xbf16>
    %112 = vector.shape_cast %111 : vector<1x32x128xbf16> to vector<32x128xbf16>
    %113 = arith.extf %112 : vector<32x128xbf16> to vector<32x128xf32>
    %cst_68 = arith.constant 0.000000e+00 : f32
    %114 = vector.broadcast %cst_68 : f32 to vector<32x128xf32>
    %115 = arith.maximumf %113, %114 : vector<32x128xf32>
    %c11_69 = arith.constant 11 : index
    %c0_70 = arith.constant 0 : index
    %c0_71 = arith.constant 0 : index
    %116 = vector.load %arg2[%c11_69, %c0_70, %c0_71] : memref<25x1x128xf32, #tpu.memory_space<vmem>>, vector<1x1x128xf32>
    %117 = vector.shape_cast %116 : vector<1x1x128xf32> to vector<1x128xf32>
    %118 = vector.broadcast %117 : vector<1x128xf32> to vector<32x128xf32>
    %119 = arith.mulf %115, %118 : vector<32x128xf32>
    %120 = arith.addf %110, %119 : vector<32x128xf32>
    %c12 = arith.constant 12 : index
    %c0_72 = arith.constant 0 : index
    %c0_73 = arith.constant 0 : index
    %121 = vector.load %arg1[%c12, %c0_72, %c0_73] : memref<25x32x128xbf16, #tpu.memory_space<vmem>>, vector<1x32x128xbf16>
    %122 = vector.shape_cast %121 : vector<1x32x128xbf16> to vector<32x128xbf16>
    %123 = arith.extf %122 : vector<32x128xbf16> to vector<32x128xf32>
    %cst_74 = arith.constant 0.000000e+00 : f32
    %124 = vector.broadcast %cst_74 : f32 to vector<32x128xf32>
    %125 = arith.maximumf %123, %124 : vector<32x128xf32>
    %c12_75 = arith.constant 12 : index
    %c0_76 = arith.constant 0 : index
    %c0_77 = arith.constant 0 : index
    %126 = vector.load %arg2[%c12_75, %c0_76, %c0_77] : memref<25x1x128xf32, #tpu.memory_space<vmem>>, vector<1x1x128xf32>
    %127 = vector.shape_cast %126 : vector<1x1x128xf32> to vector<1x128xf32>
    %128 = vector.broadcast %127 : vector<1x128xf32> to vector<32x128xf32>
    %129 = arith.mulf %125, %128 : vector<32x128xf32>
    %130 = arith.addf %120, %129 : vector<32x128xf32>
    %c13 = arith.constant 13 : index
    %c0_78 = arith.constant 0 : index
    %c0_79 = arith.constant 0 : index
    %131 = vector.load %arg1[%c13, %c0_78, %c0_79] : memref<25x32x128xbf16, #tpu.memory_space<vmem>>, vector<1x32x128xbf16>
    %132 = vector.shape_cast %131 : vector<1x32x128xbf16> to vector<32x128xbf16>
    %133 = arith.extf %132 : vector<32x128xbf16> to vector<32x128xf32>
    %cst_80 = arith.constant 0.000000e+00 : f32
    %134 = vector.broadcast %cst_80 : f32 to vector<32x128xf32>
    %135 = arith.maximumf %133, %134 : vector<32x128xf32>
    %c13_81 = arith.constant 13 : index
    %c0_82 = arith.constant 0 : index
    %c0_83 = arith.constant 0 : index
    %136 = vector.load %arg2[%c13_81, %c0_82, %c0_83] : memref<25x1x128xf32, #tpu.memory_space<vmem>>, vector<1x1x128xf32>
    %137 = vector.shape_cast %136 : vector<1x1x128xf32> to vector<1x128xf32>
    %138 = vector.broadcast %137 : vector<1x128xf32> to vector<32x128xf32>
    %139 = arith.mulf %135, %138 : vector<32x128xf32>
    %140 = arith.addf %130, %139 : vector<32x128xf32>
    %c14 = arith.constant 14 : index
    %c0_84 = arith.constant 0 : index
    %c0_85 = arith.constant 0 : index
    %141 = vector.load %arg1[%c14, %c0_84, %c0_85] : memref<25x32x128xbf16, #tpu.memory_space<vmem>>, vector<1x32x128xbf16>
    %142 = vector.shape_cast %141 : vector<1x32x128xbf16> to vector<32x128xbf16>
    %143 = arith.extf %142 : vector<32x128xbf16> to vector<32x128xf32>
    %cst_86 = arith.constant 0.000000e+00 : f32
    %144 = vector.broadcast %cst_86 : f32 to vector<32x128xf32>
    %145 = arith.maximumf %143, %144 : vector<32x128xf32>
    %c14_87 = arith.constant 14 : index
    %c0_88 = arith.constant 0 : index
    %c0_89 = arith.constant 0 : index
    %146 = vector.load %arg2[%c14_87, %c0_88, %c0_89] : memref<25x1x128xf32, #tpu.memory_space<vmem>>, vector<1x1x128xf32>
    %147 = vector.shape_cast %146 : vector<1x1x128xf32> to vector<1x128xf32>
    %148 = vector.broadcast %147 : vector<1x128xf32> to vector<32x128xf32>
    %149 = arith.mulf %145, %148 : vector<32x128xf32>
    %150 = arith.addf %140, %149 : vector<32x128xf32>
    %c15 = arith.constant 15 : index
    %c0_90 = arith.constant 0 : index
    %c0_91 = arith.constant 0 : index
    %151 = vector.load %arg1[%c15, %c0_90, %c0_91] : memref<25x32x128xbf16, #tpu.memory_space<vmem>>, vector<1x32x128xbf16>
    %152 = vector.shape_cast %151 : vector<1x32x128xbf16> to vector<32x128xbf16>
    %153 = arith.extf %152 : vector<32x128xbf16> to vector<32x128xf32>
    %cst_92 = arith.constant 0.000000e+00 : f32
    %154 = vector.broadcast %cst_92 : f32 to vector<32x128xf32>
    %155 = arith.maximumf %153, %154 : vector<32x128xf32>
    %c15_93 = arith.constant 15 : index
    %c0_94 = arith.constant 0 : index
    %c0_95 = arith.constant 0 : index
    %156 = vector.load %arg2[%c15_93, %c0_94, %c0_95] : memref<25x1x128xf32, #tpu.memory_space<vmem>>, vector<1x1x128xf32>
    %157 = vector.shape_cast %156 : vector<1x1x128xf32> to vector<1x128xf32>
    %158 = vector.broadcast %157 : vector<1x128xf32> to vector<32x128xf32>
    %159 = arith.mulf %155, %158 : vector<32x128xf32>
    %160 = arith.addf %150, %159 : vector<32x128xf32>
    %c16 = arith.constant 16 : index
    %c0_96 = arith.constant 0 : index
    %c0_97 = arith.constant 0 : index
    %161 = vector.load %arg1[%c16, %c0_96, %c0_97] : memref<25x32x128xbf16, #tpu.memory_space<vmem>>, vector<1x32x128xbf16>
    %162 = vector.shape_cast %161 : vector<1x32x128xbf16> to vector<32x128xbf16>
    %163 = arith.extf %162 : vector<32x128xbf16> to vector<32x128xf32>
    %cst_98 = arith.constant 0.000000e+00 : f32
    %164 = vector.broadcast %cst_98 : f32 to vector<32x128xf32>
    %165 = arith.maximumf %163, %164 : vector<32x128xf32>
    %c16_99 = arith.constant 16 : index
    %c0_100 = arith.constant 0 : index
    %c0_101 = arith.constant 0 : index
    %166 = vector.load %arg2[%c16_99, %c0_100, %c0_101] : memref<25x1x128xf32, #tpu.memory_space<vmem>>, vector<1x1x128xf32>
    %167 = vector.shape_cast %166 : vector<1x1x128xf32> to vector<1x128xf32>
    %168 = vector.broadcast %167 : vector<1x128xf32> to vector<32x128xf32>
    %169 = arith.mulf %165, %168 : vector<32x128xf32>
    %170 = arith.addf %160, %169 : vector<32x128xf32>
    %c17 = arith.constant 17 : index
    %c0_102 = arith.constant 0 : index
    %c0_103 = arith.constant 0 : index
    %171 = vector.load %arg1[%c17, %c0_102, %c0_103] : memref<25x32x128xbf16, #tpu.memory_space<vmem>>, vector<1x32x128xbf16>
    %172 = vector.shape_cast %171 : vector<1x32x128xbf16> to vector<32x128xbf16>
    %173 = arith.extf %172 : vector<32x128xbf16> to vector<32x128xf32>
    %cst_104 = arith.constant 0.000000e+00 : f32
    %174 = vector.broadcast %cst_104 : f32 to vector<32x128xf32>
    %175 = arith.maximumf %173, %174 : vector<32x128xf32>
    %c17_105 = arith.constant 17 : index
    %c0_106 = arith.constant 0 : index
    %c0_107 = arith.constant 0 : index
    %176 = vector.load %arg2[%c17_105, %c0_106, %c0_107] : memref<25x1x128xf32, #tpu.memory_space<vmem>>, vector<1x1x128xf32>
    %177 = vector.shape_cast %176 : vector<1x1x128xf32> to vector<1x128xf32>
    %178 = vector.broadcast %177 : vector<1x128xf32> to vector<32x128xf32>
    %179 = arith.mulf %175, %178 : vector<32x128xf32>
    %180 = arith.addf %170, %179 : vector<32x128xf32>
    %c18 = arith.constant 18 : index
    %c0_108 = arith.constant 0 : index
    %c0_109 = arith.constant 0 : index
    %181 = vector.load %arg1[%c18, %c0_108, %c0_109] : memref<25x32x128xbf16, #tpu.memory_space<vmem>>, vector<1x32x128xbf16>
    %182 = vector.shape_cast %181 : vector<1x32x128xbf16> to vector<32x128xbf16>
    %183 = arith.extf %182 : vector<32x128xbf16> to vector<32x128xf32>
    %cst_110 = arith.constant 0.000000e+00 : f32
    %184 = vector.broadcast %cst_110 : f32 to vector<32x128xf32>
    %185 = arith.maximumf %183, %184 : vector<32x128xf32>
    %c18_111 = arith.constant 18 : index
    %c0_112 = arith.constant 0 : index
    %c0_113 = arith.constant 0 : index
    %186 = vector.load %arg2[%c18_111, %c0_112, %c0_113] : memref<25x1x128xf32, #tpu.memory_space<vmem>>, vector<1x1x128xf32>
    %187 = vector.shape_cast %186 : vector<1x1x128xf32> to vector<1x128xf32>
    %188 = vector.broadcast %187 : vector<1x128xf32> to vector<32x128xf32>
    %189 = arith.mulf %185, %188 : vector<32x128xf32>
    %190 = arith.addf %180, %189 : vector<32x128xf32>
    %c19 = arith.constant 19 : index
    %c0_114 = arith.constant 0 : index
    %c0_115 = arith.constant 0 : index
    %191 = vector.load %arg1[%c19, %c0_114, %c0_115] : memref<25x32x128xbf16, #tpu.memory_space<vmem>>, vector<1x32x128xbf16>
    %192 = vector.shape_cast %191 : vector<1x32x128xbf16> to vector<32x128xbf16>
    %193 = arith.extf %192 : vector<32x128xbf16> to vector<32x128xf32>
    %cst_116 = arith.constant 0.000000e+00 : f32
    %194 = vector.broadcast %cst_116 : f32 to vector<32x128xf32>
    %195 = arith.maximumf %193, %194 : vector<32x128xf32>
    %c19_117 = arith.constant 19 : index
    %c0_118 = arith.constant 0 : index
    %c0_119 = arith.constant 0 : index
    %196 = vector.load %arg2[%c19_117, %c0_118, %c0_119] : memref<25x1x128xf32, #tpu.memory_space<vmem>>, vector<1x1x128xf32>
    %197 = vector.shape_cast %196 : vector<1x1x128xf32> to vector<1x128xf32>
    %198 = vector.broadcast %197 : vector<1x128xf32> to vector<32x128xf32>
    %199 = arith.mulf %195, %198 : vector<32x128xf32>
    %200 = arith.addf %190, %199 : vector<32x128xf32>
    %c20 = arith.constant 20 : index
    %c0_120 = arith.constant 0 : index
    %c0_121 = arith.constant 0 : index
    %201 = vector.load %arg1[%c20, %c0_120, %c0_121] : memref<25x32x128xbf16, #tpu.memory_space<vmem>>, vector<1x32x128xbf16>
    %202 = vector.shape_cast %201 : vector<1x32x128xbf16> to vector<32x128xbf16>
    %203 = arith.extf %202 : vector<32x128xbf16> to vector<32x128xf32>
    %cst_122 = arith.constant 0.000000e+00 : f32
    %204 = vector.broadcast %cst_122 : f32 to vector<32x128xf32>
    %205 = arith.maximumf %203, %204 : vector<32x128xf32>
    %c20_123 = arith.constant 20 : index
    %c0_124 = arith.constant 0 : index
    %c0_125 = arith.constant 0 : index
    %206 = vector.load %arg2[%c20_123, %c0_124, %c0_125] : memref<25x1x128xf32, #tpu.memory_space<vmem>>, vector<1x1x128xf32>
    %207 = vector.shape_cast %206 : vector<1x1x128xf32> to vector<1x128xf32>
    %208 = vector.broadcast %207 : vector<1x128xf32> to vector<32x128xf32>
    %209 = arith.mulf %205, %208 : vector<32x128xf32>
    %210 = arith.addf %200, %209 : vector<32x128xf32>
    %c21 = arith.constant 21 : index
    %c0_126 = arith.constant 0 : index
    %c0_127 = arith.constant 0 : index
    %211 = vector.load %arg1[%c21, %c0_126, %c0_127] : memref<25x32x128xbf16, #tpu.memory_space<vmem>>, vector<1x32x128xbf16>
    %212 = vector.shape_cast %211 : vector<1x32x128xbf16> to vector<32x128xbf16>
    %213 = arith.extf %212 : vector<32x128xbf16> to vector<32x128xf32>
    %cst_128 = arith.constant 0.000000e+00 : f32
    %214 = vector.broadcast %cst_128 : f32 to vector<32x128xf32>
    %215 = arith.maximumf %213, %214 : vector<32x128xf32>
    %c21_129 = arith.constant 21 : index
    %c0_130 = arith.constant 0 : index
    %c0_131 = arith.constant 0 : index
    %216 = vector.load %arg2[%c21_129, %c0_130, %c0_131] : memref<25x1x128xf32, #tpu.memory_space<vmem>>, vector<1x1x128xf32>
    %217 = vector.shape_cast %216 : vector<1x1x128xf32> to vector<1x128xf32>
    %218 = vector.broadcast %217 : vector<1x128xf32> to vector<32x128xf32>
    %219 = arith.mulf %215, %218 : vector<32x128xf32>
    %220 = arith.addf %210, %219 : vector<32x128xf32>
    %c22 = arith.constant 22 : index
    %c0_132 = arith.constant 0 : index
    %c0_133 = arith.constant 0 : index
    %221 = vector.load %arg1[%c22, %c0_132, %c0_133] : memref<25x32x128xbf16, #tpu.memory_space<vmem>>, vector<1x32x128xbf16>
    %222 = vector.shape_cast %221 : vector<1x32x128xbf16> to vector<32x128xbf16>
    %223 = arith.extf %222 : vector<32x128xbf16> to vector<32x128xf32>
    %cst_134 = arith.constant 0.000000e+00 : f32
    %224 = vector.broadcast %cst_134 : f32 to vector<32x128xf32>
    %225 = arith.maximumf %223, %224 : vector<32x128xf32>
    %c22_135 = arith.constant 22 : index
    %c0_136 = arith.constant 0 : index
    %c0_137 = arith.constant 0 : index
    %226 = vector.load %arg2[%c22_135, %c0_136, %c0_137] : memref<25x1x128xf32, #tpu.memory_space<vmem>>, vector<1x1x128xf32>
    %227 = vector.shape_cast %226 : vector<1x1x128xf32> to vector<1x128xf32>
    %228 = vector.broadcast %227 : vector<1x128xf32> to vector<32x128xf32>
    %229 = arith.mulf %225, %228 : vector<32x128xf32>
    %230 = arith.addf %220, %229 : vector<32x128xf32>
    %c23 = arith.constant 23 : index
    %c0_138 = arith.constant 0 : index
    %c0_139 = arith.constant 0 : index
    %231 = vector.load %arg1[%c23, %c0_138, %c0_139] : memref<25x32x128xbf16, #tpu.memory_space<vmem>>, vector<1x32x128xbf16>
    %232 = vector.shape_cast %231 : vector<1x32x128xbf16> to vector<32x128xbf16>
    %233 = arith.extf %232 : vector<32x128xbf16> to vector<32x128xf32>
    %cst_140 = arith.constant 0.000000e+00 : f32
    %234 = vector.broadcast %cst_140 : f32 to vector<32x128xf32>
    %235 = arith.maximumf %233, %234 : vector<32x128xf32>
    %c23_141 = arith.constant 23 : index
    %c0_142 = arith.constant 0 : index
    %c0_143 = arith.constant 0 : index
    %236 = vector.load %arg2[%c23_141, %c0_142, %c0_143] : memref<25x1x128xf32, #tpu.memory_space<vmem>>, vector<1x1x128xf32>
    %237 = vector.shape_cast %236 : vector<1x1x128xf32> to vector<1x128xf32>
    %238 = vector.broadcast %237 : vector<1x128xf32> to vector<32x128xf32>
    %239 = arith.mulf %235, %238 : vector<32x128xf32>
    %240 = arith.addf %230, %239 : vector<32x128xf32>
    %c24 = arith.constant 24 : index
    %c0_144 = arith.constant 0 : index
    %c0_145 = arith.constant 0 : index
    %241 = vector.load %arg1[%c24, %c0_144, %c0_145] : memref<25x32x128xbf16, #tpu.memory_space<vmem>>, vector<1x32x128xbf16>
    %242 = vector.shape_cast %241 : vector<1x32x128xbf16> to vector<32x128xbf16>
    %243 = arith.extf %242 : vector<32x128xbf16> to vector<32x128xf32>
    %cst_146 = arith.constant 0.000000e+00 : f32
    %244 = vector.broadcast %cst_146 : f32 to vector<32x128xf32>
    %245 = arith.maximumf %243, %244 : vector<32x128xf32>
    %c24_147 = arith.constant 24 : index
    %c0_148 = arith.constant 0 : index
    %c0_149 = arith.constant 0 : index
    %246 = vector.load %arg2[%c24_147, %c0_148, %c0_149] : memref<25x1x128xf32, #tpu.memory_space<vmem>>, vector<1x1x128xf32>
    %247 = vector.shape_cast %246 : vector<1x1x128xf32> to vector<1x128xf32>
    %248 = vector.broadcast %247 : vector<1x128xf32> to vector<32x128xf32>
    %249 = arith.mulf %245, %248 : vector<32x128xf32>
    %250 = arith.addf %240, %249 : vector<32x128xf32>
    %c0_150 = arith.constant 0 : index
    %c0_151 = arith.constant 0 : index
    %251 = vector.load %arg3[%c0_150, %c0_151] : memref<32x128xf32, #tpu.memory_space<vmem>>, vector<32x128xf32>
    tpu.vector_store %arg3[%c0_150, %c0_151], %250 {strides = array<i32>} : memref<32x128xf32, #tpu.memory_space<vmem>>, vector<32x128xf32>,
    return
  }
  func.func @transform_0(%arg0: i32) -> (i32, i32, i32) {
    %c0_i32 = arith.constant 0 : i32
    %c0_i32_0 = arith.constant 0 : i32
    %c0_i32_1 = arith.constant 0 : i32
    return %c0_i32, %arg0, %c0_i32_0 : i32, i32, i32
  }
  func.func @transform_1(%arg0: i32) -> (i32, i32, i32) {
    %c0_i32 = arith.constant 0 : i32
    %c0_i32_0 = arith.constant 0 : i32
    %c0_i32_1 = arith.constant 0 : i32
    %c0_i32_2 = arith.constant 0 : i32
    return %c0_i32, %c0_i32_0, %c0_i32_1 : i32, i32, i32
  }
  func.func @transform_2(%arg0: i32) -> (i32, i32) {
    %c0_i32 = arith.constant 0 : i32
    %c0_i32_0 = arith.constant 0 : i32
    return %arg0, %c0_i32 : i32, i32
  }
}

module attributes {stable_mosaic.version = 11 : i64} {
  func.func @_matmul_kernel_single(%arg0: i32, %arg1: i32, %arg2: i32, %arg3: memref<256x8xbf16, #tpu.memory_space<vmem>>, %arg4: memref<8x8xbf16, #tpu.memory_space<vmem>>, %arg5: memref<256x8xf32, #tpu.memory_space<vmem>>) attributes {dimension_semantics = [#tpu.dimension_semantics<parallel>, #tpu.dimension_semantics<parallel>, #tpu.dimension_semantics<arbitrary>], iteration_bounds = array<i64: 2, 1, 1>, scalar_prefetch = 0 : i64, scratch_operands = 0 : i64, tpu.core_type = #tpu.core_type<tc>, window_params = [{transform_indices = @transform_0, window_bounds = array<i64: 256, 8>}, {transform_indices = @transform_1, window_bounds = array<i64: 8, 8>}, {transform_indices = @transform_2, window_bounds = array<i64: 256, 8>}]} {
    %c0 = arith.constant 0 : index
    %c0_0 = arith.constant 0 : index
    %0 = vector.load %arg3[%c0, %c0_0] : memref<256x8xbf16, #tpu.memory_space<vmem>>, vector<256x8xbf16>
    %c0_1 = arith.constant 0 : index
    %c0_2 = arith.constant 0 : index
    %1 = vector.load %arg4[%c0_1, %c0_2] : memref<8x8xbf16, #tpu.memory_space<vmem>>, vector<8x8xbf16>
    %cst = arith.constant dense<0.000000e+00> : vector<256x8xf32>
    %2 = tpu.matmul %0, %1, %cst {dimension_numbers = #tpu.dot_dimension_numbers<[1], [0], [0], [1], [0, 0, 1, 1], [], []>} : vector<256x8xbf16>, vector<8x8xbf16>, vector<256x8xf32> -> vector<256x8xf32>
    %c0_3 = arith.constant 0 : index
    %c0_4 = arith.constant 0 : index
    %3 = vector.load %arg5[%c0_3, %c0_4] : memref<256x8xf32, #tpu.memory_space<vmem>>, vector<256x8xf32>
    tpu.vector_store %arg5[%c0_3, %c0_4], %2 {strides = array<i32>} : memref<256x8xf32, #tpu.memory_space<vmem>>, vector<256x8xf32>,
    return
  }
  func.func @transform_0(%arg0: i32, %arg1: i32, %arg2: i32) -> (i32, i32) {
    %c0_i32 = arith.constant 0 : i32
    return %arg0, %arg2 : i32, i32
  }
  func.func @transform_1(%arg0: i32, %arg1: i32, %arg2: i32) -> (i32, i32) {
    %c0_i32 = arith.constant 0 : i32
    return %arg2, %arg1 : i32, i32
  }
  func.func @transform_2(%arg0: i32, %arg1: i32, %arg2: i32) -> (i32, i32) {
    %c0_i32 = arith.constant 0 : i32
    return %arg0, %arg1 : i32, i32
  }
}

module attributes {stable_mosaic.version = 11 : i64} {
  func.func @_dw_kernel(%arg0: i32, %arg1: memref<9x32x128xbf16, #tpu.memory_space<vmem>>, %arg2: memref<9x1x128xf32, #tpu.memory_space<vmem>>, %arg3: memref<32x128xf32, #tpu.memory_space<vmem>>) attributes {dimension_semantics = [#tpu.dimension_semantics<parallel>], iteration_bounds = array<i64: 1>, scalar_prefetch = 0 : i64, scratch_operands = 0 : i64, tpu.core_type = #tpu.core_type<tc>, window_params = [{transform_indices = @transform_0, window_bounds = array<i64: 9, 32, 128>}, {pipeline_mode = #tpu.pipeline_mode<synchronous>, transform_indices = @transform_1, window_bounds = array<i64: 9, 1, 128>}, {transform_indices = @transform_2, window_bounds = array<i64: 32, 128>}]} {
    %cst = arith.constant 0.000000e+00 : f32
    %0 = vector.broadcast %cst : f32 to vector<32x128xf32>
    %c0 = arith.constant 0 : index
    %c0_0 = arith.constant 0 : index
    %c0_1 = arith.constant 0 : index
    %1 = vector.load %arg1[%c0, %c0_0, %c0_1] : memref<9x32x128xbf16, #tpu.memory_space<vmem>>, vector<1x32x128xbf16>
    %2 = vector.shape_cast %1 : vector<1x32x128xbf16> to vector<32x128xbf16>
    %3 = arith.extf %2 : vector<32x128xbf16> to vector<32x128xf32>
    %cst_2 = arith.constant 0.000000e+00 : f32
    %4 = vector.broadcast %cst_2 : f32 to vector<32x128xf32>
    %5 = arith.maximumf %3, %4 : vector<32x128xf32>
    %c0_3 = arith.constant 0 : index
    %c0_4 = arith.constant 0 : index
    %c0_5 = arith.constant 0 : index
    %6 = vector.load %arg2[%c0_3, %c0_4, %c0_5] : memref<9x1x128xf32, #tpu.memory_space<vmem>>, vector<1x1x128xf32>
    %7 = vector.shape_cast %6 : vector<1x1x128xf32> to vector<1x128xf32>
    %8 = vector.broadcast %7 : vector<1x128xf32> to vector<32x128xf32>
    %9 = arith.mulf %5, %8 : vector<32x128xf32>
    %10 = arith.addf %0, %9 : vector<32x128xf32>
    %c1 = arith.constant 1 : index
    %c0_6 = arith.constant 0 : index
    %c0_7 = arith.constant 0 : index
    %11 = vector.load %arg1[%c1, %c0_6, %c0_7] : memref<9x32x128xbf16, #tpu.memory_space<vmem>>, vector<1x32x128xbf16>
    %12 = vector.shape_cast %11 : vector<1x32x128xbf16> to vector<32x128xbf16>
    %13 = arith.extf %12 : vector<32x128xbf16> to vector<32x128xf32>
    %cst_8 = arith.constant 0.000000e+00 : f32
    %14 = vector.broadcast %cst_8 : f32 to vector<32x128xf32>
    %15 = arith.maximumf %13, %14 : vector<32x128xf32>
    %c1_9 = arith.constant 1 : index
    %c0_10 = arith.constant 0 : index
    %c0_11 = arith.constant 0 : index
    %16 = vector.load %arg2[%c1_9, %c0_10, %c0_11] : memref<9x1x128xf32, #tpu.memory_space<vmem>>, vector<1x1x128xf32>
    %17 = vector.shape_cast %16 : vector<1x1x128xf32> to vector<1x128xf32>
    %18 = vector.broadcast %17 : vector<1x128xf32> to vector<32x128xf32>
    %19 = arith.mulf %15, %18 : vector<32x128xf32>
    %20 = arith.addf %10, %19 : vector<32x128xf32>
    %c2 = arith.constant 2 : index
    %c0_12 = arith.constant 0 : index
    %c0_13 = arith.constant 0 : index
    %21 = vector.load %arg1[%c2, %c0_12, %c0_13] : memref<9x32x128xbf16, #tpu.memory_space<vmem>>, vector<1x32x128xbf16>
    %22 = vector.shape_cast %21 : vector<1x32x128xbf16> to vector<32x128xbf16>
    %23 = arith.extf %22 : vector<32x128xbf16> to vector<32x128xf32>
    %cst_14 = arith.constant 0.000000e+00 : f32
    %24 = vector.broadcast %cst_14 : f32 to vector<32x128xf32>
    %25 = arith.maximumf %23, %24 : vector<32x128xf32>
    %c2_15 = arith.constant 2 : index
    %c0_16 = arith.constant 0 : index
    %c0_17 = arith.constant 0 : index
    %26 = vector.load %arg2[%c2_15, %c0_16, %c0_17] : memref<9x1x128xf32, #tpu.memory_space<vmem>>, vector<1x1x128xf32>
    %27 = vector.shape_cast %26 : vector<1x1x128xf32> to vector<1x128xf32>
    %28 = vector.broadcast %27 : vector<1x128xf32> to vector<32x128xf32>
    %29 = arith.mulf %25, %28 : vector<32x128xf32>
    %30 = arith.addf %20, %29 : vector<32x128xf32>
    %c3 = arith.constant 3 : index
    %c0_18 = arith.constant 0 : index
    %c0_19 = arith.constant 0 : index
    %31 = vector.load %arg1[%c3, %c0_18, %c0_19] : memref<9x32x128xbf16, #tpu.memory_space<vmem>>, vector<1x32x128xbf16>
    %32 = vector.shape_cast %31 : vector<1x32x128xbf16> to vector<32x128xbf16>
    %33 = arith.extf %32 : vector<32x128xbf16> to vector<32x128xf32>
    %cst_20 = arith.constant 0.000000e+00 : f32
    %34 = vector.broadcast %cst_20 : f32 to vector<32x128xf32>
    %35 = arith.maximumf %33, %34 : vector<32x128xf32>
    %c3_21 = arith.constant 3 : index
    %c0_22 = arith.constant 0 : index
    %c0_23 = arith.constant 0 : index
    %36 = vector.load %arg2[%c3_21, %c0_22, %c0_23] : memref<9x1x128xf32, #tpu.memory_space<vmem>>, vector<1x1x128xf32>
    %37 = vector.shape_cast %36 : vector<1x1x128xf32> to vector<1x128xf32>
    %38 = vector.broadcast %37 : vector<1x128xf32> to vector<32x128xf32>
    %39 = arith.mulf %35, %38 : vector<32x128xf32>
    %40 = arith.addf %30, %39 : vector<32x128xf32>
    %c4 = arith.constant 4 : index
    %c0_24 = arith.constant 0 : index
    %c0_25 = arith.constant 0 : index
    %41 = vector.load %arg1[%c4, %c0_24, %c0_25] : memref<9x32x128xbf16, #tpu.memory_space<vmem>>, vector<1x32x128xbf16>
    %42 = vector.shape_cast %41 : vector<1x32x128xbf16> to vector<32x128xbf16>
    %43 = arith.extf %42 : vector<32x128xbf16> to vector<32x128xf32>
    %cst_26 = arith.constant 0.000000e+00 : f32
    %44 = vector.broadcast %cst_26 : f32 to vector<32x128xf32>
    %45 = arith.maximumf %43, %44 : vector<32x128xf32>
    %c4_27 = arith.constant 4 : index
    %c0_28 = arith.constant 0 : index
    %c0_29 = arith.constant 0 : index
    %46 = vector.load %arg2[%c4_27, %c0_28, %c0_29] : memref<9x1x128xf32, #tpu.memory_space<vmem>>, vector<1x1x128xf32>
    %47 = vector.shape_cast %46 : vector<1x1x128xf32> to vector<1x128xf32>
    %48 = vector.broadcast %47 : vector<1x128xf32> to vector<32x128xf32>
    %49 = arith.mulf %45, %48 : vector<32x128xf32>
    %50 = arith.addf %40, %49 : vector<32x128xf32>
    %c5 = arith.constant 5 : index
    %c0_30 = arith.constant 0 : index
    %c0_31 = arith.constant 0 : index
    %51 = vector.load %arg1[%c5, %c0_30, %c0_31] : memref<9x32x128xbf16, #tpu.memory_space<vmem>>, vector<1x32x128xbf16>
    %52 = vector.shape_cast %51 : vector<1x32x128xbf16> to vector<32x128xbf16>
    %53 = arith.extf %52 : vector<32x128xbf16> to vector<32x128xf32>
    %cst_32 = arith.constant 0.000000e+00 : f32
    %54 = vector.broadcast %cst_32 : f32 to vector<32x128xf32>
    %55 = arith.maximumf %53, %54 : vector<32x128xf32>
    %c5_33 = arith.constant 5 : index
    %c0_34 = arith.constant 0 : index
    %c0_35 = arith.constant 0 : index
    %56 = vector.load %arg2[%c5_33, %c0_34, %c0_35] : memref<9x1x128xf32, #tpu.memory_space<vmem>>, vector<1x1x128xf32>
    %57 = vector.shape_cast %56 : vector<1x1x128xf32> to vector<1x128xf32>
    %58 = vector.broadcast %57 : vector<1x128xf32> to vector<32x128xf32>
    %59 = arith.mulf %55, %58 : vector<32x128xf32>
    %60 = arith.addf %50, %59 : vector<32x128xf32>
    %c6 = arith.constant 6 : index
    %c0_36 = arith.constant 0 : index
    %c0_37 = arith.constant 0 : index
    %61 = vector.load %arg1[%c6, %c0_36, %c0_37] : memref<9x32x128xbf16, #tpu.memory_space<vmem>>, vector<1x32x128xbf16>
    %62 = vector.shape_cast %61 : vector<1x32x128xbf16> to vector<32x128xbf16>
    %63 = arith.extf %62 : vector<32x128xbf16> to vector<32x128xf32>
    %cst_38 = arith.constant 0.000000e+00 : f32
    %64 = vector.broadcast %cst_38 : f32 to vector<32x128xf32>
    %65 = arith.maximumf %63, %64 : vector<32x128xf32>
    %c6_39 = arith.constant 6 : index
    %c0_40 = arith.constant 0 : index
    %c0_41 = arith.constant 0 : index
    %66 = vector.load %arg2[%c6_39, %c0_40, %c0_41] : memref<9x1x128xf32, #tpu.memory_space<vmem>>, vector<1x1x128xf32>
    %67 = vector.shape_cast %66 : vector<1x1x128xf32> to vector<1x128xf32>
    %68 = vector.broadcast %67 : vector<1x128xf32> to vector<32x128xf32>
    %69 = arith.mulf %65, %68 : vector<32x128xf32>
    %70 = arith.addf %60, %69 : vector<32x128xf32>
    %c7 = arith.constant 7 : index
    %c0_42 = arith.constant 0 : index
    %c0_43 = arith.constant 0 : index
    %71 = vector.load %arg1[%c7, %c0_42, %c0_43] : memref<9x32x128xbf16, #tpu.memory_space<vmem>>, vector<1x32x128xbf16>
    %72 = vector.shape_cast %71 : vector<1x32x128xbf16> to vector<32x128xbf16>
    %73 = arith.extf %72 : vector<32x128xbf16> to vector<32x128xf32>
    %cst_44 = arith.constant 0.000000e+00 : f32
    %74 = vector.broadcast %cst_44 : f32 to vector<32x128xf32>
    %75 = arith.maximumf %73, %74 : vector<32x128xf32>
    %c7_45 = arith.constant 7 : index
    %c0_46 = arith.constant 0 : index
    %c0_47 = arith.constant 0 : index
    %76 = vector.load %arg2[%c7_45, %c0_46, %c0_47] : memref<9x1x128xf32, #tpu.memory_space<vmem>>, vector<1x1x128xf32>
    %77 = vector.shape_cast %76 : vector<1x1x128xf32> to vector<1x128xf32>
    %78 = vector.broadcast %77 : vector<1x128xf32> to vector<32x128xf32>
    %79 = arith.mulf %75, %78 : vector<32x128xf32>
    %80 = arith.addf %70, %79 : vector<32x128xf32>
    %c8 = arith.constant 8 : index
    %c0_48 = arith.constant 0 : index
    %c0_49 = arith.constant 0 : index
    %81 = vector.load %arg1[%c8, %c0_48, %c0_49] : memref<9x32x128xbf16, #tpu.memory_space<vmem>>, vector<1x32x128xbf16>
    %82 = vector.shape_cast %81 : vector<1x32x128xbf16> to vector<32x128xbf16>
    %83 = arith.extf %82 : vector<32x128xbf16> to vector<32x128xf32>
    %cst_50 = arith.constant 0.000000e+00 : f32
    %84 = vector.broadcast %cst_50 : f32 to vector<32x128xf32>
    %85 = arith.maximumf %83, %84 : vector<32x128xf32>
    %c8_51 = arith.constant 8 : index
    %c0_52 = arith.constant 0 : index
    %c0_53 = arith.constant 0 : index
    %86 = vector.load %arg2[%c8_51, %c0_52, %c0_53] : memref<9x1x128xf32, #tpu.memory_space<vmem>>, vector<1x1x128xf32>
    %87 = vector.shape_cast %86 : vector<1x1x128xf32> to vector<1x128xf32>
    %88 = vector.broadcast %87 : vector<1x128xf32> to vector<32x128xf32>
    %89 = arith.mulf %85, %88 : vector<32x128xf32>
    %90 = arith.addf %80, %89 : vector<32x128xf32>
    %c0_54 = arith.constant 0 : index
    %c0_55 = arith.constant 0 : index
    %91 = vector.load %arg3[%c0_54, %c0_55] : memref<32x128xf32, #tpu.memory_space<vmem>>, vector<32x128xf32>
    tpu.vector_store %arg3[%c0_54, %c0_55], %90 {strides = array<i32>} : memref<32x128xf32, #tpu.memory_space<vmem>>, vector<32x128xf32>,
    return
  }
  func.func @transform_0(%arg0: i32) -> (i32, i32, i32) {
    %c0_i32 = arith.constant 0 : i32
    %c0_i32_0 = arith.constant 0 : i32
    %c0_i32_1 = arith.constant 0 : i32
    return %c0_i32, %arg0, %c0_i32_0 : i32, i32, i32
  }
  func.func @transform_1(%arg0: i32) -> (i32, i32, i32) {
    %c0_i32 = arith.constant 0 : i32
    %c0_i32_0 = arith.constant 0 : i32
    %c0_i32_1 = arith.constant 0 : i32
    %c0_i32_2 = arith.constant 0 : i32
    return %c0_i32, %c0_i32_0, %c0_i32_1 : i32, i32, i32
  }
  func.func @transform_2(%arg0: i32) -> (i32, i32) {
    %c0_i32 = arith.constant 0 : i32
    %c0_i32_0 = arith.constant 0 : i32
    return %arg0, %c0_i32 : i32, i32
  }
}

module attributes {stable_mosaic.version = 11 : i64} {
  func.func @_matmul_kernel_single(%arg0: i32, %arg1: i32, %arg2: i32, %arg3: memref<256x16xbf16, #tpu.memory_space<vmem>>, %arg4: memref<16x16xbf16, #tpu.memory_space<vmem>>, %arg5: memref<256x16xf32, #tpu.memory_space<vmem>>) attributes {dimension_semantics = [#tpu.dimension_semantics<parallel>, #tpu.dimension_semantics<parallel>, #tpu.dimension_semantics<arbitrary>], iteration_bounds = array<i64: 2, 1, 1>, scalar_prefetch = 0 : i64, scratch_operands = 0 : i64, tpu.core_type = #tpu.core_type<tc>, window_params = [{transform_indices = @transform_0, window_bounds = array<i64: 256, 16>}, {transform_indices = @transform_1, window_bounds = array<i64: 16, 16>}, {transform_indices = @transform_2, window_bounds = array<i64: 256, 16>}]} {
    %c0 = arith.constant 0 : index
    %c0_0 = arith.constant 0 : index
    %0 = vector.load %arg3[%c0, %c0_0] : memref<256x16xbf16, #tpu.memory_space<vmem>>, vector<256x16xbf16>
    %cst = arith.constant 0.000000e+00 : bf16
    %1 = vector.broadcast %cst : bf16 to vector<256x16xbf16>
    %2 = arith.maximumf %0, %1 : vector<256x16xbf16>
    %c0_1 = arith.constant 0 : index
    %c0_2 = arith.constant 0 : index
    %3 = vector.load %arg4[%c0_1, %c0_2] : memref<16x16xbf16, #tpu.memory_space<vmem>>, vector<16x16xbf16>
    %cst_3 = arith.constant dense<0.000000e+00> : vector<256x16xf32>
    %4 = tpu.matmul %2, %3, %cst_3 {dimension_numbers = #tpu.dot_dimension_numbers<[1], [0], [0], [1], [0, 0, 1, 1], [], []>} : vector<256x16xbf16>, vector<16x16xbf16>, vector<256x16xf32> -> vector<256x16xf32>
    %c0_4 = arith.constant 0 : index
    %c0_5 = arith.constant 0 : index
    %5 = vector.load %arg5[%c0_4, %c0_5] : memref<256x16xf32, #tpu.memory_space<vmem>>, vector<256x16xf32>
    tpu.vector_store %arg5[%c0_4, %c0_5], %4 {strides = array<i32>} : memref<256x16xf32, #tpu.memory_space<vmem>>, vector<256x16xf32>,
    return
  }
  func.func @transform_0(%arg0: i32, %arg1: i32, %arg2: i32) -> (i32, i32) {
    %c0_i32 = arith.constant 0 : i32
    return %arg0, %arg2 : i32, i32
  }
  func.func @transform_1(%arg0: i32, %arg1: i32, %arg2: i32) -> (i32, i32) {
    %c0_i32 = arith.constant 0 : i32
    return %arg2, %arg1 : i32, i32
  }
  func.func @transform_2(%arg0: i32, %arg1: i32, %arg2: i32) -> (i32, i32) {
    %c0_i32 = arith.constant 0 : i32
    return %arg0, %arg1 : i32, i32
  }
}

module attributes {stable_mosaic.version = 11 : i64} {
  func.func @_matmul_kernel_single(%arg0: i32, %arg1: i32, %arg2: i32, %arg3: memref<128x16xbf16, #tpu.memory_space<vmem>>, %arg4: memref<16x16xbf16, #tpu.memory_space<vmem>>, %arg5: memref<128x16xf32, #tpu.memory_space<vmem>>) attributes {dimension_semantics = [#tpu.dimension_semantics<parallel>, #tpu.dimension_semantics<parallel>, #tpu.dimension_semantics<arbitrary>], iteration_bounds = array<i64: 1, 1, 1>, scalar_prefetch = 0 : i64, scratch_operands = 0 : i64, tpu.core_type = #tpu.core_type<tc>, window_params = [{transform_indices = @transform_0, window_bounds = array<i64: 128, 16>}, {transform_indices = @transform_1, window_bounds = array<i64: 16, 16>}, {transform_indices = @transform_2, window_bounds = array<i64: 128, 16>}]} {
    %c0 = arith.constant 0 : index
    %c0_0 = arith.constant 0 : index
    %0 = vector.load %arg3[%c0, %c0_0] : memref<128x16xbf16, #tpu.memory_space<vmem>>, vector<128x16xbf16>
    %cst = arith.constant 0.000000e+00 : bf16
    %1 = vector.broadcast %cst : bf16 to vector<128x16xbf16>
    %2 = arith.maximumf %0, %1 : vector<128x16xbf16>
    %c0_1 = arith.constant 0 : index
    %c0_2 = arith.constant 0 : index
    %3 = vector.load %arg4[%c0_1, %c0_2] : memref<16x16xbf16, #tpu.memory_space<vmem>>, vector<16x16xbf16>
    %cst_3 = arith.constant dense<0.000000e+00> : vector<128x16xf32>
    %4 = tpu.matmul %2, %3, %cst_3 {dimension_numbers = #tpu.dot_dimension_numbers<[1], [0], [0], [1], [0, 0, 1, 1], [], []>} : vector<128x16xbf16>, vector<16x16xbf16>, vector<128x16xf32> -> vector<128x16xf32>
    %c0_4 = arith.constant 0 : index
    %c0_5 = arith.constant 0 : index
    %5 = vector.load %arg5[%c0_4, %c0_5] : memref<128x16xf32, #tpu.memory_space<vmem>>, vector<128x16xf32>
    tpu.vector_store %arg5[%c0_4, %c0_5], %4 {strides = array<i32>} : memref<128x16xf32, #tpu.memory_space<vmem>>, vector<128x16xf32>,
    return
  }
  func.func @transform_0(%arg0: i32, %arg1: i32, %arg2: i32) -> (i32, i32) {
    %c0_i32 = arith.constant 0 : i32
    return %arg0, %arg2 : i32, i32
  }
  func.func @transform_1(%arg0: i32, %arg1: i32, %arg2: i32) -> (i32, i32) {
    %c0_i32 = arith.constant 0 : i32
    return %arg2, %arg1 : i32, i32
  }
  func.func @transform_2(%arg0: i32, %arg1: i32, %arg2: i32) -> (i32, i32) {
    %c0_i32 = arith.constant 0 : i32
    return %arg0, %arg1 : i32, i32
  }
}

module attributes {stable_mosaic.version = 11 : i64} {
  func.func @_matmul_kernel_single(%arg0: i32, %arg1: i32, %arg2: i32, %arg3: memref<32x32xbf16, #tpu.memory_space<vmem>>, %arg4: memref<32x16xbf16, #tpu.memory_space<vmem>>, %arg5: memref<32x16xf32, #tpu.memory_space<vmem>>) attributes {dimension_semantics = [#tpu.dimension_semantics<parallel>, #tpu.dimension_semantics<parallel>, #tpu.dimension_semantics<arbitrary>], iteration_bounds = array<i64: 1, 1, 1>, scalar_prefetch = 0 : i64, scratch_operands = 0 : i64, tpu.core_type = #tpu.core_type<tc>, window_params = [{transform_indices = @transform_0, window_bounds = array<i64: 32, 32>}, {transform_indices = @transform_1, window_bounds = array<i64: 32, 16>}, {transform_indices = @transform_2, window_bounds = array<i64: 32, 16>}]} {
    %c0 = arith.constant 0 : index
    %c0_0 = arith.constant 0 : index
    %0 = vector.load %arg3[%c0, %c0_0] : memref<32x32xbf16, #tpu.memory_space<vmem>>, vector<32x32xbf16>
    %cst = arith.constant 0.000000e+00 : bf16
    %1 = vector.broadcast %cst : bf16 to vector<32x32xbf16>
    %2 = arith.maximumf %0, %1 : vector<32x32xbf16>
    %c0_1 = arith.constant 0 : index
    %c0_2 = arith.constant 0 : index
    %3 = vector.load %arg4[%c0_1, %c0_2] : memref<32x16xbf16, #tpu.memory_space<vmem>>, vector<32x16xbf16>
    %cst_3 = arith.constant dense<0.000000e+00> : vector<32x16xf32>
    %4 = tpu.matmul %2, %3, %cst_3 {dimension_numbers = #tpu.dot_dimension_numbers<[1], [0], [0], [1], [0, 0, 1, 1], [], []>} : vector<32x32xbf16>, vector<32x16xbf16>, vector<32x16xf32> -> vector<32x16xf32>
    %c0_4 = arith.constant 0 : index
    %c0_5 = arith.constant 0 : index
    %5 = vector.load %arg5[%c0_4, %c0_5] : memref<32x16xf32, #tpu.memory_space<vmem>>, vector<32x16xf32>
    tpu.vector_store %arg5[%c0_4, %c0_5], %4 {strides = array<i32>} : memref<32x16xf32, #tpu.memory_space<vmem>>, vector<32x16xf32>,
    return
  }
  func.func @transform_0(%arg0: i32, %arg1: i32, %arg2: i32) -> (i32, i32) {
    %c0_i32 = arith.constant 0 : i32
    return %arg0, %arg2 : i32, i32
  }
  func.func @transform_1(%arg0: i32, %arg1: i32, %arg2: i32) -> (i32, i32) {
    %c0_i32 = arith.constant 0 : i32
    return %arg2, %arg1 : i32, i32
  }
  func.func @transform_2(%arg0: i32, %arg1: i32, %arg2: i32) -> (i32, i32) {
    %c0_i32 = arith.constant 0 : i32
    return %arg0, %arg1 : i32, i32
  }
}

module attributes {stable_mosaic.version = 11 : i64} {
  func.func @_matmul_kernel_single(%arg0: i32, %arg1: i32, %arg2: i32, %arg3: memref<32x32xbf16, #tpu.memory_space<vmem>>, %arg4: memref<32x32xbf16, #tpu.memory_space<vmem>>, %arg5: memref<32x32xf32, #tpu.memory_space<vmem>>) attributes {dimension_semantics = [#tpu.dimension_semantics<parallel>, #tpu.dimension_semantics<parallel>, #tpu.dimension_semantics<arbitrary>], iteration_bounds = array<i64: 1, 1, 1>, scalar_prefetch = 0 : i64, scratch_operands = 0 : i64, tpu.core_type = #tpu.core_type<tc>, window_params = [{transform_indices = @transform_0, window_bounds = array<i64: 32, 32>}, {transform_indices = @transform_1, window_bounds = array<i64: 32, 32>}, {transform_indices = @transform_2, window_bounds = array<i64: 32, 32>}]} {
    %c0 = arith.constant 0 : index
    %c0_0 = arith.constant 0 : index
    %0 = vector.load %arg3[%c0, %c0_0] : memref<32x32xbf16, #tpu.memory_space<vmem>>, vector<32x32xbf16>
    %c0_1 = arith.constant 0 : index
    %c0_2 = arith.constant 0 : index
    %1 = vector.load %arg4[%c0_1, %c0_2] : memref<32x32xbf16, #tpu.memory_space<vmem>>, vector<32x32xbf16>
    %cst = arith.constant dense<0.000000e+00> : vector<32x32xf32>
    %2 = tpu.matmul %0, %1, %cst {dimension_numbers = #tpu.dot_dimension_numbers<[1], [0], [0], [1], [0, 0, 1, 1], [], []>} : vector<32x32xbf16>, vector<32x32xbf16>, vector<32x32xf32> -> vector<32x32xf32>
    %c0_3 = arith.constant 0 : index
    %c0_4 = arith.constant 0 : index
    %3 = vector.load %arg5[%c0_3, %c0_4] : memref<32x32xf32, #tpu.memory_space<vmem>>, vector<32x32xf32>
    tpu.vector_store %arg5[%c0_3, %c0_4], %2 {strides = array<i32>} : memref<32x32xf32, #tpu.memory_space<vmem>>, vector<32x32xf32>,
    return
  }
  func.func @transform_0(%arg0: i32, %arg1: i32, %arg2: i32) -> (i32, i32) {
    %c0_i32 = arith.constant 0 : i32
    return %arg0, %arg2 : i32, i32
  }
  func.func @transform_1(%arg0: i32, %arg1: i32, %arg2: i32) -> (i32, i32) {
    %c0_i32 = arith.constant 0 : i32
    return %arg2, %arg1 : i32, i32
  }
  func.func @transform_2(%arg0: i32, %arg1: i32, %arg2: i32) -> (i32, i32) {
    %c0_i32 = arith.constant 0 : i32
    return %arg0, %arg1 : i32, i32
  }
}

module attributes {stable_mosaic.version = 11 : i64} {
  func.func @_dw_kernel(%arg0: i32, %arg1: memref<9x8x128xbf16, #tpu.memory_space<vmem>>, %arg2: memref<9x1x128xf32, #tpu.memory_space<vmem>>, %arg3: memref<8x128xf32, #tpu.memory_space<vmem>>) attributes {dimension_semantics = [#tpu.dimension_semantics<parallel>], iteration_bounds = array<i64: 1>, scalar_prefetch = 0 : i64, scratch_operands = 0 : i64, tpu.core_type = #tpu.core_type<tc>, window_params = [{transform_indices = @transform_0, window_bounds = array<i64: 9, 8, 128>}, {pipeline_mode = #tpu.pipeline_mode<synchronous>, transform_indices = @transform_1, window_bounds = array<i64: 9, 1, 128>}, {transform_indices = @transform_2, window_bounds = array<i64: 8, 128>}]} {
    %cst = arith.constant 0.000000e+00 : f32
    %0 = vector.broadcast %cst : f32 to vector<8x128xf32>
    %c0 = arith.constant 0 : index
    %c0_0 = arith.constant 0 : index
    %c0_1 = arith.constant 0 : index
    %1 = vector.load %arg1[%c0, %c0_0, %c0_1] : memref<9x8x128xbf16, #tpu.memory_space<vmem>>, vector<1x8x128xbf16>
    %2 = vector.shape_cast %1 : vector<1x8x128xbf16> to vector<8x128xbf16>
    %3 = arith.extf %2 : vector<8x128xbf16> to vector<8x128xf32>
    %cst_2 = arith.constant 0.000000e+00 : f32
    %4 = vector.broadcast %cst_2 : f32 to vector<8x128xf32>
    %5 = arith.maximumf %3, %4 : vector<8x128xf32>
    %c0_3 = arith.constant 0 : index
    %c0_4 = arith.constant 0 : index
    %c0_5 = arith.constant 0 : index
    %6 = vector.load %arg2[%c0_3, %c0_4, %c0_5] : memref<9x1x128xf32, #tpu.memory_space<vmem>>, vector<1x1x128xf32>
    %7 = vector.shape_cast %6 : vector<1x1x128xf32> to vector<1x128xf32>
    %8 = vector.broadcast %7 : vector<1x128xf32> to vector<8x128xf32>
    %9 = arith.mulf %5, %8 : vector<8x128xf32>
    %10 = arith.addf %0, %9 : vector<8x128xf32>
    %c1 = arith.constant 1 : index
    %c0_6 = arith.constant 0 : index
    %c0_7 = arith.constant 0 : index
    %11 = vector.load %arg1[%c1, %c0_6, %c0_7] : memref<9x8x128xbf16, #tpu.memory_space<vmem>>, vector<1x8x128xbf16>
    %12 = vector.shape_cast %11 : vector<1x8x128xbf16> to vector<8x128xbf16>
    %13 = arith.extf %12 : vector<8x128xbf16> to vector<8x128xf32>
    %cst_8 = arith.constant 0.000000e+00 : f32
    %14 = vector.broadcast %cst_8 : f32 to vector<8x128xf32>
    %15 = arith.maximumf %13, %14 : vector<8x128xf32>
    %c1_9 = arith.constant 1 : index
    %c0_10 = arith.constant 0 : index
    %c0_11 = arith.constant 0 : index
    %16 = vector.load %arg2[%c1_9, %c0_10, %c0_11] : memref<9x1x128xf32, #tpu.memory_space<vmem>>, vector<1x1x128xf32>
    %17 = vector.shape_cast %16 : vector<1x1x128xf32> to vector<1x128xf32>
    %18 = vector.broadcast %17 : vector<1x128xf32> to vector<8x128xf32>
    %19 = arith.mulf %15, %18 : vector<8x128xf32>
    %20 = arith.addf %10, %19 : vector<8x128xf32>
    %c2 = arith.constant 2 : index
    %c0_12 = arith.constant 0 : index
    %c0_13 = arith.constant 0 : index
    %21 = vector.load %arg1[%c2, %c0_12, %c0_13] : memref<9x8x128xbf16, #tpu.memory_space<vmem>>, vector<1x8x128xbf16>
    %22 = vector.shape_cast %21 : vector<1x8x128xbf16> to vector<8x128xbf16>
    %23 = arith.extf %22 : vector<8x128xbf16> to vector<8x128xf32>
    %cst_14 = arith.constant 0.000000e+00 : f32
    %24 = vector.broadcast %cst_14 : f32 to vector<8x128xf32>
    %25 = arith.maximumf %23, %24 : vector<8x128xf32>
    %c2_15 = arith.constant 2 : index
    %c0_16 = arith.constant 0 : index
    %c0_17 = arith.constant 0 : index
    %26 = vector.load %arg2[%c2_15, %c0_16, %c0_17] : memref<9x1x128xf32, #tpu.memory_space<vmem>>, vector<1x1x128xf32>
    %27 = vector.shape_cast %26 : vector<1x1x128xf32> to vector<1x128xf32>
    %28 = vector.broadcast %27 : vector<1x128xf32> to vector<8x128xf32>
    %29 = arith.mulf %25, %28 : vector<8x128xf32>
    %30 = arith.addf %20, %29 : vector<8x128xf32>
    %c3 = arith.constant 3 : index
    %c0_18 = arith.constant 0 : index
    %c0_19 = arith.constant 0 : index
    %31 = vector.load %arg1[%c3, %c0_18, %c0_19] : memref<9x8x128xbf16, #tpu.memory_space<vmem>>, vector<1x8x128xbf16>
    %32 = vector.shape_cast %31 : vector<1x8x128xbf16> to vector<8x128xbf16>
    %33 = arith.extf %32 : vector<8x128xbf16> to vector<8x128xf32>
    %cst_20 = arith.constant 0.000000e+00 : f32
    %34 = vector.broadcast %cst_20 : f32 to vector<8x128xf32>
    %35 = arith.maximumf %33, %34 : vector<8x128xf32>
    %c3_21 = arith.constant 3 : index
    %c0_22 = arith.constant 0 : index
    %c0_23 = arith.constant 0 : index
    %36 = vector.load %arg2[%c3_21, %c0_22, %c0_23] : memref<9x1x128xf32, #tpu.memory_space<vmem>>, vector<1x1x128xf32>
    %37 = vector.shape_cast %36 : vector<1x1x128xf32> to vector<1x128xf32>
    %38 = vector.broadcast %37 : vector<1x128xf32> to vector<8x128xf32>
    %39 = arith.mulf %35, %38 : vector<8x128xf32>
    %40 = arith.addf %30, %39 : vector<8x128xf32>
    %c4 = arith.constant 4 : index
    %c0_24 = arith.constant 0 : index
    %c0_25 = arith.constant 0 : index
    %41 = vector.load %arg1[%c4, %c0_24, %c0_25] : memref<9x8x128xbf16, #tpu.memory_space<vmem>>, vector<1x8x128xbf16>
    %42 = vector.shape_cast %41 : vector<1x8x128xbf16> to vector<8x128xbf16>
    %43 = arith.extf %42 : vector<8x128xbf16> to vector<8x128xf32>
    %cst_26 = arith.constant 0.000000e+00 : f32
    %44 = vector.broadcast %cst_26 : f32 to vector<8x128xf32>
    %45 = arith.maximumf %43, %44 : vector<8x128xf32>
    %c4_27 = arith.constant 4 : index
    %c0_28 = arith.constant 0 : index
    %c0_29 = arith.constant 0 : index
    %46 = vector.load %arg2[%c4_27, %c0_28, %c0_29] : memref<9x1x128xf32, #tpu.memory_space<vmem>>, vector<1x1x128xf32>
    %47 = vector.shape_cast %46 : vector<1x1x128xf32> to vector<1x128xf32>
    %48 = vector.broadcast %47 : vector<1x128xf32> to vector<8x128xf32>
    %49 = arith.mulf %45, %48 : vector<8x128xf32>
    %50 = arith.addf %40, %49 : vector<8x128xf32>
    %c5 = arith.constant 5 : index
    %c0_30 = arith.constant 0 : index
    %c0_31 = arith.constant 0 : index
    %51 = vector.load %arg1[%c5, %c0_30, %c0_31] : memref<9x8x128xbf16, #tpu.memory_space<vmem>>, vector<1x8x128xbf16>
    %52 = vector.shape_cast %51 : vector<1x8x128xbf16> to vector<8x128xbf16>
    %53 = arith.extf %52 : vector<8x128xbf16> to vector<8x128xf32>
    %cst_32 = arith.constant 0.000000e+00 : f32
    %54 = vector.broadcast %cst_32 : f32 to vector<8x128xf32>
    %55 = arith.maximumf %53, %54 : vector<8x128xf32>
    %c5_33 = arith.constant 5 : index
    %c0_34 = arith.constant 0 : index
    %c0_35 = arith.constant 0 : index
    %56 = vector.load %arg2[%c5_33, %c0_34, %c0_35] : memref<9x1x128xf32, #tpu.memory_space<vmem>>, vector<1x1x128xf32>
    %57 = vector.shape_cast %56 : vector<1x1x128xf32> to vector<1x128xf32>
    %58 = vector.broadcast %57 : vector<1x128xf32> to vector<8x128xf32>
    %59 = arith.mulf %55, %58 : vector<8x128xf32>
    %60 = arith.addf %50, %59 : vector<8x128xf32>
    %c6 = arith.constant 6 : index
    %c0_36 = arith.constant 0 : index
    %c0_37 = arith.constant 0 : index
    %61 = vector.load %arg1[%c6, %c0_36, %c0_37] : memref<9x8x128xbf16, #tpu.memory_space<vmem>>, vector<1x8x128xbf16>
    %62 = vector.shape_cast %61 : vector<1x8x128xbf16> to vector<8x128xbf16>
    %63 = arith.extf %62 : vector<8x128xbf16> to vector<8x128xf32>
    %cst_38 = arith.constant 0.000000e+00 : f32
    %64 = vector.broadcast %cst_38 : f32 to vector<8x128xf32>
    %65 = arith.maximumf %63, %64 : vector<8x128xf32>
    %c6_39 = arith.constant 6 : index
    %c0_40 = arith.constant 0 : index
    %c0_41 = arith.constant 0 : index
    %66 = vector.load %arg2[%c6_39, %c0_40, %c0_41] : memref<9x1x128xf32, #tpu.memory_space<vmem>>, vector<1x1x128xf32>
    %67 = vector.shape_cast %66 : vector<1x1x128xf32> to vector<1x128xf32>
    %68 = vector.broadcast %67 : vector<1x128xf32> to vector<8x128xf32>
    %69 = arith.mulf %65, %68 : vector<8x128xf32>
    %70 = arith.addf %60, %69 : vector<8x128xf32>
    %c7 = arith.constant 7 : index
    %c0_42 = arith.constant 0 : index
    %c0_43 = arith.constant 0 : index
    %71 = vector.load %arg1[%c7, %c0_42, %c0_43] : memref<9x8x128xbf16, #tpu.memory_space<vmem>>, vector<1x8x128xbf16>
    %72 = vector.shape_cast %71 : vector<1x8x128xbf16> to vector<8x128xbf16>
    %73 = arith.extf %72 : vector<8x128xbf16> to vector<8x128xf32>
    %cst_44 = arith.constant 0.000000e+00 : f32
    %74 = vector.broadcast %cst_44 : f32 to vector<8x128xf32>
    %75 = arith.maximumf %73, %74 : vector<8x128xf32>
    %c7_45 = arith.constant 7 : index
    %c0_46 = arith.constant 0 : index
    %c0_47 = arith.constant 0 : index
    %76 = vector.load %arg2[%c7_45, %c0_46, %c0_47] : memref<9x1x128xf32, #tpu.memory_space<vmem>>, vector<1x1x128xf32>
    %77 = vector.shape_cast %76 : vector<1x1x128xf32> to vector<1x128xf32>
    %78 = vector.broadcast %77 : vector<1x128xf32> to vector<8x128xf32>
    %79 = arith.mulf %75, %78 : vector<8x128xf32>
    %80 = arith.addf %70, %79 : vector<8x128xf32>
    %c8 = arith.constant 8 : index
    %c0_48 = arith.constant 0 : index
    %c0_49 = arith.constant 0 : index
    %81 = vector.load %arg1[%c8, %c0_48, %c0_49] : memref<9x8x128xbf16, #tpu.memory_space<vmem>>, vector<1x8x128xbf16>
    %82 = vector.shape_cast %81 : vector<1x8x128xbf16> to vector<8x128xbf16>
    %83 = arith.extf %82 : vector<8x128xbf16> to vector<8x128xf32>
    %cst_50 = arith.constant 0.000000e+00 : f32
    %84 = vector.broadcast %cst_50 : f32 to vector<8x128xf32>
    %85 = arith.maximumf %83, %84 : vector<8x128xf32>
    %c8_51 = arith.constant 8 : index
    %c0_52 = arith.constant 0 : index
    %c0_53 = arith.constant 0 : index
    %86 = vector.load %arg2[%c8_51, %c0_52, %c0_53] : memref<9x1x128xf32, #tpu.memory_space<vmem>>, vector<1x1x128xf32>
    %87 = vector.shape_cast %86 : vector<1x1x128xf32> to vector<1x128xf32>
    %88 = vector.broadcast %87 : vector<1x128xf32> to vector<8x128xf32>
    %89 = arith.mulf %85, %88 : vector<8x128xf32>
    %90 = arith.addf %80, %89 : vector<8x128xf32>
    %c0_54 = arith.constant 0 : index
    %c0_55 = arith.constant 0 : index
    %91 = vector.load %arg3[%c0_54, %c0_55] : memref<8x128xf32, #tpu.memory_space<vmem>>, vector<8x128xf32>
    tpu.vector_store %arg3[%c0_54, %c0_55], %90 {strides = array<i32>} : memref<8x128xf32, #tpu.memory_space<vmem>>, vector<8x128xf32>,
    return
  }
  func.func @transform_0(%arg0: i32) -> (i32, i32, i32) {
    %c0_i32 = arith.constant 0 : i32
    %c0_i32_0 = arith.constant 0 : i32
    %c0_i32_1 = arith.constant 0 : i32
    return %c0_i32, %arg0, %c0_i32_0 : i32, i32, i32
  }
  func.func @transform_1(%arg0: i32) -> (i32, i32, i32) {
    %c0_i32 = arith.constant 0 : i32
    %c0_i32_0 = arith.constant 0 : i32
    %c0_i32_1 = arith.constant 0 : i32
    %c0_i32_2 = arith.constant 0 : i32
    return %c0_i32, %c0_i32_0, %c0_i32_1 : i32, i32, i32
  }
  func.func @transform_2(%arg0: i32) -> (i32, i32) {
    %c0_i32 = arith.constant 0 : i32
    %c0_i32_0 = arith.constant 0 : i32
    return %arg0, %c0_i32 : i32, i32
  }
}

module attributes {stable_mosaic.version = 11 : i64} {
  func.func @_dw_kernel(%arg0: i32, %arg1: memref<25x8x128xbf16, #tpu.memory_space<vmem>>, %arg2: memref<25x1x128xf32, #tpu.memory_space<vmem>>, %arg3: memref<8x128xf32, #tpu.memory_space<vmem>>) attributes {dimension_semantics = [#tpu.dimension_semantics<parallel>], iteration_bounds = array<i64: 1>, scalar_prefetch = 0 : i64, scratch_operands = 0 : i64, tpu.core_type = #tpu.core_type<tc>, window_params = [{transform_indices = @transform_0, window_bounds = array<i64: 25, 8, 128>}, {pipeline_mode = #tpu.pipeline_mode<synchronous>, transform_indices = @transform_1, window_bounds = array<i64: 25, 1, 128>}, {transform_indices = @transform_2, window_bounds = array<i64: 8, 128>}]} {
    %cst = arith.constant 0.000000e+00 : f32
    %0 = vector.broadcast %cst : f32 to vector<8x128xf32>
    %c0 = arith.constant 0 : index
    %c0_0 = arith.constant 0 : index
    %c0_1 = arith.constant 0 : index
    %1 = vector.load %arg1[%c0, %c0_0, %c0_1] : memref<25x8x128xbf16, #tpu.memory_space<vmem>>, vector<1x8x128xbf16>
    %2 = vector.shape_cast %1 : vector<1x8x128xbf16> to vector<8x128xbf16>
    %3 = arith.extf %2 : vector<8x128xbf16> to vector<8x128xf32>
    %cst_2 = arith.constant 0.000000e+00 : f32
    %4 = vector.broadcast %cst_2 : f32 to vector<8x128xf32>
    %5 = arith.maximumf %3, %4 : vector<8x128xf32>
    %c0_3 = arith.constant 0 : index
    %c0_4 = arith.constant 0 : index
    %c0_5 = arith.constant 0 : index
    %6 = vector.load %arg2[%c0_3, %c0_4, %c0_5] : memref<25x1x128xf32, #tpu.memory_space<vmem>>, vector<1x1x128xf32>
    %7 = vector.shape_cast %6 : vector<1x1x128xf32> to vector<1x128xf32>
    %8 = vector.broadcast %7 : vector<1x128xf32> to vector<8x128xf32>
    %9 = arith.mulf %5, %8 : vector<8x128xf32>
    %10 = arith.addf %0, %9 : vector<8x128xf32>
    %c1 = arith.constant 1 : index
    %c0_6 = arith.constant 0 : index
    %c0_7 = arith.constant 0 : index
    %11 = vector.load %arg1[%c1, %c0_6, %c0_7] : memref<25x8x128xbf16, #tpu.memory_space<vmem>>, vector<1x8x128xbf16>
    %12 = vector.shape_cast %11 : vector<1x8x128xbf16> to vector<8x128xbf16>
    %13 = arith.extf %12 : vector<8x128xbf16> to vector<8x128xf32>
    %cst_8 = arith.constant 0.000000e+00 : f32
    %14 = vector.broadcast %cst_8 : f32 to vector<8x128xf32>
    %15 = arith.maximumf %13, %14 : vector<8x128xf32>
    %c1_9 = arith.constant 1 : index
    %c0_10 = arith.constant 0 : index
    %c0_11 = arith.constant 0 : index
    %16 = vector.load %arg2[%c1_9, %c0_10, %c0_11] : memref<25x1x128xf32, #tpu.memory_space<vmem>>, vector<1x1x128xf32>
    %17 = vector.shape_cast %16 : vector<1x1x128xf32> to vector<1x128xf32>
    %18 = vector.broadcast %17 : vector<1x128xf32> to vector<8x128xf32>
    %19 = arith.mulf %15, %18 : vector<8x128xf32>
    %20 = arith.addf %10, %19 : vector<8x128xf32>
    %c2 = arith.constant 2 : index
    %c0_12 = arith.constant 0 : index
    %c0_13 = arith.constant 0 : index
    %21 = vector.load %arg1[%c2, %c0_12, %c0_13] : memref<25x8x128xbf16, #tpu.memory_space<vmem>>, vector<1x8x128xbf16>
    %22 = vector.shape_cast %21 : vector<1x8x128xbf16> to vector<8x128xbf16>
    %23 = arith.extf %22 : vector<8x128xbf16> to vector<8x128xf32>
    %cst_14 = arith.constant 0.000000e+00 : f32
    %24 = vector.broadcast %cst_14 : f32 to vector<8x128xf32>
    %25 = arith.maximumf %23, %24 : vector<8x128xf32>
    %c2_15 = arith.constant 2 : index
    %c0_16 = arith.constant 0 : index
    %c0_17 = arith.constant 0 : index
    %26 = vector.load %arg2[%c2_15, %c0_16, %c0_17] : memref<25x1x128xf32, #tpu.memory_space<vmem>>, vector<1x1x128xf32>
    %27 = vector.shape_cast %26 : vector<1x1x128xf32> to vector<1x128xf32>
    %28 = vector.broadcast %27 : vector<1x128xf32> to vector<8x128xf32>
    %29 = arith.mulf %25, %28 : vector<8x128xf32>
    %30 = arith.addf %20, %29 : vector<8x128xf32>
    %c3 = arith.constant 3 : index
    %c0_18 = arith.constant 0 : index
    %c0_19 = arith.constant 0 : index
    %31 = vector.load %arg1[%c3, %c0_18, %c0_19] : memref<25x8x128xbf16, #tpu.memory_space<vmem>>, vector<1x8x128xbf16>
    %32 = vector.shape_cast %31 : vector<1x8x128xbf16> to vector<8x128xbf16>
    %33 = arith.extf %32 : vector<8x128xbf16> to vector<8x128xf32>
    %cst_20 = arith.constant 0.000000e+00 : f32
    %34 = vector.broadcast %cst_20 : f32 to vector<8x128xf32>
    %35 = arith.maximumf %33, %34 : vector<8x128xf32>
    %c3_21 = arith.constant 3 : index
    %c0_22 = arith.constant 0 : index
    %c0_23 = arith.constant 0 : index
    %36 = vector.load %arg2[%c3_21, %c0_22, %c0_23] : memref<25x1x128xf32, #tpu.memory_space<vmem>>, vector<1x1x128xf32>
    %37 = vector.shape_cast %36 : vector<1x1x128xf32> to vector<1x128xf32>
    %38 = vector.broadcast %37 : vector<1x128xf32> to vector<8x128xf32>
    %39 = arith.mulf %35, %38 : vector<8x128xf32>
    %40 = arith.addf %30, %39 : vector<8x128xf32>
    %c4 = arith.constant 4 : index
    %c0_24 = arith.constant 0 : index
    %c0_25 = arith.constant 0 : index
    %41 = vector.load %arg1[%c4, %c0_24, %c0_25] : memref<25x8x128xbf16, #tpu.memory_space<vmem>>, vector<1x8x128xbf16>
    %42 = vector.shape_cast %41 : vector<1x8x128xbf16> to vector<8x128xbf16>
    %43 = arith.extf %42 : vector<8x128xbf16> to vector<8x128xf32>
    %cst_26 = arith.constant 0.000000e+00 : f32
    %44 = vector.broadcast %cst_26 : f32 to vector<8x128xf32>
    %45 = arith.maximumf %43, %44 : vector<8x128xf32>
    %c4_27 = arith.constant 4 : index
    %c0_28 = arith.constant 0 : index
    %c0_29 = arith.constant 0 : index
    %46 = vector.load %arg2[%c4_27, %c0_28, %c0_29] : memref<25x1x128xf32, #tpu.memory_space<vmem>>, vector<1x1x128xf32>
    %47 = vector.shape_cast %46 : vector<1x1x128xf32> to vector<1x128xf32>
    %48 = vector.broadcast %47 : vector<1x128xf32> to vector<8x128xf32>
    %49 = arith.mulf %45, %48 : vector<8x128xf32>
    %50 = arith.addf %40, %49 : vector<8x128xf32>
    %c5 = arith.constant 5 : index
    %c0_30 = arith.constant 0 : index
    %c0_31 = arith.constant 0 : index
    %51 = vector.load %arg1[%c5, %c0_30, %c0_31] : memref<25x8x128xbf16, #tpu.memory_space<vmem>>, vector<1x8x128xbf16>
    %52 = vector.shape_cast %51 : vector<1x8x128xbf16> to vector<8x128xbf16>
    %53 = arith.extf %52 : vector<8x128xbf16> to vector<8x128xf32>
    %cst_32 = arith.constant 0.000000e+00 : f32
    %54 = vector.broadcast %cst_32 : f32 to vector<8x128xf32>
    %55 = arith.maximumf %53, %54 : vector<8x128xf32>
    %c5_33 = arith.constant 5 : index
    %c0_34 = arith.constant 0 : index
    %c0_35 = arith.constant 0 : index
    %56 = vector.load %arg2[%c5_33, %c0_34, %c0_35] : memref<25x1x128xf32, #tpu.memory_space<vmem>>, vector<1x1x128xf32>
    %57 = vector.shape_cast %56 : vector<1x1x128xf32> to vector<1x128xf32>
    %58 = vector.broadcast %57 : vector<1x128xf32> to vector<8x128xf32>
    %59 = arith.mulf %55, %58 : vector<8x128xf32>
    %60 = arith.addf %50, %59 : vector<8x128xf32>
    %c6 = arith.constant 6 : index
    %c0_36 = arith.constant 0 : index
    %c0_37 = arith.constant 0 : index
    %61 = vector.load %arg1[%c6, %c0_36, %c0_37] : memref<25x8x128xbf16, #tpu.memory_space<vmem>>, vector<1x8x128xbf16>
    %62 = vector.shape_cast %61 : vector<1x8x128xbf16> to vector<8x128xbf16>
    %63 = arith.extf %62 : vector<8x128xbf16> to vector<8x128xf32>
    %cst_38 = arith.constant 0.000000e+00 : f32
    %64 = vector.broadcast %cst_38 : f32 to vector<8x128xf32>
    %65 = arith.maximumf %63, %64 : vector<8x128xf32>
    %c6_39 = arith.constant 6 : index
    %c0_40 = arith.constant 0 : index
    %c0_41 = arith.constant 0 : index
    %66 = vector.load %arg2[%c6_39, %c0_40, %c0_41] : memref<25x1x128xf32, #tpu.memory_space<vmem>>, vector<1x1x128xf32>
    %67 = vector.shape_cast %66 : vector<1x1x128xf32> to vector<1x128xf32>
    %68 = vector.broadcast %67 : vector<1x128xf32> to vector<8x128xf32>
    %69 = arith.mulf %65, %68 : vector<8x128xf32>
    %70 = arith.addf %60, %69 : vector<8x128xf32>
    %c7 = arith.constant 7 : index
    %c0_42 = arith.constant 0 : index
    %c0_43 = arith.constant 0 : index
    %71 = vector.load %arg1[%c7, %c0_42, %c0_43] : memref<25x8x128xbf16, #tpu.memory_space<vmem>>, vector<1x8x128xbf16>
    %72 = vector.shape_cast %71 : vector<1x8x128xbf16> to vector<8x128xbf16>
    %73 = arith.extf %72 : vector<8x128xbf16> to vector<8x128xf32>
    %cst_44 = arith.constant 0.000000e+00 : f32
    %74 = vector.broadcast %cst_44 : f32 to vector<8x128xf32>
    %75 = arith.maximumf %73, %74 : vector<8x128xf32>
    %c7_45 = arith.constant 7 : index
    %c0_46 = arith.constant 0 : index
    %c0_47 = arith.constant 0 : index
    %76 = vector.load %arg2[%c7_45, %c0_46, %c0_47] : memref<25x1x128xf32, #tpu.memory_space<vmem>>, vector<1x1x128xf32>
    %77 = vector.shape_cast %76 : vector<1x1x128xf32> to vector<1x128xf32>
    %78 = vector.broadcast %77 : vector<1x128xf32> to vector<8x128xf32>
    %79 = arith.mulf %75, %78 : vector<8x128xf32>
    %80 = arith.addf %70, %79 : vector<8x128xf32>
    %c8 = arith.constant 8 : index
    %c0_48 = arith.constant 0 : index
    %c0_49 = arith.constant 0 : index
    %81 = vector.load %arg1[%c8, %c0_48, %c0_49] : memref<25x8x128xbf16, #tpu.memory_space<vmem>>, vector<1x8x128xbf16>
    %82 = vector.shape_cast %81 : vector<1x8x128xbf16> to vector<8x128xbf16>
    %83 = arith.extf %82 : vector<8x128xbf16> to vector<8x128xf32>
    %cst_50 = arith.constant 0.000000e+00 : f32
    %84 = vector.broadcast %cst_50 : f32 to vector<8x128xf32>
    %85 = arith.maximumf %83, %84 : vector<8x128xf32>
    %c8_51 = arith.constant 8 : index
    %c0_52 = arith.constant 0 : index
    %c0_53 = arith.constant 0 : index
    %86 = vector.load %arg2[%c8_51, %c0_52, %c0_53] : memref<25x1x128xf32, #tpu.memory_space<vmem>>, vector<1x1x128xf32>
    %87 = vector.shape_cast %86 : vector<1x1x128xf32> to vector<1x128xf32>
    %88 = vector.broadcast %87 : vector<1x128xf32> to vector<8x128xf32>
    %89 = arith.mulf %85, %88 : vector<8x128xf32>
    %90 = arith.addf %80, %89 : vector<8x128xf32>
    %c9 = arith.constant 9 : index
    %c0_54 = arith.constant 0 : index
    %c0_55 = arith.constant 0 : index
    %91 = vector.load %arg1[%c9, %c0_54, %c0_55] : memref<25x8x128xbf16, #tpu.memory_space<vmem>>, vector<1x8x128xbf16>
    %92 = vector.shape_cast %91 : vector<1x8x128xbf16> to vector<8x128xbf16>
    %93 = arith.extf %92 : vector<8x128xbf16> to vector<8x128xf32>
    %cst_56 = arith.constant 0.000000e+00 : f32
    %94 = vector.broadcast %cst_56 : f32 to vector<8x128xf32>
    %95 = arith.maximumf %93, %94 : vector<8x128xf32>
    %c9_57 = arith.constant 9 : index
    %c0_58 = arith.constant 0 : index
    %c0_59 = arith.constant 0 : index
    %96 = vector.load %arg2[%c9_57, %c0_58, %c0_59] : memref<25x1x128xf32, #tpu.memory_space<vmem>>, vector<1x1x128xf32>
    %97 = vector.shape_cast %96 : vector<1x1x128xf32> to vector<1x128xf32>
    %98 = vector.broadcast %97 : vector<1x128xf32> to vector<8x128xf32>
    %99 = arith.mulf %95, %98 : vector<8x128xf32>
    %100 = arith.addf %90, %99 : vector<8x128xf32>
    %c10 = arith.constant 10 : index
    %c0_60 = arith.constant 0 : index
    %c0_61 = arith.constant 0 : index
    %101 = vector.load %arg1[%c10, %c0_60, %c0_61] : memref<25x8x128xbf16, #tpu.memory_space<vmem>>, vector<1x8x128xbf16>
    %102 = vector.shape_cast %101 : vector<1x8x128xbf16> to vector<8x128xbf16>
    %103 = arith.extf %102 : vector<8x128xbf16> to vector<8x128xf32>
    %cst_62 = arith.constant 0.000000e+00 : f32
    %104 = vector.broadcast %cst_62 : f32 to vector<8x128xf32>
    %105 = arith.maximumf %103, %104 : vector<8x128xf32>
    %c10_63 = arith.constant 10 : index
    %c0_64 = arith.constant 0 : index
    %c0_65 = arith.constant 0 : index
    %106 = vector.load %arg2[%c10_63, %c0_64, %c0_65] : memref<25x1x128xf32, #tpu.memory_space<vmem>>, vector<1x1x128xf32>
    %107 = vector.shape_cast %106 : vector<1x1x128xf32> to vector<1x128xf32>
    %108 = vector.broadcast %107 : vector<1x128xf32> to vector<8x128xf32>
    %109 = arith.mulf %105, %108 : vector<8x128xf32>
    %110 = arith.addf %100, %109 : vector<8x128xf32>
    %c11 = arith.constant 11 : index
    %c0_66 = arith.constant 0 : index
    %c0_67 = arith.constant 0 : index
    %111 = vector.load %arg1[%c11, %c0_66, %c0_67] : memref<25x8x128xbf16, #tpu.memory_space<vmem>>, vector<1x8x128xbf16>
    %112 = vector.shape_cast %111 : vector<1x8x128xbf16> to vector<8x128xbf16>
    %113 = arith.extf %112 : vector<8x128xbf16> to vector<8x128xf32>
    %cst_68 = arith.constant 0.000000e+00 : f32
    %114 = vector.broadcast %cst_68 : f32 to vector<8x128xf32>
    %115 = arith.maximumf %113, %114 : vector<8x128xf32>
    %c11_69 = arith.constant 11 : index
    %c0_70 = arith.constant 0 : index
    %c0_71 = arith.constant 0 : index
    %116 = vector.load %arg2[%c11_69, %c0_70, %c0_71] : memref<25x1x128xf32, #tpu.memory_space<vmem>>, vector<1x1x128xf32>
    %117 = vector.shape_cast %116 : vector<1x1x128xf32> to vector<1x128xf32>
    %118 = vector.broadcast %117 : vector<1x128xf32> to vector<8x128xf32>
    %119 = arith.mulf %115, %118 : vector<8x128xf32>
    %120 = arith.addf %110, %119 : vector<8x128xf32>
    %c12 = arith.constant 12 : index
    %c0_72 = arith.constant 0 : index
    %c0_73 = arith.constant 0 : index
    %121 = vector.load %arg1[%c12, %c0_72, %c0_73] : memref<25x8x128xbf16, #tpu.memory_space<vmem>>, vector<1x8x128xbf16>
    %122 = vector.shape_cast %121 : vector<1x8x128xbf16> to vector<8x128xbf16>
    %123 = arith.extf %122 : vector<8x128xbf16> to vector<8x128xf32>
    %cst_74 = arith.constant 0.000000e+00 : f32
    %124 = vector.broadcast %cst_74 : f32 to vector<8x128xf32>
    %125 = arith.maximumf %123, %124 : vector<8x128xf32>
    %c12_75 = arith.constant 12 : index
    %c0_76 = arith.constant 0 : index
    %c0_77 = arith.constant 0 : index
    %126 = vector.load %arg2[%c12_75, %c0_76, %c0_77] : memref<25x1x128xf32, #tpu.memory_space<vmem>>, vector<1x1x128xf32>
    %127 = vector.shape_cast %126 : vector<1x1x128xf32> to vector<1x128xf32>
    %128 = vector.broadcast %127 : vector<1x128xf32> to vector<8x128xf32>
    %129 = arith.mulf %125, %128 : vector<8x128xf32>
    %130 = arith.addf %120, %129 : vector<8x128xf32>
    %c13 = arith.constant 13 : index
    %c0_78 = arith.constant 0 : index
    %c0_79 = arith.constant 0 : index
    %131 = vector.load %arg1[%c13, %c0_78, %c0_79] : memref<25x8x128xbf16, #tpu.memory_space<vmem>>, vector<1x8x128xbf16>
    %132 = vector.shape_cast %131 : vector<1x8x128xbf16> to vector<8x128xbf16>
    %133 = arith.extf %132 : vector<8x128xbf16> to vector<8x128xf32>
    %cst_80 = arith.constant 0.000000e+00 : f32
    %134 = vector.broadcast %cst_80 : f32 to vector<8x128xf32>
    %135 = arith.maximumf %133, %134 : vector<8x128xf32>
    %c13_81 = arith.constant 13 : index
    %c0_82 = arith.constant 0 : index
    %c0_83 = arith.constant 0 : index
    %136 = vector.load %arg2[%c13_81, %c0_82, %c0_83] : memref<25x1x128xf32, #tpu.memory_space<vmem>>, vector<1x1x128xf32>
    %137 = vector.shape_cast %136 : vector<1x1x128xf32> to vector<1x128xf32>
    %138 = vector.broadcast %137 : vector<1x128xf32> to vector<8x128xf32>
    %139 = arith.mulf %135, %138 : vector<8x128xf32>
    %140 = arith.addf %130, %139 : vector<8x128xf32>
    %c14 = arith.constant 14 : index
    %c0_84 = arith.constant 0 : index
    %c0_85 = arith.constant 0 : index
    %141 = vector.load %arg1[%c14, %c0_84, %c0_85] : memref<25x8x128xbf16, #tpu.memory_space<vmem>>, vector<1x8x128xbf16>
    %142 = vector.shape_cast %141 : vector<1x8x128xbf16> to vector<8x128xbf16>
    %143 = arith.extf %142 : vector<8x128xbf16> to vector<8x128xf32>
    %cst_86 = arith.constant 0.000000e+00 : f32
    %144 = vector.broadcast %cst_86 : f32 to vector<8x128xf32>
    %145 = arith.maximumf %143, %144 : vector<8x128xf32>
    %c14_87 = arith.constant 14 : index
    %c0_88 = arith.constant 0 : index
    %c0_89 = arith.constant 0 : index
    %146 = vector.load %arg2[%c14_87, %c0_88, %c0_89] : memref<25x1x128xf32, #tpu.memory_space<vmem>>, vector<1x1x128xf32>
    %147 = vector.shape_cast %146 : vector<1x1x128xf32> to vector<1x128xf32>
    %148 = vector.broadcast %147 : vector<1x128xf32> to vector<8x128xf32>
    %149 = arith.mulf %145, %148 : vector<8x128xf32>
    %150 = arith.addf %140, %149 : vector<8x128xf32>
    %c15 = arith.constant 15 : index
    %c0_90 = arith.constant 0 : index
    %c0_91 = arith.constant 0 : index
    %151 = vector.load %arg1[%c15, %c0_90, %c0_91] : memref<25x8x128xbf16, #tpu.memory_space<vmem>>, vector<1x8x128xbf16>
    %152 = vector.shape_cast %151 : vector<1x8x128xbf16> to vector<8x128xbf16>
    %153 = arith.extf %152 : vector<8x128xbf16> to vector<8x128xf32>
    %cst_92 = arith.constant 0.000000e+00 : f32
    %154 = vector.broadcast %cst_92 : f32 to vector<8x128xf32>
    %155 = arith.maximumf %153, %154 : vector<8x128xf32>
    %c15_93 = arith.constant 15 : index
    %c0_94 = arith.constant 0 : index
    %c0_95 = arith.constant 0 : index
    %156 = vector.load %arg2[%c15_93, %c0_94, %c0_95] : memref<25x1x128xf32, #tpu.memory_space<vmem>>, vector<1x1x128xf32>
    %157 = vector.shape_cast %156 : vector<1x1x128xf32> to vector<1x128xf32>
    %158 = vector.broadcast %157 : vector<1x128xf32> to vector<8x128xf32>
    %159 = arith.mulf %155, %158 : vector<8x128xf32>
    %160 = arith.addf %150, %159 : vector<8x128xf32>
    %c16 = arith.constant 16 : index
    %c0_96 = arith.constant 0 : index
    %c0_97 = arith.constant 0 : index
    %161 = vector.load %arg1[%c16, %c0_96, %c0_97] : memref<25x8x128xbf16, #tpu.memory_space<vmem>>, vector<1x8x128xbf16>
    %162 = vector.shape_cast %161 : vector<1x8x128xbf16> to vector<8x128xbf16>
    %163 = arith.extf %162 : vector<8x128xbf16> to vector<8x128xf32>
    %cst_98 = arith.constant 0.000000e+00 : f32
    %164 = vector.broadcast %cst_98 : f32 to vector<8x128xf32>
    %165 = arith.maximumf %163, %164 : vector<8x128xf32>
    %c16_99 = arith.constant 16 : index
    %c0_100 = arith.constant 0 : index
    %c0_101 = arith.constant 0 : index
    %166 = vector.load %arg2[%c16_99, %c0_100, %c0_101] : memref<25x1x128xf32, #tpu.memory_space<vmem>>, vector<1x1x128xf32>
    %167 = vector.shape_cast %166 : vector<1x1x128xf32> to vector<1x128xf32>
    %168 = vector.broadcast %167 : vector<1x128xf32> to vector<8x128xf32>
    %169 = arith.mulf %165, %168 : vector<8x128xf32>
    %170 = arith.addf %160, %169 : vector<8x128xf32>
    %c17 = arith.constant 17 : index
    %c0_102 = arith.constant 0 : index
    %c0_103 = arith.constant 0 : index
    %171 = vector.load %arg1[%c17, %c0_102, %c0_103] : memref<25x8x128xbf16, #tpu.memory_space<vmem>>, vector<1x8x128xbf16>
    %172 = vector.shape_cast %171 : vector<1x8x128xbf16> to vector<8x128xbf16>
    %173 = arith.extf %172 : vector<8x128xbf16> to vector<8x128xf32>
    %cst_104 = arith.constant 0.000000e+00 : f32
    %174 = vector.broadcast %cst_104 : f32 to vector<8x128xf32>
    %175 = arith.maximumf %173, %174 : vector<8x128xf32>
    %c17_105 = arith.constant 17 : index
    %c0_106 = arith.constant 0 : index
    %c0_107 = arith.constant 0 : index
    %176 = vector.load %arg2[%c17_105, %c0_106, %c0_107] : memref<25x1x128xf32, #tpu.memory_space<vmem>>, vector<1x1x128xf32>
    %177 = vector.shape_cast %176 : vector<1x1x128xf32> to vector<1x128xf32>
    %178 = vector.broadcast %177 : vector<1x128xf32> to vector<8x128xf32>
    %179 = arith.mulf %175, %178 : vector<8x128xf32>
    %180 = arith.addf %170, %179 : vector<8x128xf32>
    %c18 = arith.constant 18 : index
    %c0_108 = arith.constant 0 : index
    %c0_109 = arith.constant 0 : index
    %181 = vector.load %arg1[%c18, %c0_108, %c0_109] : memref<25x8x128xbf16, #tpu.memory_space<vmem>>, vector<1x8x128xbf16>
    %182 = vector.shape_cast %181 : vector<1x8x128xbf16> to vector<8x128xbf16>
    %183 = arith.extf %182 : vector<8x128xbf16> to vector<8x128xf32>
    %cst_110 = arith.constant 0.000000e+00 : f32
    %184 = vector.broadcast %cst_110 : f32 to vector<8x128xf32>
    %185 = arith.maximumf %183, %184 : vector<8x128xf32>
    %c18_111 = arith.constant 18 : index
    %c0_112 = arith.constant 0 : index
    %c0_113 = arith.constant 0 : index
    %186 = vector.load %arg2[%c18_111, %c0_112, %c0_113] : memref<25x1x128xf32, #tpu.memory_space<vmem>>, vector<1x1x128xf32>
    %187 = vector.shape_cast %186 : vector<1x1x128xf32> to vector<1x128xf32>
    %188 = vector.broadcast %187 : vector<1x128xf32> to vector<8x128xf32>
    %189 = arith.mulf %185, %188 : vector<8x128xf32>
    %190 = arith.addf %180, %189 : vector<8x128xf32>
    %c19 = arith.constant 19 : index
    %c0_114 = arith.constant 0 : index
    %c0_115 = arith.constant 0 : index
    %191 = vector.load %arg1[%c19, %c0_114, %c0_115] : memref<25x8x128xbf16, #tpu.memory_space<vmem>>, vector<1x8x128xbf16>
    %192 = vector.shape_cast %191 : vector<1x8x128xbf16> to vector<8x128xbf16>
    %193 = arith.extf %192 : vector<8x128xbf16> to vector<8x128xf32>
    %cst_116 = arith.constant 0.000000e+00 : f32
    %194 = vector.broadcast %cst_116 : f32 to vector<8x128xf32>
    %195 = arith.maximumf %193, %194 : vector<8x128xf32>
    %c19_117 = arith.constant 19 : index
    %c0_118 = arith.constant 0 : index
    %c0_119 = arith.constant 0 : index
    %196 = vector.load %arg2[%c19_117, %c0_118, %c0_119] : memref<25x1x128xf32, #tpu.memory_space<vmem>>, vector<1x1x128xf32>
    %197 = vector.shape_cast %196 : vector<1x1x128xf32> to vector<1x128xf32>
    %198 = vector.broadcast %197 : vector<1x128xf32> to vector<8x128xf32>
    %199 = arith.mulf %195, %198 : vector<8x128xf32>
    %200 = arith.addf %190, %199 : vector<8x128xf32>
    %c20 = arith.constant 20 : index
    %c0_120 = arith.constant 0 : index
    %c0_121 = arith.constant 0 : index
    %201 = vector.load %arg1[%c20, %c0_120, %c0_121] : memref<25x8x128xbf16, #tpu.memory_space<vmem>>, vector<1x8x128xbf16>
    %202 = vector.shape_cast %201 : vector<1x8x128xbf16> to vector<8x128xbf16>
    %203 = arith.extf %202 : vector<8x128xbf16> to vector<8x128xf32>
    %cst_122 = arith.constant 0.000000e+00 : f32
    %204 = vector.broadcast %cst_122 : f32 to vector<8x128xf32>
    %205 = arith.maximumf %203, %204 : vector<8x128xf32>
    %c20_123 = arith.constant 20 : index
    %c0_124 = arith.constant 0 : index
    %c0_125 = arith.constant 0 : index
    %206 = vector.load %arg2[%c20_123, %c0_124, %c0_125] : memref<25x1x128xf32, #tpu.memory_space<vmem>>, vector<1x1x128xf32>
    %207 = vector.shape_cast %206 : vector<1x1x128xf32> to vector<1x128xf32>
    %208 = vector.broadcast %207 : vector<1x128xf32> to vector<8x128xf32>
    %209 = arith.mulf %205, %208 : vector<8x128xf32>
    %210 = arith.addf %200, %209 : vector<8x128xf32>
    %c21 = arith.constant 21 : index
    %c0_126 = arith.constant 0 : index
    %c0_127 = arith.constant 0 : index
    %211 = vector.load %arg1[%c21, %c0_126, %c0_127] : memref<25x8x128xbf16, #tpu.memory_space<vmem>>, vector<1x8x128xbf16>
    %212 = vector.shape_cast %211 : vector<1x8x128xbf16> to vector<8x128xbf16>
    %213 = arith.extf %212 : vector<8x128xbf16> to vector<8x128xf32>
    %cst_128 = arith.constant 0.000000e+00 : f32
    %214 = vector.broadcast %cst_128 : f32 to vector<8x128xf32>
    %215 = arith.maximumf %213, %214 : vector<8x128xf32>
    %c21_129 = arith.constant 21 : index
    %c0_130 = arith.constant 0 : index
    %c0_131 = arith.constant 0 : index
    %216 = vector.load %arg2[%c21_129, %c0_130, %c0_131] : memref<25x1x128xf32, #tpu.memory_space<vmem>>, vector<1x1x128xf32>
    %217 = vector.shape_cast %216 : vector<1x1x128xf32> to vector<1x128xf32>
    %218 = vector.broadcast %217 : vector<1x128xf32> to vector<8x128xf32>
    %219 = arith.mulf %215, %218 : vector<8x128xf32>
    %220 = arith.addf %210, %219 : vector<8x128xf32>
    %c22 = arith.constant 22 : index
    %c0_132 = arith.constant 0 : index
    %c0_133 = arith.constant 0 : index
    %221 = vector.load %arg1[%c22, %c0_132, %c0_133] : memref<25x8x128xbf16, #tpu.memory_space<vmem>>, vector<1x8x128xbf16>
    %222 = vector.shape_cast %221 : vector<1x8x128xbf16> to vector<8x128xbf16>
    %223 = arith.extf %222 : vector<8x128xbf16> to vector<8x128xf32>
    %cst_134 = arith.constant 0.000000e+00 : f32
    %224 = vector.broadcast %cst_134 : f32 to vector<8x128xf32>
    %225 = arith.maximumf %223, %224 : vector<8x128xf32>
    %c22_135 = arith.constant 22 : index
    %c0_136 = arith.constant 0 : index
    %c0_137 = arith.constant 0 : index
    %226 = vector.load %arg2[%c22_135, %c0_136, %c0_137] : memref<25x1x128xf32, #tpu.memory_space<vmem>>, vector<1x1x128xf32>
    %227 = vector.shape_cast %226 : vector<1x1x128xf32> to vector<1x128xf32>
    %228 = vector.broadcast %227 : vector<1x128xf32> to vector<8x128xf32>
    %229 = arith.mulf %225, %228 : vector<8x128xf32>
    %230 = arith.addf %220, %229 : vector<8x128xf32>
    %c23 = arith.constant 23 : index
    %c0_138 = arith.constant 0 : index
    %c0_139 = arith.constant 0 : index
    %231 = vector.load %arg1[%c23, %c0_138, %c0_139] : memref<25x8x128xbf16, #tpu.memory_space<vmem>>, vector<1x8x128xbf16>
    %232 = vector.shape_cast %231 : vector<1x8x128xbf16> to vector<8x128xbf16>
    %233 = arith.extf %232 : vector<8x128xbf16> to vector<8x128xf32>
    %cst_140 = arith.constant 0.000000e+00 : f32
    %234 = vector.broadcast %cst_140 : f32 to vector<8x128xf32>
    %235 = arith.maximumf %233, %234 : vector<8x128xf32>
    %c23_141 = arith.constant 23 : index
    %c0_142 = arith.constant 0 : index
    %c0_143 = arith.constant 0 : index
    %236 = vector.load %arg2[%c23_141, %c0_142, %c0_143] : memref<25x1x128xf32, #tpu.memory_space<vmem>>, vector<1x1x128xf32>
    %237 = vector.shape_cast %236 : vector<1x1x128xf32> to vector<1x128xf32>
    %238 = vector.broadcast %237 : vector<1x128xf32> to vector<8x128xf32>
    %239 = arith.mulf %235, %238 : vector<8x128xf32>
    %240 = arith.addf %230, %239 : vector<8x128xf32>
    %c24 = arith.constant 24 : index
    %c0_144 = arith.constant 0 : index
    %c0_145 = arith.constant 0 : index
    %241 = vector.load %arg1[%c24, %c0_144, %c0_145] : memref<25x8x128xbf16, #tpu.memory_space<vmem>>, vector<1x8x128xbf16>
    %242 = vector.shape_cast %241 : vector<1x8x128xbf16> to vector<8x128xbf16>
    %243 = arith.extf %242 : vector<8x128xbf16> to vector<8x128xf32>
    %cst_146 = arith.constant 0.000000e+00 : f32
    %244 = vector.broadcast %cst_146 : f32 to vector<8x128xf32>
    %245 = arith.maximumf %243, %244 : vector<8x128xf32>
    %c24_147 = arith.constant 24 : index
    %c0_148 = arith.constant 0 : index
    %c0_149 = arith.constant 0 : index
    %246 = vector.load %arg2[%c24_147, %c0_148, %c0_149] : memref<25x1x128xf32, #tpu.memory_space<vmem>>, vector<1x1x128xf32>
    %247 = vector.shape_cast %246 : vector<1x1x128xf32> to vector<1x128xf32>
    %248 = vector.broadcast %247 : vector<1x128xf32> to vector<8x128xf32>
    %249 = arith.mulf %245, %248 : vector<8x128xf32>
    %250 = arith.addf %240, %249 : vector<8x128xf32>
    %c0_150 = arith.constant 0 : index
    %c0_151 = arith.constant 0 : index
    %251 = vector.load %arg3[%c0_150, %c0_151] : memref<8x128xf32, #tpu.memory_space<vmem>>, vector<8x128xf32>
    tpu.vector_store %arg3[%c0_150, %c0_151], %250 {strides = array<i32>} : memref<8x128xf32, #tpu.memory_space<vmem>>, vector<8x128xf32>,
    return
  }
  func.func @transform_0(%arg0: i32) -> (i32, i32, i32) {
    %c0_i32 = arith.constant 0 : i32
    %c0_i32_0 = arith.constant 0 : i32
    %c0_i32_1 = arith.constant 0 : i32
    return %c0_i32, %arg0, %c0_i32_0 : i32, i32, i32
  }
  func.func @transform_1(%arg0: i32) -> (i32, i32, i32) {
    %c0_i32 = arith.constant 0 : i32
    %c0_i32_0 = arith.constant 0 : i32
    %c0_i32_1 = arith.constant 0 : i32
    %c0_i32_2 = arith.constant 0 : i32
    return %c0_i32, %c0_i32_0, %c0_i32_1 : i32, i32, i32
  }
  func.func @transform_2(%arg0: i32) -> (i32, i32) {
    %c0_i32 = arith.constant 0 : i32
    %c0_i32_0 = arith.constant 0 : i32
    return %arg0, %c0_i32 : i32, i32
  }
}

module attributes {stable_mosaic.version = 11 : i64} {
  func.func @_matmul_kernel_single(%arg0: i32, %arg1: i32, %arg2: i32, %arg3: memref<128x32xbf16, #tpu.memory_space<vmem>>, %arg4: memref<32x32xbf16, #tpu.memory_space<vmem>>, %arg5: memref<128x32xf32, #tpu.memory_space<vmem>>) attributes {dimension_semantics = [#tpu.dimension_semantics<parallel>, #tpu.dimension_semantics<parallel>, #tpu.dimension_semantics<arbitrary>], iteration_bounds = array<i64: 1, 1, 1>, scalar_prefetch = 0 : i64, scratch_operands = 0 : i64, tpu.core_type = #tpu.core_type<tc>, window_params = [{transform_indices = @transform_0, window_bounds = array<i64: 128, 32>}, {transform_indices = @transform_1, window_bounds = array<i64: 32, 32>}, {transform_indices = @transform_2, window_bounds = array<i64: 128, 32>}]} {
    %c0 = arith.constant 0 : index
    %c0_0 = arith.constant 0 : index
    %0 = vector.load %arg3[%c0, %c0_0] : memref<128x32xbf16, #tpu.memory_space<vmem>>, vector<128x32xbf16>
    %cst = arith.constant 0.000000e+00 : bf16
    %1 = vector.broadcast %cst : bf16 to vector<128x32xbf16>
    %2 = arith.maximumf %0, %1 : vector<128x32xbf16>
    %c0_1 = arith.constant 0 : index
    %c0_2 = arith.constant 0 : index
    %3 = vector.load %arg4[%c0_1, %c0_2] : memref<32x32xbf16, #tpu.memory_space<vmem>>, vector<32x32xbf16>
    %cst_3 = arith.constant dense<0.000000e+00> : vector<128x32xf32>
    %4 = tpu.matmul %2, %3, %cst_3 {dimension_numbers = #tpu.dot_dimension_numbers<[1], [0], [0], [1], [0, 0, 1, 1], [], []>} : vector<128x32xbf16>, vector<32x32xbf16>, vector<128x32xf32> -> vector<128x32xf32>
    %c0_4 = arith.constant 0 : index
    %c0_5 = arith.constant 0 : index
    %5 = vector.load %arg5[%c0_4, %c0_5] : memref<128x32xf32, #tpu.memory_space<vmem>>, vector<128x32xf32>
    tpu.vector_store %arg5[%c0_4, %c0_5], %4 {strides = array<i32>} : memref<128x32xf32, #tpu.memory_space<vmem>>, vector<128x32xf32>,
    return
  }
  func.func @transform_0(%arg0: i32, %arg1: i32, %arg2: i32) -> (i32, i32) {
    %c0_i32 = arith.constant 0 : i32
    return %arg0, %arg2 : i32, i32
  }
  func.func @transform_1(%arg0: i32, %arg1: i32, %arg2: i32) -> (i32, i32) {
    %c0_i32 = arith.constant 0 : i32
    return %arg2, %arg1 : i32, i32
  }
  func.func @transform_2(%arg0: i32, %arg1: i32, %arg2: i32) -> (i32, i32) {
    %c0_i32 = arith.constant 0 : i32
    return %arg0, %arg1 : i32, i32
  }
}

module attributes {stable_mosaic.version = 11 : i64} {
  func.func @_matmul_kernel_single(%arg0: i32, %arg1: i32, %arg2: i32, %arg3: memref<16x64xbf16, #tpu.memory_space<vmem>>, %arg4: memref<64x10xbf16, #tpu.memory_space<vmem>>, %arg5: memref<16x10xf32, #tpu.memory_space<vmem>>) attributes {dimension_semantics = [#tpu.dimension_semantics<parallel>, #tpu.dimension_semantics<parallel>, #tpu.dimension_semantics<arbitrary>], iteration_bounds = array<i64: 1, 1, 1>, scalar_prefetch = 0 : i64, scratch_operands = 0 : i64, tpu.core_type = #tpu.core_type<tc>, window_params = [{transform_indices = @transform_0, window_bounds = array<i64: 16, 64>}, {transform_indices = @transform_1, window_bounds = array<i64: 64, 10>}, {transform_indices = @transform_2, window_bounds = array<i64: 16, 10>}]} {
    %c0 = arith.constant 0 : index
    %c0_0 = arith.constant 0 : index
    %0 = vector.load %arg3[%c0, %c0_0] : memref<16x64xbf16, #tpu.memory_space<vmem>>, vector<16x64xbf16>
    %c0_1 = arith.constant 0 : index
    %c0_2 = arith.constant 0 : index
    %1 = vector.load %arg4[%c0_1, %c0_2] : memref<64x10xbf16, #tpu.memory_space<vmem>>, vector<64x10xbf16>
    %cst = arith.constant dense<0.000000e+00> : vector<16x10xf32>
    %2 = tpu.matmul %0, %1, %cst {dimension_numbers = #tpu.dot_dimension_numbers<[1], [0], [0], [1], [0, 0, 1, 1], [], []>} : vector<16x64xbf16>, vector<64x10xbf16>, vector<16x10xf32> -> vector<16x10xf32>
    %c0_3 = arith.constant 0 : index
    %c0_4 = arith.constant 0 : index
    %3 = vector.load %arg5[%c0_3, %c0_4] : memref<16x10xf32, #tpu.memory_space<vmem>>, vector<16x10xf32>
    tpu.vector_store %arg5[%c0_3, %c0_4], %2 {strides = array<i32>} : memref<16x10xf32, #tpu.memory_space<vmem>>, vector<16x10xf32>,
    return
  }
  func.func @transform_0(%arg0: i32, %arg1: i32, %arg2: i32) -> (i32, i32) {
    %c0_i32 = arith.constant 0 : i32
    return %arg0, %arg2 : i32, i32
  }
  func.func @transform_1(%arg0: i32, %arg1: i32, %arg2: i32) -> (i32, i32) {
    %c0_i32 = arith.constant 0 : i32
    return %arg2, %arg1 : i32, i32
  }
  func.func @transform_2(%arg0: i32, %arg1: i32, %arg2: i32) -> (i32, i32) {
    %c0_i32 = arith.constant 0 : i32
    return %arg0, %arg1 : i32, i32
  }
}

</mosaic_0001>

<llo_original>
// kernel: pdarts_cnn_forward.205
$region0: #{pdarts_cnn_forward.205}
  #allocation0 [shape = 'u32[]', space=smem, size = 0x4, offset = 0x4, fixed_abs, tag = 'smem constant byte address 0x4 - core index']
  #allocation1 [shape = 'u32[144,128]{1,0:T(1,128)}', space=vmem, size = 0x12000, scoped, tag = 'internal scratch']
  %s0 = inlined_call_operand.vmem [shape: bf16[512,27], index: 0, kind: input, shape index: {}]
  %s1 = inlined_call_operand.vmem [shape: bf16[27,24], index: 1, kind: input, shape index: {}]
  %s2 = inlined_call_operand.vmem [shape: f32[512,24], index: 2, kind: output, shape index: {}]
  %s3 = sld [smem:[#allocation0]]
  $region41: #{pdarts_cnn_forward.205} parent=0
    _
  %s5 = ssub.s32 1, %s3
  %s6 = scalar_select 0, %s5, %s3
  loop: start=0, step=1, limit=4
  $region2: #{pdarts_cnn_forward.205} parent=0 // loop_pre_header
    _
  $region3: #{pdarts_cnn_forward.205} parent=0 // loop_header
    %s8 = sphi 0, %s12
    %p9 = scmp.ge.s32.totalorder %s8, 4
    %s15 = sphi 0, %s34
    %s16 = sphi 0, %s30
    %s17 = sphi 0, %s26
    %s18 = sphi 0, %s15
    %s19 = sphi 0, %s16
    %s20 = sphi 0, %s17
    %s21 = sphi 0, %s18
    %s22 = sphi 0, %s19
    %s23 = sphi 0, %s20
    %s39 = sphi 0, %s41
    %s42 = sphi 0, %s39
    %s43 = sphi 0, %s42
    %s59 = sphi 0, %s43
    %s67 = sphi 0, %s69
    %s70 = sphi 0, %s67
    %s71 = sphi 0, %s70
    %s87 = sphi 0, %s71
    %s95 = sphi 0, %s97
    %s98 = sphi 0, %s95
    %s99 = sphi 0, %s98
    %s115 = sphi 0, %s99
  $region4: #{pdarts_cnn_forward.205} parent=0 // loop_header_branch
    %11 = sbr.rel (%p9) target = $region8
  $region5: #{pdarts_cnn_forward.205} parent=0 // loop_body
    %s13 = ssub.s32 %s8, 1
    %s14 = ssub.s32 %s8, 2
    %s24 = sadd.s32 1, %s17
    %p25 = scmp.ge.s32.totalorder %s24, 1
    %s26 = scalar_select %p25, 0, %s24
    %s27 = sadd.s32 1, %s16
    %s28 = scalar_select %p25, %s27, %s16
    %p29 = scmp.ge.s32.totalorder %s28, 1
    %s30 = scalar_select %p29, 0, %s28
    %s31 = sadd.s32 1, %s15
    %s32 = scalar_select %p29, %s31, %s15
    %p33 = scmp.ge.s32.totalorder %s32, 2
    %s34 = scalar_select %p33, 0, %s32
    %s35 = ssub.s32 %s15, %s34
    %s36 = ssub.s32 %s17, %s26
    %s37 = sor.u32 %s35, %s36
    %p38 = scmp.eq.s32.totalorder %s37, 0
    %s40 = sadd.s32 %s39, 1
    %s41 = scalar_select %p38, %s39, %s40
    %p44 = pneg %p38
    %p45 = scmp.eq.s32.totalorder %s8, 1
    %p46 = por %p44, %p45
    %p47 = scmp.ne.s32.totalorder %s39, %s42
    %p48 = scmp.eq.s32.totalorder %s8, 0
    %p49 = por %p47, %p48
    %p50 = scmp.ne.s32.totalorder %s39, %s42
    %p51 = scmp.eq.s32.totalorder %s13, 1
    %p52 = por %p50, %p51
    %p53 = scmp.ne.s32.totalorder %s42, %s43
    %p54 = scmp.eq.s32.totalorder %s13, 0
    %p55 = por %p53, %p54
    %p56 = scmp.ne.s32.totalorder %s42, %s43
    %p57 = scmp.eq.s32.totalorder %s14, 1
    %p58 = por %p56, %p57
    %p60 = scmp.ne.s32.totalorder %s43, %s59
    %p61 = scmp.eq.s32.totalorder %s14, 0
    %p62 = por %p60, %p61
    %s63 = ssub.s32 %s17, %s26
    %s64 = ssub.s32 %s16, %s30
    %s65 = sor.u32 %s63, %s64
    %p66 = scmp.eq.s32.totalorder %s65, 0
    %s68 = sadd.s32 %s67, 1
    %s69 = scalar_select %p66, %s67, %s68
    %p72 = pneg %p66
    %p73 = scmp.eq.s32.totalorder %s8, 1
    %p74 = por %p72, %p73
    %p75 = scmp.ne.s32.totalorder %s67, %s70
    %p76 = scmp.eq.s32.totalorder %s8, 0
    %p77 = por %p75, %p76
    %p78 = scmp.ne.s32.totalorder %s67, %s70
    %p79 = scmp.eq.s32.totalorder %s13, 1
    %p80 = por %p78, %p79
    %p81 = scmp.ne.s32.totalorder %s70, %s71
    %p82 = scmp.eq.s32.totalorder %s13, 0
    %p83 = por %p81, %p82
    %p84 = scmp.ne.s32.totalorder %s70, %s71
    %p85 = scmp.eq.s32.totalorder %s14, 1
    %p86 = por %p84, %p85
    %p88 = scmp.ne.s32.totalorder %s71, %s87
    %p89 = scmp.eq.s32.totalorder %s14, 0
    %p90 = por %p88, %p89
    %s91 = ssub.s32 %s15, %s34
    %s92 = ssub.s32 %s16, %s30
    %s93 = sor.u32 %s91, %s92
    %p94 = scmp.eq.s32.totalorder %s93, 0
    %s96 = sadd.s32 %s95, 1
    %s97 = scalar_select %p94, %s95, %s96
    %p100 = pneg %p94
    %p101 = scmp.eq.s32.totalorder %s8, 1
    %p102 = por %p100, %p101
    %p103 = scmp.ne.s32.totalorder %s95, %s98
    %p104 = scmp.eq.s32.totalorder %s8, 0
    %p105 = por %p103, %p104
    %p106 = scmp.ne.s32.totalorder %s95, %s98
    %p107 = scmp.eq.s32.totalorder %s13, 1
    %p108 = por %p106, %p107
    %p109 = scmp.ne.s32.totalorder %s98, %s99
    %p110 = scmp.eq.s32.totalorder %s13, 0
    %p111 = por %p109, %p110
    %p112 = scmp.ne.s32.totalorder %s98, %s99
    %p113 = scmp.eq.s32.totalorder %s14, 1
    %p114 = por %p112, %p113
    %p116 = scmp.ne.s32.totalorder %s99, %s115
    %p117 = scmp.eq.s32.totalorder %s14, 0
    %p118 = por %p116, %p117
    %p119 = scmp.le.s32.totalorder 1, %s8
    %p120 = scmp.lt.s32.totalorder %s8, 3
    %p121 = pnand %p119, %p120
    %p122 = pneg %p121
    // Predicated region
    $region9: #{pdarts_cnn_forward.205} parent=5 // pred_check
      _
    $region10: #{pdarts_cnn_forward.205} parent=5 // pred_check_branch
      %124 = sbr.rel (%p121) target = $region12
    $region11: #{pdarts_cnn_forward.205} parent=5 // pred_region
      %s125 = ssub.s32 %s8, 1
      // Predicated region
      $region13: #{pdarts_cnn_forward.205} parent=11 // pred_check
        %p126 = pneg %p83
      $region14: #{pdarts_cnn_forward.205} parent=11 // pred_check_branch
        %128 = sbr.rel (%p126) target = $region16
      $region15: #{pdarts_cnn_forward.205} parent=11 // pred_region
        %s129 = smul.u32 4, %s20
        %p130 = scmp.lt.s32.totalorder %s129, 3
        %s131 = scalar_select %p130, %s129, 3
        %p132 = scmp.lt.s32.totalorder %s19, 0
        %s133 = scalar_select %p132, %s19, 0
        %s134 = sadd.s32 %s133, %s131
        %s135 = smul.addr %s134, 4
        %s136 = scalar_lea.vmem %s1, %s135
        %s137 = smul.u32 4, %s20
      $region16: #{pdarts_cnn_forward.205} parent=11 // pred_fallthru
        _
    $region12: #{pdarts_cnn_forward.205} parent=5 // pred_fallthru
      _
    %p138 = scmp.lt.s32.totalorder %s8, 2
    // Predicated region
    $region17: #{pdarts_cnn_forward.205} parent=5 // pred_check
      %p139 = pneg %p138
    $region18: #{pdarts_cnn_forward.205} parent=5 // pred_check_branch
      %141 = sbr.rel (%p139) target = $region20
    $region19: #{pdarts_cnn_forward.205} parent=5 // pred_region
      // Predicated region
      $region21: #{pdarts_cnn_forward.205} parent=19 // pred_check
        %p142 = pneg %p49
      $region22: #{pdarts_cnn_forward.205} parent=19 // pred_check_branch
        %144 = sbr.rel (%p142) target = $region24
      $region23: #{pdarts_cnn_forward.205} parent=19 // pred_region
        %s145 = smul.u32 32, %s15
        %p146 = scmp.lt.s32.totalorder %s145, 63
        %s147 = scalar_select %p146, %s145, 63
        %p148 = scmp.lt.s32.totalorder %s17, 0
        %s149 = scalar_select %p148, %s17, 0
        %s150 = sadd.s32 %s149, %s147
        %s151 = smul.addr %s150, 4
        %s152 = scalar_lea.vmem %s0, %s151
        %s153 = smul.u32 32, %s15
      $region24: #{pdarts_cnn_forward.205} parent=19 // pred_fallthru
        _
    $region20: #{pdarts_cnn_forward.205} parent=5 // pred_fallthru
      _
    %p154 = scmp.le.s32.totalorder 1, %s8
    %p155 = scmp.lt.s32.totalorder %s8, 3
    %p156 = pnand %p154, %p155
    %p157 = pneg %p156
    // Predicated region
    $region25: #{pdarts_cnn_forward.205} parent=5 // pred_check
      _
    $region26: #{pdarts_cnn_forward.205} parent=5 // pred_check_branch
      %159 = sbr.rel (%p156) target = $region28
    $region27: #{pdarts_cnn_forward.205} parent=5 // pred_region
      %s160 = ssub.s32 %s8, 1
      %s161 = smul.u32 32, %s18
      %p162 = scmp.lt.s32.totalorder %s161, 63
      %s163 = scalar_select %p162, %s161, 63
      %p164 = scmp.lt.s32.totalorder %s20, 0
      %s165 = scalar_select %p164, %s20, 0
      %s166 = sadd.s32 %s165, %s163
      %s167 = smul.addr %s166, 4
      %s168 = scalar_lea.vmem %s0, %s167
      %p169 = pneg %p55
      %p170 = pneg %p52
      %s171 = smul.u32 4, %s20
      %p172 = scmp.lt.s32.totalorder %s171, 3
      %s173 = scalar_select %p172, %s171, 3
      %p174 = scmp.lt.s32.totalorder %s19, 0
      %s175 = scalar_select %p174, %s19, 0
      %s176 = sadd.s32 %s175, %s173
      %s177 = smul.addr %s176, 4
      %s178 = scalar_lea.vmem %s1, %s177
      %p179 = pneg %p83
      %p180 = pneg %p80
      %p181 = pneg %p111
      %p182 = pneg %p108
      %s183 = smul.u32 32, %s18
      %p184 = scmp.lt.s32.totalorder %s183, 63
      %s185 = scalar_select %p184, %s183, 63
      %p186 = scmp.lt.s32.totalorder %s19, 0
      %s187 = scalar_select %p186, %s19, 0
      %s188 = sadd.s32 %s187, %s185
      %s189 = smul.addr %s188, 8
      %s190 = scalar_lea.vmem %s2, %s189
      %s191 = smul.u32 32, %s18
      %p192 = scmp.lt.s32.totalorder %s191, 63
      %s193 = scalar_select %p192, %s191, 63
      %p194 = scmp.lt.s32.totalorder %s20, 0
      %s195 = scalar_select %p194, %s20, 0
      %s196 = sadd.s32 %s195, %s193
      %s197 = smul.addr %s196, 4
      %s198 = scalar_lea.vmem %s0, %s197
      %s199 = smul.u32 32, %s18
      %s200 = smul.u32 4, %s20
      %p201 = scmp.lt.s32.totalorder %s200, 3
      %s202 = scalar_select %p201, %s200, 3
      %p203 = scmp.lt.s32.totalorder %s19, 0
      %s204 = scalar_select %p203, %s19, 0
      %s205 = sadd.s32 %s204, %s202
      %s206 = smul.addr %s205, 4
      %s207 = scalar_lea.vmem %s1, %s206
      %s208 = smul.u32 4, %s20
      %s209 = smul.u32 32, %s18
      %p210 = scmp.lt.s32.totalorder %s209, 63
      %s211 = scalar_select %p210, %s209, 63
      %p212 = scmp.lt.s32.totalorder %s19, 0
      %s213 = scalar_select %p212, %s19, 0
      %s214 = sadd.s32 %s213, %s211
      %s215 = smul.addr %s214, 8
      %s216 = scalar_lea.vmem %s2, %s215
      %s217 = smul.u32 32, %s18
      %v219 = vld [vmem:[%s198] sm:$0xf]
      %v220 = vld [vmem:[%s198 + $0x4] sm:$0xf]
      %v221 = vld [vmem:[%s198 + $0x8] sm:$0xf]
      %v222 = vld [vmem:[%s198 + $0xc] sm:$0xf]
      %v223 = vld [vmem:[%s198 + $0x10] sm:$0xf]
      %v224 = vld [vmem:[%s198 + $0x14] sm:$0xf]
      %v225 = vld [vmem:[%s198 + $0x18] sm:$0xf]
      %v226 = vld [vmem:[%s198 + $0x1c] sm:$0xf]
      %v227 = vld [vmem:[%s198 + $0x20] sm:$0xf]
      %v228 = vld [vmem:[%s198 + $0x24] sm:$0xf]
      %v229 = vld [vmem:[%s198 + $0x28] sm:$0xf]
      %v230 = vld [vmem:[%s198 + $0x2c] sm:$0xf]
      %v231 = vld [vmem:[%s198 + $0x30] sm:$0xf]
      %v232 = vld [vmem:[%s198 + $0x34] sm:$0xf]
      %v233 = vld [vmem:[%s198 + $0x38] sm:$0xf]
      %v234 = vld [vmem:[%s198 + $0x3c] sm:$0xf]
      %v235 = vld [vmem:[%s198 + $0x40] sm:$0xf]
      %v236 = vld [vmem:[%s198 + $0x44] sm:$0xf]
      %v237 = vld [vmem:[%s198 + $0x48] sm:$0xf]
      %v238 = vld [vmem:[%s198 + $0x4c] sm:$0xf]
      %v239 = vld [vmem:[%s198 + $0x50] sm:$0xf]
      %v240 = vld [vmem:[%s198 + $0x54] sm:$0xf]
      %v241 = vld [vmem:[%s198 + $0x58] sm:$0xf]
      %v242 = vld [vmem:[%s198 + $0x5c] sm:$0xf]
      %v243 = vld [vmem:[%s198 + $0x60] sm:$0xf]
      %v244 = vld [vmem:[%s198 + $0x64] sm:$0xf]
      %v245 = vld [vmem:[%s198 + $0x68] sm:$0xf]
      %v246 = vld [vmem:[%s198 + $0x6c] sm:$0xf]
      %v247 = vld [vmem:[%s198 + $0x70] sm:$0xf]
      %v248 = vld [vmem:[%s198 + $0x74] sm:$0xf]
      %v249 = vld [vmem:[%s198 + $0x78] sm:$0xf]
      %v250 = vld [vmem:[%s198 + $0x7c] sm:$0xf]
      %v251 = vld [vmem:[%s207] sm:$0xf]
      %v252 = vld [vmem:[%s207 + $0x4] sm:$0xf]
      %v253 = vld [vmem:[%s207 + $0x8] sm:$0xf]
      %v254 = vld [vmem:[%s207 + $0xc] sm:$0x3]
      %v287 = vunpack.c.l.b16 %v219
      %v288 = vunpack.c.l.b16 %v220
      %v289 = vunpack.c.l.b16 %v221
      %v290 = vunpack.c.l.b16 %v222
      %v291 = vunpack.c.l.b16 %v223
      %v292 = vunpack.c.l.b16 %v224
      %v293 = vunpack.c.l.b16 %v225
      %v294 = vunpack.c.l.b16 %v226
      %v295 = vunpack.c.l.b16 %v227
      %v296 = vunpack.c.l.b16 %v228
      %v297 = vunpack.c.l.b16 %v229
      %v298 = vunpack.c.l.b16 %v230
      %v299 = vunpack.c.l.b16 %v231
      %v300 = vunpack.c.l.b16 %v232
      %v301 = vunpack.c.l.b16 %v233
      %v302 = vunpack.c.l.b16 %v234
      %v303 = vunpack.c.l.b16 %v235
      %v304 = vunpack.c.l.b16 %v236
      %v305 = vunpack.c.l.b16 %v237
      %v306 = vunpack.c.l.b16 %v238
      %v307 = vunpack.c.l.b16 %v239
      %v308 = vunpack.c.l.b16 %v240
      %v309 = vunpack.c.l.b16 %v241
      %v310 = vunpack.c.l.b16 %v242
      %v311 = vunpack.c.l.b16 %v243
      %v312 = vunpack.c.l.b16 %v244
      %v313 = vunpack.c.l.b16 %v245
      %v314 = vunpack.c.l.b16 %v246
      %v315 = vunpack.c.l.b16 %v247
      %v316 = vunpack.c.l.b16 %v248
      %v317 = vunpack.c.l.b16 %v249
      %v318 = vunpack.c.l.b16 %v250
      %v319 = vpack.c.b16 %v288, %v287
      %v320 = vpack.c.b16 %v290, %v289
      %v321 = vpack.c.b16 %v292, %v291
      %v322 = vpack.c.b16 %v294, %v293
      %v323 = vpack.c.b16 %v296, %v295
      %v324 = vpack.c.b16 %v298, %v297
      %v325 = vpack.c.b16 %v300, %v299
      %v326 = vpack.c.b16 %v302, %v301
      %v327 = vpack.c.b16 %v304, %v303
      %v328 = vpack.c.b16 %v306, %v305
      %v329 = vpack.c.b16 %v308, %v307
      %v330 = vpack.c.b16 %v310, %v309
      %v331 = vpack.c.b16 %v312, %v311
      %v332 = vpack.c.b16 %v314, %v313
      %v333 = vpack.c.b16 %v316, %v315
      %v334 = vpack.c.b16 %v318, %v317
      %v339 = vunpack.c.l.b16 %v251
      %v340 = vunpack.c.l.b16 %v252
      %v341 = vunpack.c.l.b16 %v253
      %v342 = vunpack.c.l.b16 %v254
      %v343 = vpack.c.b16 %v340, %v339
      %v344 = vpack.c.b16 %v342, %v341
      %vm346 = vcmask 220160
      %v348 = vsel %vm346, %v319, 0
      %v351 = vsel %vm346, %v320, 0
      %v354 = vsel %vm346, %v321, 0
      %v357 = vsel %vm346, %v322, 0
      %v360 = vsel %vm346, %v323, 0
      %v363 = vsel %vm346, %v324, 0
      %v366 = vsel %vm346, %v325, 0
      %v369 = vsel %vm346, %v326, 0
      %v372 = vsel %vm346, %v327, 0
      %v375 = vsel %vm346, %v328, 0
      %v378 = vsel %vm346, %v329, 0
      %v381 = vsel %vm346, %v330, 0
      %v384 = vsel %vm346, %v331, 0
      %v387 = vsel %vm346, %v332, 0
      %v390 = vsel %vm346, %v333, 0
      %v393 = vsel %vm346, %v334, 0
      %vm395 = vcmask 1044480
      %vm396 = vcmask 1045504
      %v397 = vsel %vm395, 4294967295, 65535
      %v398 = vsel %vm396, %v397, 0
      %v400 = vand.u32 %v344, %v398
      %402 = vmatprep.subr.bf16.mxu0 0
      %403 = vmatpush1.bf16.msra.mxu0 0
      %404 = vmatprep.subr.bf16.mxu0 0
      %405 = vmatpush1.bf16.msra.mxu0 0
      %406 = vmatprep.subr.bf16.mxu0 0
      %407 = vmatpush1.bf16.msra.mxu0 0
      %408 = vmatprep.subr.bf16.mxu0 0
      %409 = vmatpush1.bf16.msra.mxu0 0
      %410 = vmatprep.subr.bf16.mxu0 0
      %411 = vmatpush1.bf16.msra.mxu0 0
      %412 = vmatprep.subr.bf16.mxu0 0
      %413 = vmatpush1.bf16.msra.mxu0 0
      %414 = vmatprep.subr.bf16.mxu0 0
      %415 = vmatpush1.bf16.msra.mxu0 %v400
      %416 = vmatprep.subr.bf16.mxu0 0
      %417 = vmatpush1.bf16.msra.mxu0 %v343
      %418 = vmatprep.subr.bf16.mxu0 0
      %419 = vmatpush2.bf16.msra.mxu0 0
      %420 = vmatprep.subr.bf16.mxu0 0
      %421 = vmatpush2.bf16.msra.mxu0 0
      %422 = vmatprep.subr.bf16.mxu0 0
      %423 = vmatpush2.bf16.msra.mxu0 0
      %424 = vmatprep.subr.bf16.mxu0 0
      %425 = vmatpush2.bf16.msra.mxu0 0
      %426 = vmatprep.subr.bf16.mxu0 0
      %427 = vmatpush2.bf16.msra.mxu0 0
      %428 = vmatprep.subr.bf16.mxu0 0
      %429 = vmatpush2.bf16.msra.mxu0 0
      %430 = vmatprep.subr.bf16.mxu0 0
      %431 = vmatpush2.bf16.msra.mxu0 0
      %432 = vmatprep.subr.bf16.mxu0 0
      %433 = vmatpush2.bf16.msra.mxu0 0
      %434 = vmatprep.mubr.bf16.mxu0 0
      %435 = vmatmul.mubr.bf16.gmra.mxu0 %v348
      %v436 = vpop.f32.mrf.mxu0
      %v437 = vadd.f32 0.0, %v436
      %v438 = vpop.f32.mrf.mxu0
      %v439 = vpop.f32.mrf.mxu0
      %v440 = vadd.f32 0.0, %v439
      %v441 = vpop.f32.mrf.mxu0
      %442 = vmatprep.mubr.bf16.mxu0 0
      %443 = vmatmul.mubr.bf16.gmra.mxu0 %v351
      %v444 = vpop.f32.mrf.mxu0
      %v445 = vadd.f32 0.0, %v444
      %v446 = vpop.f32.mrf.mxu0
      %v447 = vpop.f32.mrf.mxu0
      %v448 = vadd.f32 0.0, %v447
      %v449 = vpop.f32.mrf.mxu0
      %450 = vmatprep.mubr.bf16.mxu0 0
      %451 = vmatmul.mubr.bf16.gmra.mxu0 %v354
      %v452 = vpop.f32.mrf.mxu0
      %v453 = vadd.f32 0.0, %v452
      %v454 = vpop.f32.mrf.mxu0
      %v455 = vpop.f32.mrf.mxu0
      %v456 = vadd.f32 0.0, %v455
      %v457 = vpop.f32.mrf.mxu0
      %458 = vmatprep.mubr.bf16.mxu0 0
      %459 = vmatmul.mubr.bf16.gmra.mxu0 %v357
      %v460 = vpop.f32.mrf.mxu0
      %v461 = vadd.f32 0.0, %v460
      %v462 = vpop.f32.mrf.mxu0
      %v463 = vpop.f32.mrf.mxu0
      %v464 = vadd.f32 0.0, %v463
      %v465 = vpop.f32.mrf.mxu0
      %466 = vmatprep.mubr.bf16.mxu0 0
      %467 = vmatmul.mubr.bf16.gmra.mxu0 %v360
      %v468 = vpop.f32.mrf.mxu0
      %v469 = vadd.f32 0.0, %v468
      %v470 = vpop.f32.mrf.mxu0
      %v471 = vpop.f32.mrf.mxu0
      %v472 = vadd.f32 0.0, %v471
      %v473 = vpop.f32.mrf.mxu0
      %474 = vmatprep.mubr.bf16.mxu0 0
      %475 = vmatmul.mubr.bf16.gmra.mxu0 %v363
      %v476 = vpop.f32.mrf.mxu0
      %v477 = vadd.f32 0.0, %v476
      %v478 = vpop.f32.mrf.mxu0
      %v479 = vpop.f32.mrf.mxu0
      %v480 = vadd.f32 0.0, %v479
      %v481 = vpop.f32.mrf.mxu0
      %482 = vmatprep.mubr.bf16.mxu0 0
      %483 = vmatmul.mubr.bf16.gmra.mxu0 %v366
      %v484 = vpop.f32.mrf.mxu0
      %v485 = vadd.f32 0.0, %v484
      %v486 = vpop.f32.mrf.mxu0
      %v487 = vpop.f32.mrf.mxu0
      %v488 = vadd.f32 0.0, %v487
      %v489 = vpop.f32.mrf.mxu0
      %490 = vmatprep.mubr.bf16.mxu0 0
      %491 = vmatmul.mubr.bf16.gmra.mxu0 %v369
      %v492 = vpop.f32.mrf.mxu0
      %v493 = vadd.f32 0.0, %v492
      %v494 = vpop.f32.mrf.mxu0
      %v495 = vpop.f32.mrf.mxu0
      %v496 = vadd.f32 0.0, %v495
      %v497 = vpop.f32.mrf.mxu0
      %498 = vmatprep.mubr.bf16.mxu0 0
      %499 = vmatmul.mubr.bf16.gmra.mxu0 %v372
      %v500 = vpop.f32.mrf.mxu0
      %v501 = vadd.f32 0.0, %v500
      %v502 = vpop.f32.mrf.mxu0
      %v503 = vpop.f32.mrf.mxu0
      %v504 = vadd.f32 0.0, %v503
      %v505 = vpop.f32.mrf.mxu0
      %506 = vmatprep.mubr.bf16.mxu0 0
      %507 = vmatmul.mubr.bf16.gmra.mxu0 %v375
      %v508 = vpop.f32.mrf.mxu0
      %v509 = vadd.f32 0.0, %v508
      %v510 = vpop.f32.mrf.mxu0
      %v511 = vpop.f32.mrf.mxu0
      %v512 = vadd.f32 0.0, %v511
      %v513 = vpop.f32.mrf.mxu0
      %514 = vmatprep.mubr.bf16.mxu0 0
      %515 = vmatmul.mubr.bf16.gmra.mxu0 %v378
      %v516 = vpop.f32.mrf.mxu0
      %v517 = vadd.f32 0.0, %v516
      %v518 = vpop.f32.mrf.mxu0
      %v519 = vpop.f32.mrf.mxu0
      %v520 = vadd.f32 0.0, %v519
      %v521 = vpop.f32.mrf.mxu0
      %522 = vmatprep.mubr.bf16.mxu0 0
      %523 = vmatmul.mubr.bf16.gmra.mxu0 %v381
      %v524 = vpop.f32.mrf.mxu0
      %v525 = vadd.f32 0.0, %v524
      %v526 = vpop.f32.mrf.mxu0
      %v527 = vpop.f32.mrf.mxu0
      %v528 = vadd.f32 0.0, %v527
      %v529 = vpop.f32.mrf.mxu0
      %530 = vmatprep.mubr.bf16.mxu0 0
      %531 = vmatmul.mubr.bf16.gmra.mxu0 %v384
      %v532 = vpop.f32.mrf.mxu0
      %v533 = vadd.f32 0.0, %v532
      %v534 = vpop.f32.mrf.mxu0
      %v535 = vpop.f32.mrf.mxu0
      %v536 = vadd.f32 0.0, %v535
      %v537 = vpop.f32.mrf.mxu0
      %538 = vmatprep.mubr.bf16.mxu0 0
      %539 = vmatmul.mubr.bf16.gmra.mxu0 %v387
      %v540 = vpop.f32.mrf.mxu0
      %v541 = vadd.f32 0.0, %v540
      %v542 = vpop.f32.mrf.mxu0
      %v543 = vpop.f32.mrf.mxu0
      %v544 = vadd.f32 0.0, %v543
      %v545 = vpop.f32.mrf.mxu0
      %546 = vmatprep.mubr.bf16.mxu0 0
      %547 = vmatmul.mubr.bf16.gmra.mxu0 %v390
      %v548 = vpop.f32.mrf.mxu0
      %v549 = vadd.f32 0.0, %v548
      %v550 = vpop.f32.mrf.mxu0
      %v551 = vpop.f32.mrf.mxu0
      %v552 = vadd.f32 0.0, %v551
      %v553 = vpop.f32.mrf.mxu0
      %554 = vmatprep.mubr.bf16.mxu0 0
      %555 = vmatmul.mubr.bf16.gmra.mxu0 %v393
      %v556 = vpop.f32.mrf.mxu0
      %v557 = vadd.f32 0.0, %v556
      %v558 = vpop.f32.mrf.mxu0
      %v559 = vpop.f32.mrf.mxu0
      %v560 = vadd.f32 0.0, %v559
      %v561 = vpop.f32.mrf.mxu0
      %562 = vdwg.mxu0
      %vm563 = vcmask 195584
      %564 = vst.msk [vmem:[%s216] sm:$0xff] %vm563, %v437
      %565 = vst.msk [vmem:[%s216 + $0x8] sm:$0xff] %vm563, %v440
      %566 = vst.msk [vmem:[%s216 + $0x10] sm:$0xff] %vm563, %v445
      %567 = vst.msk [vmem:[%s216 + $0x18] sm:$0xff] %vm563, %v448
      %568 = vst.msk [vmem:[%s216 + $0x20] sm:$0xff] %vm563, %v453
      %569 = vst.msk [vmem:[%s216 + $0x28] sm:$0xff] %vm563, %v456
      %570 = vst.msk [vmem:[%s216 + $0x30] sm:$0xff] %vm563, %v461
      %571 = vst.msk [vmem:[%s216 + $0x38] sm:$0xff] %vm563, %v464
      %572 = vst.msk [vmem:[%s216 + $0x40] sm:$0xff] %vm563, %v469
      %573 = vst.msk [vmem:[%s216 + $0x48] sm:$0xff] %vm563, %v472
      %574 = vst.msk [vmem:[%s216 + $0x50] sm:$0xff] %vm563, %v477
      %575 = vst.msk [vmem:[%s216 + $0x58] sm:$0xff] %vm563, %v480
      %576 = vst.msk [vmem:[%s216 + $0x60] sm:$0xff] %vm563, %v485
      %577 = vst.msk [vmem:[%s216 + $0x68] sm:$0xff] %vm563, %v488
      %578 = vst.msk [vmem:[%s216 + $0x70] sm:$0xff] %vm563, %v493
      %579 = vst.msk [vmem:[%s216 + $0x78] sm:$0xff] %vm563, %v496
      %580 = vst.msk [vmem:[%s216 + $0x80] sm:$0xff] %vm563, %v501
      %581 = vst.msk [vmem:[%s216 + $0x88] sm:$0xff] %vm563, %v504
      %582 = vst.msk [vmem:[%s216 + $0x90] sm:$0xff] %vm563, %v509
      %583 = vst.msk [vmem:[%s216 + $0x98] sm:$0xff] %vm563, %v512
      %584 = vst.msk [vmem:[%s216 + $0xa0] sm:$0xff] %vm563, %v517
      %585 = vst.msk [vmem:[%s216 + $0xa8] sm:$0xff] %vm563, %v520
      %586 = vst.msk [vmem:[%s216 + $0xb0] sm:$0xff] %vm563, %v525
      %587 = vst.msk [vmem:[%s216 + $0xb8] sm:$0xff] %vm563, %v528
      %588 = vst.msk [vmem:[%s216 + $0xc0] sm:$0xff] %vm563, %v533
      %589 = vst.msk [vmem:[%s216 + $0xc8] sm:$0xff] %vm563, %v536
      %590 = vst.msk [vmem:[%s216 + $0xd0] sm:$0xff] %vm563, %v541
      %591 = vst.msk [vmem:[%s216 + $0xd8] sm:$0xff] %vm563, %v544
      %592 = vst.msk [vmem:[%s216 + $0xe0] sm:$0xff] %vm563, %v549
      %593 = vst.msk [vmem:[%s216 + $0xe8] sm:$0xff] %vm563, %v552
      %594 = vst.msk [vmem:[%s216 + $0xf0] sm:$0xff] %vm563, %v557
      %595 = vst.msk [vmem:[%s216 + $0xf8] sm:$0xff] %vm563, %v560
      %s596 = smul.u32 32, %s18
      %p597 = scmp.lt.s32.totalorder %s596, 63
      %s598 = scalar_select %p597, %s596, 63
      %p599 = scmp.lt.s32.totalorder %s19, 0
      %s600 = scalar_select %p599, %s19, 0
      %s601 = sadd.s32 %s600, %s598
      %s602 = smul.addr %s601, 8
      %s603 = scalar_lea.vmem %s2, %s602
      // Predicated region
      $region29: #{pdarts_cnn_forward.205} parent=27 // pred_check
        %p604 = pneg %p108
      $region30: #{pdarts_cnn_forward.205} parent=27 // pred_check_branch
        %606 = sbr.rel (%p604) target = $region32
      $region31: #{pdarts_cnn_forward.205} parent=27 // pred_region
        %s607 = smul.u32 32, %s18
      $region32: #{pdarts_cnn_forward.205} parent=27 // pred_fallthru
        _
    $region28: #{pdarts_cnn_forward.205} parent=5 // pred_fallthru
      _
    %p608 = scmp.le.s32.totalorder 2, %s8
    // Predicated region
    $region33: #{pdarts_cnn_forward.205} parent=5 // pred_check
      %p609 = pneg %p608
    $region34: #{pdarts_cnn_forward.205} parent=5 // pred_check_branch
      %611 = sbr.rel (%p609) target = $region36
    $region35: #{pdarts_cnn_forward.205} parent=5 // pred_region
      %s612 = ssub.s32 %s8, 2
      // Predicated region
      $region37: #{pdarts_cnn_forward.205} parent=35 // pred_check
        %p613 = pneg %p114
      $region38: #{pdarts_cnn_forward.205} parent=35 // pred_check_branch
        %615 = sbr.rel (%p613) target = $region40
      $region39: #{pdarts_cnn_forward.205} parent=35 // pred_region
        %s616 = smul.u32 32, %s21
        %p617 = scmp.lt.s32.totalorder %s616, 63
        %s618 = scalar_select %p617, %s616, 63
        %p619 = scmp.lt.s32.totalorder %s22, 0
        %s620 = scalar_select %p619, %s22, 0
        %s621 = sadd.s32 %s620, %s618
        %s622 = smul.addr %s621, 8
        %s623 = scalar_lea.vmem %s2, %s622
      $region40: #{pdarts_cnn_forward.205} parent=35 // pred_fallthru
        _
    $region36: #{pdarts_cnn_forward.205} parent=5 // pred_fallthru
      _
  $region6: #{pdarts_cnn_forward.205} parent=0 // loop_footer
    %s12 = sadd.s32 1, %s8
  $region7: #{pdarts_cnn_forward.205} parent=0 // loop_footer_branch
    %7 = sbr.rel target = $region3
  $region8: #{pdarts_cnn_forward.205} parent=0 // loop_exit
    _

// kernel: pdarts_cnn_forward.207
$region0: #{pdarts_cnn_forward.207}
  #allocation0 [shape = 'u32[]', space=smem, size = 0x4, offset = 0x4, fixed_abs, tag = 'smem constant byte address 0x4 - core index']
  #allocation1 [shape = 'u32[144,128]{1,0:T(1,128)}', space=vmem, size = 0x12000, scoped, tag = 'internal scratch']
  %s0 = inlined_call_operand.vmem [shape: bf16[512,24], index: 0, kind: input, shape index: {}]
  %s1 = inlined_call_operand.vmem [shape: bf16[24,8], index: 1, kind: input, shape index: {}]
  %s2 = inlined_call_operand.vmem [shape: f32[512,8], index: 2, kind: output, shape index: {}]
  %s3 = sld [smem:[#allocation0]]
  $region41: #{pdarts_cnn_forward.207} parent=0
    _
  %s5 = ssub.s32 1, %s3
  %s6 = scalar_select 0, %s5, %s3
  loop: start=0, step=1, limit=4
  $region2: #{pdarts_cnn_forward.207} parent=0 // loop_pre_header
    _
  $region3: #{pdarts_cnn_forward.207} parent=0 // loop_header
    %s8 = sphi 0, %s12
    %p9 = scmp.ge.s32.totalorder %s8, 4
    %s15 = sphi 0, %s34
    %s16 = sphi 0, %s30
    %s17 = sphi 0, %s26
    %s18 = sphi 0, %s15
    %s19 = sphi 0, %s16
    %s20 = sphi 0, %s17
    %s21 = sphi 0, %s18
    %s22 = sphi 0, %s19
    %s23 = sphi 0, %s20
    %s39 = sphi 0, %s41
    %s42 = sphi 0, %s39
    %s43 = sphi 0, %s42
    %s59 = sphi 0, %s43
    %s67 = sphi 0, %s69
    %s70 = sphi 0, %s67
    %s71 = sphi 0, %s70
    %s87 = sphi 0, %s71
    %s95 = sphi 0, %s97
    %s98 = sphi 0, %s95
    %s99 = sphi 0, %s98
    %s115 = sphi 0, %s99
  $region4: #{pdarts_cnn_forward.207} parent=0 // loop_header_branch
    %11 = sbr.rel (%p9) target = $region8
  $region5: #{pdarts_cnn_forward.207} parent=0 // loop_body
    %s13 = ssub.s32 %s8, 1
    %s14 = ssub.s32 %s8, 2
    %s24 = sadd.s32 1, %s17
    %p25 = scmp.ge.s32.totalorder %s24, 1
    %s26 = scalar_select %p25, 0, %s24
    %s27 = sadd.s32 1, %s16
    %s28 = scalar_select %p25, %s27, %s16
    %p29 = scmp.ge.s32.totalorder %s28, 1
    %s30 = scalar_select %p29, 0, %s28
    %s31 = sadd.s32 1, %s15
    %s32 = scalar_select %p29, %s31, %s15
    %p33 = scmp.ge.s32.totalorder %s32, 2
    %s34 = scalar_select %p33, 0, %s32
    %s35 = ssub.s32 %s15, %s34
    %s36 = ssub.s32 %s17, %s26
    %s37 = sor.u32 %s35, %s36
    %p38 = scmp.eq.s32.totalorder %s37, 0
    %s40 = sadd.s32 %s39, 1
    %s41 = scalar_select %p38, %s39, %s40
    %p44 = pneg %p38
    %p45 = scmp.eq.s32.totalorder %s8, 1
    %p46 = por %p44, %p45
    %p47 = scmp.ne.s32.totalorder %s39, %s42
    %p48 = scmp.eq.s32.totalorder %s8, 0
    %p49 = por %p47, %p48
    %p50 = scmp.ne.s32.totalorder %s39, %s42
    %p51 = scmp.eq.s32.totalorder %s13, 1
    %p52 = por %p50, %p51
    %p53 = scmp.ne.s32.totalorder %s42, %s43
    %p54 = scmp.eq.s32.totalorder %s13, 0
    %p55 = por %p53, %p54
    %p56 = scmp.ne.s32.totalorder %s42, %s43
    %p57 = scmp.eq.s32.totalorder %s14, 1
    %p58 = por %p56, %p57
    %p60 = scmp.ne.s32.totalorder %s43, %s59
    %p61 = scmp.eq.s32.totalorder %s14, 0
    %p62 = por %p60, %p61
    %s63 = ssub.s32 %s17, %s26
    %s64 = ssub.s32 %s16, %s30
    %s65 = sor.u32 %s63, %s64
    %p66 = scmp.eq.s32.totalorder %s65, 0
    %s68 = sadd.s32 %s67, 1
    %s69 = scalar_select %p66, %s67, %s68
    %p72 = pneg %p66
    %p73 = scmp.eq.s32.totalorder %s8, 1
    %p74 = por %p72, %p73
    %p75 = scmp.ne.s32.totalorder %s67, %s70
    %p76 = scmp.eq.s32.totalorder %s8, 0
    %p77 = por %p75, %p76
    %p78 = scmp.ne.s32.totalorder %s67, %s70
    %p79 = scmp.eq.s32.totalorder %s13, 1
    %p80 = por %p78, %p79
    %p81 = scmp.ne.s32.totalorder %s70, %s71
    %p82 = scmp.eq.s32.totalorder %s13, 0
    %p83 = por %p81, %p82
    %p84 = scmp.ne.s32.totalorder %s70, %s71
    %p85 = scmp.eq.s32.totalorder %s14, 1
    %p86 = por %p84, %p85
    %p88 = scmp.ne.s32.totalorder %s71, %s87
    %p89 = scmp.eq.s32.totalorder %s14, 0
    %p90 = por %p88, %p89
    %s91 = ssub.s32 %s15, %s34
    %s92 = ssub.s32 %s16, %s30
    %s93 = sor.u32 %s91, %s92
    %p94 = scmp.eq.s32.totalorder %s93, 0
    %s96 = sadd.s32 %s95, 1
    %s97 = scalar_select %p94, %s95, %s96
    %p100 = pneg %p94
    %p101 = scmp.eq.s32.totalorder %s8, 1
    %p102 = por %p100, %p101
    %p103 = scmp.ne.s32.totalorder %s95, %s98
    %p104 = scmp.eq.s32.totalorder %s8, 0
    %p105 = por %p103, %p104
    %p106 = scmp.ne.s32.totalorder %s95, %s98
    %p107 = scmp.eq.s32.totalorder %s13, 1
    %p108 = por %p106, %p107
    %p109 = scmp.ne.s32.totalorder %s98, %s99
    %p110 = scmp.eq.s32.totalorder %s13, 0
    %p111 = por %p109, %p110
    %p112 = scmp.ne.s32.totalorder %s98, %s99
    %p113 = scmp.eq.s32.totalorder %s14, 1
    %p114 = por %p112, %p113
    %p116 = scmp.ne.s32.totalorder %s99, %s115
    %p117 = scmp.eq.s32.totalorder %s14, 0
    %p118 = por %p116, %p117
    %p119 = scmp.le.s32.totalorder 1, %s8
    %p120 = scmp.lt.s32.totalorder %s8, 3
    %p121 = pnand %p119, %p120
    %p122 = pneg %p121
    // Predicated region
    $region9: #{pdarts_cnn_forward.207} parent=5 // pred_check
      _
    $region10: #{pdarts_cnn_forward.207} parent=5 // pred_check_branch
      %124 = sbr.rel (%p121) target = $region12
    $region11: #{pdarts_cnn_forward.207} parent=5 // pred_region
      %s125 = ssub.s32 %s8, 1
      // Predicated region
      $region13: #{pdarts_cnn_forward.207} parent=11 // pred_check
        %p126 = pneg %p83
      $region14: #{pdarts_cnn_forward.207} parent=11 // pred_check_branch
        %128 = sbr.rel (%p126) target = $region16
      $region15: #{pdarts_cnn_forward.207} parent=11 // pred_region
        %s129 = smul.u32 3, %s20
        %p130 = scmp.lt.s32.totalorder %s129, 2
        %s131 = scalar_select %p130, %s129, 2
        %p132 = scmp.lt.s32.totalorder %s19, 0
        %s133 = scalar_select %p132, %s19, 0
        %s134 = sadd.s32 %s133, %s131
        %s135 = smul.addr %s134, 4
        %s136 = scalar_lea.vmem %s1, %s135
        %s137 = smul.u32 3, %s20
      $region16: #{pdarts_cnn_forward.207} parent=11 // pred_fallthru
        _
    $region12: #{pdarts_cnn_forward.207} parent=5 // pred_fallthru
      _
    %p138 = scmp.lt.s32.totalorder %s8, 2
    // Predicated region
    $region17: #{pdarts_cnn_forward.207} parent=5 // pred_check
      %p139 = pneg %p138
    $region18: #{pdarts_cnn_forward.207} parent=5 // pred_check_branch
      %141 = sbr.rel (%p139) target = $region20
    $region19: #{pdarts_cnn_forward.207} parent=5 // pred_region
      // Predicated region
      $region21: #{pdarts_cnn_forward.207} parent=19 // pred_check
        %p142 = pneg %p49
      $region22: #{pdarts_cnn_forward.207} parent=19 // pred_check_branch
        %144 = sbr.rel (%p142) target = $region24
      $region23: #{pdarts_cnn_forward.207} parent=19 // pred_region
        %s145 = smul.u32 32, %s15
        %p146 = scmp.lt.s32.totalorder %s145, 63
        %s147 = scalar_select %p146, %s145, 63
        %p148 = scmp.lt.s32.totalorder %s17, 0
        %s149 = scalar_select %p148, %s17, 0
        %s150 = sadd.s32 %s149, %s147
        %s151 = smul.addr %s150, 4
        %s152 = scalar_lea.vmem %s0, %s151
        %s153 = smul.u32 32, %s15
      $region24: #{pdarts_cnn_forward.207} parent=19 // pred_fallthru
        _
    $region20: #{pdarts_cnn_forward.207} parent=5 // pred_fallthru
      _
    %p154 = scmp.le.s32.totalorder 1, %s8
    %p155 = scmp.lt.s32.totalorder %s8, 3
    %p156 = pnand %p154, %p155
    %p157 = pneg %p156
    // Predicated region
    $region25: #{pdarts_cnn_forward.207} parent=5 // pred_check
      _
    $region26: #{pdarts_cnn_forward.207} parent=5 // pred_check_branch
      %159 = sbr.rel (%p156) target = $region28
    $region27: #{pdarts_cnn_forward.207} parent=5 // pred_region
      %s160 = ssub.s32 %s8, 1
      %s161 = smul.u32 32, %s18
      %p162 = scmp.lt.s32.totalorder %s161, 63
      %s163 = scalar_select %p162, %s161, 63
      %p164 = scmp.lt.s32.totalorder %s20, 0
      %s165 = scalar_select %p164, %s20, 0
      %s166 = sadd.s32 %s165, %s163
      %s167 = smul.addr %s166, 4
      %s168 = scalar_lea.vmem %s0, %s167
      %p169 = pneg %p55
      %p170 = pneg %p52
      %s171 = smul.u32 3, %s20
      %p172 = scmp.lt.s32.totalorder %s171, 2
      %s173 = scalar_select %p172, %s171, 2
      %p174 = scmp.lt.s32.totalorder %s19, 0
      %s175 = scalar_select %p174, %s19, 0
      %s176 = sadd.s32 %s175, %s173
      %s177 = smul.addr %s176, 4
      %s178 = scalar_lea.vmem %s1, %s177
      %p179 = pneg %p83
      %p180 = pneg %p80
      %p181 = pneg %p111
      %p182 = pneg %p108
      %s183 = smul.u32 32, %s18
      %p184 = scmp.lt.s32.totalorder %s183, 63
      %s185 = scalar_select %p184, %s183, 63
      %p186 = scmp.lt.s32.totalorder %s19, 0
      %s187 = scalar_select %p186, %s19, 0
      %s188 = sadd.s32 %s187, %s185
      %s189 = smul.addr %s188, 8
      %s190 = scalar_lea.vmem %s2, %s189
      %s191 = smul.u32 32, %s18
      %p192 = scmp.lt.s32.totalorder %s191, 63
      %s193 = scalar_select %p192, %s191, 63
      %p194 = scmp.lt.s32.totalorder %s20, 0
      %s195 = scalar_select %p194, %s20, 0
      %s196 = sadd.s32 %s195, %s193
      %s197 = smul.addr %s196, 4
      %s198 = scalar_lea.vmem %s0, %s197
      %s199 = smul.u32 32, %s18
      %s200 = smul.u32 3, %s20
      %p201 = scmp.lt.s32.totalorder %s200, 2
      %s202 = scalar_select %p201, %s200, 2
      %p203 = scmp.lt.s32.totalorder %s19, 0
      %s204 = scalar_select %p203, %s19, 0
      %s205 = sadd.s32 %s204, %s202
      %s206 = smul.addr %s205, 4
      %s207 = scalar_lea.vmem %s1, %s206
      %s208 = smul.u32 3, %s20
      %s209 = smul.u32 32, %s18
      %p210 = scmp.lt.s32.totalorder %s209, 63
      %s211 = scalar_select %p210, %s209, 63
      %p212 = scmp.lt.s32.totalorder %s19, 0
      %s213 = scalar_select %p212, %s19, 0
      %s214 = sadd.s32 %s213, %s211
      %s215 = smul.addr %s214, 8
      %s216 = scalar_lea.vmem %s2, %s215
      %s217 = smul.u32 32, %s18
      %v219 = vld [vmem:[%s198] sm:$0xf]
      %v220 = vld [vmem:[%s198 + $0x4] sm:$0xf]
      %v221 = vld [vmem:[%s198 + $0x8] sm:$0xf]
      %v222 = vld [vmem:[%s198 + $0xc] sm:$0xf]
      %v223 = vld [vmem:[%s198 + $0x10] sm:$0xf]
      %v224 = vld [vmem:[%s198 + $0x14] sm:$0xf]
      %v225 = vld [vmem:[%s198 + $0x18] sm:$0xf]
      %v226 = vld [vmem:[%s198 + $0x1c] sm:$0xf]
      %v227 = vld [vmem:[%s198 + $0x20] sm:$0xf]
      %v228 = vld [vmem:[%s198 + $0x24] sm:$0xf]
      %v229 = vld [vmem:[%s198 + $0x28] sm:$0xf]
      %v230 = vld [vmem:[%s198 + $0x2c] sm:$0xf]
      %v231 = vld [vmem:[%s198 + $0x30] sm:$0xf]
      %v232 = vld [vmem:[%s198 + $0x34] sm:$0xf]
      %v233 = vld [vmem:[%s198 + $0x38] sm:$0xf]
      %v234 = vld [vmem:[%s198 + $0x3c] sm:$0xf]
      %v235 = vld [vmem:[%s198 + $0x40] sm:$0xf]
      %v236 = vld [vmem:[%s198 + $0x44] sm:$0xf]
      %v237 = vld [vmem:[%s198 + $0x48] sm:$0xf]
      %v238 = vld [vmem:[%s198 + $0x4c] sm:$0xf]
      %v239 = vld [vmem:[%s198 + $0x50] sm:$0xf]
      %v240 = vld [vmem:[%s198 + $0x54] sm:$0xf]
      %v241 = vld [vmem:[%s198 + $0x58] sm:$0xf]
      %v242 = vld [vmem:[%s198 + $0x5c] sm:$0xf]
      %v243 = vld [vmem:[%s198 + $0x60] sm:$0xf]
      %v244 = vld [vmem:[%s198 + $0x64] sm:$0xf]
      %v245 = vld [vmem:[%s198 + $0x68] sm:$0xf]
      %v246 = vld [vmem:[%s198 + $0x6c] sm:$0xf]
      %v247 = vld [vmem:[%s198 + $0x70] sm:$0xf]
      %v248 = vld [vmem:[%s198 + $0x74] sm:$0xf]
      %v249 = vld [vmem:[%s198 + $0x78] sm:$0xf]
      %v250 = vld [vmem:[%s198 + $0x7c] sm:$0xf]
      %v251 = vmax.bf16 %v219, 0
      %v252 = vmax.bf16 %v220, 0
      %v253 = vmax.bf16 %v221, 0
      %v254 = vmax.bf16 %v222, 0
      %v255 = vmax.bf16 %v223, 0
      %v256 = vmax.bf16 %v224, 0
      %v257 = vmax.bf16 %v225, 0
      %v258 = vmax.bf16 %v226, 0
      %v259 = vmax.bf16 %v227, 0
      %v260 = vmax.bf16 %v228, 0
      %v261 = vmax.bf16 %v229, 0
      %v262 = vmax.bf16 %v230, 0
      %v263 = vmax.bf16 %v231, 0
      %v264 = vmax.bf16 %v232, 0
      %v265 = vmax.bf16 %v233, 0
      %v266 = vmax.bf16 %v234, 0
      %v267 = vmax.bf16 %v235, 0
      %v268 = vmax.bf16 %v236, 0
      %v269 = vmax.bf16 %v237, 0
      %v270 = vmax.bf16 %v238, 0
      %v271 = vmax.bf16 %v239, 0
      %v272 = vmax.bf16 %v240, 0
      %v273 = vmax.bf16 %v241, 0
      %v274 = vmax.bf16 %v242, 0
      %v275 = vmax.bf16 %v243, 0
      %v276 = vmax.bf16 %v244, 0
      %v277 = vmax.bf16 %v245, 0
      %v278 = vmax.bf16 %v246, 0
      %v279 = vmax.bf16 %v247, 0
      %v280 = vmax.bf16 %v248, 0
      %v281 = vmax.bf16 %v249, 0
      %v282 = vmax.bf16 %v250, 0
      %v283 = vld [vmem:[%s207] sm:$0xf]
      %v284 = vld [vmem:[%s207 + $0x4] sm:$0xf]
      %v285 = vld [vmem:[%s207 + $0x8] sm:$0xf]
      %v318 = vunpack.c.l.b16 %v251
      %v319 = vunpack.c.l.b16 %v252
      %v320 = vunpack.c.l.b16 %v253
      %v321 = vunpack.c.l.b16 %v254
      %v322 = vunpack.c.l.b16 %v255
      %v323 = vunpack.c.l.b16 %v256
      %v324 = vunpack.c.l.b16 %v257
      %v325 = vunpack.c.l.b16 %v258
      %v326 = vunpack.c.l.b16 %v259
      %v327 = vunpack.c.l.b16 %v260
      %v328 = vunpack.c.l.b16 %v261
      %v329 = vunpack.c.l.b16 %v262
      %v330 = vunpack.c.l.b16 %v263
      %v331 = vunpack.c.l.b16 %v264
      %v332 = vunpack.c.l.b16 %v265
      %v333 = vunpack.c.l.b16 %v266
      %v334 = vunpack.c.l.b16 %v267
      %v335 = vunpack.c.l.b16 %v268
      %v336 = vunpack.c.l.b16 %v269
      %v337 = vunpack.c.l.b16 %v270
      %v338 = vunpack.c.l.b16 %v271
      %v339 = vunpack.c.l.b16 %v272
      %v340 = vunpack.c.l.b16 %v273
      %v341 = vunpack.c.l.b16 %v274
      %v342 = vunpack.c.l.b16 %v275
      %v343 = vunpack.c.l.b16 %v276
      %v344 = vunpack.c.l.b16 %v277
      %v345 = vunpack.c.l.b16 %v278
      %v346 = vunpack.c.l.b16 %v279
      %v347 = vunpack.c.l.b16 %v280
      %v348 = vunpack.c.l.b16 %v281
      %v349 = vunpack.c.l.b16 %v282
      %v350 = vpack.c.b16 %v319, %v318
      %v351 = vpack.c.b16 %v321, %v320
      %v352 = vpack.c.b16 %v323, %v322
      %v353 = vpack.c.b16 %v325, %v324
      %v354 = vpack.c.b16 %v327, %v326
      %v355 = vpack.c.b16 %v329, %v328
      %v356 = vpack.c.b16 %v331, %v330
      %v357 = vpack.c.b16 %v333, %v332
      %v358 = vpack.c.b16 %v335, %v334
      %v359 = vpack.c.b16 %v337, %v336
      %v360 = vpack.c.b16 %v339, %v338
      %v361 = vpack.c.b16 %v341, %v340
      %v362 = vpack.c.b16 %v343, %v342
      %v363 = vpack.c.b16 %v345, %v344
      %v364 = vpack.c.b16 %v347, %v346
      %v365 = vpack.c.b16 %v349, %v348
      %v369 = vunpack.c.l.b16 %v283
      %v370 = vunpack.c.l.b16 %v284
      %v371 = vunpack.c.l.b16 %v285
      %v372 = vpack.c.b16 %v370, %v369
      %v373 = vpack.c.b16 %v371, %v371
      %vm375 = vcmask 195584
      %v377 = vsel %vm375, %v350, 0
      %v380 = vsel %vm375, %v351, 0
      %v383 = vsel %vm375, %v352, 0
      %v386 = vsel %vm375, %v353, 0
      %v389 = vsel %vm375, %v354, 0
      %v392 = vsel %vm375, %v355, 0
      %v395 = vsel %vm375, %v356, 0
      %v398 = vsel %vm375, %v357, 0
      %v401 = vsel %vm375, %v358, 0
      %v404 = vsel %vm375, %v359, 0
      %v407 = vsel %vm375, %v360, 0
      %v410 = vsel %vm375, %v361, 0
      %v413 = vsel %vm375, %v362, 0
      %v416 = vsel %vm375, %v363, 0
      %v419 = vsel %vm375, %v364, 0
      %v422 = vsel %vm375, %v365, 0
      %vm424 = vcmask 1043456
      %v426 = vsel %vm424, %v373, 0
      %428 = vmatprep.subr.bf16.mxu0 0
      %429 = vmatpush1.bf16.msra.mxu0 0
      %430 = vmatprep.subr.bf16.mxu0 0
      %431 = vmatpush1.bf16.msra.mxu0 0
      %432 = vmatprep.subr.bf16.mxu0 0
      %433 = vmatpush1.bf16.msra.mxu0 0
      %434 = vmatprep.subr.bf16.mxu0 0
      %435 = vmatpush1.bf16.msra.mxu0 0
      %436 = vmatprep.subr.bf16.mxu0 0
      %437 = vmatpush1.bf16.msra.mxu0 0
      %438 = vmatprep.subr.bf16.mxu0 0
      %439 = vmatpush1.bf16.msra.mxu0 0
      %440 = vmatprep.subr.bf16.mxu0 0
      %441 = vmatpush1.bf16.msra.mxu0 %v426
      %442 = vmatprep.subr.bf16.mxu0 0
      %443 = vmatpush1.bf16.msra.mxu0 %v372
      %444 = vmatprep.subr.bf16.mxu0 0
      %445 = vmatpush2.bf16.msra.mxu0 0
      %446 = vmatprep.subr.bf16.mxu0 0
      %447 = vmatpush2.bf16.msra.mxu0 0
      %448 = vmatprep.subr.bf16.mxu0 0
      %449 = vmatpush2.bf16.msra.mxu0 0
      %450 = vmatprep.subr.bf16.mxu0 0
      %451 = vmatpush2.bf16.msra.mxu0 0
      %452 = vmatprep.subr.bf16.mxu0 0
      %453 = vmatpush2.bf16.msra.mxu0 0
      %454 = vmatprep.subr.bf16.mxu0 0
      %455 = vmatpush2.bf16.msra.mxu0 0
      %456 = vmatprep.subr.bf16.mxu0 0
      %457 = vmatpush2.bf16.msra.mxu0 0
      %458 = vmatprep.subr.bf16.mxu0 0
      %459 = vmatpush2.bf16.msra.mxu0 0
      %460 = vmatprep.mubr.bf16.mxu0 0
      %461 = vmatmul.mubr.bf16.gmra.mxu0 %v377
      %v462 = vpop.f32.mrf.mxu0
      %v463 = vadd.f32 0.0, %v462
      %v464 = vpop.f32.mrf.mxu0
      %v465 = vpop.f32.mrf.mxu0
      %v466 = vadd.f32 0.0, %v465
      %v467 = vpop.f32.mrf.mxu0
      %468 = vmatprep.mubr.bf16.mxu0 0
      %469 = vmatmul.mubr.bf16.gmra.mxu0 %v380
      %v470 = vpop.f32.mrf.mxu0
      %v471 = vadd.f32 0.0, %v470
      %v472 = vpop.f32.mrf.mxu0
      %v473 = vpop.f32.mrf.mxu0
      %v474 = vadd.f32 0.0, %v473
      %v475 = vpop.f32.mrf.mxu0
      %476 = vmatprep.mubr.bf16.mxu0 0
      %477 = vmatmul.mubr.bf16.gmra.mxu0 %v383
      %v478 = vpop.f32.mrf.mxu0
      %v479 = vadd.f32 0.0, %v478
      %v480 = vpop.f32.mrf.mxu0
      %v481 = vpop.f32.mrf.mxu0
      %v482 = vadd.f32 0.0, %v481
      %v483 = vpop.f32.mrf.mxu0
      %484 = vmatprep.mubr.bf16.mxu0 0
      %485 = vmatmul.mubr.bf16.gmra.mxu0 %v386
      %v486 = vpop.f32.mrf.mxu0
      %v487 = vadd.f32 0.0, %v486
      %v488 = vpop.f32.mrf.mxu0
      %v489 = vpop.f32.mrf.mxu0
      %v490 = vadd.f32 0.0, %v489
      %v491 = vpop.f32.mrf.mxu0
      %492 = vmatprep.mubr.bf16.mxu0 0
      %493 = vmatmul.mubr.bf16.gmra.mxu0 %v389
      %v494 = vpop.f32.mrf.mxu0
      %v495 = vadd.f32 0.0, %v494
      %v496 = vpop.f32.mrf.mxu0
      %v497 = vpop.f32.mrf.mxu0
      %v498 = vadd.f32 0.0, %v497
      %v499 = vpop.f32.mrf.mxu0
      %500 = vmatprep.mubr.bf16.mxu0 0
      %501 = vmatmul.mubr.bf16.gmra.mxu0 %v392
      %v502 = vpop.f32.mrf.mxu0
      %v503 = vadd.f32 0.0, %v502
      %v504 = vpop.f32.mrf.mxu0
      %v505 = vpop.f32.mrf.mxu0
      %v506 = vadd.f32 0.0, %v505
      %v507 = vpop.f32.mrf.mxu0
      %508 = vmatprep.mubr.bf16.mxu0 0
      %509 = vmatmul.mubr.bf16.gmra.mxu0 %v395
      %v510 = vpop.f32.mrf.mxu0
      %v511 = vadd.f32 0.0, %v510
      %v512 = vpop.f32.mrf.mxu0
      %v513 = vpop.f32.mrf.mxu0
      %v514 = vadd.f32 0.0, %v513
      %v515 = vpop.f32.mrf.mxu0
      %516 = vmatprep.mubr.bf16.mxu0 0
      %517 = vmatmul.mubr.bf16.gmra.mxu0 %v398
      %v518 = vpop.f32.mrf.mxu0
      %v519 = vadd.f32 0.0, %v518
      %v520 = vpop.f32.mrf.mxu0
      %v521 = vpop.f32.mrf.mxu0
      %v522 = vadd.f32 0.0, %v521
      %v523 = vpop.f32.mrf.mxu0
      %524 = vmatprep.mubr.bf16.mxu0 0
      %525 = vmatmul.mubr.bf16.gmra.mxu0 %v401
      %v526 = vpop.f32.mrf.mxu0
      %v527 = vadd.f32 0.0, %v526
      %v528 = vpop.f32.mrf.mxu0
      %v529 = vpop.f32.mrf.mxu0
      %v530 = vadd.f32 0.0, %v529
      %v531 = vpop.f32.mrf.mxu0
      %532 = vmatprep.mubr.bf16.mxu0 0
      %533 = vmatmul.mubr.bf16.gmra.mxu0 %v404
      %v534 = vpop.f32.mrf.mxu0
      %v535 = vadd.f32 0.0, %v534
      %v536 = vpop.f32.mrf.mxu0
      %v537 = vpop.f32.mrf.mxu0
      %v538 = vadd.f32 0.0, %v537
      %v539 = vpop.f32.mrf.mxu0
      %540 = vmatprep.mubr.bf16.mxu0 0
      %541 = vmatmul.mubr.bf16.gmra.mxu0 %v407
      %v542 = vpop.f32.mrf.mxu0
      %v543 = vadd.f32 0.0, %v542
      %v544 = vpop.f32.mrf.mxu0
      %v545 = vpop.f32.mrf.mxu0
      %v546 = vadd.f32 0.0, %v545
      %v547 = vpop.f32.mrf.mxu0
      %548 = vmatprep.mubr.bf16.mxu0 0
      %549 = vmatmul.mubr.bf16.gmra.mxu0 %v410
      %v550 = vpop.f32.mrf.mxu0
      %v551 = vadd.f32 0.0, %v550
      %v552 = vpop.f32.mrf.mxu0
      %v553 = vpop.f32.mrf.mxu0
      %v554 = vadd.f32 0.0, %v553
      %v555 = vpop.f32.mrf.mxu0
      %556 = vmatprep.mubr.bf16.mxu0 0
      %557 = vmatmul.mubr.bf16.gmra.mxu0 %v413
      %v558 = vpop.f32.mrf.mxu0
      %v559 = vadd.f32 0.0, %v558
      %v560 = vpop.f32.mrf.mxu0
      %v561 = vpop.f32.mrf.mxu0
      %v562 = vadd.f32 0.0, %v561
      %v563 = vpop.f32.mrf.mxu0
      %564 = vmatprep.mubr.bf16.mxu0 0
      %565 = vmatmul.mubr.bf16.gmra.mxu0 %v416
      %v566 = vpop.f32.mrf.mxu0
      %v567 = vadd.f32 0.0, %v566
      %v568 = vpop.f32.mrf.mxu0
      %v569 = vpop.f32.mrf.mxu0
      %v570 = vadd.f32 0.0, %v569
      %v571 = vpop.f32.mrf.mxu0
      %572 = vmatprep.mubr.bf16.mxu0 0
      %573 = vmatmul.mubr.bf16.gmra.mxu0 %v419
      %v574 = vpop.f32.mrf.mxu0
      %v575 = vadd.f32 0.0, %v574
      %v576 = vpop.f32.mrf.mxu0
      %v577 = vpop.f32.mrf.mxu0
      %v578 = vadd.f32 0.0, %v577
      %v579 = vpop.f32.mrf.mxu0
      %580 = vmatprep.mubr.bf16.mxu0 0
      %581 = vmatmul.mubr.bf16.gmra.mxu0 %v422
      %v582 = vpop.f32.mrf.mxu0
      %v583 = vadd.f32 0.0, %v582
      %v584 = vpop.f32.mrf.mxu0
      %v585 = vpop.f32.mrf.mxu0
      %v586 = vadd.f32 0.0, %v585
      %v587 = vpop.f32.mrf.mxu0
      %588 = vdwg.mxu0
      %vm589 = vcmask 64512
      %590 = vst.msk [vmem:[%s216] sm:$0xff] %vm589, %v463
      %591 = vst.msk [vmem:[%s216 + $0x8] sm:$0xff] %vm589, %v466
      %592 = vst.msk [vmem:[%s216 + $0x10] sm:$0xff] %vm589, %v471
      %593 = vst.msk [vmem:[%s216 + $0x18] sm:$0xff] %vm589, %v474
      %594 = vst.msk [vmem:[%s216 + $0x20] sm:$0xff] %vm589, %v479
      %595 = vst.msk [vmem:[%s216 + $0x28] sm:$0xff] %vm589, %v482
      %596 = vst.msk [vmem:[%s216 + $0x30] sm:$0xff] %vm589, %v487
      %597 = vst.msk [vmem:[%s216 + $0x38] sm:$0xff] %vm589, %v490
      %598 = vst.msk [vmem:[%s216 + $0x40] sm:$0xff] %vm589, %v495
      %599 = vst.msk [vmem:[%s216 + $0x48] sm:$0xff] %vm589, %v498
      %600 = vst.msk [vmem:[%s216 + $0x50] sm:$0xff] %vm589, %v503
      %601 = vst.msk [vmem:[%s216 + $0x58] sm:$0xff] %vm589, %v506
      %602 = vst.msk [vmem:[%s216 + $0x60] sm:$0xff] %vm589, %v511
      %603 = vst.msk [vmem:[%s216 + $0x68] sm:$0xff] %vm589, %v514
      %604 = vst.msk [vmem:[%s216 + $0x70] sm:$0xff] %vm589, %v519
      %605 = vst.msk [vmem:[%s216 + $0x78] sm:$0xff] %vm589, %v522
      %606 = vst.msk [vmem:[%s216 + $0x80] sm:$0xff] %vm589, %v527
      %607 = vst.msk [vmem:[%s216 + $0x88] sm:$0xff] %vm589, %v530
      %608 = vst.msk [vmem:[%s216 + $0x90] sm:$0xff] %vm589, %v535
      %609 = vst.msk [vmem:[%s216 + $0x98] sm:$0xff] %vm589, %v538
      %610 = vst.msk [vmem:[%s216 + $0xa0] sm:$0xff] %vm589, %v543
      %611 = vst.msk [vmem:[%s216 + $0xa8] sm:$0xff] %vm589, %v546
      %612 = vst.msk [vmem:[%s216 + $0xb0] sm:$0xff] %vm589, %v551
      %613 = vst.msk [vmem:[%s216 + $0xb8] sm:$0xff] %vm589, %v554
      %614 = vst.msk [vmem:[%s216 + $0xc0] sm:$0xff] %vm589, %v559
      %615 = vst.msk [vmem:[%s216 + $0xc8] sm:$0xff] %vm589, %v562
      %616 = vst.msk [vmem:[%s216 + $0xd0] sm:$0xff] %vm589, %v567
      %617 = vst.msk [vmem:[%s216 + $0xd8] sm:$0xff] %vm589, %v570
      %618 = vst.msk [vmem:[%s216 + $0xe0] sm:$0xff] %vm589, %v575
      %619 = vst.msk [vmem:[%s216 + $0xe8] sm:$0xff] %vm589, %v578
      %620 = vst.msk [vmem:[%s216 + $0xf0] sm:$0xff] %vm589, %v583
      %621 = vst.msk [vmem:[%s216 + $0xf8] sm:$0xff] %vm589, %v586
      %s622 = smul.u32 32, %s18
      %p623 = scmp.lt.s32.totalorder %s622, 63
      %s624 = scalar_select %p623, %s622, 63
      %p625 = scmp.lt.s32.totalorder %s19, 0
      %s626 = scalar_select %p625, %s19, 0
      %s627 = sadd.s32 %s626, %s624
      %s628 = smul.addr %s627, 8
      %s629 = scalar_lea.vmem %s2, %s628
      // Predicated region
      $region29: #{pdarts_cnn_forward.207} parent=27 // pred_check
        %p630 = pneg %p108
      $region30: #{pdarts_cnn_forward.207} parent=27 // pred_check_branch
        %632 = sbr.rel (%p630) target = $region32
      $region31: #{pdarts_cnn_forward.207} parent=27 // pred_region
        %s633 = smul.u32 32, %s18
      $region32: #{pdarts_cnn_forward.207} parent=27 // pred_fallthru
        _
    $region28: #{pdarts_cnn_forward.207} parent=5 // pred_fallthru
      _
    %p634 = scmp.le.s32.totalorder 2, %s8
    // Predicated region
    $region33: #{pdarts_cnn_forward.207} parent=5 // pred_check
      %p635 = pneg %p634
    $region34: #{pdarts_cnn_forward.207} parent=5 // pred_check_branch
      %637 = sbr.rel (%p635) target = $region36
    $region35: #{pdarts_cnn_forward.207} parent=5 // pred_region
      %s638 = ssub.s32 %s8, 2
      // Predicated region
      $region37: #{pdarts_cnn_forward.207} parent=35 // pred_check
        %p639 = pneg %p114
      $region38: #{pdarts_cnn_forward.207} parent=35 // pred_check_branch
        %641 = sbr.rel (%p639) target = $region40
      $region39: #{pdarts_cnn_forward.207} parent=35 // pred_region
        %s642 = smul.u32 32, %s21
        %p643 = scmp.lt.s32.totalorder %s642, 63
        %s644 = scalar_select %p643, %s642, 63
        %p645 = scmp.lt.s32.totalorder %s22, 0
        %s646 = scalar_select %p645, %s22, 0
        %s647 = sadd.s32 %s646, %s644
        %s648 = smul.addr %s647, 8
        %s649 = scalar_lea.vmem %s2, %s648
      $region40: #{pdarts_cnn_forward.207} parent=35 // pred_fallthru
        _
    $region36: #{pdarts_cnn_forward.207} parent=5 // pred_fallthru
      _
  $region6: #{pdarts_cnn_forward.207} parent=0 // loop_footer
    %s12 = sadd.s32 1, %s8
  $region7: #{pdarts_cnn_forward.207} parent=0 // loop_footer_branch
    %7 = sbr.rel target = $region3
  $region8: #{pdarts_cnn_forward.207} parent=0 // loop_exit
    _

// kernel: pdarts_cnn_forward.268
$region0: #{pdarts_cnn_forward.268}
  #allocation0 [shape = 'u32[]', space=smem, size = 0x4, offset = 0x4, fixed_abs, tag = 'smem constant byte address 0x4 - core index']
  #allocation1 [shape = 'u32[144,128]{1,0:T(1,128)}', space=vmem, size = 0x12000, scoped, tag = 'internal scratch']
  %s0 = inlined_call_operand.vmem [shape: bf16[512,24], index: 0, kind: input, shape index: {}]
  %s1 = inlined_call_operand.vmem [shape: bf16[24,16], index: 1, kind: input, shape index: {}]
  %s2 = inlined_call_operand.vmem [shape: f32[512,16], index: 2, kind: output, shape index: {}]
  %s3 = sld [smem:[#allocation0]]
  $region41: #{pdarts_cnn_forward.268} parent=0
    _
  %s5 = ssub.s32 1, %s3
  %s6 = scalar_select 0, %s5, %s3
  loop: start=0, step=1, limit=4
  $region2: #{pdarts_cnn_forward.268} parent=0 // loop_pre_header
    _
  $region3: #{pdarts_cnn_forward.268} parent=0 // loop_header
    %s8 = sphi 0, %s12
    %p9 = scmp.ge.s32.totalorder %s8, 4
    %s15 = sphi 0, %s34
    %s16 = sphi 0, %s30
    %s17 = sphi 0, %s26
    %s18 = sphi 0, %s15
    %s19 = sphi 0, %s16
    %s20 = sphi 0, %s17
    %s21 = sphi 0, %s18
    %s22 = sphi 0, %s19
    %s23 = sphi 0, %s20
    %s39 = sphi 0, %s41
    %s42 = sphi 0, %s39
    %s43 = sphi 0, %s42
    %s59 = sphi 0, %s43
    %s67 = sphi 0, %s69
    %s70 = sphi 0, %s67
    %s71 = sphi 0, %s70
    %s87 = sphi 0, %s71
    %s95 = sphi 0, %s97
    %s98 = sphi 0, %s95
    %s99 = sphi 0, %s98
    %s115 = sphi 0, %s99
  $region4: #{pdarts_cnn_forward.268} parent=0 // loop_header_branch
    %11 = sbr.rel (%p9) target = $region8
  $region5: #{pdarts_cnn_forward.268} parent=0 // loop_body
    %s13 = ssub.s32 %s8, 1
    %s14 = ssub.s32 %s8, 2
    %s24 = sadd.s32 1, %s17
    %p25 = scmp.ge.s32.totalorder %s24, 1
    %s26 = scalar_select %p25, 0, %s24
    %s27 = sadd.s32 1, %s16
    %s28 = scalar_select %p25, %s27, %s16
    %p29 = scmp.ge.s32.totalorder %s28, 1
    %s30 = scalar_select %p29, 0, %s28
    %s31 = sadd.s32 1, %s15
    %s32 = scalar_select %p29, %s31, %s15
    %p33 = scmp.ge.s32.totalorder %s32, 2
    %s34 = scalar_select %p33, 0, %s32
    %s35 = ssub.s32 %s15, %s34
    %s36 = ssub.s32 %s17, %s26
    %s37 = sor.u32 %s35, %s36
    %p38 = scmp.eq.s32.totalorder %s37, 0
    %s40 = sadd.s32 %s39, 1
    %s41 = scalar_select %p38, %s39, %s40
    %p44 = pneg %p38
    %p45 = scmp.eq.s32.totalorder %s8, 1
    %p46 = por %p44, %p45
    %p47 = scmp.ne.s32.totalorder %s39, %s42
    %p48 = scmp.eq.s32.totalorder %s8, 0
    %p49 = por %p47, %p48
    %p50 = scmp.ne.s32.totalorder %s39, %s42
    %p51 = scmp.eq.s32.totalorder %s13, 1
    %p52 = por %p50, %p51
    %p53 = scmp.ne.s32.totalorder %s42, %s43
    %p54 = scmp.eq.s32.totalorder %s13, 0
    %p55 = por %p53, %p54
    %p56 = scmp.ne.s32.totalorder %s42, %s43
    %p57 = scmp.eq.s32.totalorder %s14, 1
    %p58 = por %p56, %p57
    %p60 = scmp.ne.s32.totalorder %s43, %s59
    %p61 = scmp.eq.s32.totalorder %s14, 0
    %p62 = por %p60, %p61
    %s63 = ssub.s32 %s17, %s26
    %s64 = ssub.s32 %s16, %s30
    %s65 = sor.u32 %s63, %s64
    %p66 = scmp.eq.s32.totalorder %s65, 0
    %s68 = sadd.s32 %s67, 1
    %s69 = scalar_select %p66, %s67, %s68
    %p72 = pneg %p66
    %p73 = scmp.eq.s32.totalorder %s8, 1
    %p74 = por %p72, %p73
    %p75 = scmp.ne.s32.totalorder %s67, %s70
    %p76 = scmp.eq.s32.totalorder %s8, 0
    %p77 = por %p75, %p76
    %p78 = scmp.ne.s32.totalorder %s67, %s70
    %p79 = scmp.eq.s32.totalorder %s13, 1
    %p80 = por %p78, %p79
    %p81 = scmp.ne.s32.totalorder %s70, %s71
    %p82 = scmp.eq.s32.totalorder %s13, 0
    %p83 = por %p81, %p82
    %p84 = scmp.ne.s32.totalorder %s70, %s71
    %p85 = scmp.eq.s32.totalorder %s14, 1
    %p86 = por %p84, %p85
    %p88 = scmp.ne.s32.totalorder %s71, %s87
    %p89 = scmp.eq.s32.totalorder %s14, 0
    %p90 = por %p88, %p89
    %s91 = ssub.s32 %s15, %s34
    %s92 = ssub.s32 %s16, %s30
    %s93 = sor.u32 %s91, %s92
    %p94 = scmp.eq.s32.totalorder %s93, 0
    %s96 = sadd.s32 %s95, 1
    %s97 = scalar_select %p94, %s95, %s96
    %p100 = pneg %p94
    %p101 = scmp.eq.s32.totalorder %s8, 1
    %p102 = por %p100, %p101
    %p103 = scmp.ne.s32.totalorder %s95, %s98
    %p104 = scmp.eq.s32.totalorder %s8, 0
    %p105 = por %p103, %p104
    %p106 = scmp.ne.s32.totalorder %s95, %s98
    %p107 = scmp.eq.s32.totalorder %s13, 1
    %p108 = por %p106, %p107
    %p109 = scmp.ne.s32.totalorder %s98, %s99
    %p110 = scmp.eq.s32.totalorder %s13, 0
    %p111 = por %p109, %p110
    %p112 = scmp.ne.s32.totalorder %s98, %s99
    %p113 = scmp.eq.s32.totalorder %s14, 1
    %p114 = por %p112, %p113
    %p116 = scmp.ne.s32.totalorder %s99, %s115
    %p117 = scmp.eq.s32.totalorder %s14, 0
    %p118 = por %p116, %p117
    %p119 = scmp.le.s32.totalorder 1, %s8
    %p120 = scmp.lt.s32.totalorder %s8, 3
    %p121 = pnand %p119, %p120
    %p122 = pneg %p121
    // Predicated region
    $region9: #{pdarts_cnn_forward.268} parent=5 // pred_check
      _
    $region10: #{pdarts_cnn_forward.268} parent=5 // pred_check_branch
      %124 = sbr.rel (%p121) target = $region12
    $region11: #{pdarts_cnn_forward.268} parent=5 // pred_region
      %s125 = ssub.s32 %s8, 1
      // Predicated region
      $region13: #{pdarts_cnn_forward.268} parent=11 // pred_check
        %p126 = pneg %p83
      $region14: #{pdarts_cnn_forward.268} parent=11 // pred_check_branch
        %128 = sbr.rel (%p126) target = $region16
      $region15: #{pdarts_cnn_forward.268} parent=11 // pred_region
        %s129 = smul.u32 3, %s20
        %p130 = scmp.lt.s32.totalorder %s129, 2
        %s131 = scalar_select %p130, %s129, 2
        %p132 = scmp.lt.s32.totalorder %s19, 0
        %s133 = scalar_select %p132, %s19, 0
        %s134 = sadd.s32 %s133, %s131
        %s135 = smul.addr %s134, 4
        %s136 = scalar_lea.vmem %s1, %s135
        %s137 = smul.u32 3, %s20
      $region16: #{pdarts_cnn_forward.268} parent=11 // pred_fallthru
        _
    $region12: #{pdarts_cnn_forward.268} parent=5 // pred_fallthru
      _
    %p138 = scmp.lt.s32.totalorder %s8, 2
    // Predicated region
    $region17: #{pdarts_cnn_forward.268} parent=5 // pred_check
      %p139 = pneg %p138
    $region18: #{pdarts_cnn_forward.268} parent=5 // pred_check_branch
      %141 = sbr.rel (%p139) target = $region20
    $region19: #{pdarts_cnn_forward.268} parent=5 // pred_region
      // Predicated region
      $region21: #{pdarts_cnn_forward.268} parent=19 // pred_check
        %p142 = pneg %p49
      $region22: #{pdarts_cnn_forward.268} parent=19 // pred_check_branch
        %144 = sbr.rel (%p142) target = $region24
      $region23: #{pdarts_cnn_forward.268} parent=19 // pred_region
        %s145 = smul.u32 32, %s15
        %p146 = scmp.lt.s32.totalorder %s145, 63
        %s147 = scalar_select %p146, %s145, 63
        %p148 = scmp.lt.s32.totalorder %s17, 0
        %s149 = scalar_select %p148, %s17, 0
        %s150 = sadd.s32 %s149, %s147
        %s151 = smul.addr %s150, 4
        %s152 = scalar_lea.vmem %s0, %s151
        %s153 = smul.u32 32, %s15
      $region24: #{pdarts_cnn_forward.268} parent=19 // pred_fallthru
        _
    $region20: #{pdarts_cnn_forward.268} parent=5 // pred_fallthru
      _
    %p154 = scmp.le.s32.totalorder 1, %s8
    %p155 = scmp.lt.s32.totalorder %s8, 3
    %p156 = pnand %p154, %p155
    %p157 = pneg %p156
    // Predicated region
    $region25: #{pdarts_cnn_forward.268} parent=5 // pred_check
      _
    $region26: #{pdarts_cnn_forward.268} parent=5 // pred_check_branch
      %159 = sbr.rel (%p156) target = $region28
    $region27: #{pdarts_cnn_forward.268} parent=5 // pred_region
      %s160 = ssub.s32 %s8, 1
      %s161 = smul.u32 32, %s18
      %p162 = scmp.lt.s32.totalorder %s161, 63
      %s163 = scalar_select %p162, %s161, 63
      %p164 = scmp.lt.s32.totalorder %s20, 0
      %s165 = scalar_select %p164, %s20, 0
      %s166 = sadd.s32 %s165, %s163
      %s167 = smul.addr %s166, 4
      %s168 = scalar_lea.vmem %s0, %s167
      %p169 = pneg %p55
      %p170 = pneg %p52
      %s171 = smul.u32 3, %s20
      %p172 = scmp.lt.s32.totalorder %s171, 2
      %s173 = scalar_select %p172, %s171, 2
      %p174 = scmp.lt.s32.totalorder %s19, 0
      %s175 = scalar_select %p174, %s19, 0
      %s176 = sadd.s32 %s175, %s173
      %s177 = smul.addr %s176, 4
      %s178 = scalar_lea.vmem %s1, %s177
      %p179 = pneg %p83
      %p180 = pneg %p80
      %p181 = pneg %p111
      %p182 = pneg %p108
      %s183 = smul.u32 32, %s18
      %p184 = scmp.lt.s32.totalorder %s183, 63
      %s185 = scalar_select %p184, %s183, 63
      %p186 = scmp.lt.s32.totalorder %s19, 0
      %s187 = scalar_select %p186, %s19, 0
      %s188 = sadd.s32 %s187, %s185
      %s189 = smul.addr %s188, 8
      %s190 = scalar_lea.vmem %s2, %s189
      %s191 = smul.u32 32, %s18
      %p192 = scmp.lt.s32.totalorder %s191, 63
      %s193 = scalar_select %p192, %s191, 63
      %p194 = scmp.lt.s32.totalorder %s20, 0
      %s195 = scalar_select %p194, %s20, 0
      %s196 = sadd.s32 %s195, %s193
      %s197 = smul.addr %s196, 4
      %s198 = scalar_lea.vmem %s0, %s197
      %s199 = smul.u32 32, %s18
      %s200 = smul.u32 3, %s20
      %p201 = scmp.lt.s32.totalorder %s200, 2
      %s202 = scalar_select %p201, %s200, 2
      %p203 = scmp.lt.s32.totalorder %s19, 0
      %s204 = scalar_select %p203, %s19, 0
      %s205 = sadd.s32 %s204, %s202
      %s206 = smul.addr %s205, 4
      %s207 = scalar_lea.vmem %s1, %s206
      %s208 = smul.u32 3, %s20
      %s209 = smul.u32 32, %s18
      %p210 = scmp.lt.s32.totalorder %s209, 63
      %s211 = scalar_select %p210, %s209, 63
      %p212 = scmp.lt.s32.totalorder %s19, 0
      %s213 = scalar_select %p212, %s19, 0
      %s214 = sadd.s32 %s213, %s211
      %s215 = smul.addr %s214, 8
      %s216 = scalar_lea.vmem %s2, %s215
      %s217 = smul.u32 32, %s18
      %v219 = vld [vmem:[%s198] sm:$0xf]
      %v220 = vld [vmem:[%s198 + $0x4] sm:$0xf]
      %v221 = vld [vmem:[%s198 + $0x8] sm:$0xf]
      %v222 = vld [vmem:[%s198 + $0xc] sm:$0xf]
      %v223 = vld [vmem:[%s198 + $0x10] sm:$0xf]
      %v224 = vld [vmem:[%s198 + $0x14] sm:$0xf]
      %v225 = vld [vmem:[%s198 + $0x18] sm:$0xf]
      %v226 = vld [vmem:[%s198 + $0x1c] sm:$0xf]
      %v227 = vld [vmem:[%s198 + $0x20] sm:$0xf]
      %v228 = vld [vmem:[%s198 + $0x24] sm:$0xf]
      %v229 = vld [vmem:[%s198 + $0x28] sm:$0xf]
      %v230 = vld [vmem:[%s198 + $0x2c] sm:$0xf]
      %v231 = vld [vmem:[%s198 + $0x30] sm:$0xf]
      %v232 = vld [vmem:[%s198 + $0x34] sm:$0xf]
      %v233 = vld [vmem:[%s198 + $0x38] sm:$0xf]
      %v234 = vld [vmem:[%s198 + $0x3c] sm:$0xf]
      %v235 = vld [vmem:[%s198 + $0x40] sm:$0xf]
      %v236 = vld [vmem:[%s198 + $0x44] sm:$0xf]
      %v237 = vld [vmem:[%s198 + $0x48] sm:$0xf]
      %v238 = vld [vmem:[%s198 + $0x4c] sm:$0xf]
      %v239 = vld [vmem:[%s198 + $0x50] sm:$0xf]
      %v240 = vld [vmem:[%s198 + $0x54] sm:$0xf]
      %v241 = vld [vmem:[%s198 + $0x58] sm:$0xf]
      %v242 = vld [vmem:[%s198 + $0x5c] sm:$0xf]
      %v243 = vld [vmem:[%s198 + $0x60] sm:$0xf]
      %v244 = vld [vmem:[%s198 + $0x64] sm:$0xf]
      %v245 = vld [vmem:[%s198 + $0x68] sm:$0xf]
      %v246 = vld [vmem:[%s198 + $0x6c] sm:$0xf]
      %v247 = vld [vmem:[%s198 + $0x70] sm:$0xf]
      %v248 = vld [vmem:[%s198 + $0x74] sm:$0xf]
      %v249 = vld [vmem:[%s198 + $0x78] sm:$0xf]
      %v250 = vld [vmem:[%s198 + $0x7c] sm:$0xf]
      %v251 = vmax.bf16 %v219, 0
      %v252 = vmax.bf16 %v220, 0
      %v253 = vmax.bf16 %v221, 0
      %v254 = vmax.bf16 %v222, 0
      %v255 = vmax.bf16 %v223, 0
      %v256 = vmax.bf16 %v224, 0
      %v257 = vmax.bf16 %v225, 0
      %v258 = vmax.bf16 %v226, 0
      %v259 = vmax.bf16 %v227, 0
      %v260 = vmax.bf16 %v228, 0
      %v261 = vmax.bf16 %v229, 0
      %v262 = vmax.bf16 %v230, 0
      %v263 = vmax.bf16 %v231, 0
      %v264 = vmax.bf16 %v232, 0
      %v265 = vmax.bf16 %v233, 0
      %v266 = vmax.bf16 %v234, 0
      %v267 = vmax.bf16 %v235, 0
      %v268 = vmax.bf16 %v236, 0
      %v269 = vmax.bf16 %v237, 0
      %v270 = vmax.bf16 %v238, 0
      %v271 = vmax.bf16 %v239, 0
      %v272 = vmax.bf16 %v240, 0
      %v273 = vmax.bf16 %v241, 0
      %v274 = vmax.bf16 %v242, 0
      %v275 = vmax.bf16 %v243, 0
      %v276 = vmax.bf16 %v244, 0
      %v277 = vmax.bf16 %v245, 0
      %v278 = vmax.bf16 %v246, 0
      %v279 = vmax.bf16 %v247, 0
      %v280 = vmax.bf16 %v248, 0
      %v281 = vmax.bf16 %v249, 0
      %v282 = vmax.bf16 %v250, 0
      %v283 = vld [vmem:[%s207] sm:$0xf]
      %v284 = vld [vmem:[%s207 + $0x4] sm:$0xf]
      %v285 = vld [vmem:[%s207 + $0x8] sm:$0xf]
      %v318 = vunpack.c.l.b16 %v251
      %v319 = vunpack.c.l.b16 %v252
      %v320 = vunpack.c.l.b16 %v253
      %v321 = vunpack.c.l.b16 %v254
      %v322 = vunpack.c.l.b16 %v255
      %v323 = vunpack.c.l.b16 %v256
      %v324 = vunpack.c.l.b16 %v257
      %v325 = vunpack.c.l.b16 %v258
      %v326 = vunpack.c.l.b16 %v259
      %v327 = vunpack.c.l.b16 %v260
      %v328 = vunpack.c.l.b16 %v261
      %v329 = vunpack.c.l.b16 %v262
      %v330 = vunpack.c.l.b16 %v263
      %v331 = vunpack.c.l.b16 %v264
      %v332 = vunpack.c.l.b16 %v265
      %v333 = vunpack.c.l.b16 %v266
      %v334 = vunpack.c.l.b16 %v267
      %v335 = vunpack.c.l.b16 %v268
      %v336 = vunpack.c.l.b16 %v269
      %v337 = vunpack.c.l.b16 %v270
      %v338 = vunpack.c.l.b16 %v271
      %v339 = vunpack.c.l.b16 %v272
      %v340 = vunpack.c.l.b16 %v273
      %v341 = vunpack.c.l.b16 %v274
      %v342 = vunpack.c.l.b16 %v275
      %v343 = vunpack.c.l.b16 %v276
      %v344 = vunpack.c.l.b16 %v277
      %v345 = vunpack.c.l.b16 %v278
      %v346 = vunpack.c.l.b16 %v279
      %v347 = vunpack.c.l.b16 %v280
      %v348 = vunpack.c.l.b16 %v281
      %v349 = vunpack.c.l.b16 %v282
      %v350 = vpack.c.b16 %v319, %v318
      %v351 = vpack.c.b16 %v321, %v320
      %v352 = vpack.c.b16 %v323, %v322
      %v353 = vpack.c.b16 %v325, %v324
      %v354 = vpack.c.b16 %v327, %v326
      %v355 = vpack.c.b16 %v329, %v328
      %v356 = vpack.c.b16 %v331, %v330
      %v357 = vpack.c.b16 %v333, %v332
      %v358 = vpack.c.b16 %v335, %v334
      %v359 = vpack.c.b16 %v337, %v336
      %v360 = vpack.c.b16 %v339, %v338
      %v361 = vpack.c.b16 %v341, %v340
      %v362 = vpack.c.b16 %v343, %v342
      %v363 = vpack.c.b16 %v345, %v344
      %v364 = vpack.c.b16 %v347, %v346
      %v365 = vpack.c.b16 %v349, %v348
      %v369 = vunpack.c.l.b16 %v283
      %v370 = vunpack.c.l.b16 %v284
      %v371 = vunpack.c.l.b16 %v285
      %v372 = vpack.c.b16 %v370, %v369
      %v373 = vpack.c.b16 %v371, %v371
      %vm375 = vcmask 195584
      %v377 = vsel %vm375, %v350, 0
      %v380 = vsel %vm375, %v351, 0
      %v383 = vsel %vm375, %v352, 0
      %v386 = vsel %vm375, %v353, 0
      %v389 = vsel %vm375, %v354, 0
      %v392 = vsel %vm375, %v355, 0
      %v395 = vsel %vm375, %v356, 0
      %v398 = vsel %vm375, %v357, 0
      %v401 = vsel %vm375, %v358, 0
      %v404 = vsel %vm375, %v359, 0
      %v407 = vsel %vm375, %v360, 0
      %v410 = vsel %vm375, %v361, 0
      %v413 = vsel %vm375, %v362, 0
      %v416 = vsel %vm375, %v363, 0
      %v419 = vsel %vm375, %v364, 0
      %v422 = vsel %vm375, %v365, 0
      %vm424 = vcmask 1043456
      %v426 = vsel %vm424, %v373, 0
      %428 = vmatprep.subr.bf16.mxu0 0
      %429 = vmatpush1.bf16.msra.mxu0 0
      %430 = vmatprep.subr.bf16.mxu0 0
      %431 = vmatpush1.bf16.msra.mxu0 0
      %432 = vmatprep.subr.bf16.mxu0 0
      %433 = vmatpush1.bf16.msra.mxu0 0
      %434 = vmatprep.subr.bf16.mxu0 0
      %435 = vmatpush1.bf16.msra.mxu0 0
      %436 = vmatprep.subr.bf16.mxu0 0
      %437 = vmatpush1.bf16.msra.mxu0 0
      %438 = vmatprep.subr.bf16.mxu0 0
      %439 = vmatpush1.bf16.msra.mxu0 0
      %440 = vmatprep.subr.bf16.mxu0 0
      %441 = vmatpush1.bf16.msra.mxu0 %v426
      %442 = vmatprep.subr.bf16.mxu0 0
      %443 = vmatpush1.bf16.msra.mxu0 %v372
      %444 = vmatprep.subr.bf16.mxu0 0
      %445 = vmatpush2.bf16.msra.mxu0 0
      %446 = vmatprep.subr.bf16.mxu0 0
      %447 = vmatpush2.bf16.msra.mxu0 0
      %448 = vmatprep.subr.bf16.mxu0 0
      %449 = vmatpush2.bf16.msra.mxu0 0
      %450 = vmatprep.subr.bf16.mxu0 0
      %451 = vmatpush2.bf16.msra.mxu0 0
      %452 = vmatprep.subr.bf16.mxu0 0
      %453 = vmatpush2.bf16.msra.mxu0 0
      %454 = vmatprep.subr.bf16.mxu0 0
      %455 = vmatpush2.bf16.msra.mxu0 0
      %456 = vmatprep.subr.bf16.mxu0 0
      %457 = vmatpush2.bf16.msra.mxu0 0
      %458 = vmatprep.subr.bf16.mxu0 0
      %459 = vmatpush2.bf16.msra.mxu0 0
      %460 = vmatprep.mubr.bf16.mxu0 0
      %461 = vmatmul.mubr.bf16.gmra.mxu0 %v377
      %v462 = vpop.f32.mrf.mxu0
      %v463 = vadd.f32 0.0, %v462
      %v464 = vpop.f32.mrf.mxu0
      %v465 = vpop.f32.mrf.mxu0
      %v466 = vadd.f32 0.0, %v465
      %v467 = vpop.f32.mrf.mxu0
      %468 = vmatprep.mubr.bf16.mxu0 0
      %469 = vmatmul.mubr.bf16.gmra.mxu0 %v380
      %v470 = vpop.f32.mrf.mxu0
      %v471 = vadd.f32 0.0, %v470
      %v472 = vpop.f32.mrf.mxu0
      %v473 = vpop.f32.mrf.mxu0
      %v474 = vadd.f32 0.0, %v473
      %v475 = vpop.f32.mrf.mxu0
      %476 = vmatprep.mubr.bf16.mxu0 0
      %477 = vmatmul.mubr.bf16.gmra.mxu0 %v383
      %v478 = vpop.f32.mrf.mxu0
      %v479 = vadd.f32 0.0, %v478
      %v480 = vpop.f32.mrf.mxu0
      %v481 = vpop.f32.mrf.mxu0
      %v482 = vadd.f32 0.0, %v481
      %v483 = vpop.f32.mrf.mxu0
      %484 = vmatprep.mubr.bf16.mxu0 0
      %485 = vmatmul.mubr.bf16.gmra.mxu0 %v386
      %v486 = vpop.f32.mrf.mxu0
      %v487 = vadd.f32 0.0, %v486
      %v488 = vpop.f32.mrf.mxu0
      %v489 = vpop.f32.mrf.mxu0
      %v490 = vadd.f32 0.0, %v489
      %v491 = vpop.f32.mrf.mxu0
      %492 = vmatprep.mubr.bf16.mxu0 0
      %493 = vmatmul.mubr.bf16.gmra.mxu0 %v389
      %v494 = vpop.f32.mrf.mxu0
      %v495 = vadd.f32 0.0, %v494
      %v496 = vpop.f32.mrf.mxu0
      %v497 = vpop.f32.mrf.mxu0
      %v498 = vadd.f32 0.0, %v497
      %v499 = vpop.f32.mrf.mxu0
      %500 = vmatprep.mubr.bf16.mxu0 0
      %501 = vmatmul.mubr.bf16.gmra.mxu0 %v392
      %v502 = vpop.f32.mrf.mxu0
      %v503 = vadd.f32 0.0, %v502
      %v504 = vpop.f32.mrf.mxu0
      %v505 = vpop.f32.mrf.mxu0
      %v506 = vadd.f32 0.0, %v505
      %v507 = vpop.f32.mrf.mxu0
      %508 = vmatprep.mubr.bf16.mxu0 0
      %509 = vmatmul.mubr.bf16.gmra.mxu0 %v395
      %v510 = vpop.f32.mrf.mxu0
      %v511 = vadd.f32 0.0, %v510
      %v512 = vpop.f32.mrf.mxu0
      %v513 = vpop.f32.mrf.mxu0
      %v514 = vadd.f32 0.0, %v513
      %v515 = vpop.f32.mrf.mxu0
      %516 = vmatprep.mubr.bf16.mxu0 0
      %517 = vmatmul.mubr.bf16.gmra.mxu0 %v398
      %v518 = vpop.f32.mrf.mxu0
      %v519 = vadd.f32 0.0, %v518
      %v520 = vpop.f32.mrf.mxu0
      %v521 = vpop.f32.mrf.mxu0
      %v522 = vadd.f32 0.0, %v521
      %v523 = vpop.f32.mrf.mxu0
      %524 = vmatprep.mubr.bf16.mxu0 0
      %525 = vmatmul.mubr.bf16.gmra.mxu0 %v401
      %v526 = vpop.f32.mrf.mxu0
      %v527 = vadd.f32 0.0, %v526
      %v528 = vpop.f32.mrf.mxu0
      %v529 = vpop.f32.mrf.mxu0
      %v530 = vadd.f32 0.0, %v529
      %v531 = vpop.f32.mrf.mxu0
      %532 = vmatprep.mubr.bf16.mxu0 0
      %533 = vmatmul.mubr.bf16.gmra.mxu0 %v404
      %v534 = vpop.f32.mrf.mxu0
      %v535 = vadd.f32 0.0, %v534
      %v536 = vpop.f32.mrf.mxu0
      %v537 = vpop.f32.mrf.mxu0
      %v538 = vadd.f32 0.0, %v537
      %v539 = vpop.f32.mrf.mxu0
      %540 = vmatprep.mubr.bf16.mxu0 0
      %541 = vmatmul.mubr.bf16.gmra.mxu0 %v407
      %v542 = vpop.f32.mrf.mxu0
      %v543 = vadd.f32 0.0, %v542
      %v544 = vpop.f32.mrf.mxu0
      %v545 = vpop.f32.mrf.mxu0
      %v546 = vadd.f32 0.0, %v545
      %v547 = vpop.f32.mrf.mxu0
      %548 = vmatprep.mubr.bf16.mxu0 0
      %549 = vmatmul.mubr.bf16.gmra.mxu0 %v410
      %v550 = vpop.f32.mrf.mxu0
      %v551 = vadd.f32 0.0, %v550
      %v552 = vpop.f32.mrf.mxu0
      %v553 = vpop.f32.mrf.mxu0
      %v554 = vadd.f32 0.0, %v553
      %v555 = vpop.f32.mrf.mxu0
      %556 = vmatprep.mubr.bf16.mxu0 0
      %557 = vmatmul.mubr.bf16.gmra.mxu0 %v413
      %v558 = vpop.f32.mrf.mxu0
      %v559 = vadd.f32 0.0, %v558
      %v560 = vpop.f32.mrf.mxu0
      %v561 = vpop.f32.mrf.mxu0
      %v562 = vadd.f32 0.0, %v561
      %v563 = vpop.f32.mrf.mxu0
      %564 = vmatprep.mubr.bf16.mxu0 0
      %565 = vmatmul.mubr.bf16.gmra.mxu0 %v416
      %v566 = vpop.f32.mrf.mxu0
      %v567 = vadd.f32 0.0, %v566
      %v568 = vpop.f32.mrf.mxu0
      %v569 = vpop.f32.mrf.mxu0
      %v570 = vadd.f32 0.0, %v569
      %v571 = vpop.f32.mrf.mxu0
      %572 = vmatprep.mubr.bf16.mxu0 0
      %573 = vmatmul.mubr.bf16.gmra.mxu0 %v419
      %v574 = vpop.f32.mrf.mxu0
      %v575 = vadd.f32 0.0, %v574
      %v576 = vpop.f32.mrf.mxu0
      %v577 = vpop.f32.mrf.mxu0
      %v578 = vadd.f32 0.0, %v577
      %v579 = vpop.f32.mrf.mxu0
      %580 = vmatprep.mubr.bf16.mxu0 0
      %581 = vmatmul.mubr.bf16.gmra.mxu0 %v422
      %v582 = vpop.f32.mrf.mxu0
      %v583 = vadd.f32 0.0, %v582
      %v584 = vpop.f32.mrf.mxu0
      %v585 = vpop.f32.mrf.mxu0
      %v586 = vadd.f32 0.0, %v585
      %v587 = vpop.f32.mrf.mxu0
      %588 = vdwg.mxu0
      %vm589 = vcmask 130048
      %590 = vst.msk [vmem:[%s216] sm:$0xff] %vm589, %v463
      %591 = vst.msk [vmem:[%s216 + $0x8] sm:$0xff] %vm589, %v466
      %592 = vst.msk [vmem:[%s216 + $0x10] sm:$0xff] %vm589, %v471
      %593 = vst.msk [vmem:[%s216 + $0x18] sm:$0xff] %vm589, %v474
      %594 = vst.msk [vmem:[%s216 + $0x20] sm:$0xff] %vm589, %v479
      %595 = vst.msk [vmem:[%s216 + $0x28] sm:$0xff] %vm589, %v482
      %596 = vst.msk [vmem:[%s216 + $0x30] sm:$0xff] %vm589, %v487
      %597 = vst.msk [vmem:[%s216 + $0x38] sm:$0xff] %vm589, %v490
      %598 = vst.msk [vmem:[%s216 + $0x40] sm:$0xff] %vm589, %v495
      %599 = vst.msk [vmem:[%s216 + $0x48] sm:$0xff] %vm589, %v498
      %600 = vst.msk [vmem:[%s216 + $0x50] sm:$0xff] %vm589, %v503
      %601 = vst.msk [vmem:[%s216 + $0x58] sm:$0xff] %vm589, %v506
      %602 = vst.msk [vmem:[%s216 + $0x60] sm:$0xff] %vm589, %v511
      %603 = vst.msk [vmem:[%s216 + $0x68] sm:$0xff] %vm589, %v514
      %604 = vst.msk [vmem:[%s216 + $0x70] sm:$0xff] %vm589, %v519
      %605 = vst.msk [vmem:[%s216 + $0x78] sm:$0xff] %vm589, %v522
      %606 = vst.msk [vmem:[%s216 + $0x80] sm:$0xff] %vm589, %v527
      %607 = vst.msk [vmem:[%s216 + $0x88] sm:$0xff] %vm589, %v530
      %608 = vst.msk [vmem:[%s216 + $0x90] sm:$0xff] %vm589, %v535
      %609 = vst.msk [vmem:[%s216 + $0x98] sm:$0xff] %vm589, %v538
      %610 = vst.msk [vmem:[%s216 + $0xa0] sm:$0xff] %vm589, %v543
      %611 = vst.msk [vmem:[%s216 + $0xa8] sm:$0xff] %vm589, %v546
      %612 = vst.msk [vmem:[%s216 + $0xb0] sm:$0xff] %vm589, %v551
      %613 = vst.msk [vmem:[%s216 + $0xb8] sm:$0xff] %vm589, %v554
      %614 = vst.msk [vmem:[%s216 + $0xc0] sm:$0xff] %vm589, %v559
      %615 = vst.msk [vmem:[%s216 + $0xc8] sm:$0xff] %vm589, %v562
      %616 = vst.msk [vmem:[%s216 + $0xd0] sm:$0xff] %vm589, %v567
      %617 = vst.msk [vmem:[%s216 + $0xd8] sm:$0xff] %vm589, %v570
      %618 = vst.msk [vmem:[%s216 + $0xe0] sm:$0xff] %vm589, %v575
      %619 = vst.msk [vmem:[%s216 + $0xe8] sm:$0xff] %vm589, %v578
      %620 = vst.msk [vmem:[%s216 + $0xf0] sm:$0xff] %vm589, %v583
      %621 = vst.msk [vmem:[%s216 + $0xf8] sm:$0xff] %vm589, %v586
      %s622 = smul.u32 32, %s18
      %p623 = scmp.lt.s32.totalorder %s622, 63
      %s624 = scalar_select %p623, %s622, 63
      %p625 = scmp.lt.s32.totalorder %s19, 0
      %s626 = scalar_select %p625, %s19, 0
      %s627 = sadd.s32 %s626, %s624
      %s628 = smul.addr %s627, 8
      %s629 = scalar_lea.vmem %s2, %s628
      // Predicated region
      $region29: #{pdarts_cnn_forward.268} parent=27 // pred_check
        %p630 = pneg %p108
      $region30: #{pdarts_cnn_forward.268} parent=27 // pred_check_branch
        %632 = sbr.rel (%p630) target = $region32
      $region31: #{pdarts_cnn_forward.268} parent=27 // pred_region
        %s633 = smul.u32 32, %s18
      $region32: #{pdarts_cnn_forward.268} parent=27 // pred_fallthru
        _
    $region28: #{pdarts_cnn_forward.268} parent=5 // pred_fallthru
      _
    %p634 = scmp.le.s32.totalorder 2, %s8
    // Predicated region
    $region33: #{pdarts_cnn_forward.268} parent=5 // pred_check
      %p635 = pneg %p634
    $region34: #{pdarts_cnn_forward.268} parent=5 // pred_check_branch
      %637 = sbr.rel (%p635) target = $region36
    $region35: #{pdarts_cnn_forward.268} parent=5 // pred_region
      %s638 = ssub.s32 %s8, 2
      // Predicated region
      $region37: #{pdarts_cnn_forward.268} parent=35 // pred_check
        %p639 = pneg %p114
      $region38: #{pdarts_cnn_forward.268} parent=35 // pred_check_branch
        %641 = sbr.rel (%p639) target = $region40
      $region39: #{pdarts_cnn_forward.268} parent=35 // pred_region
        %s642 = smul.u32 32, %s21
        %p643 = scmp.lt.s32.totalorder %s642, 63
        %s644 = scalar_select %p643, %s642, 63
        %p645 = scmp.lt.s32.totalorder %s22, 0
        %s646 = scalar_select %p645, %s22, 0
        %s647 = sadd.s32 %s646, %s644
        %s648 = smul.addr %s647, 8
        %s649 = scalar_lea.vmem %s2, %s648
      $region40: #{pdarts_cnn_forward.268} parent=35 // pred_fallthru
        _
    $region36: #{pdarts_cnn_forward.268} parent=5 // pred_fallthru
      _
  $region6: #{pdarts_cnn_forward.268} parent=0 // loop_footer
    %s12 = sadd.s32 1, %s8
  $region7: #{pdarts_cnn_forward.268} parent=0 // loop_footer_branch
    %7 = sbr.rel target = $region3
  $region8: #{pdarts_cnn_forward.268} parent=0 // loop_exit
    _

// kernel: pdarts_cnn_forward.270
$region0: #{pdarts_cnn_forward.270}
  #allocation0 [shape = 'u32[]', space=smem, size = 0x4, offset = 0x4, fixed_abs, tag = 'smem constant byte address 0x4 - core index']
  #allocation1 [shape = 'u32[144,128]{1,0:T(1,128)}', space=vmem, size = 0x12000, scoped, tag = 'internal scratch']
  %s0 = inlined_call_operand.vmem [shape: bf16[128,16], index: 0, kind: input, shape index: {}]
  %s1 = inlined_call_operand.vmem [shape: bf16[16,8], index: 1, kind: input, shape index: {}]
  %s2 = inlined_call_operand.vmem [shape: f32[128,8], index: 2, kind: output, shape index: {}]
  %s3 = sld [smem:[#allocation0]]
  $region18: #{pdarts_cnn_forward.270} parent=0
    _
  %s5 = ssub.s32 1, %s3
  %s6 = scalar_select 0, %s5, %s3
  // Predicated region
  $region2: #{pdarts_cnn_forward.270} parent=0 // pred_check
    _
  $region3: #{pdarts_cnn_forward.270} parent=0 // pred_check_branch
    %8 = sbr.rel (0) target = $region5
  $region4: #{pdarts_cnn_forward.270} parent=0 // pred_region
    _
  $region5: #{pdarts_cnn_forward.270} parent=0 // pred_fallthru
    _
  // Predicated region
  $region6: #{pdarts_cnn_forward.270} parent=0 // pred_check
    _
  $region7: #{pdarts_cnn_forward.270} parent=0 // pred_check_branch
    %10 = sbr.rel (0) target = $region9
  $region8: #{pdarts_cnn_forward.270} parent=0 // pred_region
    _
  $region9: #{pdarts_cnn_forward.270} parent=0 // pred_fallthru
    _
  %v12 = vld [vmem:[%s0] sm:$0xf]
  %v13 = vld [vmem:[%s0 + $0x4] sm:$0xf]
  %v14 = vld [vmem:[%s0 + $0x8] sm:$0xf]
  %v15 = vld [vmem:[%s0 + $0xc] sm:$0xf]
  %v16 = vld [vmem:[%s0 + $0x10] sm:$0xf]
  %v17 = vld [vmem:[%s0 + $0x14] sm:$0xf]
  %v18 = vld [vmem:[%s0 + $0x18] sm:$0xf]
  %v19 = vld [vmem:[%s0 + $0x1c] sm:$0xf]
  %v20 = vld [vmem:[%s0 + $0x20] sm:$0xf]
  %v21 = vld [vmem:[%s0 + $0x24] sm:$0xf]
  %v22 = vld [vmem:[%s0 + $0x28] sm:$0xf]
  %v23 = vld [vmem:[%s0 + $0x2c] sm:$0xf]
  %v24 = vld [vmem:[%s0 + $0x30] sm:$0xf]
  %v25 = vld [vmem:[%s0 + $0x34] sm:$0xf]
  %v26 = vld [vmem:[%s0 + $0x38] sm:$0xf]
  %v27 = vld [vmem:[%s0 + $0x3c] sm:$0xf]
  %v28 = vmax.bf16 %v12, 0
  %v29 = vmax.bf16 %v13, 0
  %v30 = vmax.bf16 %v14, 0
  %v31 = vmax.bf16 %v15, 0
  %v32 = vmax.bf16 %v16, 0
  %v33 = vmax.bf16 %v17, 0
  %v34 = vmax.bf16 %v18, 0
  %v35 = vmax.bf16 %v19, 0
  %v36 = vmax.bf16 %v20, 0
  %v37 = vmax.bf16 %v21, 0
  %v38 = vmax.bf16 %v22, 0
  %v39 = vmax.bf16 %v23, 0
  %v40 = vmax.bf16 %v24, 0
  %v41 = vmax.bf16 %v25, 0
  %v42 = vmax.bf16 %v26, 0
  %v43 = vmax.bf16 %v27, 0
  %v44 = vld [vmem:[%s1] sm:$0xf]
  %v45 = vld [vmem:[%s1 + $0x4] sm:$0xf]
  %v62 = vunpack.c.l.b16 %v28
  %v63 = vunpack.c.l.b16 %v29
  %v64 = vunpack.c.l.b16 %v30
  %v65 = vunpack.c.l.b16 %v31
  %v66 = vunpack.c.l.b16 %v32
  %v67 = vunpack.c.l.b16 %v33
  %v68 = vunpack.c.l.b16 %v34
  %v69 = vunpack.c.l.b16 %v35
  %v70 = vunpack.c.l.b16 %v36
  %v71 = vunpack.c.l.b16 %v37
  %v72 = vunpack.c.l.b16 %v38
  %v73 = vunpack.c.l.b16 %v39
  %v74 = vunpack.c.l.b16 %v40
  %v75 = vunpack.c.l.b16 %v41
  %v76 = vunpack.c.l.b16 %v42
  %v77 = vunpack.c.l.b16 %v43
  %v78 = vpack.c.b16 %v63, %v62
  %v79 = vpack.c.b16 %v65, %v64
  %v80 = vpack.c.b16 %v67, %v66
  %v81 = vpack.c.b16 %v69, %v68
  %v82 = vpack.c.b16 %v71, %v70
  %v83 = vpack.c.b16 %v73, %v72
  %v84 = vpack.c.b16 %v75, %v74
  %v85 = vpack.c.b16 %v77, %v76
  %v88 = vunpack.c.l.b16 %v44
  %v89 = vunpack.c.l.b16 %v45
  %v90 = vpack.c.b16 %v89, %v88
  %vm92 = vcmask 130048
  %v94 = vsel %vm92, %v78, 0
  %v97 = vsel %vm92, %v79, 0
  %v100 = vsel %vm92, %v80, 0
  %v103 = vsel %vm92, %v81, 0
  %v106 = vsel %vm92, %v82, 0
  %v109 = vsel %vm92, %v83, 0
  %v112 = vsel %vm92, %v84, 0
  %v115 = vsel %vm92, %v85, 0
  %117 = vmatprep.subr.bf16.mxu0 0
  %118 = vmatpush1.bf16.msra.mxu0 0
  %119 = vmatprep.subr.bf16.mxu0 0
  %120 = vmatpush1.bf16.msra.mxu0 0
  %121 = vmatprep.subr.bf16.mxu0 0
  %122 = vmatpush1.bf16.msra.mxu0 0
  %123 = vmatprep.subr.bf16.mxu0 0
  %124 = vmatpush1.bf16.msra.mxu0 0
  %125 = vmatprep.subr.bf16.mxu0 0
  %126 = vmatpush1.bf16.msra.mxu0 0
  %127 = vmatprep.subr.bf16.mxu0 0
  %128 = vmatpush1.bf16.msra.mxu0 0
  %129 = vmatprep.subr.bf16.mxu0 0
  %130 = vmatpush1.bf16.msra.mxu0 0
  %131 = vmatprep.subr.bf16.mxu0 0
  %132 = vmatpush1.bf16.msra.mxu0 %v90
  %133 = vmatprep.subr.bf16.mxu0 0
  %134 = vmatpush2.bf16.msra.mxu0 0
  %135 = vmatprep.subr.bf16.mxu0 0
  %136 = vmatpush2.bf16.msra.mxu0 0
  %137 = vmatprep.subr.bf16.mxu0 0
  %138 = vmatpush2.bf16.msra.mxu0 0
  %139 = vmatprep.subr.bf16.mxu0 0
  %140 = vmatpush2.bf16.msra.mxu0 0
  %141 = vmatprep.subr.bf16.mxu0 0
  %142 = vmatpush2.bf16.msra.mxu0 0
  %143 = vmatprep.subr.bf16.mxu0 0
  %144 = vmatpush2.bf16.msra.mxu0 0
  %145 = vmatprep.subr.bf16.mxu0 0
  %146 = vmatpush2.bf16.msra.mxu0 0
  %147 = vmatprep.subr.bf16.mxu0 0
  %148 = vmatpush2.bf16.msra.mxu0 0
  %149 = vmatprep.mubr.bf16.mxu0 0
  %150 = vmatmul.mubr.bf16.gmra.mxu0 %v94
  %v151 = vpop.f32.mrf.mxu0
  %v152 = vadd.f32 0.0, %v151
  %v153 = vpop.f32.mrf.mxu0
  %v154 = vpop.f32.mrf.mxu0
  %v155 = vadd.f32 0.0, %v154
  %v156 = vpop.f32.mrf.mxu0
  %157 = vmatprep.mubr.bf16.mxu0 0
  %158 = vmatmul.mubr.bf16.gmra.mxu0 %v97
  %v159 = vpop.f32.mrf.mxu0
  %v160 = vadd.f32 0.0, %v159
  %v161 = vpop.f32.mrf.mxu0
  %v162 = vpop.f32.mrf.mxu0
  %v163 = vadd.f32 0.0, %v162
  %v164 = vpop.f32.mrf.mxu0
  %165 = vmatprep.mubr.bf16.mxu0 0
  %166 = vmatmul.mubr.bf16.gmra.mxu0 %v100
  %v167 = vpop.f32.mrf.mxu0
  %v168 = vadd.f32 0.0, %v167
  %v169 = vpop.f32.mrf.mxu0
  %v170 = vpop.f32.mrf.mxu0
  %v171 = vadd.f32 0.0, %v170
  %v172 = vpop.f32.mrf.mxu0
  %173 = vmatprep.mubr.bf16.mxu0 0
  %174 = vmatmul.mubr.bf16.gmra.mxu0 %v103
  %v175 = vpop.f32.mrf.mxu0
  %v176 = vadd.f32 0.0, %v175
  %v177 = vpop.f32.mrf.mxu0
  %v178 = vpop.f32.mrf.mxu0
  %v179 = vadd.f32 0.0, %v178
  %v180 = vpop.f32.mrf.mxu0
  %181 = vmatprep.mubr.bf16.mxu0 0
  %182 = vmatmul.mubr.bf16.gmra.mxu0 %v106
  %v183 = vpop.f32.mrf.mxu0
  %v184 = vadd.f32 0.0, %v183
  %v185 = vpop.f32.mrf.mxu0
  %v186 = vpop.f32.mrf.mxu0
  %v187 = vadd.f32 0.0, %v186
  %v188 = vpop.f32.mrf.mxu0
  %189 = vmatprep.mubr.bf16.mxu0 0
  %190 = vmatmul.mubr.bf16.gmra.mxu0 %v109
  %v191 = vpop.f32.mrf.mxu0
  %v192 = vadd.f32 0.0, %v191
  %v193 = vpop.f32.mrf.mxu0
  %v194 = vpop.f32.mrf.mxu0
  %v195 = vadd.f32 0.0, %v194
  %v196 = vpop.f32.mrf.mxu0
  %197 = vmatprep.mubr.bf16.mxu0 0
  %198 = vmatmul.mubr.bf16.gmra.mxu0 %v112
  %v199 = vpop.f32.mrf.mxu0
  %v200 = vadd.f32 0.0, %v199
  %v201 = vpop.f32.mrf.mxu0
  %v202 = vpop.f32.mrf.mxu0
  %v203 = vadd.f32 0.0, %v202
  %v204 = vpop.f32.mrf.mxu0
  %205 = vmatprep.mubr.bf16.mxu0 0
  %206 = vmatmul.mubr.bf16.gmra.mxu0 %v115
  %v207 = vpop.f32.mrf.mxu0
  %v208 = vadd.f32 0.0, %v207
  %v209 = vpop.f32.mrf.mxu0
  %v210 = vpop.f32.mrf.mxu0
  %v211 = vadd.f32 0.0, %v210
  %v212 = vpop.f32.mrf.mxu0
  %213 = vdwg.mxu0
  %vm214 = vcmask 64512
  %215 = vst.msk [vmem:[%s2] sm:$0xff] %vm214, %v152
  %216 = vst.msk [vmem:[%s2 + $0x8] sm:$0xff] %vm214, %v155
  %217 = vst.msk [vmem:[%s2 + $0x10] sm:$0xff] %vm214, %v160
  %218 = vst.msk [vmem:[%s2 + $0x18] sm:$0xff] %vm214, %v163
  %219 = vst.msk [vmem:[%s2 + $0x20] sm:$0xff] %vm214, %v168
  %220 = vst.msk [vmem:[%s2 + $0x28] sm:$0xff] %vm214, %v171
  %221 = vst.msk [vmem:[%s2 + $0x30] sm:$0xff] %vm214, %v176
  %222 = vst.msk [vmem:[%s2 + $0x38] sm:$0xff] %vm214, %v179
  %223 = vst.msk [vmem:[%s2 + $0x40] sm:$0xff] %vm214, %v184
  %224 = vst.msk [vmem:[%s2 + $0x48] sm:$0xff] %vm214, %v187
  %225 = vst.msk [vmem:[%s2 + $0x50] sm:$0xff] %vm214, %v192
  %226 = vst.msk [vmem:[%s2 + $0x58] sm:$0xff] %vm214, %v195
  %227 = vst.msk [vmem:[%s2 + $0x60] sm:$0xff] %vm214, %v200
  %228 = vst.msk [vmem:[%s2 + $0x68] sm:$0xff] %vm214, %v203
  %229 = vst.msk [vmem:[%s2 + $0x70] sm:$0xff] %vm214, %v208
  %230 = vst.msk [vmem:[%s2 + $0x78] sm:$0xff] %vm214, %v211
  // Predicated region
  $region10: #{pdarts_cnn_forward.270} parent=0 // pred_check
    _
  $region11: #{pdarts_cnn_forward.270} parent=0 // pred_check_branch
    %232 = sbr.rel (0) target = $region13
  $region12: #{pdarts_cnn_forward.270} parent=0 // pred_region
    _
  $region13: #{pdarts_cnn_forward.270} parent=0 // pred_fallthru
    _
  // Predicated region
  $region14: #{pdarts_cnn_forward.270} parent=0 // pred_check
    _
  $region15: #{pdarts_cnn_forward.270} parent=0 // pred_check_branch
    %234 = sbr.rel (0) target = $region17
  $region16: #{pdarts_cnn_forward.270} parent=0 // pred_region
    _
  $region17: #{pdarts_cnn_forward.270} parent=0 // pred_fallthru
    _

// kernel: pdarts_cnn_forward.273
$region0: #{pdarts_cnn_forward.273}
  #allocation0 [shape = 'u32[]', space=smem, size = 0x4, offset = 0x4, fixed_abs, tag = 'smem constant byte address 0x4 - core index']
  #allocation1 [shape = 'u32[144,128]{1,0:T(1,128)}', space=vmem, size = 0x12000, scoped, tag = 'internal scratch']
  %s0 = inlined_call_operand.vmem [shape: bf16[128,16], index: 0, kind: input, shape index: {}]
  %s1 = inlined_call_operand.vmem [shape: bf16[16,16], index: 1, kind: input, shape index: {}]
  %s2 = inlined_call_operand.vmem [shape: f32[128,16], index: 2, kind: output, shape index: {}]
  %s3 = sld [smem:[#allocation0]]
  $region18: #{pdarts_cnn_forward.273} parent=0
    _
  %s5 = ssub.s32 1, %s3
  %s6 = scalar_select 0, %s5, %s3
  // Predicated region
  $region2: #{pdarts_cnn_forward.273} parent=0 // pred_check
    _
  $region3: #{pdarts_cnn_forward.273} parent=0 // pred_check_branch
    %8 = sbr.rel (0) target = $region5
  $region4: #{pdarts_cnn_forward.273} parent=0 // pred_region
    _
  $region5: #{pdarts_cnn_forward.273} parent=0 // pred_fallthru
    _
  // Predicated region
  $region6: #{pdarts_cnn_forward.273} parent=0 // pred_check
    _
  $region7: #{pdarts_cnn_forward.273} parent=0 // pred_check_branch
    %10 = sbr.rel (0) target = $region9
  $region8: #{pdarts_cnn_forward.273} parent=0 // pred_region
    _
  $region9: #{pdarts_cnn_forward.273} parent=0 // pred_fallthru
    _
  %v12 = vld [vmem:[%s0] sm:$0xf]
  %v13 = vld [vmem:[%s0 + $0x4] sm:$0xf]
  %v14 = vld [vmem:[%s0 + $0x8] sm:$0xf]
  %v15 = vld [vmem:[%s0 + $0xc] sm:$0xf]
  %v16 = vld [vmem:[%s0 + $0x10] sm:$0xf]
  %v17 = vld [vmem:[%s0 + $0x14] sm:$0xf]
  %v18 = vld [vmem:[%s0 + $0x18] sm:$0xf]
  %v19 = vld [vmem:[%s0 + $0x1c] sm:$0xf]
  %v20 = vld [vmem:[%s0 + $0x20] sm:$0xf]
  %v21 = vld [vmem:[%s0 + $0x24] sm:$0xf]
  %v22 = vld [vmem:[%s0 + $0x28] sm:$0xf]
  %v23 = vld [vmem:[%s0 + $0x2c] sm:$0xf]
  %v24 = vld [vmem:[%s0 + $0x30] sm:$0xf]
  %v25 = vld [vmem:[%s0 + $0x34] sm:$0xf]
  %v26 = vld [vmem:[%s0 + $0x38] sm:$0xf]
  %v27 = vld [vmem:[%s0 + $0x3c] sm:$0xf]
  %v28 = vld [vmem:[%s1] sm:$0xf]
  %v29 = vld [vmem:[%s1 + $0x4] sm:$0xf]
  %v46 = vunpack.c.l.b16 %v12
  %v47 = vunpack.c.l.b16 %v13
  %v48 = vunpack.c.l.b16 %v14
  %v49 = vunpack.c.l.b16 %v15
  %v50 = vunpack.c.l.b16 %v16
  %v51 = vunpack.c.l.b16 %v17
  %v52 = vunpack.c.l.b16 %v18
  %v53 = vunpack.c.l.b16 %v19
  %v54 = vunpack.c.l.b16 %v20
  %v55 = vunpack.c.l.b16 %v21
  %v56 = vunpack.c.l.b16 %v22
  %v57 = vunpack.c.l.b16 %v23
  %v58 = vunpack.c.l.b16 %v24
  %v59 = vunpack.c.l.b16 %v25
  %v60 = vunpack.c.l.b16 %v26
  %v61 = vunpack.c.l.b16 %v27
  %v62 = vpack.c.b16 %v47, %v46
  %v63 = vpack.c.b16 %v49, %v48
  %v64 = vpack.c.b16 %v51, %v50
  %v65 = vpack.c.b16 %v53, %v52
  %v66 = vpack.c.b16 %v55, %v54
  %v67 = vpack.c.b16 %v57, %v56
  %v68 = vpack.c.b16 %v59, %v58
  %v69 = vpack.c.b16 %v61, %v60
  %v72 = vunpack.c.l.b16 %v28
  %v73 = vunpack.c.l.b16 %v29
  %v74 = vpack.c.b16 %v73, %v72
  %vm76 = vcmask 130048
  %v78 = vsel %vm76, %v62, 0
  %v81 = vsel %vm76, %v63, 0
  %v84 = vsel %vm76, %v64, 0
  %v87 = vsel %vm76, %v65, 0
  %v90 = vsel %vm76, %v66, 0
  %v93 = vsel %vm76, %v67, 0
  %v96 = vsel %vm76, %v68, 0
  %v99 = vsel %vm76, %v69, 0
  %101 = vmatprep.subr.bf16.mxu0 0
  %102 = vmatpush1.bf16.msra.mxu0 0
  %103 = vmatprep.subr.bf16.mxu0 0
  %104 = vmatpush1.bf16.msra.mxu0 0
  %105 = vmatprep.subr.bf16.mxu0 0
  %106 = vmatpush1.bf16.msra.mxu0 0
  %107 = vmatprep.subr.bf16.mxu0 0
  %108 = vmatpush1.bf16.msra.mxu0 0
  %109 = vmatprep.subr.bf16.mxu0 0
  %110 = vmatpush1.bf16.msra.mxu0 0
  %111 = vmatprep.subr.bf16.mxu0 0
  %112 = vmatpush1.bf16.msra.mxu0 0
  %113 = vmatprep.subr.bf16.mxu0 0
  %114 = vmatpush1.bf16.msra.mxu0 0
  %115 = vmatprep.subr.bf16.mxu0 0
  %116 = vmatpush1.bf16.msra.mxu0 %v74
  %117 = vmatprep.subr.bf16.mxu0 0
  %118 = vmatpush2.bf16.msra.mxu0 0
  %119 = vmatprep.subr.bf16.mxu0 0
  %120 = vmatpush2.bf16.msra.mxu0 0
  %121 = vmatprep.subr.bf16.mxu0 0
  %122 = vmatpush2.bf16.msra.mxu0 0
  %123 = vmatprep.subr.bf16.mxu0 0
  %124 = vmatpush2.bf16.msra.mxu0 0
  %125 = vmatprep.subr.bf16.mxu0 0
  %126 = vmatpush2.bf16.msra.mxu0 0
  %127 = vmatprep.subr.bf16.mxu0 0
  %128 = vmatpush2.bf16.msra.mxu0 0
  %129 = vmatprep.subr.bf16.mxu0 0
  %130 = vmatpush2.bf16.msra.mxu0 0
  %131 = vmatprep.subr.bf16.mxu0 0
  %132 = vmatpush2.bf16.msra.mxu0 0
  %133 = vmatprep.mubr.bf16.mxu0 0
  %134 = vmatmul.mubr.bf16.gmra.mxu0 %v78
  %v135 = vpop.f32.mrf.mxu0
  %v136 = vadd.f32 0.0, %v135
  %v137 = vpop.f32.mrf.mxu0
  %v138 = vpop.f32.mrf.mxu0
  %v139 = vadd.f32 0.0, %v138
  %v140 = vpop.f32.mrf.mxu0
  %141 = vmatprep.mubr.bf16.mxu0 0
  %142 = vmatmul.mubr.bf16.gmra.mxu0 %v81
  %v143 = vpop.f32.mrf.mxu0
  %v144 = vadd.f32 0.0, %v143
  %v145 = vpop.f32.mrf.mxu0
  %v146 = vpop.f32.mrf.mxu0
  %v147 = vadd.f32 0.0, %v146
  %v148 = vpop.f32.mrf.mxu0
  %149 = vmatprep.mubr.bf16.mxu0 0
  %150 = vmatmul.mubr.bf16.gmra.mxu0 %v84
  %v151 = vpop.f32.mrf.mxu0
  %v152 = vadd.f32 0.0, %v151
  %v153 = vpop.f32.mrf.mxu0
  %v154 = vpop.f32.mrf.mxu0
  %v155 = vadd.f32 0.0, %v154
  %v156 = vpop.f32.mrf.mxu0
  %157 = vmatprep.mubr.bf16.mxu0 0
  %158 = vmatmul.mubr.bf16.gmra.mxu0 %v87
  %v159 = vpop.f32.mrf.mxu0
  %v160 = vadd.f32 0.0, %v159
  %v161 = vpop.f32.mrf.mxu0
  %v162 = vpop.f32.mrf.mxu0
  %v163 = vadd.f32 0.0, %v162
  %v164 = vpop.f32.mrf.mxu0
  %165 = vmatprep.mubr.bf16.mxu0 0
  %166 = vmatmul.mubr.bf16.gmra.mxu0 %v90
  %v167 = vpop.f32.mrf.mxu0
  %v168 = vadd.f32 0.0, %v167
  %v169 = vpop.f32.mrf.mxu0
  %v170 = vpop.f32.mrf.mxu0
  %v171 = vadd.f32 0.0, %v170
  %v172 = vpop.f32.mrf.mxu0
  %173 = vmatprep.mubr.bf16.mxu0 0
  %174 = vmatmul.mubr.bf16.gmra.mxu0 %v93
  %v175 = vpop.f32.mrf.mxu0
  %v176 = vadd.f32 0.0, %v175
  %v177 = vpop.f32.mrf.mxu0
  %v178 = vpop.f32.mrf.mxu0
  %v179 = vadd.f32 0.0, %v178
  %v180 = vpop.f32.mrf.mxu0
  %181 = vmatprep.mubr.bf16.mxu0 0
  %182 = vmatmul.mubr.bf16.gmra.mxu0 %v96
  %v183 = vpop.f32.mrf.mxu0
  %v184 = vadd.f32 0.0, %v183
  %v185 = vpop.f32.mrf.mxu0
  %v186 = vpop.f32.mrf.mxu0
  %v187 = vadd.f32 0.0, %v186
  %v188 = vpop.f32.mrf.mxu0
  %189 = vmatprep.mubr.bf16.mxu0 0
  %190 = vmatmul.mubr.bf16.gmra.mxu0 %v99
  %v191 = vpop.f32.mrf.mxu0
  %v192 = vadd.f32 0.0, %v191
  %v193 = vpop.f32.mrf.mxu0
  %v194 = vpop.f32.mrf.mxu0
  %v195 = vadd.f32 0.0, %v194
  %v196 = vpop.f32.mrf.mxu0
  %197 = vdwg.mxu0
  %198 = vst.msk [vmem:[%s2] sm:$0xff] %vm76, %v136
  %199 = vst.msk [vmem:[%s2 + $0x8] sm:$0xff] %vm76, %v139
  %200 = vst.msk [vmem:[%s2 + $0x10] sm:$0xff] %vm76, %v144
  %201 = vst.msk [vmem:[%s2 + $0x18] sm:$0xff] %vm76, %v147
  %202 = vst.msk [vmem:[%s2 + $0x20] sm:$0xff] %vm76, %v152
  %203 = vst.msk [vmem:[%s2 + $0x28] sm:$0xff] %vm76, %v155
  %204 = vst.msk [vmem:[%s2 + $0x30] sm:$0xff] %vm76, %v160
  %205 = vst.msk [vmem:[%s2 + $0x38] sm:$0xff] %vm76, %v163
  %206 = vst.msk [vmem:[%s2 + $0x40] sm:$0xff] %vm76, %v168
  %207 = vst.msk [vmem:[%s2 + $0x48] sm:$0xff] %vm76, %v171
  %208 = vst.msk [vmem:[%s2 + $0x50] sm:$0xff] %vm76, %v176
  %209 = vst.msk [vmem:[%s2 + $0x58] sm:$0xff] %vm76, %v179
  %210 = vst.msk [vmem:[%s2 + $0x60] sm:$0xff] %vm76, %v184
  %211 = vst.msk [vmem:[%s2 + $0x68] sm:$0xff] %vm76, %v187
  %212 = vst.msk [vmem:[%s2 + $0x70] sm:$0xff] %vm76, %v192
  %213 = vst.msk [vmem:[%s2 + $0x78] sm:$0xff] %vm76, %v195
  // Predicated region
  $region10: #{pdarts_cnn_forward.273} parent=0 // pred_check
    _
  $region11: #{pdarts_cnn_forward.273} parent=0 // pred_check_branch
    %215 = sbr.rel (0) target = $region13
  $region12: #{pdarts_cnn_forward.273} parent=0 // pred_region
    _
  $region13: #{pdarts_cnn_forward.273} parent=0 // pred_fallthru
    _
  // Predicated region
  $region14: #{pdarts_cnn_forward.273} parent=0 // pred_check
    _
  $region15: #{pdarts_cnn_forward.273} parent=0 // pred_check_branch
    %217 = sbr.rel (0) target = $region17
  $region16: #{pdarts_cnn_forward.273} parent=0 // pred_region
    _
  $region17: #{pdarts_cnn_forward.273} parent=0 // pred_fallthru
    _

// kernel: pdarts_cnn_forward.300
$region0: #{pdarts_cnn_forward.300}
  #allocation0 [shape = 'u32[]', space=smem, size = 0x4, offset = 0x4, fixed_abs, tag = 'smem constant byte address 0x4 - core index']
  #allocation1 [shape = 'u32[144,128]{1,0:T(1,128)}', space=vmem, size = 0x12000, scoped, tag = 'internal scratch']
  %s0 = inlined_call_operand.vmem [shape: bf16[9,16,128], index: 0, kind: input, shape index: {}]
  %s1 = inlined_call_operand.vmem [shape: f32[9,1,128], index: 1, kind: input, shape index: {}]
  %s2 = inlined_call_operand.vmem [shape: f32[16,128], index: 2, kind: output, shape index: {}]
  %s3 = sld [smem:[#allocation0]]
  $region18: #{pdarts_cnn_forward.300} parent=0
    _
  %s5 = ssub.s32 1, %s3
  %s6 = scalar_select 0, %s5, %s3
  // Predicated region
  $region2: #{pdarts_cnn_forward.300} parent=0 // pred_check
    _
  $region3: #{pdarts_cnn_forward.300} parent=0 // pred_check_branch
    %8 = sbr.rel (0) target = $region5
  $region4: #{pdarts_cnn_forward.300} parent=0 // pred_region
    _
  $region5: #{pdarts_cnn_forward.300} parent=0 // pred_fallthru
    _
  // Predicated region
  $region6: #{pdarts_cnn_forward.300} parent=0 // pred_check
    _
  $region7: #{pdarts_cnn_forward.300} parent=0 // pred_check_branch
    %10 = sbr.rel (0) target = $region9
  $region8: #{pdarts_cnn_forward.300} parent=0 // pred_region
    _
  $region9: #{pdarts_cnn_forward.300} parent=0 // pred_fallthru
    _
  %v11 = vld [vmem:[%s0] sm:$0xf]
  %v12 = vld [vmem:[%s0 + $0x4] sm:$0xf]
  %v13 = vunpack.c.l.bf16 %v11
  %v14 = vunpack.c.l.bf16 %v12
  %v15 = vmax.f32 %v13, 0.0
  %v16 = vmax.f32 %v14, 0.0
  %v17 = vld [vmem:[%s1] sm:$0x1]
  %v19 = vlaneseq
  %v20 = vshrl.u32 %v19, 7
  %v21 = vsub.s32 0, %v20
  %v22 = vrot.slane %v17, %v21
  %v24 = vmul.f32 %v15, %v22
  %v25 = vmul.f32 %v16, %v22
  %v26 = vadd.f32 %v24, 0.0
  %v27 = vadd.f32 %v25, 0.0
  %s28 = scalar_lea.vmem %s0, 8
  %v29 = vld [vmem:[%s28] sm:$0xf]
  %v30 = vld [vmem:[%s28 + $0x4] sm:$0xf]
  %v31 = vunpack.c.l.bf16 %v29
  %v32 = vunpack.c.l.bf16 %v30
  %v33 = vmax.f32 %v31, 0.0
  %v34 = vmax.f32 %v32, 0.0
  %s35 = scalar_lea.vmem %s1, 1
  %v36 = vld [vmem:[%s35] sm:$0x1]
  %v38 = vlaneseq
  %v39 = vshrl.u32 %v38, 7
  %v40 = vsub.s32 0, %v39
  %v41 = vrot.slane %v36, %v40
  %v43 = vmul.f32 %v33, %v41
  %v44 = vmul.f32 %v34, %v41
  %v45 = vadd.f32 %v26, %v43
  %v46 = vadd.f32 %v27, %v44
  %s47 = scalar_lea.vmem %s0, 16
  %v48 = vld [vmem:[%s47] sm:$0xf]
  %v49 = vld [vmem:[%s47 + $0x4] sm:$0xf]
  %v50 = vunpack.c.l.bf16 %v48
  %v51 = vunpack.c.l.bf16 %v49
  %v52 = vmax.f32 %v50, 0.0
  %v53 = vmax.f32 %v51, 0.0
  %s54 = scalar_lea.vmem %s1, 2
  %v55 = vld [vmem:[%s54] sm:$0x1]
  %v57 = vlaneseq
  %v58 = vshrl.u32 %v57, 7
  %v59 = vsub.s32 0, %v58
  %v60 = vrot.slane %v55, %v59
  %v62 = vmul.f32 %v52, %v60
  %v63 = vmul.f32 %v53, %v60
  %v64 = vadd.f32 %v45, %v62
  %v65 = vadd.f32 %v46, %v63
  %s66 = scalar_lea.vmem %s0, 24
  %v67 = vld [vmem:[%s66] sm:$0xf]
  %v68 = vld [vmem:[%s66 + $0x4] sm:$0xf]
  %v69 = vunpack.c.l.bf16 %v67
  %v70 = vunpack.c.l.bf16 %v68
  %v71 = vmax.f32 %v69, 0.0
  %v72 = vmax.f32 %v70, 0.0
  %s73 = scalar_lea.vmem %s1, 3
  %v74 = vld [vmem:[%s73] sm:$0x1]
  %v76 = vlaneseq
  %v77 = vshrl.u32 %v76, 7
  %v78 = vsub.s32 0, %v77
  %v79 = vrot.slane %v74, %v78
  %v81 = vmul.f32 %v71, %v79
  %v82 = vmul.f32 %v72, %v79
  %v83 = vadd.f32 %v64, %v81
  %v84 = vadd.f32 %v65, %v82
  %s85 = scalar_lea.vmem %s0, 32
  %v86 = vld [vmem:[%s85] sm:$0xf]
  %v87 = vld [vmem:[%s85 + $0x4] sm:$0xf]
  %v88 = vunpack.c.l.bf16 %v86
  %v89 = vunpack.c.l.bf16 %v87
  %v90 = vmax.f32 %v88, 0.0
  %v91 = vmax.f32 %v89, 0.0
  %s92 = scalar_lea.vmem %s1, 4
  %v93 = vld [vmem:[%s92] sm:$0x1]
  %v95 = vlaneseq
  %v96 = vshrl.u32 %v95, 7
  %v97 = vsub.s32 0, %v96
  %v98 = vrot.slane %v93, %v97
  %v100 = vmul.f32 %v90, %v98
  %v101 = vmul.f32 %v91, %v98
  %v102 = vadd.f32 %v83, %v100
  %v103 = vadd.f32 %v84, %v101
  %s104 = scalar_lea.vmem %s0, 40
  %v105 = vld [vmem:[%s104] sm:$0xf]
  %v106 = vld [vmem:[%s104 + $0x4] sm:$0xf]
  %v107 = vunpack.c.l.bf16 %v105
  %v108 = vunpack.c.l.bf16 %v106
  %v109 = vmax.f32 %v107, 0.0
  %v110 = vmax.f32 %v108, 0.0
  %s111 = scalar_lea.vmem %s1, 5
  %v112 = vld [vmem:[%s111] sm:$0x1]
  %v114 = vlaneseq
  %v115 = vshrl.u32 %v114, 7
  %v116 = vsub.s32 0, %v115
  %v117 = vrot.slane %v112, %v116
  %v119 = vmul.f32 %v109, %v117
  %v120 = vmul.f32 %v110, %v117
  %v121 = vadd.f32 %v102, %v119
  %v122 = vadd.f32 %v103, %v120
  %s123 = scalar_lea.vmem %s0, 48
  %v124 = vld [vmem:[%s123] sm:$0xf]
  %v125 = vld [vmem:[%s123 + $0x4] sm:$0xf]
  %v126 = vunpack.c.l.bf16 %v124
  %v127 = vunpack.c.l.bf16 %v125
  %v128 = vmax.f32 %v126, 0.0
  %v129 = vmax.f32 %v127, 0.0
  %s130 = scalar_lea.vmem %s1, 6
  %v131 = vld [vmem:[%s130] sm:$0x1]
  %v133 = vlaneseq
  %v134 = vshrl.u32 %v133, 7
  %v135 = vsub.s32 0, %v134
  %v136 = vrot.slane %v131, %v135
  %v138 = vmul.f32 %v128, %v136
  %v139 = vmul.f32 %v129, %v136
  %v140 = vadd.f32 %v121, %v138
  %v141 = vadd.f32 %v122, %v139
  %s142 = scalar_lea.vmem %s0, 56
  %v143 = vld [vmem:[%s142] sm:$0xf]
  %v144 = vld [vmem:[%s142 + $0x4] sm:$0xf]
  %v145 = vunpack.c.l.bf16 %v143
  %v146 = vunpack.c.l.bf16 %v144
  %v147 = vmax.f32 %v145, 0.0
  %v148 = vmax.f32 %v146, 0.0
  %s149 = scalar_lea.vmem %s1, 7
  %v150 = vld [vmem:[%s149] sm:$0x1]
  %v152 = vlaneseq
  %v153 = vshrl.u32 %v152, 7
  %v154 = vsub.s32 0, %v153
  %v155 = vrot.slane %v150, %v154
  %v157 = vmul.f32 %v147, %v155
  %v158 = vmul.f32 %v148, %v155
  %v159 = vadd.f32 %v140, %v157
  %v160 = vadd.f32 %v141, %v158
  %s161 = scalar_lea.vmem %s0, 64
  %v162 = vld [vmem:[%s161] sm:$0xf]
  %v163 = vld [vmem:[%s161 + $0x4] sm:$0xf]
  %v164 = vunpack.c.l.bf16 %v162
  %v165 = vunpack.c.l.bf16 %v163
  %v166 = vmax.f32 %v164, 0.0
  %v167 = vmax.f32 %v165, 0.0
  %s168 = scalar_lea.vmem %s1, 8
  %v169 = vld [vmem:[%s168] sm:$0x1]
  %v171 = vlaneseq
  %v172 = vshrl.u32 %v171, 7
  %v173 = vsub.s32 0, %v172
  %v174 = vrot.slane %v169, %v173
  %v176 = vmul.f32 %v166, %v174
  %v177 = vmul.f32 %v167, %v174
  %v178 = vadd.f32 %v159, %v176
  %v179 = vadd.f32 %v160, %v177
  %180 = vst [vmem:[%s2] sm:$0xff] %v178
  %181 = vst [vmem:[%s2 + $0x8] sm:$0xff] %v179
  // Predicated region
  $region10: #{pdarts_cnn_forward.300} parent=0 // pred_check
    _
  $region11: #{pdarts_cnn_forward.300} parent=0 // pred_check_branch
    %183 = sbr.rel (0) target = $region13
  $region12: #{pdarts_cnn_forward.300} parent=0 // pred_region
    _
  $region13: #{pdarts_cnn_forward.300} parent=0 // pred_fallthru
    _
  // Predicated region
  $region14: #{pdarts_cnn_forward.300} parent=0 // pred_check
    _
  $region15: #{pdarts_cnn_forward.300} parent=0 // pred_check_branch
    %185 = sbr.rel (0) target = $region17
  $region16: #{pdarts_cnn_forward.300} parent=0 // pred_region
    _
  $region17: #{pdarts_cnn_forward.300} parent=0 // pred_fallthru
    _

// kernel: pdarts_cnn_forward.310
$region0: #{pdarts_cnn_forward.310}
  #allocation0 [shape = 'u32[]', space=smem, size = 0x4, offset = 0x4, fixed_abs, tag = 'smem constant byte address 0x4 - core index']
  #allocation1 [shape = 'u32[144,128]{1,0:T(1,128)}', space=vmem, size = 0x12000, scoped, tag = 'internal scratch']
  %s0 = inlined_call_operand.vmem [shape: bf16[25,16,128], index: 0, kind: input, shape index: {}]
  %s1 = inlined_call_operand.vmem [shape: f32[25,1,128], index: 1, kind: input, shape index: {}]
  %s2 = inlined_call_operand.vmem [shape: f32[16,128], index: 2, kind: output, shape index: {}]
  %s3 = sld [smem:[#allocation0]]
  $region18: #{pdarts_cnn_forward.310} parent=0
    _
  %s5 = ssub.s32 1, %s3
  %s6 = scalar_select 0, %s5, %s3
  // Predicated region
  $region2: #{pdarts_cnn_forward.310} parent=0 // pred_check
    _
  $region3: #{pdarts_cnn_forward.310} parent=0 // pred_check_branch
    %8 = sbr.rel (0) target = $region5
  $region4: #{pdarts_cnn_forward.310} parent=0 // pred_region
    _
  $region5: #{pdarts_cnn_forward.310} parent=0 // pred_fallthru
    _
  // Predicated region
  $region6: #{pdarts_cnn_forward.310} parent=0 // pred_check
    _
  $region7: #{pdarts_cnn_forward.310} parent=0 // pred_check_branch
    %10 = sbr.rel (0) target = $region9
  $region8: #{pdarts_cnn_forward.310} parent=0 // pred_region
    _
  $region9: #{pdarts_cnn_forward.310} parent=0 // pred_fallthru
    _
  %v11 = vld [vmem:[%s0] sm:$0xf]
  %v12 = vld [vmem:[%s0 + $0x4] sm:$0xf]
  %v13 = vunpack.c.l.bf16 %v11
  %v14 = vunpack.c.l.bf16 %v12
  %v15 = vmax.f32 %v13, 0.0
  %v16 = vmax.f32 %v14, 0.0
  %v17 = vld [vmem:[%s1] sm:$0x1]
  %v19 = vlaneseq
  %v20 = vshrl.u32 %v19, 7
  %v21 = vsub.s32 0, %v20
  %v22 = vrot.slane %v17, %v21
  %v24 = vmul.f32 %v15, %v22
  %v25 = vmul.f32 %v16, %v22
  %v26 = vadd.f32 %v24, 0.0
  %v27 = vadd.f32 %v25, 0.0
  %s28 = scalar_lea.vmem %s0, 8
  %v29 = vld [vmem:[%s28] sm:$0xf]
  %v30 = vld [vmem:[%s28 + $0x4] sm:$0xf]
  %v31 = vunpack.c.l.bf16 %v29
  %v32 = vunpack.c.l.bf16 %v30
  %v33 = vmax.f32 %v31, 0.0
  %v34 = vmax.f32 %v32, 0.0
  %s35 = scalar_lea.vmem %s1, 1
  %v36 = vld [vmem:[%s35] sm:$0x1]
  %v38 = vlaneseq
  %v39 = vshrl.u32 %v38, 7
  %v40 = vsub.s32 0, %v39
  %v41 = vrot.slane %v36, %v40
  %v43 = vmul.f32 %v33, %v41
  %v44 = vmul.f32 %v34, %v41
  %v45 = vadd.f32 %v26, %v43
  %v46 = vadd.f32 %v27, %v44
  %s47 = scalar_lea.vmem %s0, 16
  %v48 = vld [vmem:[%s47] sm:$0xf]
  %v49 = vld [vmem:[%s47 + $0x4] sm:$0xf]
  %v50 = vunpack.c.l.bf16 %v48
  %v51 = vunpack.c.l.bf16 %v49
  %v52 = vmax.f32 %v50, 0.0
  %v53 = vmax.f32 %v51, 0.0
  %s54 = scalar_lea.vmem %s1, 2
  %v55 = vld [vmem:[%s54] sm:$0x1]
  %v57 = vlaneseq
  %v58 = vshrl.u32 %v57, 7
  %v59 = vsub.s32 0, %v58
  %v60 = vrot.slane %v55, %v59
  %v62 = vmul.f32 %v52, %v60
  %v63 = vmul.f32 %v53, %v60
  %v64 = vadd.f32 %v45, %v62
  %v65 = vadd.f32 %v46, %v63
  %s66 = scalar_lea.vmem %s0, 24
  %v67 = vld [vmem:[%s66] sm:$0xf]
  %v68 = vld [vmem:[%s66 + $0x4] sm:$0xf]
  %v69 = vunpack.c.l.bf16 %v67
  %v70 = vunpack.c.l.bf16 %v68
  %v71 = vmax.f32 %v69, 0.0
  %v72 = vmax.f32 %v70, 0.0
  %s73 = scalar_lea.vmem %s1, 3
  %v74 = vld [vmem:[%s73] sm:$0x1]
  %v76 = vlaneseq
  %v77 = vshrl.u32 %v76, 7
  %v78 = vsub.s32 0, %v77
  %v79 = vrot.slane %v74, %v78
  %v81 = vmul.f32 %v71, %v79
  %v82 = vmul.f32 %v72, %v79
  %v83 = vadd.f32 %v64, %v81
  %v84 = vadd.f32 %v65, %v82
  %s85 = scalar_lea.vmem %s0, 32
  %v86 = vld [vmem:[%s85] sm:$0xf]
  %v87 = vld [vmem:[%s85 + $0x4] sm:$0xf]
  %v88 = vunpack.c.l.bf16 %v86
  %v89 = vunpack.c.l.bf16 %v87
  %v90 = vmax.f32 %v88, 0.0
  %v91 = vmax.f32 %v89, 0.0
  %s92 = scalar_lea.vmem %s1, 4
  %v93 = vld [vmem:[%s92] sm:$0x1]
  %v95 = vlaneseq
  %v96 = vshrl.u32 %v95, 7
  %v97 = vsub.s32 0, %v96
  %v98 = vrot.slane %v93, %v97
  %v100 = vmul.f32 %v90, %v98
  %v101 = vmul.f32 %v91, %v98
  %v102 = vadd.f32 %v83, %v100
  %v103 = vadd.f32 %v84, %v101
  %s104 = scalar_lea.vmem %s0, 40
  %v105 = vld [vmem:[%s104] sm:$0xf]
  %v106 = vld [vmem:[%s104 + $0x4] sm:$0xf]
  %v107 = vunpack.c.l.bf16 %v105
  %v108 = vunpack.c.l.bf16 %v106
  %v109 = vmax.f32 %v107, 0.0
  %v110 = vmax.f32 %v108, 0.0
  %s111 = scalar_lea.vmem %s1, 5
  %v112 = vld [vmem:[%s111] sm:$0x1]
  %v114 = vlaneseq
  %v115 = vshrl.u32 %v114, 7
  %v116 = vsub.s32 0, %v115
  %v117 = vrot.slane %v112, %v116
  %v119 = vmul.f32 %v109, %v117
  %v120 = vmul.f32 %v110, %v117
  %v121 = vadd.f32 %v102, %v119
  %v122 = vadd.f32 %v103, %v120
  %s123 = scalar_lea.vmem %s0, 48
  %v124 = vld [vmem:[%s123] sm:$0xf]
  %v125 = vld [vmem:[%s123 + $0x4] sm:$0xf]
  %v126 = vunpack.c.l.bf16 %v124
  %v127 = vunpack.c.l.bf16 %v125
  %v128 = vmax.f32 %v126, 0.0
  %v129 = vmax.f32 %v127, 0.0
  %s130 = scalar_lea.vmem %s1, 6
  %v131 = vld [vmem:[%s130] sm:$0x1]
  %v133 = vlaneseq
  %v134 = vshrl.u32 %v133, 7
  %v135 = vsub.s32 0, %v134
  %v136 = vrot.slane %v131, %v135
  %v138 = vmul.f32 %v128, %v136
  %v139 = vmul.f32 %v129, %v136
  %v140 = vadd.f32 %v121, %v138
  %v141 = vadd.f32 %v122, %v139
  %s142 = scalar_lea.vmem %s0, 56
  %v143 = vld [vmem:[%s142] sm:$0xf]
  %v144 = vld [vmem:[%s142 + $0x4] sm:$0xf]
  %v145 = vunpack.c.l.bf16 %v143
  %v146 = vunpack.c.l.bf16 %v144
  %v147 = vmax.f32 %v145, 0.0
  %v148 = vmax.f32 %v146, 0.0
  %s149 = scalar_lea.vmem %s1, 7
  %v150 = vld [vmem:[%s149] sm:$0x1]
  %v152 = vlaneseq
  %v153 = vshrl.u32 %v152, 7
  %v154 = vsub.s32 0, %v153
  %v155 = vrot.slane %v150, %v154
  %v157 = vmul.f32 %v147, %v155
  %v158 = vmul.f32 %v148, %v155
  %v159 = vadd.f32 %v140, %v157
  %v160 = vadd.f32 %v141, %v158
  %s161 = scalar_lea.vmem %s0, 64
  %v162 = vld [vmem:[%s161] sm:$0xf]
  %v163 = vld [vmem:[%s161 + $0x4] sm:$0xf]
  %v164 = vunpack.c.l.bf16 %v162
  %v165 = vunpack.c.l.bf16 %v163
  %v166 = vmax.f32 %v164, 0.0
  %v167 = vmax.f32 %v165, 0.0
  %s168 = scalar_lea.vmem %s1, 8
  %v169 = vld [vmem:[%s168] sm:$0x1]
  %v171 = vlaneseq
  %v172 = vshrl.u32 %v171, 7
  %v173 = vsub.s32 0, %v172
  %v174 = vrot.slane %v169, %v173
  %v176 = vmul.f32 %v166, %v174
  %v177 = vmul.f32 %v167, %v174
  %v178 = vadd.f32 %v159, %v176
  %v179 = vadd.f32 %v160, %v177
  %s180 = scalar_lea.vmem %s0, 72
  %v181 = vld [vmem:[%s180] sm:$0xf]
  %v182 = vld [vmem:[%s180 + $0x4] sm:$0xf]
  %v183 = vunpack.c.l.bf16 %v181
  %v184 = vunpack.c.l.bf16 %v182
  %v185 = vmax.f32 %v183, 0.0
  %v186 = vmax.f32 %v184, 0.0
  %s187 = scalar_lea.vmem %s1, 9
  %v188 = vld [vmem:[%s187] sm:$0x1]
  %v190 = vlaneseq
  %v191 = vshrl.u32 %v190, 7
  %v192 = vsub.s32 0, %v191
  %v193 = vrot.slane %v188, %v192
  %v195 = vmul.f32 %v185, %v193
  %v196 = vmul.f32 %v186, %v193
  %v197 = vadd.f32 %v178, %v195
  %v198 = vadd.f32 %v179, %v196
  %s199 = scalar_lea.vmem %s0, 80
  %v200 = vld [vmem:[%s199] sm:$0xf]
  %v201 = vld [vmem:[%s199 + $0x4] sm:$0xf]
  %v202 = vunpack.c.l.bf16 %v200
  %v203 = vunpack.c.l.bf16 %v201
  %v204 = vmax.f32 %v202, 0.0
  %v205 = vmax.f32 %v203, 0.0
  %s206 = scalar_lea.vmem %s1, 10
  %v207 = vld [vmem:[%s206] sm:$0x1]
  %v209 = vlaneseq
  %v210 = vshrl.u32 %v209, 7
  %v211 = vsub.s32 0, %v210
  %v212 = vrot.slane %v207, %v211
  %v214 = vmul.f32 %v204, %v212
  %v215 = vmul.f32 %v205, %v212
  %v216 = vadd.f32 %v197, %v214
  %v217 = vadd.f32 %v198, %v215
  %s218 = scalar_lea.vmem %s0, 88
  %v219 = vld [vmem:[%s218] sm:$0xf]
  %v220 = vld [vmem:[%s218 + $0x4] sm:$0xf]
  %v221 = vunpack.c.l.bf16 %v219
  %v222 = vunpack.c.l.bf16 %v220
  %v223 = vmax.f32 %v221, 0.0
  %v224 = vmax.f32 %v222, 0.0
  %s225 = scalar_lea.vmem %s1, 11
  %v226 = vld [vmem:[%s225] sm:$0x1]
  %v228 = vlaneseq
  %v229 = vshrl.u32 %v228, 7
  %v230 = vsub.s32 0, %v229
  %v231 = vrot.slane %v226, %v230
  %v233 = vmul.f32 %v223, %v231
  %v234 = vmul.f32 %v224, %v231
  %v235 = vadd.f32 %v216, %v233
  %v236 = vadd.f32 %v217, %v234
  %s237 = scalar_lea.vmem %s0, 96
  %v238 = vld [vmem:[%s237] sm:$0xf]
  %v239 = vld [vmem:[%s237 + $0x4] sm:$0xf]
  %v240 = vunpack.c.l.bf16 %v238
  %v241 = vunpack.c.l.bf16 %v239
  %v242 = vmax.f32 %v240, 0.0
  %v243 = vmax.f32 %v241, 0.0
  %s244 = scalar_lea.vmem %s1, 12
  %v245 = vld [vmem:[%s244] sm:$0x1]
  %v247 = vlaneseq
  %v248 = vshrl.u32 %v247, 7
  %v249 = vsub.s32 0, %v248
  %v250 = vrot.slane %v245, %v249
  %v252 = vmul.f32 %v242, %v250
  %v253 = vmul.f32 %v243, %v250
  %v254 = vadd.f32 %v235, %v252
  %v255 = vadd.f32 %v236, %v253
  %s256 = scalar_lea.vmem %s0, 104
  %v257 = vld [vmem:[%s256] sm:$0xf]
  %v258 = vld [vmem:[%s256 + $0x4] sm:$0xf]
  %v259 = vunpack.c.l.bf16 %v257
  %v260 = vunpack.c.l.bf16 %v258
  %v261 = vmax.f32 %v259, 0.0
  %v262 = vmax.f32 %v260, 0.0
  %s263 = scalar_lea.vmem %s1, 13
  %v264 = vld [vmem:[%s263] sm:$0x1]
  %v266 = vlaneseq
  %v267 = vshrl.u32 %v266, 7
  %v268 = vsub.s32 0, %v267
  %v269 = vrot.slane %v264, %v268
  %v271 = vmul.f32 %v261, %v269
  %v272 = vmul.f32 %v262, %v269
  %v273 = vadd.f32 %v254, %v271
  %v274 = vadd.f32 %v255, %v272
  %s275 = scalar_lea.vmem %s0, 112
  %v276 = vld [vmem:[%s275] sm:$0xf]
  %v277 = vld [vmem:[%s275 + $0x4] sm:$0xf]
  %v278 = vunpack.c.l.bf16 %v276
  %v279 = vunpack.c.l.bf16 %v277
  %v280 = vmax.f32 %v278, 0.0
  %v281 = vmax.f32 %v279, 0.0
  %s282 = scalar_lea.vmem %s1, 14
  %v283 = vld [vmem:[%s282] sm:$0x1]
  %v285 = vlaneseq
  %v286 = vshrl.u32 %v285, 7
  %v287 = vsub.s32 0, %v286
  %v288 = vrot.slane %v283, %v287
  %v290 = vmul.f32 %v280, %v288
  %v291 = vmul.f32 %v281, %v288
  %v292 = vadd.f32 %v273, %v290
  %v293 = vadd.f32 %v274, %v291
  %s294 = scalar_lea.vmem %s0, 120
  %v295 = vld [vmem:[%s294] sm:$0xf]
  %v296 = vld [vmem:[%s294 + $0x4] sm:$0xf]
  %v297 = vunpack.c.l.bf16 %v295
  %v298 = vunpack.c.l.bf16 %v296
  %v299 = vmax.f32 %v297, 0.0
  %v300 = vmax.f32 %v298, 0.0
  %s301 = scalar_lea.vmem %s1, 15
  %v302 = vld [vmem:[%s301] sm:$0x1]
  %v304 = vlaneseq
  %v305 = vshrl.u32 %v304, 7
  %v306 = vsub.s32 0, %v305
  %v307 = vrot.slane %v302, %v306
  %v309 = vmul.f32 %v299, %v307
  %v310 = vmul.f32 %v300, %v307
  %v311 = vadd.f32 %v292, %v309
  %v312 = vadd.f32 %v293, %v310
  %s313 = scalar_lea.vmem %s0, 128
  %v314 = vld [vmem:[%s313] sm:$0xf]
  %v315 = vld [vmem:[%s313 + $0x4] sm:$0xf]
  %v316 = vunpack.c.l.bf16 %v314
  %v317 = vunpack.c.l.bf16 %v315
  %v318 = vmax.f32 %v316, 0.0
  %v319 = vmax.f32 %v317, 0.0
  %s320 = scalar_lea.vmem %s1, 16
  %v321 = vld [vmem:[%s320] sm:$0x1]
  %v323 = vlaneseq
  %v324 = vshrl.u32 %v323, 7
  %v325 = vsub.s32 0, %v324
  %v326 = vrot.slane %v321, %v325
  %v328 = vmul.f32 %v318, %v326
  %v329 = vmul.f32 %v319, %v326
  %v330 = vadd.f32 %v311, %v328
  %v331 = vadd.f32 %v312, %v329
  %s332 = scalar_lea.vmem %s0, 136
  %v333 = vld [vmem:[%s332] sm:$0xf]
  %v334 = vld [vmem:[%s332 + $0x4] sm:$0xf]
  %v335 = vunpack.c.l.bf16 %v333
  %v336 = vunpack.c.l.bf16 %v334
  %v337 = vmax.f32 %v335, 0.0
  %v338 = vmax.f32 %v336, 0.0
  %s339 = scalar_lea.vmem %s1, 17
  %v340 = vld [vmem:[%s339] sm:$0x1]
  %v342 = vlaneseq
  %v343 = vshrl.u32 %v342, 7
  %v344 = vsub.s32 0, %v343
  %v345 = vrot.slane %v340, %v344
  %v347 = vmul.f32 %v337, %v345
  %v348 = vmul.f32 %v338, %v345
  %v349 = vadd.f32 %v330, %v347
  %v350 = vadd.f32 %v331, %v348
  %s351 = scalar_lea.vmem %s0, 144
  %v352 = vld [vmem:[%s351] sm:$0xf]
  %v353 = vld [vmem:[%s351 + $0x4] sm:$0xf]
  %v354 = vunpack.c.l.bf16 %v352
  %v355 = vunpack.c.l.bf16 %v353
  %v356 = vmax.f32 %v354, 0.0
  %v357 = vmax.f32 %v355, 0.0
  %s358 = scalar_lea.vmem %s1, 18
  %v359 = vld [vmem:[%s358] sm:$0x1]
  %v361 = vlaneseq
  %v362 = vshrl.u32 %v361, 7
  %v363 = vsub.s32 0, %v362
  %v364 = vrot.slane %v359, %v363
  %v366 = vmul.f32 %v356, %v364
  %v367 = vmul.f32 %v357, %v364
  %v368 = vadd.f32 %v349, %v366
  %v369 = vadd.f32 %v350, %v367
  %s370 = scalar_lea.vmem %s0, 152
  %v371 = vld [vmem:[%s370] sm:$0xf]
  %v372 = vld [vmem:[%s370 + $0x4] sm:$0xf]
  %v373 = vunpack.c.l.bf16 %v371
  %v374 = vunpack.c.l.bf16 %v372
  %v375 = vmax.f32 %v373, 0.0
  %v376 = vmax.f32 %v374, 0.0
  %s377 = scalar_lea.vmem %s1, 19
  %v378 = vld [vmem:[%s377] sm:$0x1]
  %v380 = vlaneseq
  %v381 = vshrl.u32 %v380, 7
  %v382 = vsub.s32 0, %v381
  %v383 = vrot.slane %v378, %v382
  %v385 = vmul.f32 %v375, %v383
  %v386 = vmul.f32 %v376, %v383
  %v387 = vadd.f32 %v368, %v385
  %v388 = vadd.f32 %v369, %v386
  %s389 = scalar_lea.vmem %s0, 160
  %v390 = vld [vmem:[%s389] sm:$0xf]
  %v391 = vld [vmem:[%s389 + $0x4] sm:$0xf]
  %v392 = vunpack.c.l.bf16 %v390
  %v393 = vunpack.c.l.bf16 %v391
  %v394 = vmax.f32 %v392, 0.0
  %v395 = vmax.f32 %v393, 0.0
  %s396 = scalar_lea.vmem %s1, 20
  %v397 = vld [vmem:[%s396] sm:$0x1]
  %v399 = vlaneseq
  %v400 = vshrl.u32 %v399, 7
  %v401 = vsub.s32 0, %v400
  %v402 = vrot.slane %v397, %v401
  %v404 = vmul.f32 %v394, %v402
  %v405 = vmul.f32 %v395, %v402
  %v406 = vadd.f32 %v387, %v404
  %v407 = vadd.f32 %v388, %v405
  %s408 = scalar_lea.vmem %s0, 168
  %v409 = vld [vmem:[%s408] sm:$0xf]
  %v410 = vld [vmem:[%s408 + $0x4] sm:$0xf]
  %v411 = vunpack.c.l.bf16 %v409
  %v412 = vunpack.c.l.bf16 %v410
  %v413 = vmax.f32 %v411, 0.0
  %v414 = vmax.f32 %v412, 0.0
  %s415 = scalar_lea.vmem %s1, 21
  %v416 = vld [vmem:[%s415] sm:$0x1]
  %v418 = vlaneseq
  %v419 = vshrl.u32 %v418, 7
  %v420 = vsub.s32 0, %v419
  %v421 = vrot.slane %v416, %v420
  %v423 = vmul.f32 %v413, %v421
  %v424 = vmul.f32 %v414, %v421
  %v425 = vadd.f32 %v406, %v423
  %v426 = vadd.f32 %v407, %v424
  %s427 = scalar_lea.vmem %s0, 176
  %v428 = vld [vmem:[%s427] sm:$0xf]
  %v429 = vld [vmem:[%s427 + $0x4] sm:$0xf]
  %v430 = vunpack.c.l.bf16 %v428
  %v431 = vunpack.c.l.bf16 %v429
  %v432 = vmax.f32 %v430, 0.0
  %v433 = vmax.f32 %v431, 0.0
  %s434 = scalar_lea.vmem %s1, 22
  %v435 = vld [vmem:[%s434] sm:$0x1]
  %v437 = vlaneseq
  %v438 = vshrl.u32 %v437, 7
  %v439 = vsub.s32 0, %v438
  %v440 = vrot.slane %v435, %v439
  %v442 = vmul.f32 %v432, %v440
  %v443 = vmul.f32 %v433, %v440
  %v444 = vadd.f32 %v425, %v442
  %v445 = vadd.f32 %v426, %v443
  %s446 = scalar_lea.vmem %s0, 184
  %v447 = vld [vmem:[%s446] sm:$0xf]
  %v448 = vld [vmem:[%s446 + $0x4] sm:$0xf]
  %v449 = vunpack.c.l.bf16 %v447
  %v450 = vunpack.c.l.bf16 %v448
  %v451 = vmax.f32 %v449, 0.0
  %v452 = vmax.f32 %v450, 0.0
  %s453 = scalar_lea.vmem %s1, 23
  %v454 = vld [vmem:[%s453] sm:$0x1]
  %v456 = vlaneseq
  %v457 = vshrl.u32 %v456, 7
  %v458 = vsub.s32 0, %v457
  %v459 = vrot.slane %v454, %v458
  %v461 = vmul.f32 %v451, %v459
  %v462 = vmul.f32 %v452, %v459
  %v463 = vadd.f32 %v444, %v461
  %v464 = vadd.f32 %v445, %v462
  %s465 = scalar_lea.vmem %s0, 192
  %v466 = vld [vmem:[%s465] sm:$0xf]
  %v467 = vld [vmem:[%s465 + $0x4] sm:$0xf]
  %v468 = vunpack.c.l.bf16 %v466
  %v469 = vunpack.c.l.bf16 %v467
  %v470 = vmax.f32 %v468, 0.0
  %v471 = vmax.f32 %v469, 0.0
  %s472 = scalar_lea.vmem %s1, 24
  %v473 = vld [vmem:[%s472] sm:$0x1]
  %v475 = vlaneseq
  %v476 = vshrl.u32 %v475, 7
  %v477 = vsub.s32 0, %v476
  %v478 = vrot.slane %v473, %v477
  %v480 = vmul.f32 %v470, %v478
  %v481 = vmul.f32 %v471, %v478
  %v482 = vadd.f32 %v463, %v480
  %v483 = vadd.f32 %v464, %v481
  %484 = vst [vmem:[%s2] sm:$0xff] %v482
  %485 = vst [vmem:[%s2 + $0x8] sm:$0xff] %v483
  // Predicated region
  $region10: #{pdarts_cnn_forward.310} parent=0 // pred_check
    _
  $region11: #{pdarts_cnn_forward.310} parent=0 // pred_check_branch
    %487 = sbr.rel (0) target = $region13
  $region12: #{pdarts_cnn_forward.310} parent=0 // pred_region
    _
  $region13: #{pdarts_cnn_forward.310} parent=0 // pred_fallthru
    _
  // Predicated region
  $region14: #{pdarts_cnn_forward.310} parent=0 // pred_check
    _
  $region15: #{pdarts_cnn_forward.310} parent=0 // pred_check_branch
    %489 = sbr.rel (0) target = $region17
  $region16: #{pdarts_cnn_forward.310} parent=0 // pred_region
    _
  $region17: #{pdarts_cnn_forward.310} parent=0 // pred_fallthru
    _

// kernel: pdarts_cnn_forward.254
$region0: #{pdarts_cnn_forward.254}
  #allocation0 [shape = 'u32[]', space=smem, size = 0x4, offset = 0x4, fixed_abs, tag = 'smem constant byte address 0x4 - core index']
  #allocation1 [shape = 'u32[144,128]{1,0:T(1,128)}', space=vmem, size = 0x12000, scoped, tag = 'internal scratch']
  %s0 = inlined_call_operand.vmem [shape: bf16[25,32,128], index: 0, kind: input, shape index: {}]
  %s1 = inlined_call_operand.vmem [shape: f32[25,1,128], index: 1, kind: input, shape index: {}]
  %s2 = inlined_call_operand.vmem [shape: f32[32,128], index: 2, kind: output, shape index: {}]
  %s3 = sld [smem:[#allocation0]]
  $region18: #{pdarts_cnn_forward.254} parent=0
    _
  %s5 = ssub.s32 1, %s3
  %s6 = scalar_select 0, %s5, %s3
  // Predicated region
  $region2: #{pdarts_cnn_forward.254} parent=0 // pred_check
    _
  $region3: #{pdarts_cnn_forward.254} parent=0 // pred_check_branch
    %8 = sbr.rel (0) target = $region5
  $region4: #{pdarts_cnn_forward.254} parent=0 // pred_region
    _
  $region5: #{pdarts_cnn_forward.254} parent=0 // pred_fallthru
    _
  // Predicated region
  $region6: #{pdarts_cnn_forward.254} parent=0 // pred_check
    _
  $region7: #{pdarts_cnn_forward.254} parent=0 // pred_check_branch
    %10 = sbr.rel (0) target = $region9
  $region8: #{pdarts_cnn_forward.254} parent=0 // pred_region
    _
  $region9: #{pdarts_cnn_forward.254} parent=0 // pred_fallthru
    _
  %v11 = vld [vmem:[%s0] sm:$0xf]
  %v12 = vld [vmem:[%s0 + $0x4] sm:$0xf]
  %v13 = vld [vmem:[%s0 + $0x8] sm:$0xf]
  %v14 = vld [vmem:[%s0 + $0xc] sm:$0xf]
  %v15 = vunpack.c.l.bf16 %v11
  %v16 = vunpack.c.l.bf16 %v12
  %v17 = vunpack.c.l.bf16 %v13
  %v18 = vunpack.c.l.bf16 %v14
  %v19 = vmax.f32 %v15, 0.0
  %v20 = vmax.f32 %v16, 0.0
  %v21 = vmax.f32 %v17, 0.0
  %v22 = vmax.f32 %v18, 0.0
  %v23 = vld [vmem:[%s1] sm:$0x1]
  %v25 = vlaneseq
  %v26 = vshrl.u32 %v25, 7
  %v27 = vsub.s32 0, %v26
  %v28 = vrot.slane %v23, %v27
  %v30 = vmul.f32 %v19, %v28
  %v31 = vmul.f32 %v20, %v28
  %v32 = vmul.f32 %v21, %v28
  %v33 = vmul.f32 %v22, %v28
  %v34 = vadd.f32 %v30, 0.0
  %v35 = vadd.f32 %v31, 0.0
  %v36 = vadd.f32 %v32, 0.0
  %v37 = vadd.f32 %v33, 0.0
  %s38 = scalar_lea.vmem %s0, 16
  %v39 = vld [vmem:[%s38] sm:$0xf]
  %v40 = vld [vmem:[%s38 + $0x4] sm:$0xf]
  %v41 = vld [vmem:[%s38 + $0x8] sm:$0xf]
  %v42 = vld [vmem:[%s38 + $0xc] sm:$0xf]
  %v43 = vunpack.c.l.bf16 %v39
  %v44 = vunpack.c.l.bf16 %v40
  %v45 = vunpack.c.l.bf16 %v41
  %v46 = vunpack.c.l.bf16 %v42
  %v47 = vmax.f32 %v43, 0.0
  %v48 = vmax.f32 %v44, 0.0
  %v49 = vmax.f32 %v45, 0.0
  %v50 = vmax.f32 %v46, 0.0
  %s51 = scalar_lea.vmem %s1, 1
  %v52 = vld [vmem:[%s51] sm:$0x1]
  %v54 = vlaneseq
  %v55 = vshrl.u32 %v54, 7
  %v56 = vsub.s32 0, %v55
  %v57 = vrot.slane %v52, %v56
  %v59 = vmul.f32 %v47, %v57
  %v60 = vmul.f32 %v48, %v57
  %v61 = vmul.f32 %v49, %v57
  %v62 = vmul.f32 %v50, %v57
  %v63 = vadd.f32 %v34, %v59
  %v64 = vadd.f32 %v35, %v60
  %v65 = vadd.f32 %v36, %v61
  %v66 = vadd.f32 %v37, %v62
  %s67 = scalar_lea.vmem %s0, 32
  %v68 = vld [vmem:[%s67] sm:$0xf]
  %v69 = vld [vmem:[%s67 + $0x4] sm:$0xf]
  %v70 = vld [vmem:[%s67 + $0x8] sm:$0xf]
  %v71 = vld [vmem:[%s67 + $0xc] sm:$0xf]
  %v72 = vunpack.c.l.bf16 %v68
  %v73 = vunpack.c.l.bf16 %v69
  %v74 = vunpack.c.l.bf16 %v70
  %v75 = vunpack.c.l.bf16 %v71
  %v76 = vmax.f32 %v72, 0.0
  %v77 = vmax.f32 %v73, 0.0
  %v78 = vmax.f32 %v74, 0.0
  %v79 = vmax.f32 %v75, 0.0
  %s80 = scalar_lea.vmem %s1, 2
  %v81 = vld [vmem:[%s80] sm:$0x1]
  %v83 = vlaneseq
  %v84 = vshrl.u32 %v83, 7
  %v85 = vsub.s32 0, %v84
  %v86 = vrot.slane %v81, %v85
  %v88 = vmul.f32 %v76, %v86
  %v89 = vmul.f32 %v77, %v86
  %v90 = vmul.f32 %v78, %v86
  %v91 = vmul.f32 %v79, %v86
  %v92 = vadd.f32 %v63, %v88
  %v93 = vadd.f32 %v64, %v89
  %v94 = vadd.f32 %v65, %v90
  %v95 = vadd.f32 %v66, %v91
  %s96 = scalar_lea.vmem %s0, 48
  %v97 = vld [vmem:[%s96] sm:$0xf]
  %v98 = vld [vmem:[%s96 + $0x4] sm:$0xf]
  %v99 = vld [vmem:[%s96 + $0x8] sm:$0xf]
  %v100 = vld [vmem:[%s96 + $0xc] sm:$0xf]
  %v101 = vunpack.c.l.bf16 %v97
  %v102 = vunpack.c.l.bf16 %v98
  %v103 = vunpack.c.l.bf16 %v99
  %v104 = vunpack.c.l.bf16 %v100
  %v105 = vmax.f32 %v101, 0.0
  %v106 = vmax.f32 %v102, 0.0
  %v107 = vmax.f32 %v103, 0.0
  %v108 = vmax.f32 %v104, 0.0
  %s109 = scalar_lea.vmem %s1, 3
  %v110 = vld [vmem:[%s109] sm:$0x1]
  %v112 = vlaneseq
  %v113 = vshrl.u32 %v112, 7
  %v114 = vsub.s32 0, %v113
  %v115 = vrot.slane %v110, %v114
  %v117 = vmul.f32 %v105, %v115
  %v118 = vmul.f32 %v106, %v115
  %v119 = vmul.f32 %v107, %v115
  %v120 = vmul.f32 %v108, %v115
  %v121 = vadd.f32 %v92, %v117
  %v122 = vadd.f32 %v93, %v118
  %v123 = vadd.f32 %v94, %v119
  %v124 = vadd.f32 %v95, %v120
  %s125 = scalar_lea.vmem %s0, 64
  %v126 = vld [vmem:[%s125] sm:$0xf]
  %v127 = vld [vmem:[%s125 + $0x4] sm:$0xf]
  %v128 = vld [vmem:[%s125 + $0x8] sm:$0xf]
  %v129 = vld [vmem:[%s125 + $0xc] sm:$0xf]
  %v130 = vunpack.c.l.bf16 %v126
  %v131 = vunpack.c.l.bf16 %v127
  %v132 = vunpack.c.l.bf16 %v128
  %v133 = vunpack.c.l.bf16 %v129
  %v134 = vmax.f32 %v130, 0.0
  %v135 = vmax.f32 %v131, 0.0
  %v136 = vmax.f32 %v132, 0.0
  %v137 = vmax.f32 %v133, 0.0
  %s138 = scalar_lea.vmem %s1, 4
  %v139 = vld [vmem:[%s138] sm:$0x1]
  %v141 = vlaneseq
  %v142 = vshrl.u32 %v141, 7
  %v143 = vsub.s32 0, %v142
  %v144 = vrot.slane %v139, %v143
  %v146 = vmul.f32 %v134, %v144
  %v147 = vmul.f32 %v135, %v144
  %v148 = vmul.f32 %v136, %v144
  %v149 = vmul.f32 %v137, %v144
  %v150 = vadd.f32 %v121, %v146
  %v151 = vadd.f32 %v122, %v147
  %v152 = vadd.f32 %v123, %v148
  %v153 = vadd.f32 %v124, %v149
  %s154 = scalar_lea.vmem %s0, 80
  %v155 = vld [vmem:[%s154] sm:$0xf]
  %v156 = vld [vmem:[%s154 + $0x4] sm:$0xf]
  %v157 = vld [vmem:[%s154 + $0x8] sm:$0xf]
  %v158 = vld [vmem:[%s154 + $0xc] sm:$0xf]
  %v159 = vunpack.c.l.bf16 %v155
  %v160 = vunpack.c.l.bf16 %v156
  %v161 = vunpack.c.l.bf16 %v157
  %v162 = vunpack.c.l.bf16 %v158
  %v163 = vmax.f32 %v159, 0.0
  %v164 = vmax.f32 %v160, 0.0
  %v165 = vmax.f32 %v161, 0.0
  %v166 = vmax.f32 %v162, 0.0
  %s167 = scalar_lea.vmem %s1, 5
  %v168 = vld [vmem:[%s167] sm:$0x1]
  %v170 = vlaneseq
  %v171 = vshrl.u32 %v170, 7
  %v172 = vsub.s32 0, %v171
  %v173 = vrot.slane %v168, %v172
  %v175 = vmul.f32 %v163, %v173
  %v176 = vmul.f32 %v164, %v173
  %v177 = vmul.f32 %v165, %v173
  %v178 = vmul.f32 %v166, %v173
  %v179 = vadd.f32 %v150, %v175
  %v180 = vadd.f32 %v151, %v176
  %v181 = vadd.f32 %v152, %v177
  %v182 = vadd.f32 %v153, %v178
  %s183 = scalar_lea.vmem %s0, 96
  %v184 = vld [vmem:[%s183] sm:$0xf]
  %v185 = vld [vmem:[%s183 + $0x4] sm:$0xf]
  %v186 = vld [vmem:[%s183 + $0x8] sm:$0xf]
  %v187 = vld [vmem:[%s183 + $0xc] sm:$0xf]
  %v188 = vunpack.c.l.bf16 %v184
  %v189 = vunpack.c.l.bf16 %v185
  %v190 = vunpack.c.l.bf16 %v186
  %v191 = vunpack.c.l.bf16 %v187
  %v192 = vmax.f32 %v188, 0.0
  %v193 = vmax.f32 %v189, 0.0
  %v194 = vmax.f32 %v190, 0.0
  %v195 = vmax.f32 %v191, 0.0
  %s196 = scalar_lea.vmem %s1, 6
  %v197 = vld [vmem:[%s196] sm:$0x1]
  %v199 = vlaneseq
  %v200 = vshrl.u32 %v199, 7
  %v201 = vsub.s32 0, %v200
  %v202 = vrot.slane %v197, %v201
  %v204 = vmul.f32 %v192, %v202
  %v205 = vmul.f32 %v193, %v202
  %v206 = vmul.f32 %v194, %v202
  %v207 = vmul.f32 %v195, %v202
  %v208 = vadd.f32 %v179, %v204
  %v209 = vadd.f32 %v180, %v205
  %v210 = vadd.f32 %v181, %v206
  %v211 = vadd.f32 %v182, %v207
  %s212 = scalar_lea.vmem %s0, 112
  %v213 = vld [vmem:[%s212] sm:$0xf]
  %v214 = vld [vmem:[%s212 + $0x4] sm:$0xf]
  %v215 = vld [vmem:[%s212 + $0x8] sm:$0xf]
  %v216 = vld [vmem:[%s212 + $0xc] sm:$0xf]
  %v217 = vunpack.c.l.bf16 %v213
  %v218 = vunpack.c.l.bf16 %v214
  %v219 = vunpack.c.l.bf16 %v215
  %v220 = vunpack.c.l.bf16 %v216
  %v221 = vmax.f32 %v217, 0.0
  %v222 = vmax.f32 %v218, 0.0
  %v223 = vmax.f32 %v219, 0.0
  %v224 = vmax.f32 %v220, 0.0
  %s225 = scalar_lea.vmem %s1, 7
  %v226 = vld [vmem:[%s225] sm:$0x1]
  %v228 = vlaneseq
  %v229 = vshrl.u32 %v228, 7
  %v230 = vsub.s32 0, %v229
  %v231 = vrot.slane %v226, %v230
  %v233 = vmul.f32 %v221, %v231
  %v234 = vmul.f32 %v222, %v231
  %v235 = vmul.f32 %v223, %v231
  %v236 = vmul.f32 %v224, %v231
  %v237 = vadd.f32 %v208, %v233
  %v238 = vadd.f32 %v209, %v234
  %v239 = vadd.f32 %v210, %v235
  %v240 = vadd.f32 %v211, %v236
  %s241 = scalar_lea.vmem %s0, 128
  %v242 = vld [vmem:[%s241] sm:$0xf]
  %v243 = vld [vmem:[%s241 + $0x4] sm:$0xf]
  %v244 = vld [vmem:[%s241 + $0x8] sm:$0xf]
  %v245 = vld [vmem:[%s241 + $0xc] sm:$0xf]
  %v246 = vunpack.c.l.bf16 %v242
  %v247 = vunpack.c.l.bf16 %v243
  %v248 = vunpack.c.l.bf16 %v244
  %v249 = vunpack.c.l.bf16 %v245
  %v250 = vmax.f32 %v246, 0.0
  %v251 = vmax.f32 %v247, 0.0
  %v252 = vmax.f32 %v248, 0.0
  %v253 = vmax.f32 %v249, 0.0
  %s254 = scalar_lea.vmem %s1, 8
  %v255 = vld [vmem:[%s254] sm:$0x1]
  %v257 = vlaneseq
  %v258 = vshrl.u32 %v257, 7
  %v259 = vsub.s32 0, %v258
  %v260 = vrot.slane %v255, %v259
  %v262 = vmul.f32 %v250, %v260
  %v263 = vmul.f32 %v251, %v260
  %v264 = vmul.f32 %v252, %v260
  %v265 = vmul.f32 %v253, %v260
  %v266 = vadd.f32 %v237, %v262
  %v267 = vadd.f32 %v238, %v263
  %v268 = vadd.f32 %v239, %v264
  %v269 = vadd.f32 %v240, %v265
  %s270 = scalar_lea.vmem %s0, 144
  %v271 = vld [vmem:[%s270] sm:$0xf]
  %v272 = vld [vmem:[%s270 + $0x4] sm:$0xf]
  %v273 = vld [vmem:[%s270 + $0x8] sm:$0xf]
  %v274 = vld [vmem:[%s270 + $0xc] sm:$0xf]
  %v275 = vunpack.c.l.bf16 %v271
  %v276 = vunpack.c.l.bf16 %v272
  %v277 = vunpack.c.l.bf16 %v273
  %v278 = vunpack.c.l.bf16 %v274
  %v279 = vmax.f32 %v275, 0.0
  %v280 = vmax.f32 %v276, 0.0
  %v281 = vmax.f32 %v277, 0.0
  %v282 = vmax.f32 %v278, 0.0
  %s283 = scalar_lea.vmem %s1, 9
  %v284 = vld [vmem:[%s283] sm:$0x1]
  %v286 = vlaneseq
  %v287 = vshrl.u32 %v286, 7
  %v288 = vsub.s32 0, %v287
  %v289 = vrot.slane %v284, %v288
  %v291 = vmul.f32 %v279, %v289
  %v292 = vmul.f32 %v280, %v289
  %v293 = vmul.f32 %v281, %v289
  %v294 = vmul.f32 %v282, %v289
  %v295 = vadd.f32 %v266, %v291
  %v296 = vadd.f32 %v267, %v292
  %v297 = vadd.f32 %v268, %v293
  %v298 = vadd.f32 %v269, %v294
  %s299 = scalar_lea.vmem %s0, 160
  %v300 = vld [vmem:[%s299] sm:$0xf]
  %v301 = vld [vmem:[%s299 + $0x4] sm:$0xf]
  %v302 = vld [vmem:[%s299 + $0x8] sm:$0xf]
  %v303 = vld [vmem:[%s299 + $0xc] sm:$0xf]
  %v304 = vunpack.c.l.bf16 %v300
  %v305 = vunpack.c.l.bf16 %v301
  %v306 = vunpack.c.l.bf16 %v302
  %v307 = vunpack.c.l.bf16 %v303
  %v308 = vmax.f32 %v304, 0.0
  %v309 = vmax.f32 %v305, 0.0
  %v310 = vmax.f32 %v306, 0.0
  %v311 = vmax.f32 %v307, 0.0
  %s312 = scalar_lea.vmem %s1, 10
  %v313 = vld [vmem:[%s312] sm:$0x1]
  %v315 = vlaneseq
  %v316 = vshrl.u32 %v315, 7
  %v317 = vsub.s32 0, %v316
  %v318 = vrot.slane %v313, %v317
  %v320 = vmul.f32 %v308, %v318
  %v321 = vmul.f32 %v309, %v318
  %v322 = vmul.f32 %v310, %v318
  %v323 = vmul.f32 %v311, %v318
  %v324 = vadd.f32 %v295, %v320
  %v325 = vadd.f32 %v296, %v321
  %v326 = vadd.f32 %v297, %v322
  %v327 = vadd.f32 %v298, %v323
  %s328 = scalar_lea.vmem %s0, 176
  %v329 = vld [vmem:[%s328] sm:$0xf]
  %v330 = vld [vmem:[%s328 + $0x4] sm:$0xf]
  %v331 = vld [vmem:[%s328 + $0x8] sm:$0xf]
  %v332 = vld [vmem:[%s328 + $0xc] sm:$0xf]
  %v333 = vunpack.c.l.bf16 %v329
  %v334 = vunpack.c.l.bf16 %v330
  %v335 = vunpack.c.l.bf16 %v331
  %v336 = vunpack.c.l.bf16 %v332
  %v337 = vmax.f32 %v333, 0.0
  %v338 = vmax.f32 %v334, 0.0
  %v339 = vmax.f32 %v335, 0.0
  %v340 = vmax.f32 %v336, 0.0
  %s341 = scalar_lea.vmem %s1, 11
  %v342 = vld [vmem:[%s341] sm:$0x1]
  %v344 = vlaneseq
  %v345 = vshrl.u32 %v344, 7
  %v346 = vsub.s32 0, %v345
  %v347 = vrot.slane %v342, %v346
  %v349 = vmul.f32 %v337, %v347
  %v350 = vmul.f32 %v338, %v347
  %v351 = vmul.f32 %v339, %v347
  %v352 = vmul.f32 %v340, %v347
  %v353 = vadd.f32 %v324, %v349
  %v354 = vadd.f32 %v325, %v350
  %v355 = vadd.f32 %v326, %v351
  %v356 = vadd.f32 %v327, %v352
  %s357 = scalar_lea.vmem %s0, 192
  %v358 = vld [vmem:[%s357] sm:$0xf]
  %v359 = vld [vmem:[%s357 + $0x4] sm:$0xf]
  %v360 = vld [vmem:[%s357 + $0x8] sm:$0xf]
  %v361 = vld [vmem:[%s357 + $0xc] sm:$0xf]
  %v362 = vunpack.c.l.bf16 %v358
  %v363 = vunpack.c.l.bf16 %v359
  %v364 = vunpack.c.l.bf16 %v360
  %v365 = vunpack.c.l.bf16 %v361
  %v366 = vmax.f32 %v362, 0.0
  %v367 = vmax.f32 %v363, 0.0
  %v368 = vmax.f32 %v364, 0.0
  %v369 = vmax.f32 %v365, 0.0
  %s370 = scalar_lea.vmem %s1, 12
  %v371 = vld [vmem:[%s370] sm:$0x1]
  %v373 = vlaneseq
  %v374 = vshrl.u32 %v373, 7
  %v375 = vsub.s32 0, %v374
  %v376 = vrot.slane %v371, %v375
  %v378 = vmul.f32 %v366, %v376
  %v379 = vmul.f32 %v367, %v376
  %v380 = vmul.f32 %v368, %v376
  %v381 = vmul.f32 %v369, %v376
  %v382 = vadd.f32 %v353, %v378
  %v383 = vadd.f32 %v354, %v379
  %v384 = vadd.f32 %v355, %v380
  %v385 = vadd.f32 %v356, %v381
  %s386 = scalar_lea.vmem %s0, 208
  %v387 = vld [vmem:[%s386] sm:$0xf]
  %v388 = vld [vmem:[%s386 + $0x4] sm:$0xf]
  %v389 = vld [vmem:[%s386 + $0x8] sm:$0xf]
  %v390 = vld [vmem:[%s386 + $0xc] sm:$0xf]
  %v391 = vunpack.c.l.bf16 %v387
  %v392 = vunpack.c.l.bf16 %v388
  %v393 = vunpack.c.l.bf16 %v389
  %v394 = vunpack.c.l.bf16 %v390
  %v395 = vmax.f32 %v391, 0.0
  %v396 = vmax.f32 %v392, 0.0
  %v397 = vmax.f32 %v393, 0.0
  %v398 = vmax.f32 %v394, 0.0
  %s399 = scalar_lea.vmem %s1, 13
  %v400 = vld [vmem:[%s399] sm:$0x1]
  %v402 = vlaneseq
  %v403 = vshrl.u32 %v402, 7
  %v404 = vsub.s32 0, %v403
  %v405 = vrot.slane %v400, %v404
  %v407 = vmul.f32 %v395, %v405
  %v408 = vmul.f32 %v396, %v405
  %v409 = vmul.f32 %v397, %v405
  %v410 = vmul.f32 %v398, %v405
  %v411 = vadd.f32 %v382, %v407
  %v412 = vadd.f32 %v383, %v408
  %v413 = vadd.f32 %v384, %v409
  %v414 = vadd.f32 %v385, %v410
  %s415 = scalar_lea.vmem %s0, 224
  %v416 = vld [vmem:[%s415] sm:$0xf]
  %v417 = vld [vmem:[%s415 + $0x4] sm:$0xf]
  %v418 = vld [vmem:[%s415 + $0x8] sm:$0xf]
  %v419 = vld [vmem:[%s415 + $0xc] sm:$0xf]
  %v420 = vunpack.c.l.bf16 %v416
  %v421 = vunpack.c.l.bf16 %v417
  %v422 = vunpack.c.l.bf16 %v418
  %v423 = vunpack.c.l.bf16 %v419
  %v424 = vmax.f32 %v420, 0.0
  %v425 = vmax.f32 %v421, 0.0
  %v426 = vmax.f32 %v422, 0.0
  %v427 = vmax.f32 %v423, 0.0
  %s428 = scalar_lea.vmem %s1, 14
  %v429 = vld [vmem:[%s428] sm:$0x1]
  %v431 = vlaneseq
  %v432 = vshrl.u32 %v431, 7
  %v433 = vsub.s32 0, %v432
  %v434 = vrot.slane %v429, %v433
  %v436 = vmul.f32 %v424, %v434
  %v437 = vmul.f32 %v425, %v434
  %v438 = vmul.f32 %v426, %v434
  %v439 = vmul.f32 %v427, %v434
  %v440 = vadd.f32 %v411, %v436
  %v441 = vadd.f32 %v412, %v437
  %v442 = vadd.f32 %v413, %v438
  %v443 = vadd.f32 %v414, %v439
  %s444 = scalar_lea.vmem %s0, 240
  %v445 = vld [vmem:[%s444] sm:$0xf]
  %v446 = vld [vmem:[%s444 + $0x4] sm:$0xf]
  %v447 = vld [vmem:[%s444 + $0x8] sm:$0xf]
  %v448 = vld [vmem:[%s444 + $0xc] sm:$0xf]
  %v449 = vunpack.c.l.bf16 %v445
  %v450 = vunpack.c.l.bf16 %v446
  %v451 = vunpack.c.l.bf16 %v447
  %v452 = vunpack.c.l.bf16 %v448
  %v453 = vmax.f32 %v449, 0.0
  %v454 = vmax.f32 %v450, 0.0
  %v455 = vmax.f32 %v451, 0.0
  %v456 = vmax.f32 %v452, 0.0
  %s457 = scalar_lea.vmem %s1, 15
  %v458 = vld [vmem:[%s457] sm:$0x1]
  %v460 = vlaneseq
  %v461 = vshrl.u32 %v460, 7
  %v462 = vsub.s32 0, %v461
  %v463 = vrot.slane %v458, %v462
  %v465 = vmul.f32 %v453, %v463
  %v466 = vmul.f32 %v454, %v463
  %v467 = vmul.f32 %v455, %v463
  %v468 = vmul.f32 %v456, %v463
  %v469 = vadd.f32 %v440, %v465
  %v470 = vadd.f32 %v441, %v466
  %v471 = vadd.f32 %v442, %v467
  %v472 = vadd.f32 %v443, %v468
  %s473 = scalar_lea.vmem %s0, 256
  %v474 = vld [vmem:[%s473] sm:$0xf]
  %v475 = vld [vmem:[%s473 + $0x4] sm:$0xf]
  %v476 = vld [vmem:[%s473 + $0x8] sm:$0xf]
  %v477 = vld [vmem:[%s473 + $0xc] sm:$0xf]
  %v478 = vunpack.c.l.bf16 %v474
  %v479 = vunpack.c.l.bf16 %v475
  %v480 = vunpack.c.l.bf16 %v476
  %v481 = vunpack.c.l.bf16 %v477
  %v482 = vmax.f32 %v478, 0.0
  %v483 = vmax.f32 %v479, 0.0
  %v484 = vmax.f32 %v480, 0.0
  %v485 = vmax.f32 %v481, 0.0
  %s486 = scalar_lea.vmem %s1, 16
  %v487 = vld [vmem:[%s486] sm:$0x1]
  %v489 = vlaneseq
  %v490 = vshrl.u32 %v489, 7
  %v491 = vsub.s32 0, %v490
  %v492 = vrot.slane %v487, %v491
  %v494 = vmul.f32 %v482, %v492
  %v495 = vmul.f32 %v483, %v492
  %v496 = vmul.f32 %v484, %v492
  %v497 = vmul.f32 %v485, %v492
  %v498 = vadd.f32 %v469, %v494
  %v499 = vadd.f32 %v470, %v495
  %v500 = vadd.f32 %v471, %v496
  %v501 = vadd.f32 %v472, %v497
  %s502 = scalar_lea.vmem %s0, 272
  %v503 = vld [vmem:[%s502] sm:$0xf]
  %v504 = vld [vmem:[%s502 + $0x4] sm:$0xf]
  %v505 = vld [vmem:[%s502 + $0x8] sm:$0xf]
  %v506 = vld [vmem:[%s502 + $0xc] sm:$0xf]
  %v507 = vunpack.c.l.bf16 %v503
  %v508 = vunpack.c.l.bf16 %v504
  %v509 = vunpack.c.l.bf16 %v505
  %v510 = vunpack.c.l.bf16 %v506
  %v511 = vmax.f32 %v507, 0.0
  %v512 = vmax.f32 %v508, 0.0
  %v513 = vmax.f32 %v509, 0.0
  %v514 = vmax.f32 %v510, 0.0
  %s515 = scalar_lea.vmem %s1, 17
  %v516 = vld [vmem:[%s515] sm:$0x1]
  %v518 = vlaneseq
  %v519 = vshrl.u32 %v518, 7
  %v520 = vsub.s32 0, %v519
  %v521 = vrot.slane %v516, %v520
  %v523 = vmul.f32 %v511, %v521
  %v524 = vmul.f32 %v512, %v521
  %v525 = vmul.f32 %v513, %v521
  %v526 = vmul.f32 %v514, %v521
  %v527 = vadd.f32 %v498, %v523
  %v528 = vadd.f32 %v499, %v524
  %v529 = vadd.f32 %v500, %v525
  %v530 = vadd.f32 %v501, %v526
  %s531 = scalar_lea.vmem %s0, 288
  %v532 = vld [vmem:[%s531] sm:$0xf]
  %v533 = vld [vmem:[%s531 + $0x4] sm:$0xf]
  %v534 = vld [vmem:[%s531 + $0x8] sm:$0xf]
  %v535 = vld [vmem:[%s531 + $0xc] sm:$0xf]
  %v536 = vunpack.c.l.bf16 %v532
  %v537 = vunpack.c.l.bf16 %v533
  %v538 = vunpack.c.l.bf16 %v534
  %v539 = vunpack.c.l.bf16 %v535
  %v540 = vmax.f32 %v536, 0.0
  %v541 = vmax.f32 %v537, 0.0
  %v542 = vmax.f32 %v538, 0.0
  %v543 = vmax.f32 %v539, 0.0
  %s544 = scalar_lea.vmem %s1, 18
  %v545 = vld [vmem:[%s544] sm:$0x1]
  %v547 = vlaneseq
  %v548 = vshrl.u32 %v547, 7
  %v549 = vsub.s32 0, %v548
  %v550 = vrot.slane %v545, %v549
  %v552 = vmul.f32 %v540, %v550
  %v553 = vmul.f32 %v541, %v550
  %v554 = vmul.f32 %v542, %v550
  %v555 = vmul.f32 %v543, %v550
  %v556 = vadd.f32 %v527, %v552
  %v557 = vadd.f32 %v528, %v553
  %v558 = vadd.f32 %v529, %v554
  %v559 = vadd.f32 %v530, %v555
  %s560 = scalar_lea.vmem %s0, 304
  %v561 = vld [vmem:[%s560] sm:$0xf]
  %v562 = vld [vmem:[%s560 + $0x4] sm:$0xf]
  %v563 = vld [vmem:[%s560 + $0x8] sm:$0xf]
  %v564 = vld [vmem:[%s560 + $0xc] sm:$0xf]
  %v565 = vunpack.c.l.bf16 %v561
  %v566 = vunpack.c.l.bf16 %v562
  %v567 = vunpack.c.l.bf16 %v563
  %v568 = vunpack.c.l.bf16 %v564
  %v569 = vmax.f32 %v565, 0.0
  %v570 = vmax.f32 %v566, 0.0
  %v571 = vmax.f32 %v567, 0.0
  %v572 = vmax.f32 %v568, 0.0
  %s573 = scalar_lea.vmem %s1, 19
  %v574 = vld [vmem:[%s573] sm:$0x1]
  %v576 = vlaneseq
  %v577 = vshrl.u32 %v576, 7
  %v578 = vsub.s32 0, %v577
  %v579 = vrot.slane %v574, %v578
  %v581 = vmul.f32 %v569, %v579
  %v582 = vmul.f32 %v570, %v579
  %v583 = vmul.f32 %v571, %v579
  %v584 = vmul.f32 %v572, %v579
  %v585 = vadd.f32 %v556, %v581
  %v586 = vadd.f32 %v557, %v582
  %v587 = vadd.f32 %v558, %v583
  %v588 = vadd.f32 %v559, %v584
  %s589 = scalar_lea.vmem %s0, 320
  %v590 = vld [vmem:[%s589] sm:$0xf]
  %v591 = vld [vmem:[%s589 + $0x4] sm:$0xf]
  %v592 = vld [vmem:[%s589 + $0x8] sm:$0xf]
  %v593 = vld [vmem:[%s589 + $0xc] sm:$0xf]
  %v594 = vunpack.c.l.bf16 %v590
  %v595 = vunpack.c.l.bf16 %v591
  %v596 = vunpack.c.l.bf16 %v592
  %v597 = vunpack.c.l.bf16 %v593
  %v598 = vmax.f32 %v594, 0.0
  %v599 = vmax.f32 %v595, 0.0
  %v600 = vmax.f32 %v596, 0.0
  %v601 = vmax.f32 %v597, 0.0
  %s602 = scalar_lea.vmem %s1, 20
  %v603 = vld [vmem:[%s602] sm:$0x1]
  %v605 = vlaneseq
  %v606 = vshrl.u32 %v605, 7
  %v607 = vsub.s32 0, %v606
  %v608 = vrot.slane %v603, %v607
  %v610 = vmul.f32 %v598, %v608
  %v611 = vmul.f32 %v599, %v608
  %v612 = vmul.f32 %v600, %v608
  %v613 = vmul.f32 %v601, %v608
  %v614 = vadd.f32 %v585, %v610
  %v615 = vadd.f32 %v586, %v611
  %v616 = vadd.f32 %v587, %v612
  %v617 = vadd.f32 %v588, %v613
  %s618 = scalar_lea.vmem %s0, 336
  %v619 = vld [vmem:[%s618] sm:$0xf]
  %v620 = vld [vmem:[%s618 + $0x4] sm:$0xf]
  %v621 = vld [vmem:[%s618 + $0x8] sm:$0xf]
  %v622 = vld [vmem:[%s618 + $0xc] sm:$0xf]
  %v623 = vunpack.c.l.bf16 %v619
  %v624 = vunpack.c.l.bf16 %v620
  %v625 = vunpack.c.l.bf16 %v621
  %v626 = vunpack.c.l.bf16 %v622
  %v627 = vmax.f32 %v623, 0.0
  %v628 = vmax.f32 %v624, 0.0
  %v629 = vmax.f32 %v625, 0.0
  %v630 = vmax.f32 %v626, 0.0
  %s631 = scalar_lea.vmem %s1, 21
  %v632 = vld [vmem:[%s631] sm:$0x1]
  %v634 = vlaneseq
  %v635 = vshrl.u32 %v634, 7
  %v636 = vsub.s32 0, %v635
  %v637 = vrot.slane %v632, %v636
  %v639 = vmul.f32 %v627, %v637
  %v640 = vmul.f32 %v628, %v637
  %v641 = vmul.f32 %v629, %v637
  %v642 = vmul.f32 %v630, %v637
  %v643 = vadd.f32 %v614, %v639
  %v644 = vadd.f32 %v615, %v640
  %v645 = vadd.f32 %v616, %v641
  %v646 = vadd.f32 %v617, %v642
  %s647 = scalar_lea.vmem %s0, 352
  %v648 = vld [vmem:[%s647] sm:$0xf]
  %v649 = vld [vmem:[%s647 + $0x4] sm:$0xf]
  %v650 = vld [vmem:[%s647 + $0x8] sm:$0xf]
  %v651 = vld [vmem:[%s647 + $0xc] sm:$0xf]
  %v652 = vunpack.c.l.bf16 %v648
  %v653 = vunpack.c.l.bf16 %v649
  %v654 = vunpack.c.l.bf16 %v650
  %v655 = vunpack.c.l.bf16 %v651
  %v656 = vmax.f32 %v652, 0.0
  %v657 = vmax.f32 %v653, 0.0
  %v658 = vmax.f32 %v654, 0.0
  %v659 = vmax.f32 %v655, 0.0
  %s660 = scalar_lea.vmem %s1, 22
  %v661 = vld [vmem:[%s660] sm:$0x1]
  %v663 = vlaneseq
  %v664 = vshrl.u32 %v663, 7
  %v665 = vsub.s32 0, %v664
  %v666 = vrot.slane %v661, %v665
  %v668 = vmul.f32 %v656, %v666
  %v669 = vmul.f32 %v657, %v666
  %v670 = vmul.f32 %v658, %v666
  %v671 = vmul.f32 %v659, %v666
  %v672 = vadd.f32 %v643, %v668
  %v673 = vadd.f32 %v644, %v669
  %v674 = vadd.f32 %v645, %v670
  %v675 = vadd.f32 %v646, %v671
  %s676 = scalar_lea.vmem %s0, 368
  %v677 = vld [vmem:[%s676] sm:$0xf]
  %v678 = vld [vmem:[%s676 + $0x4] sm:$0xf]
  %v679 = vld [vmem:[%s676 + $0x8] sm:$0xf]
  %v680 = vld [vmem:[%s676 + $0xc] sm:$0xf]
  %v681 = vunpack.c.l.bf16 %v677
  %v682 = vunpack.c.l.bf16 %v678
  %v683 = vunpack.c.l.bf16 %v679
  %v684 = vunpack.c.l.bf16 %v680
  %v685 = vmax.f32 %v681, 0.0
  %v686 = vmax.f32 %v682, 0.0
  %v687 = vmax.f32 %v683, 0.0
  %v688 = vmax.f32 %v684, 0.0
  %s689 = scalar_lea.vmem %s1, 23
  %v690 = vld [vmem:[%s689] sm:$0x1]
  %v692 = vlaneseq
  %v693 = vshrl.u32 %v692, 7
  %v694 = vsub.s32 0, %v693
  %v695 = vrot.slane %v690, %v694
  %v697 = vmul.f32 %v685, %v695
  %v698 = vmul.f32 %v686, %v695
  %v699 = vmul.f32 %v687, %v695
  %v700 = vmul.f32 %v688, %v695
  %v701 = vadd.f32 %v672, %v697
  %v702 = vadd.f32 %v673, %v698
  %v703 = vadd.f32 %v674, %v699
  %v704 = vadd.f32 %v675, %v700
  %s705 = scalar_lea.vmem %s0, 384
  %v706 = vld [vmem:[%s705] sm:$0xf]
  %v707 = vld [vmem:[%s705 + $0x4] sm:$0xf]
  %v708 = vld [vmem:[%s705 + $0x8] sm:$0xf]
  %v709 = vld [vmem:[%s705 + $0xc] sm:$0xf]
  %v710 = vunpack.c.l.bf16 %v706
  %v711 = vunpack.c.l.bf16 %v707
  %v712 = vunpack.c.l.bf16 %v708
  %v713 = vunpack.c.l.bf16 %v709
  %v714 = vmax.f32 %v710, 0.0
  %v715 = vmax.f32 %v711, 0.0
  %v716 = vmax.f32 %v712, 0.0
  %v717 = vmax.f32 %v713, 0.0
  %s718 = scalar_lea.vmem %s1, 24
  %v719 = vld [vmem:[%s718] sm:$0x1]
  %v721 = vlaneseq
  %v722 = vshrl.u32 %v721, 7
  %v723 = vsub.s32 0, %v722
  %v724 = vrot.slane %v719, %v723
  %v726 = vmul.f32 %v714, %v724
  %v727 = vmul.f32 %v715, %v724
  %v728 = vmul.f32 %v716, %v724
  %v729 = vmul.f32 %v717, %v724
  %v730 = vadd.f32 %v701, %v726
  %v731 = vadd.f32 %v702, %v727
  %v732 = vadd.f32 %v703, %v728
  %v733 = vadd.f32 %v704, %v729
  %734 = vst [vmem:[%s2] sm:$0xff] %v730
  %735 = vst [vmem:[%s2 + $0x8] sm:$0xff] %v731
  %736 = vst [vmem:[%s2 + $0x10] sm:$0xff] %v732
  %737 = vst [vmem:[%s2 + $0x18] sm:$0xff] %v733
  // Predicated region
  $region10: #{pdarts_cnn_forward.254} parent=0 // pred_check
    _
  $region11: #{pdarts_cnn_forward.254} parent=0 // pred_check_branch
    %739 = sbr.rel (0) target = $region13
  $region12: #{pdarts_cnn_forward.254} parent=0 // pred_region
    _
  $region13: #{pdarts_cnn_forward.254} parent=0 // pred_fallthru
    _
  // Predicated region
  $region14: #{pdarts_cnn_forward.254} parent=0 // pred_check
    _
  $region15: #{pdarts_cnn_forward.254} parent=0 // pred_check_branch
    %741 = sbr.rel (0) target = $region17
  $region16: #{pdarts_cnn_forward.254} parent=0 // pred_region
    _
  $region17: #{pdarts_cnn_forward.254} parent=0 // pred_fallthru
    _

// kernel: pdarts_cnn_forward.231
$region0: #{pdarts_cnn_forward.231}
  #allocation0 [shape = 'u32[]', space=smem, size = 0x4, offset = 0x4, fixed_abs, tag = 'smem constant byte address 0x4 - core index']
  #allocation1 [shape = 'u32[144,128]{1,0:T(1,128)}', space=vmem, size = 0x12000, scoped, tag = 'internal scratch']
  %s0 = inlined_call_operand.vmem [shape: bf16[512,8], index: 0, kind: input, shape index: {}]
  %s1 = inlined_call_operand.vmem [shape: bf16[8,8], index: 1, kind: input, shape index: {}]
  %s2 = inlined_call_operand.vmem [shape: f32[512,8], index: 2, kind: output, shape index: {}]
  %s3 = sld [smem:[#allocation0]]
  $region41: #{pdarts_cnn_forward.231} parent=0
    _
  %s5 = ssub.s32 1, %s3
  %s6 = scalar_select 0, %s5, %s3
  loop: start=0, step=1, limit=4
  $region2: #{pdarts_cnn_forward.231} parent=0 // loop_pre_header
    _
  $region3: #{pdarts_cnn_forward.231} parent=0 // loop_header
    %s8 = sphi 0, %s12
    %p9 = scmp.ge.s32.totalorder %s8, 4
    %s15 = sphi 0, %s34
    %s16 = sphi 0, %s30
    %s17 = sphi 0, %s26
    %s18 = sphi 0, %s15
    %s19 = sphi 0, %s16
    %s20 = sphi 0, %s17
    %s21 = sphi 0, %s18
    %s22 = sphi 0, %s19
    %s23 = sphi 0, %s20
    %s39 = sphi 0, %s41
    %s42 = sphi 0, %s39
    %s43 = sphi 0, %s42
    %s59 = sphi 0, %s43
    %s67 = sphi 0, %s69
    %s70 = sphi 0, %s67
    %s71 = sphi 0, %s70
    %s87 = sphi 0, %s71
    %s95 = sphi 0, %s97
    %s98 = sphi 0, %s95
    %s99 = sphi 0, %s98
    %s115 = sphi 0, %s99
  $region4: #{pdarts_cnn_forward.231} parent=0 // loop_header_branch
    %11 = sbr.rel (%p9) target = $region8
  $region5: #{pdarts_cnn_forward.231} parent=0 // loop_body
    %s13 = ssub.s32 %s8, 1
    %s14 = ssub.s32 %s8, 2
    %s24 = sadd.s32 1, %s17
    %p25 = scmp.ge.s32.totalorder %s24, 1
    %s26 = scalar_select %p25, 0, %s24
    %s27 = sadd.s32 1, %s16
    %s28 = scalar_select %p25, %s27, %s16
    %p29 = scmp.ge.s32.totalorder %s28, 1
    %s30 = scalar_select %p29, 0, %s28
    %s31 = sadd.s32 1, %s15
    %s32 = scalar_select %p29, %s31, %s15
    %p33 = scmp.ge.s32.totalorder %s32, 2
    %s34 = scalar_select %p33, 0, %s32
    %s35 = ssub.s32 %s15, %s34
    %s36 = ssub.s32 %s17, %s26
    %s37 = sor.u32 %s35, %s36
    %p38 = scmp.eq.s32.totalorder %s37, 0
    %s40 = sadd.s32 %s39, 1
    %s41 = scalar_select %p38, %s39, %s40
    %p44 = pneg %p38
    %p45 = scmp.eq.s32.totalorder %s8, 1
    %p46 = por %p44, %p45
    %p47 = scmp.ne.s32.totalorder %s39, %s42
    %p48 = scmp.eq.s32.totalorder %s8, 0
    %p49 = por %p47, %p48
    %p50 = scmp.ne.s32.totalorder %s39, %s42
    %p51 = scmp.eq.s32.totalorder %s13, 1
    %p52 = por %p50, %p51
    %p53 = scmp.ne.s32.totalorder %s42, %s43
    %p54 = scmp.eq.s32.totalorder %s13, 0
    %p55 = por %p53, %p54
    %p56 = scmp.ne.s32.totalorder %s42, %s43
    %p57 = scmp.eq.s32.totalorder %s14, 1
    %p58 = por %p56, %p57
    %p60 = scmp.ne.s32.totalorder %s43, %s59
    %p61 = scmp.eq.s32.totalorder %s14, 0
    %p62 = por %p60, %p61
    %s63 = ssub.s32 %s17, %s26
    %s64 = ssub.s32 %s16, %s30
    %s65 = sor.u32 %s63, %s64
    %p66 = scmp.eq.s32.totalorder %s65, 0
    %s68 = sadd.s32 %s67, 1
    %s69 = scalar_select %p66, %s67, %s68
    %p72 = pneg %p66
    %p73 = scmp.eq.s32.totalorder %s8, 1
    %p74 = por %p72, %p73
    %p75 = scmp.ne.s32.totalorder %s67, %s70
    %p76 = scmp.eq.s32.totalorder %s8, 0
    %p77 = por %p75, %p76
    %p78 = scmp.ne.s32.totalorder %s67, %s70
    %p79 = scmp.eq.s32.totalorder %s13, 1
    %p80 = por %p78, %p79
    %p81 = scmp.ne.s32.totalorder %s70, %s71
    %p82 = scmp.eq.s32.totalorder %s13, 0
    %p83 = por %p81, %p82
    %p84 = scmp.ne.s32.totalorder %s70, %s71
    %p85 = scmp.eq.s32.totalorder %s14, 1
    %p86 = por %p84, %p85
    %p88 = scmp.ne.s32.totalorder %s71, %s87
    %p89 = scmp.eq.s32.totalorder %s14, 0
    %p90 = por %p88, %p89
    %s91 = ssub.s32 %s15, %s34
    %s92 = ssub.s32 %s16, %s30
    %s93 = sor.u32 %s91, %s92
    %p94 = scmp.eq.s32.totalorder %s93, 0
    %s96 = sadd.s32 %s95, 1
    %s97 = scalar_select %p94, %s95, %s96
    %p100 = pneg %p94
    %p101 = scmp.eq.s32.totalorder %s8, 1
    %p102 = por %p100, %p101
    %p103 = scmp.ne.s32.totalorder %s95, %s98
    %p104 = scmp.eq.s32.totalorder %s8, 0
    %p105 = por %p103, %p104
    %p106 = scmp.ne.s32.totalorder %s95, %s98
    %p107 = scmp.eq.s32.totalorder %s13, 1
    %p108 = por %p106, %p107
    %p109 = scmp.ne.s32.totalorder %s98, %s99
    %p110 = scmp.eq.s32.totalorder %s13, 0
    %p111 = por %p109, %p110
    %p112 = scmp.ne.s32.totalorder %s98, %s99
    %p113 = scmp.eq.s32.totalorder %s14, 1
    %p114 = por %p112, %p113
    %p116 = scmp.ne.s32.totalorder %s99, %s115
    %p117 = scmp.eq.s32.totalorder %s14, 0
    %p118 = por %p116, %p117
    %p119 = scmp.le.s32.totalorder 1, %s8
    %p120 = scmp.lt.s32.totalorder %s8, 3
    %p121 = pnand %p119, %p120
    %p122 = pneg %p121
    // Predicated region
    $region9: #{pdarts_cnn_forward.231} parent=5 // pred_check
      _
    $region10: #{pdarts_cnn_forward.231} parent=5 // pred_check_branch
      %124 = sbr.rel (%p121) target = $region12
    $region11: #{pdarts_cnn_forward.231} parent=5 // pred_region
      %s125 = ssub.s32 %s8, 1
      // Predicated region
      $region13: #{pdarts_cnn_forward.231} parent=11 // pred_check
        %p126 = pneg %p83
      $region14: #{pdarts_cnn_forward.231} parent=11 // pred_check_branch
        %128 = sbr.rel (%p126) target = $region16
      $region15: #{pdarts_cnn_forward.231} parent=11 // pred_region
        %p129 = scmp.lt.s32.totalorder %s20, 0
        %s130 = scalar_select %p129, %s20, 0
        %p131 = scmp.lt.s32.totalorder %s19, 0
        %s132 = scalar_select %p131, %s19, 0
        %s133 = sadd.s32 %s132, %s130
        %s134 = smul.addr %s133, 4
        %s135 = scalar_lea.vmem %s1, %s134
      $region16: #{pdarts_cnn_forward.231} parent=11 // pred_fallthru
        _
    $region12: #{pdarts_cnn_forward.231} parent=5 // pred_fallthru
      _
    %p136 = scmp.lt.s32.totalorder %s8, 2
    // Predicated region
    $region17: #{pdarts_cnn_forward.231} parent=5 // pred_check
      %p137 = pneg %p136
    $region18: #{pdarts_cnn_forward.231} parent=5 // pred_check_branch
      %139 = sbr.rel (%p137) target = $region20
    $region19: #{pdarts_cnn_forward.231} parent=5 // pred_region
      // Predicated region
      $region21: #{pdarts_cnn_forward.231} parent=19 // pred_check
        %p140 = pneg %p49
      $region22: #{pdarts_cnn_forward.231} parent=19 // pred_check_branch
        %142 = sbr.rel (%p140) target = $region24
      $region23: #{pdarts_cnn_forward.231} parent=19 // pred_region
        %s143 = smul.u32 32, %s15
        %p144 = scmp.lt.s32.totalorder %s143, 63
        %s145 = scalar_select %p144, %s143, 63
        %p146 = scmp.lt.s32.totalorder %s17, 0
        %s147 = scalar_select %p146, %s17, 0
        %s148 = sadd.s32 %s147, %s145
        %s149 = smul.addr %s148, 4
        %s150 = scalar_lea.vmem %s0, %s149
        %s151 = smul.u32 32, %s15
      $region24: #{pdarts_cnn_forward.231} parent=19 // pred_fallthru
        _
    $region20: #{pdarts_cnn_forward.231} parent=5 // pred_fallthru
      _
    %p152 = scmp.le.s32.totalorder 1, %s8
    %p153 = scmp.lt.s32.totalorder %s8, 3
    %p154 = pnand %p152, %p153
    %p155 = pneg %p154
    // Predicated region
    $region25: #{pdarts_cnn_forward.231} parent=5 // pred_check
      _
    $region26: #{pdarts_cnn_forward.231} parent=5 // pred_check_branch
      %157 = sbr.rel (%p154) target = $region28
    $region27: #{pdarts_cnn_forward.231} parent=5 // pred_region
      %s158 = ssub.s32 %s8, 1
      %s159 = smul.u32 32, %s18
      %p160 = scmp.lt.s32.totalorder %s159, 63
      %s161 = scalar_select %p160, %s159, 63
      %p162 = scmp.lt.s32.totalorder %s20, 0
      %s163 = scalar_select %p162, %s20, 0
      %s164 = sadd.s32 %s163, %s161
      %s165 = smul.addr %s164, 4
      %s166 = scalar_lea.vmem %s0, %s165
      %p167 = pneg %p55
      %p168 = pneg %p52
      %p169 = scmp.lt.s32.totalorder %s20, 0
      %s170 = scalar_select %p169, %s20, 0
      %p171 = scmp.lt.s32.totalorder %s19, 0
      %s172 = scalar_select %p171, %s19, 0
      %s173 = sadd.s32 %s172, %s170
      %s174 = smul.addr %s173, 4
      %s175 = scalar_lea.vmem %s1, %s174
      %p176 = pneg %p83
      %p177 = pneg %p80
      %p178 = pneg %p111
      %p179 = pneg %p108
      %s180 = smul.u32 32, %s18
      %p181 = scmp.lt.s32.totalorder %s180, 63
      %s182 = scalar_select %p181, %s180, 63
      %p183 = scmp.lt.s32.totalorder %s19, 0
      %s184 = scalar_select %p183, %s19, 0
      %s185 = sadd.s32 %s184, %s182
      %s186 = smul.addr %s185, 8
      %s187 = scalar_lea.vmem %s2, %s186
      %s188 = smul.u32 32, %s18
      %p189 = scmp.lt.s32.totalorder %s188, 63
      %s190 = scalar_select %p189, %s188, 63
      %p191 = scmp.lt.s32.totalorder %s20, 0
      %s192 = scalar_select %p191, %s20, 0
      %s193 = sadd.s32 %s192, %s190
      %s194 = smul.addr %s193, 4
      %s195 = scalar_lea.vmem %s0, %s194
      %s196 = smul.u32 32, %s18
      %p197 = scmp.lt.s32.totalorder %s20, 0
      %s198 = scalar_select %p197, %s20, 0
      %p199 = scmp.lt.s32.totalorder %s19, 0
      %s200 = scalar_select %p199, %s19, 0
      %s201 = sadd.s32 %s200, %s198
      %s202 = smul.addr %s201, 4
      %s203 = scalar_lea.vmem %s1, %s202
      %s204 = smul.u32 32, %s18
      %p205 = scmp.lt.s32.totalorder %s204, 63
      %s206 = scalar_select %p205, %s204, 63
      %p207 = scmp.lt.s32.totalorder %s19, 0
      %s208 = scalar_select %p207, %s19, 0
      %s209 = sadd.s32 %s208, %s206
      %s210 = smul.addr %s209, 8
      %s211 = scalar_lea.vmem %s2, %s210
      %s212 = smul.u32 32, %s18
      %v214 = vld [vmem:[%s195] sm:$0xf]
      %v215 = vld [vmem:[%s195 + $0x4] sm:$0xf]
      %v216 = vld [vmem:[%s195 + $0x8] sm:$0xf]
      %v217 = vld [vmem:[%s195 + $0xc] sm:$0xf]
      %v218 = vld [vmem:[%s195 + $0x10] sm:$0xf]
      %v219 = vld [vmem:[%s195 + $0x14] sm:$0xf]
      %v220 = vld [vmem:[%s195 + $0x18] sm:$0xf]
      %v221 = vld [vmem:[%s195 + $0x1c] sm:$0xf]
      %v222 = vld [vmem:[%s195 + $0x20] sm:$0xf]
      %v223 = vld [vmem:[%s195 + $0x24] sm:$0xf]
      %v224 = vld [vmem:[%s195 + $0x28] sm:$0xf]
      %v225 = vld [vmem:[%s195 + $0x2c] sm:$0xf]
      %v226 = vld [vmem:[%s195 + $0x30] sm:$0xf]
      %v227 = vld [vmem:[%s195 + $0x34] sm:$0xf]
      %v228 = vld [vmem:[%s195 + $0x38] sm:$0xf]
      %v229 = vld [vmem:[%s195 + $0x3c] sm:$0xf]
      %v230 = vld [vmem:[%s195 + $0x40] sm:$0xf]
      %v231 = vld [vmem:[%s195 + $0x44] sm:$0xf]
      %v232 = vld [vmem:[%s195 + $0x48] sm:$0xf]
      %v233 = vld [vmem:[%s195 + $0x4c] sm:$0xf]
      %v234 = vld [vmem:[%s195 + $0x50] sm:$0xf]
      %v235 = vld [vmem:[%s195 + $0x54] sm:$0xf]
      %v236 = vld [vmem:[%s195 + $0x58] sm:$0xf]
      %v237 = vld [vmem:[%s195 + $0x5c] sm:$0xf]
      %v238 = vld [vmem:[%s195 + $0x60] sm:$0xf]
      %v239 = vld [vmem:[%s195 + $0x64] sm:$0xf]
      %v240 = vld [vmem:[%s195 + $0x68] sm:$0xf]
      %v241 = vld [vmem:[%s195 + $0x6c] sm:$0xf]
      %v242 = vld [vmem:[%s195 + $0x70] sm:$0xf]
      %v243 = vld [vmem:[%s195 + $0x74] sm:$0xf]
      %v244 = vld [vmem:[%s195 + $0x78] sm:$0xf]
      %v245 = vld [vmem:[%s195 + $0x7c] sm:$0xf]
      %v246 = vld [vmem:[%s203] sm:$0xf]
      %v279 = vunpack.c.l.b16 %v214
      %v280 = vunpack.c.l.b16 %v215
      %v281 = vunpack.c.l.b16 %v216
      %v282 = vunpack.c.l.b16 %v217
      %v283 = vunpack.c.l.b16 %v218
      %v284 = vunpack.c.l.b16 %v219
      %v285 = vunpack.c.l.b16 %v220
      %v286 = vunpack.c.l.b16 %v221
      %v287 = vunpack.c.l.b16 %v222
      %v288 = vunpack.c.l.b16 %v223
      %v289 = vunpack.c.l.b16 %v224
      %v290 = vunpack.c.l.b16 %v225
      %v291 = vunpack.c.l.b16 %v226
      %v292 = vunpack.c.l.b16 %v227
      %v293 = vunpack.c.l.b16 %v228
      %v294 = vunpack.c.l.b16 %v229
      %v295 = vunpack.c.l.b16 %v230
      %v296 = vunpack.c.l.b16 %v231
      %v297 = vunpack.c.l.b16 %v232
      %v298 = vunpack.c.l.b16 %v233
      %v299 = vunpack.c.l.b16 %v234
      %v300 = vunpack.c.l.b16 %v235
      %v301 = vunpack.c.l.b16 %v236
      %v302 = vunpack.c.l.b16 %v237
      %v303 = vunpack.c.l.b16 %v238
      %v304 = vunpack.c.l.b16 %v239
      %v305 = vunpack.c.l.b16 %v240
      %v306 = vunpack.c.l.b16 %v241
      %v307 = vunpack.c.l.b16 %v242
      %v308 = vunpack.c.l.b16 %v243
      %v309 = vunpack.c.l.b16 %v244
      %v310 = vunpack.c.l.b16 %v245
      %v311 = vpack.c.b16 %v280, %v279
      %v312 = vpack.c.b16 %v282, %v281
      %v313 = vpack.c.b16 %v284, %v283
      %v314 = vpack.c.b16 %v286, %v285
      %v315 = vpack.c.b16 %v288, %v287
      %v316 = vpack.c.b16 %v290, %v289
      %v317 = vpack.c.b16 %v292, %v291
      %v318 = vpack.c.b16 %v294, %v293
      %v319 = vpack.c.b16 %v296, %v295
      %v320 = vpack.c.b16 %v298, %v297
      %v321 = vpack.c.b16 %v300, %v299
      %v322 = vpack.c.b16 %v302, %v301
      %v323 = vpack.c.b16 %v304, %v303
      %v324 = vpack.c.b16 %v306, %v305
      %v325 = vpack.c.b16 %v308, %v307
      %v326 = vpack.c.b16 %v310, %v309
      %vm327 = vcmask 64512
      %v329 = vsel %vm327, %v311, 0
      %v332 = vsel %vm327, %v312, 0
      %v335 = vsel %vm327, %v313, 0
      %v338 = vsel %vm327, %v314, 0
      %v341 = vsel %vm327, %v315, 0
      %v344 = vsel %vm327, %v316, 0
      %v347 = vsel %vm327, %v317, 0
      %v350 = vsel %vm327, %v318, 0
      %v353 = vsel %vm327, %v319, 0
      %v356 = vsel %vm327, %v320, 0
      %v359 = vsel %vm327, %v321, 0
      %v362 = vsel %vm327, %v322, 0
      %v365 = vsel %vm327, %v323, 0
      %v368 = vsel %vm327, %v324, 0
      %v371 = vsel %vm327, %v325, 0
      %v374 = vsel %vm327, %v326, 0
      %vm376 = vcmask 1043456
      %v378 = vsel %vm376, %v246, 0
      %380 = vmatprep.subr.bf16.mxu0 0
      %381 = vmatpush1.bf16.msra.mxu0 0
      %382 = vmatprep.subr.bf16.mxu0 0
      %383 = vmatpush1.bf16.msra.mxu0 0
      %384 = vmatprep.subr.bf16.mxu0 0
      %385 = vmatpush1.bf16.msra.mxu0 0
      %386 = vmatprep.subr.bf16.mxu0 0
      %387 = vmatpush1.bf16.msra.mxu0 0
      %388 = vmatprep.subr.bf16.mxu0 0
      %389 = vmatpush1.bf16.msra.mxu0 0
      %390 = vmatprep.subr.bf16.mxu0 0
      %391 = vmatpush1.bf16.msra.mxu0 0
      %392 = vmatprep.subr.bf16.mxu0 0
      %393 = vmatpush1.bf16.msra.mxu0 0
      %394 = vmatprep.subr.bf16.mxu0 0
      %395 = vmatpush1.bf16.msra.mxu0 %v378
      %396 = vmatprep.subr.bf16.mxu0 0
      %397 = vmatpush2.bf16.msra.mxu0 0
      %398 = vmatprep.subr.bf16.mxu0 0
      %399 = vmatpush2.bf16.msra.mxu0 0
      %400 = vmatprep.subr.bf16.mxu0 0
      %401 = vmatpush2.bf16.msra.mxu0 0
      %402 = vmatprep.subr.bf16.mxu0 0
      %403 = vmatpush2.bf16.msra.mxu0 0
      %404 = vmatprep.subr.bf16.mxu0 0
      %405 = vmatpush2.bf16.msra.mxu0 0
      %406 = vmatprep.subr.bf16.mxu0 0
      %407 = vmatpush2.bf16.msra.mxu0 0
      %408 = vmatprep.subr.bf16.mxu0 0
      %409 = vmatpush2.bf16.msra.mxu0 0
      %410 = vmatprep.subr.bf16.mxu0 0
      %411 = vmatpush2.bf16.msra.mxu0 0
      %412 = vmatprep.mubr.bf16.mxu0 0
      %413 = vmatmul.mubr.bf16.gmra.mxu0 %v329
      %v414 = vpop.f32.mrf.mxu0
      %v415 = vadd.f32 0.0, %v414
      %v416 = vpop.f32.mrf.mxu0
      %v417 = vpop.f32.mrf.mxu0
      %v418 = vadd.f32 0.0, %v417
      %v419 = vpop.f32.mrf.mxu0
      %420 = vmatprep.mubr.bf16.mxu0 0
      %421 = vmatmul.mubr.bf16.gmra.mxu0 %v332
      %v422 = vpop.f32.mrf.mxu0
      %v423 = vadd.f32 0.0, %v422
      %v424 = vpop.f32.mrf.mxu0
      %v425 = vpop.f32.mrf.mxu0
      %v426 = vadd.f32 0.0, %v425
      %v427 = vpop.f32.mrf.mxu0
      %428 = vmatprep.mubr.bf16.mxu0 0
      %429 = vmatmul.mubr.bf16.gmra.mxu0 %v335
      %v430 = vpop.f32.mrf.mxu0
      %v431 = vadd.f32 0.0, %v430
      %v432 = vpop.f32.mrf.mxu0
      %v433 = vpop.f32.mrf.mxu0
      %v434 = vadd.f32 0.0, %v433
      %v435 = vpop.f32.mrf.mxu0
      %436 = vmatprep.mubr.bf16.mxu0 0
      %437 = vmatmul.mubr.bf16.gmra.mxu0 %v338
      %v438 = vpop.f32.mrf.mxu0
      %v439 = vadd.f32 0.0, %v438
      %v440 = vpop.f32.mrf.mxu0
      %v441 = vpop.f32.mrf.mxu0
      %v442 = vadd.f32 0.0, %v441
      %v443 = vpop.f32.mrf.mxu0
      %444 = vmatprep.mubr.bf16.mxu0 0
      %445 = vmatmul.mubr.bf16.gmra.mxu0 %v341
      %v446 = vpop.f32.mrf.mxu0
      %v447 = vadd.f32 0.0, %v446
      %v448 = vpop.f32.mrf.mxu0
      %v449 = vpop.f32.mrf.mxu0
      %v450 = vadd.f32 0.0, %v449
      %v451 = vpop.f32.mrf.mxu0
      %452 = vmatprep.mubr.bf16.mxu0 0
      %453 = vmatmul.mubr.bf16.gmra.mxu0 %v344
      %v454 = vpop.f32.mrf.mxu0
      %v455 = vadd.f32 0.0, %v454
      %v456 = vpop.f32.mrf.mxu0
      %v457 = vpop.f32.mrf.mxu0
      %v458 = vadd.f32 0.0, %v457
      %v459 = vpop.f32.mrf.mxu0
      %460 = vmatprep.mubr.bf16.mxu0 0
      %461 = vmatmul.mubr.bf16.gmra.mxu0 %v347
      %v462 = vpop.f32.mrf.mxu0
      %v463 = vadd.f32 0.0, %v462
      %v464 = vpop.f32.mrf.mxu0
      %v465 = vpop.f32.mrf.mxu0
      %v466 = vadd.f32 0.0, %v465
      %v467 = vpop.f32.mrf.mxu0
      %468 = vmatprep.mubr.bf16.mxu0 0
      %469 = vmatmul.mubr.bf16.gmra.mxu0 %v350
      %v470 = vpop.f32.mrf.mxu0
      %v471 = vadd.f32 0.0, %v470
      %v472 = vpop.f32.mrf.mxu0
      %v473 = vpop.f32.mrf.mxu0
      %v474 = vadd.f32 0.0, %v473
      %v475 = vpop.f32.mrf.mxu0
      %476 = vmatprep.mubr.bf16.mxu0 0
      %477 = vmatmul.mubr.bf16.gmra.mxu0 %v353
      %v478 = vpop.f32.mrf.mxu0
      %v479 = vadd.f32 0.0, %v478
      %v480 = vpop.f32.mrf.mxu0
      %v481 = vpop.f32.mrf.mxu0
      %v482 = vadd.f32 0.0, %v481
      %v483 = vpop.f32.mrf.mxu0
      %484 = vmatprep.mubr.bf16.mxu0 0
      %485 = vmatmul.mubr.bf16.gmra.mxu0 %v356
      %v486 = vpop.f32.mrf.mxu0
      %v487 = vadd.f32 0.0, %v486
      %v488 = vpop.f32.mrf.mxu0
      %v489 = vpop.f32.mrf.mxu0
      %v490 = vadd.f32 0.0, %v489
      %v491 = vpop.f32.mrf.mxu0
      %492 = vmatprep.mubr.bf16.mxu0 0
      %493 = vmatmul.mubr.bf16.gmra.mxu0 %v359
      %v494 = vpop.f32.mrf.mxu0
      %v495 = vadd.f32 0.0, %v494
      %v496 = vpop.f32.mrf.mxu0
      %v497 = vpop.f32.mrf.mxu0
      %v498 = vadd.f32 0.0, %v497
      %v499 = vpop.f32.mrf.mxu0
      %500 = vmatprep.mubr.bf16.mxu0 0
      %501 = vmatmul.mubr.bf16.gmra.mxu0 %v362
      %v502 = vpop.f32.mrf.mxu0
      %v503 = vadd.f32 0.0, %v502
      %v504 = vpop.f32.mrf.mxu0
      %v505 = vpop.f32.mrf.mxu0
      %v506 = vadd.f32 0.0, %v505
      %v507 = vpop.f32.mrf.mxu0
      %508 = vmatprep.mubr.bf16.mxu0 0
      %509 = vmatmul.mubr.bf16.gmra.mxu0 %v365
      %v510 = vpop.f32.mrf.mxu0
      %v511 = vadd.f32 0.0, %v510
      %v512 = vpop.f32.mrf.mxu0
      %v513 = vpop.f32.mrf.mxu0
      %v514 = vadd.f32 0.0, %v513
      %v515 = vpop.f32.mrf.mxu0
      %516 = vmatprep.mubr.bf16.mxu0 0
      %517 = vmatmul.mubr.bf16.gmra.mxu0 %v368
      %v518 = vpop.f32.mrf.mxu0
      %v519 = vadd.f32 0.0, %v518
      %v520 = vpop.f32.mrf.mxu0
      %v521 = vpop.f32.mrf.mxu0
      %v522 = vadd.f32 0.0, %v521
      %v523 = vpop.f32.mrf.mxu0
      %524 = vmatprep.mubr.bf16.mxu0 0
      %525 = vmatmul.mubr.bf16.gmra.mxu0 %v371
      %v526 = vpop.f32.mrf.mxu0
      %v527 = vadd.f32 0.0, %v526
      %v528 = vpop.f32.mrf.mxu0
      %v529 = vpop.f32.mrf.mxu0
      %v530 = vadd.f32 0.0, %v529
      %v531 = vpop.f32.mrf.mxu0
      %532 = vmatprep.mubr.bf16.mxu0 0
      %533 = vmatmul.mubr.bf16.gmra.mxu0 %v374
      %v534 = vpop.f32.mrf.mxu0
      %v535 = vadd.f32 0.0, %v534
      %v536 = vpop.f32.mrf.mxu0
      %v537 = vpop.f32.mrf.mxu0
      %v538 = vadd.f32 0.0, %v537
      %v539 = vpop.f32.mrf.mxu0
      %540 = vdwg.mxu0
      %541 = vst.msk [vmem:[%s211] sm:$0xff] %vm327, %v415
      %542 = vst.msk [vmem:[%s211 + $0x8] sm:$0xff] %vm327, %v418
      %543 = vst.msk [vmem:[%s211 + $0x10] sm:$0xff] %vm327, %v423
      %544 = vst.msk [vmem:[%s211 + $0x18] sm:$0xff] %vm327, %v426
      %545 = vst.msk [vmem:[%s211 + $0x20] sm:$0xff] %vm327, %v431
      %546 = vst.msk [vmem:[%s211 + $0x28] sm:$0xff] %vm327, %v434
      %547 = vst.msk [vmem:[%s211 + $0x30] sm:$0xff] %vm327, %v439
      %548 = vst.msk [vmem:[%s211 + $0x38] sm:$0xff] %vm327, %v442
      %549 = vst.msk [vmem:[%s211 + $0x40] sm:$0xff] %vm327, %v447
      %550 = vst.msk [vmem:[%s211 + $0x48] sm:$0xff] %vm327, %v450
      %551 = vst.msk [vmem:[%s211 + $0x50] sm:$0xff] %vm327, %v455
      %552 = vst.msk [vmem:[%s211 + $0x58] sm:$0xff] %vm327, %v458
      %553 = vst.msk [vmem:[%s211 + $0x60] sm:$0xff] %vm327, %v463
      %554 = vst.msk [vmem:[%s211 + $0x68] sm:$0xff] %vm327, %v466
      %555 = vst.msk [vmem:[%s211 + $0x70] sm:$0xff] %vm327, %v471
      %556 = vst.msk [vmem:[%s211 + $0x78] sm:$0xff] %vm327, %v474
      %557 = vst.msk [vmem:[%s211 + $0x80] sm:$0xff] %vm327, %v479
      %558 = vst.msk [vmem:[%s211 + $0x88] sm:$0xff] %vm327, %v482
      %559 = vst.msk [vmem:[%s211 + $0x90] sm:$0xff] %vm327, %v487
      %560 = vst.msk [vmem:[%s211 + $0x98] sm:$0xff] %vm327, %v490
      %561 = vst.msk [vmem:[%s211 + $0xa0] sm:$0xff] %vm327, %v495
      %562 = vst.msk [vmem:[%s211 + $0xa8] sm:$0xff] %vm327, %v498
      %563 = vst.msk [vmem:[%s211 + $0xb0] sm:$0xff] %vm327, %v503
      %564 = vst.msk [vmem:[%s211 + $0xb8] sm:$0xff] %vm327, %v506
      %565 = vst.msk [vmem:[%s211 + $0xc0] sm:$0xff] %vm327, %v511
      %566 = vst.msk [vmem:[%s211 + $0xc8] sm:$0xff] %vm327, %v514
      %567 = vst.msk [vmem:[%s211 + $0xd0] sm:$0xff] %vm327, %v519
      %568 = vst.msk [vmem:[%s211 + $0xd8] sm:$0xff] %vm327, %v522
      %569 = vst.msk [vmem:[%s211 + $0xe0] sm:$0xff] %vm327, %v527
      %570 = vst.msk [vmem:[%s211 + $0xe8] sm:$0xff] %vm327, %v530
      %571 = vst.msk [vmem:[%s211 + $0xf0] sm:$0xff] %vm327, %v535
      %572 = vst.msk [vmem:[%s211 + $0xf8] sm:$0xff] %vm327, %v538
      %s573 = smul.u32 32, %s18
      %p574 = scmp.lt.s32.totalorder %s573, 63
      %s575 = scalar_select %p574, %s573, 63
      %p576 = scmp.lt.s32.totalorder %s19, 0
      %s577 = scalar_select %p576, %s19, 0
      %s578 = sadd.s32 %s577, %s575
      %s579 = smul.addr %s578, 8
      %s580 = scalar_lea.vmem %s2, %s579
      // Predicated region
      $region29: #{pdarts_cnn_forward.231} parent=27 // pred_check
        %p581 = pneg %p108
      $region30: #{pdarts_cnn_forward.231} parent=27 // pred_check_branch
        %583 = sbr.rel (%p581) target = $region32
      $region31: #{pdarts_cnn_forward.231} parent=27 // pred_region
        %s584 = smul.u32 32, %s18
      $region32: #{pdarts_cnn_forward.231} parent=27 // pred_fallthru
        _
    $region28: #{pdarts_cnn_forward.231} parent=5 // pred_fallthru
      _
    %p585 = scmp.le.s32.totalorder 2, %s8
    // Predicated region
    $region33: #{pdarts_cnn_forward.231} parent=5 // pred_check
      %p586 = pneg %p585
    $region34: #{pdarts_cnn_forward.231} parent=5 // pred_check_branch
      %588 = sbr.rel (%p586) target = $region36
    $region35: #{pdarts_cnn_forward.231} parent=5 // pred_region
      %s589 = ssub.s32 %s8, 2
      // Predicated region
      $region37: #{pdarts_cnn_forward.231} parent=35 // pred_check
        %p590 = pneg %p114
      $region38: #{pdarts_cnn_forward.231} parent=35 // pred_check_branch
        %592 = sbr.rel (%p590) target = $region40
      $region39: #{pdarts_cnn_forward.231} parent=35 // pred_region
        %s593 = smul.u32 32, %s21
        %p594 = scmp.lt.s32.totalorder %s593, 63
        %s595 = scalar_select %p594, %s593, 63
        %p596 = scmp.lt.s32.totalorder %s22, 0
        %s597 = scalar_select %p596, %s22, 0
        %s598 = sadd.s32 %s597, %s595
        %s599 = smul.addr %s598, 8
        %s600 = scalar_lea.vmem %s2, %s599
      $region40: #{pdarts_cnn_forward.231} parent=35 // pred_fallthru
        _
    $region36: #{pdarts_cnn_forward.231} parent=5 // pred_fallthru
      _
  $region6: #{pdarts_cnn_forward.231} parent=0 // loop_footer
    %s12 = sadd.s32 1, %s8
  $region7: #{pdarts_cnn_forward.231} parent=0 // loop_footer_branch
    %7 = sbr.rel target = $region3
  $region8: #{pdarts_cnn_forward.231} parent=0 // loop_exit
    _

// kernel: pdarts_cnn_forward.252
$region0: #{pdarts_cnn_forward.252}
  #allocation0 [shape = 'u32[]', space=smem, size = 0x4, offset = 0x4, fixed_abs, tag = 'smem constant byte address 0x4 - core index']
  #allocation1 [shape = 'u32[144,128]{1,0:T(1,128)}', space=vmem, size = 0x12000, scoped, tag = 'internal scratch']
  %s0 = inlined_call_operand.vmem [shape: bf16[9,32,128], index: 0, kind: input, shape index: {}]
  %s1 = inlined_call_operand.vmem [shape: f32[9,1,128], index: 1, kind: input, shape index: {}]
  %s2 = inlined_call_operand.vmem [shape: f32[32,128], index: 2, kind: output, shape index: {}]
  %s3 = sld [smem:[#allocation0]]
  $region18: #{pdarts_cnn_forward.252} parent=0
    _
  %s5 = ssub.s32 1, %s3
  %s6 = scalar_select 0, %s5, %s3
  // Predicated region
  $region2: #{pdarts_cnn_forward.252} parent=0 // pred_check
    _
  $region3: #{pdarts_cnn_forward.252} parent=0 // pred_check_branch
    %8 = sbr.rel (0) target = $region5
  $region4: #{pdarts_cnn_forward.252} parent=0 // pred_region
    _
  $region5: #{pdarts_cnn_forward.252} parent=0 // pred_fallthru
    _
  // Predicated region
  $region6: #{pdarts_cnn_forward.252} parent=0 // pred_check
    _
  $region7: #{pdarts_cnn_forward.252} parent=0 // pred_check_branch
    %10 = sbr.rel (0) target = $region9
  $region8: #{pdarts_cnn_forward.252} parent=0 // pred_region
    _
  $region9: #{pdarts_cnn_forward.252} parent=0 // pred_fallthru
    _
  %v11 = vld [vmem:[%s0] sm:$0xf]
  %v12 = vld [vmem:[%s0 + $0x4] sm:$0xf]
  %v13 = vld [vmem:[%s0 + $0x8] sm:$0xf]
  %v14 = vld [vmem:[%s0 + $0xc] sm:$0xf]
  %v15 = vunpack.c.l.bf16 %v11
  %v16 = vunpack.c.l.bf16 %v12
  %v17 = vunpack.c.l.bf16 %v13
  %v18 = vunpack.c.l.bf16 %v14
  %v19 = vmax.f32 %v15, 0.0
  %v20 = vmax.f32 %v16, 0.0
  %v21 = vmax.f32 %v17, 0.0
  %v22 = vmax.f32 %v18, 0.0
  %v23 = vld [vmem:[%s1] sm:$0x1]
  %v25 = vlaneseq
  %v26 = vshrl.u32 %v25, 7
  %v27 = vsub.s32 0, %v26
  %v28 = vrot.slane %v23, %v27
  %v30 = vmul.f32 %v19, %v28
  %v31 = vmul.f32 %v20, %v28
  %v32 = vmul.f32 %v21, %v28
  %v33 = vmul.f32 %v22, %v28
  %v34 = vadd.f32 %v30, 0.0
  %v35 = vadd.f32 %v31, 0.0
  %v36 = vadd.f32 %v32, 0.0
  %v37 = vadd.f32 %v33, 0.0
  %s38 = scalar_lea.vmem %s0, 16
  %v39 = vld [vmem:[%s38] sm:$0xf]
  %v40 = vld [vmem:[%s38 + $0x4] sm:$0xf]
  %v41 = vld [vmem:[%s38 + $0x8] sm:$0xf]
  %v42 = vld [vmem:[%s38 + $0xc] sm:$0xf]
  %v43 = vunpack.c.l.bf16 %v39
  %v44 = vunpack.c.l.bf16 %v40
  %v45 = vunpack.c.l.bf16 %v41
  %v46 = vunpack.c.l.bf16 %v42
  %v47 = vmax.f32 %v43, 0.0
  %v48 = vmax.f32 %v44, 0.0
  %v49 = vmax.f32 %v45, 0.0
  %v50 = vmax.f32 %v46, 0.0
  %s51 = scalar_lea.vmem %s1, 1
  %v52 = vld [vmem:[%s51] sm:$0x1]
  %v54 = vlaneseq
  %v55 = vshrl.u32 %v54, 7
  %v56 = vsub.s32 0, %v55
  %v57 = vrot.slane %v52, %v56
  %v59 = vmul.f32 %v47, %v57
  %v60 = vmul.f32 %v48, %v57
  %v61 = vmul.f32 %v49, %v57
  %v62 = vmul.f32 %v50, %v57
  %v63 = vadd.f32 %v34, %v59
  %v64 = vadd.f32 %v35, %v60
  %v65 = vadd.f32 %v36, %v61
  %v66 = vadd.f32 %v37, %v62
  %s67 = scalar_lea.vmem %s0, 32
  %v68 = vld [vmem:[%s67] sm:$0xf]
  %v69 = vld [vmem:[%s67 + $0x4] sm:$0xf]
  %v70 = vld [vmem:[%s67 + $0x8] sm:$0xf]
  %v71 = vld [vmem:[%s67 + $0xc] sm:$0xf]
  %v72 = vunpack.c.l.bf16 %v68
  %v73 = vunpack.c.l.bf16 %v69
  %v74 = vunpack.c.l.bf16 %v70
  %v75 = vunpack.c.l.bf16 %v71
  %v76 = vmax.f32 %v72, 0.0
  %v77 = vmax.f32 %v73, 0.0
  %v78 = vmax.f32 %v74, 0.0
  %v79 = vmax.f32 %v75, 0.0
  %s80 = scalar_lea.vmem %s1, 2
  %v81 = vld [vmem:[%s80] sm:$0x1]
  %v83 = vlaneseq
  %v84 = vshrl.u32 %v83, 7
  %v85 = vsub.s32 0, %v84
  %v86 = vrot.slane %v81, %v85
  %v88 = vmul.f32 %v76, %v86
  %v89 = vmul.f32 %v77, %v86
  %v90 = vmul.f32 %v78, %v86
  %v91 = vmul.f32 %v79, %v86
  %v92 = vadd.f32 %v63, %v88
  %v93 = vadd.f32 %v64, %v89
  %v94 = vadd.f32 %v65, %v90
  %v95 = vadd.f32 %v66, %v91
  %s96 = scalar_lea.vmem %s0, 48
  %v97 = vld [vmem:[%s96] sm:$0xf]
  %v98 = vld [vmem:[%s96 + $0x4] sm:$0xf]
  %v99 = vld [vmem:[%s96 + $0x8] sm:$0xf]
  %v100 = vld [vmem:[%s96 + $0xc] sm:$0xf]
  %v101 = vunpack.c.l.bf16 %v97
  %v102 = vunpack.c.l.bf16 %v98
  %v103 = vunpack.c.l.bf16 %v99
  %v104 = vunpack.c.l.bf16 %v100
  %v105 = vmax.f32 %v101, 0.0
  %v106 = vmax.f32 %v102, 0.0
  %v107 = vmax.f32 %v103, 0.0
  %v108 = vmax.f32 %v104, 0.0
  %s109 = scalar_lea.vmem %s1, 3
  %v110 = vld [vmem:[%s109] sm:$0x1]
  %v112 = vlaneseq
  %v113 = vshrl.u32 %v112, 7
  %v114 = vsub.s32 0, %v113
  %v115 = vrot.slane %v110, %v114
  %v117 = vmul.f32 %v105, %v115
  %v118 = vmul.f32 %v106, %v115
  %v119 = vmul.f32 %v107, %v115
  %v120 = vmul.f32 %v108, %v115
  %v121 = vadd.f32 %v92, %v117
  %v122 = vadd.f32 %v93, %v118
  %v123 = vadd.f32 %v94, %v119
  %v124 = vadd.f32 %v95, %v120
  %s125 = scalar_lea.vmem %s0, 64
  %v126 = vld [vmem:[%s125] sm:$0xf]
  %v127 = vld [vmem:[%s125 + $0x4] sm:$0xf]
  %v128 = vld [vmem:[%s125 + $0x8] sm:$0xf]
  %v129 = vld [vmem:[%s125 + $0xc] sm:$0xf]
  %v130 = vunpack.c.l.bf16 %v126
  %v131 = vunpack.c.l.bf16 %v127
  %v132 = vunpack.c.l.bf16 %v128
  %v133 = vunpack.c.l.bf16 %v129
  %v134 = vmax.f32 %v130, 0.0
  %v135 = vmax.f32 %v131, 0.0
  %v136 = vmax.f32 %v132, 0.0
  %v137 = vmax.f32 %v133, 0.0
  %s138 = scalar_lea.vmem %s1, 4
  %v139 = vld [vmem:[%s138] sm:$0x1]
  %v141 = vlaneseq
  %v142 = vshrl.u32 %v141, 7
  %v143 = vsub.s32 0, %v142
  %v144 = vrot.slane %v139, %v143
  %v146 = vmul.f32 %v134, %v144
  %v147 = vmul.f32 %v135, %v144
  %v148 = vmul.f32 %v136, %v144
  %v149 = vmul.f32 %v137, %v144
  %v150 = vadd.f32 %v121, %v146
  %v151 = vadd.f32 %v122, %v147
  %v152 = vadd.f32 %v123, %v148
  %v153 = vadd.f32 %v124, %v149
  %s154 = scalar_lea.vmem %s0, 80
  %v155 = vld [vmem:[%s154] sm:$0xf]
  %v156 = vld [vmem:[%s154 + $0x4] sm:$0xf]
  %v157 = vld [vmem:[%s154 + $0x8] sm:$0xf]
  %v158 = vld [vmem:[%s154 + $0xc] sm:$0xf]
  %v159 = vunpack.c.l.bf16 %v155
  %v160 = vunpack.c.l.bf16 %v156
  %v161 = vunpack.c.l.bf16 %v157
  %v162 = vunpack.c.l.bf16 %v158
  %v163 = vmax.f32 %v159, 0.0
  %v164 = vmax.f32 %v160, 0.0
  %v165 = vmax.f32 %v161, 0.0
  %v166 = vmax.f32 %v162, 0.0
  %s167 = scalar_lea.vmem %s1, 5
  %v168 = vld [vmem:[%s167] sm:$0x1]
  %v170 = vlaneseq
  %v171 = vshrl.u32 %v170, 7
  %v172 = vsub.s32 0, %v171
  %v173 = vrot.slane %v168, %v172
  %v175 = vmul.f32 %v163, %v173
  %v176 = vmul.f32 %v164, %v173
  %v177 = vmul.f32 %v165, %v173
  %v178 = vmul.f32 %v166, %v173
  %v179 = vadd.f32 %v150, %v175
  %v180 = vadd.f32 %v151, %v176
  %v181 = vadd.f32 %v152, %v177
  %v182 = vadd.f32 %v153, %v178
  %s183 = scalar_lea.vmem %s0, 96
  %v184 = vld [vmem:[%s183] sm:$0xf]
  %v185 = vld [vmem:[%s183 + $0x4] sm:$0xf]
  %v186 = vld [vmem:[%s183 + $0x8] sm:$0xf]
  %v187 = vld [vmem:[%s183 + $0xc] sm:$0xf]
  %v188 = vunpack.c.l.bf16 %v184
  %v189 = vunpack.c.l.bf16 %v185
  %v190 = vunpack.c.l.bf16 %v186
  %v191 = vunpack.c.l.bf16 %v187
  %v192 = vmax.f32 %v188, 0.0
  %v193 = vmax.f32 %v189, 0.0
  %v194 = vmax.f32 %v190, 0.0
  %v195 = vmax.f32 %v191, 0.0
  %s196 = scalar_lea.vmem %s1, 6
  %v197 = vld [vmem:[%s196] sm:$0x1]
  %v199 = vlaneseq
  %v200 = vshrl.u32 %v199, 7
  %v201 = vsub.s32 0, %v200
  %v202 = vrot.slane %v197, %v201
  %v204 = vmul.f32 %v192, %v202
  %v205 = vmul.f32 %v193, %v202
  %v206 = vmul.f32 %v194, %v202
  %v207 = vmul.f32 %v195, %v202
  %v208 = vadd.f32 %v179, %v204
  %v209 = vadd.f32 %v180, %v205
  %v210 = vadd.f32 %v181, %v206
  %v211 = vadd.f32 %v182, %v207
  %s212 = scalar_lea.vmem %s0, 112
  %v213 = vld [vmem:[%s212] sm:$0xf]
  %v214 = vld [vmem:[%s212 + $0x4] sm:$0xf]
  %v215 = vld [vmem:[%s212 + $0x8] sm:$0xf]
  %v216 = vld [vmem:[%s212 + $0xc] sm:$0xf]
  %v217 = vunpack.c.l.bf16 %v213
  %v218 = vunpack.c.l.bf16 %v214
  %v219 = vunpack.c.l.bf16 %v215
  %v220 = vunpack.c.l.bf16 %v216
  %v221 = vmax.f32 %v217, 0.0
  %v222 = vmax.f32 %v218, 0.0
  %v223 = vmax.f32 %v219, 0.0
  %v224 = vmax.f32 %v220, 0.0
  %s225 = scalar_lea.vmem %s1, 7
  %v226 = vld [vmem:[%s225] sm:$0x1]
  %v228 = vlaneseq
  %v229 = vshrl.u32 %v228, 7
  %v230 = vsub.s32 0, %v229
  %v231 = vrot.slane %v226, %v230
  %v233 = vmul.f32 %v221, %v231
  %v234 = vmul.f32 %v222, %v231
  %v235 = vmul.f32 %v223, %v231
  %v236 = vmul.f32 %v224, %v231
  %v237 = vadd.f32 %v208, %v233
  %v238 = vadd.f32 %v209, %v234
  %v239 = vadd.f32 %v210, %v235
  %v240 = vadd.f32 %v211, %v236
  %s241 = scalar_lea.vmem %s0, 128
  %v242 = vld [vmem:[%s241] sm:$0xf]
  %v243 = vld [vmem:[%s241 + $0x4] sm:$0xf]
  %v244 = vld [vmem:[%s241 + $0x8] sm:$0xf]
  %v245 = vld [vmem:[%s241 + $0xc] sm:$0xf]
  %v246 = vunpack.c.l.bf16 %v242
  %v247 = vunpack.c.l.bf16 %v243
  %v248 = vunpack.c.l.bf16 %v244
  %v249 = vunpack.c.l.bf16 %v245
  %v250 = vmax.f32 %v246, 0.0
  %v251 = vmax.f32 %v247, 0.0
  %v252 = vmax.f32 %v248, 0.0
  %v253 = vmax.f32 %v249, 0.0
  %s254 = scalar_lea.vmem %s1, 8
  %v255 = vld [vmem:[%s254] sm:$0x1]
  %v257 = vlaneseq
  %v258 = vshrl.u32 %v257, 7
  %v259 = vsub.s32 0, %v258
  %v260 = vrot.slane %v255, %v259
  %v262 = vmul.f32 %v250, %v260
  %v263 = vmul.f32 %v251, %v260
  %v264 = vmul.f32 %v252, %v260
  %v265 = vmul.f32 %v253, %v260
  %v266 = vadd.f32 %v237, %v262
  %v267 = vadd.f32 %v238, %v263
  %v268 = vadd.f32 %v239, %v264
  %v269 = vadd.f32 %v240, %v265
  %270 = vst [vmem:[%s2] sm:$0xff] %v266
  %271 = vst [vmem:[%s2 + $0x8] sm:$0xff] %v267
  %272 = vst [vmem:[%s2 + $0x10] sm:$0xff] %v268
  %273 = vst [vmem:[%s2 + $0x18] sm:$0xff] %v269
  // Predicated region
  $region10: #{pdarts_cnn_forward.252} parent=0 // pred_check
    _
  $region11: #{pdarts_cnn_forward.252} parent=0 // pred_check_branch
    %275 = sbr.rel (0) target = $region13
  $region12: #{pdarts_cnn_forward.252} parent=0 // pred_region
    _
  $region13: #{pdarts_cnn_forward.252} parent=0 // pred_fallthru
    _
  // Predicated region
  $region14: #{pdarts_cnn_forward.252} parent=0 // pred_check
    _
  $region15: #{pdarts_cnn_forward.252} parent=0 // pred_check_branch
    %277 = sbr.rel (0) target = $region17
  $region16: #{pdarts_cnn_forward.252} parent=0 // pred_region
    _
  $region17: #{pdarts_cnn_forward.252} parent=0 // pred_fallthru
    _

// kernel: pdarts_cnn_forward.269
$region0: #{pdarts_cnn_forward.269}
  #allocation0 [shape = 'u32[]', space=smem, size = 0x4, offset = 0x4, fixed_abs, tag = 'smem constant byte address 0x4 - core index']
  #allocation1 [shape = 'u32[144,128]{1,0:T(1,128)}', space=vmem, size = 0x12000, scoped, tag = 'internal scratch']
  %s0 = inlined_call_operand.vmem [shape: bf16[512,16], index: 0, kind: input, shape index: {}]
  %s1 = inlined_call_operand.vmem [shape: bf16[16,16], index: 1, kind: input, shape index: {}]
  %s2 = inlined_call_operand.vmem [shape: f32[512,16], index: 2, kind: output, shape index: {}]
  %s3 = sld [smem:[#allocation0]]
  $region41: #{pdarts_cnn_forward.269} parent=0
    _
  %s5 = ssub.s32 1, %s3
  %s6 = scalar_select 0, %s5, %s3
  loop: start=0, step=1, limit=4
  $region2: #{pdarts_cnn_forward.269} parent=0 // loop_pre_header
    _
  $region3: #{pdarts_cnn_forward.269} parent=0 // loop_header
    %s8 = sphi 0, %s12
    %p9 = scmp.ge.s32.totalorder %s8, 4
    %s15 = sphi 0, %s34
    %s16 = sphi 0, %s30
    %s17 = sphi 0, %s26
    %s18 = sphi 0, %s15
    %s19 = sphi 0, %s16
    %s20 = sphi 0, %s17
    %s21 = sphi 0, %s18
    %s22 = sphi 0, %s19
    %s23 = sphi 0, %s20
    %s39 = sphi 0, %s41
    %s42 = sphi 0, %s39
    %s43 = sphi 0, %s42
    %s59 = sphi 0, %s43
    %s67 = sphi 0, %s69
    %s70 = sphi 0, %s67
    %s71 = sphi 0, %s70
    %s87 = sphi 0, %s71
    %s95 = sphi 0, %s97
    %s98 = sphi 0, %s95
    %s99 = sphi 0, %s98
    %s115 = sphi 0, %s99
  $region4: #{pdarts_cnn_forward.269} parent=0 // loop_header_branch
    %11 = sbr.rel (%p9) target = $region8
  $region5: #{pdarts_cnn_forward.269} parent=0 // loop_body
    %s13 = ssub.s32 %s8, 1
    %s14 = ssub.s32 %s8, 2
    %s24 = sadd.s32 1, %s17
    %p25 = scmp.ge.s32.totalorder %s24, 1
    %s26 = scalar_select %p25, 0, %s24
    %s27 = sadd.s32 1, %s16
    %s28 = scalar_select %p25, %s27, %s16
    %p29 = scmp.ge.s32.totalorder %s28, 1
    %s30 = scalar_select %p29, 0, %s28
    %s31 = sadd.s32 1, %s15
    %s32 = scalar_select %p29, %s31, %s15
    %p33 = scmp.ge.s32.totalorder %s32, 2
    %s34 = scalar_select %p33, 0, %s32
    %s35 = ssub.s32 %s15, %s34
    %s36 = ssub.s32 %s17, %s26
    %s37 = sor.u32 %s35, %s36
    %p38 = scmp.eq.s32.totalorder %s37, 0
    %s40 = sadd.s32 %s39, 1
    %s41 = scalar_select %p38, %s39, %s40
    %p44 = pneg %p38
    %p45 = scmp.eq.s32.totalorder %s8, 1
    %p46 = por %p44, %p45
    %p47 = scmp.ne.s32.totalorder %s39, %s42
    %p48 = scmp.eq.s32.totalorder %s8, 0
    %p49 = por %p47, %p48
    %p50 = scmp.ne.s32.totalorder %s39, %s42
    %p51 = scmp.eq.s32.totalorder %s13, 1
    %p52 = por %p50, %p51
    %p53 = scmp.ne.s32.totalorder %s42, %s43
    %p54 = scmp.eq.s32.totalorder %s13, 0
    %p55 = por %p53, %p54
    %p56 = scmp.ne.s32.totalorder %s42, %s43
    %p57 = scmp.eq.s32.totalorder %s14, 1
    %p58 = por %p56, %p57
    %p60 = scmp.ne.s32.totalorder %s43, %s59
    %p61 = scmp.eq.s32.totalorder %s14, 0
    %p62 = por %p60, %p61
    %s63 = ssub.s32 %s17, %s26
    %s64 = ssub.s32 %s16, %s30
    %s65 = sor.u32 %s63, %s64
    %p66 = scmp.eq.s32.totalorder %s65, 0
    %s68 = sadd.s32 %s67, 1
    %s69 = scalar_select %p66, %s67, %s68
    %p72 = pneg %p66
    %p73 = scmp.eq.s32.totalorder %s8, 1
    %p74 = por %p72, %p73
    %p75 = scmp.ne.s32.totalorder %s67, %s70
    %p76 = scmp.eq.s32.totalorder %s8, 0
    %p77 = por %p75, %p76
    %p78 = scmp.ne.s32.totalorder %s67, %s70
    %p79 = scmp.eq.s32.totalorder %s13, 1
    %p80 = por %p78, %p79
    %p81 = scmp.ne.s32.totalorder %s70, %s71
    %p82 = scmp.eq.s32.totalorder %s13, 0
    %p83 = por %p81, %p82
    %p84 = scmp.ne.s32.totalorder %s70, %s71
    %p85 = scmp.eq.s32.totalorder %s14, 1
    %p86 = por %p84, %p85
    %p88 = scmp.ne.s32.totalorder %s71, %s87
    %p89 = scmp.eq.s32.totalorder %s14, 0
    %p90 = por %p88, %p89
    %s91 = ssub.s32 %s15, %s34
    %s92 = ssub.s32 %s16, %s30
    %s93 = sor.u32 %s91, %s92
    %p94 = scmp.eq.s32.totalorder %s93, 0
    %s96 = sadd.s32 %s95, 1
    %s97 = scalar_select %p94, %s95, %s96
    %p100 = pneg %p94
    %p101 = scmp.eq.s32.totalorder %s8, 1
    %p102 = por %p100, %p101
    %p103 = scmp.ne.s32.totalorder %s95, %s98
    %p104 = scmp.eq.s32.totalorder %s8, 0
    %p105 = por %p103, %p104
    %p106 = scmp.ne.s32.totalorder %s95, %s98
    %p107 = scmp.eq.s32.totalorder %s13, 1
    %p108 = por %p106, %p107
    %p109 = scmp.ne.s32.totalorder %s98, %s99
    %p110 = scmp.eq.s32.totalorder %s13, 0
    %p111 = por %p109, %p110
    %p112 = scmp.ne.s32.totalorder %s98, %s99
    %p113 = scmp.eq.s32.totalorder %s14, 1
    %p114 = por %p112, %p113
    %p116 = scmp.ne.s32.totalorder %s99, %s115
    %p117 = scmp.eq.s32.totalorder %s14, 0
    %p118 = por %p116, %p117
    %p119 = scmp.le.s32.totalorder 1, %s8
    %p120 = scmp.lt.s32.totalorder %s8, 3
    %p121 = pnand %p119, %p120
    %p122 = pneg %p121
    // Predicated region
    $region9: #{pdarts_cnn_forward.269} parent=5 // pred_check
      _
    $region10: #{pdarts_cnn_forward.269} parent=5 // pred_check_branch
      %124 = sbr.rel (%p121) target = $region12
    $region11: #{pdarts_cnn_forward.269} parent=5 // pred_region
      %s125 = ssub.s32 %s8, 1
      // Predicated region
      $region13: #{pdarts_cnn_forward.269} parent=11 // pred_check
        %p126 = pneg %p83
      $region14: #{pdarts_cnn_forward.269} parent=11 // pred_check_branch
        %128 = sbr.rel (%p126) target = $region16
      $region15: #{pdarts_cnn_forward.269} parent=11 // pred_region
        %s129 = smul.u32 2, %s20
        %p130 = scmp.lt.s32.totalorder %s129, 1
        %s131 = scalar_select %p130, %s129, 1
        %p132 = scmp.lt.s32.totalorder %s19, 0
        %s133 = scalar_select %p132, %s19, 0
        %s134 = sadd.s32 %s133, %s131
        %s135 = smul.addr %s134, 4
        %s136 = scalar_lea.vmem %s1, %s135
        %s137 = smul.u32 2, %s20
      $region16: #{pdarts_cnn_forward.269} parent=11 // pred_fallthru
        _
    $region12: #{pdarts_cnn_forward.269} parent=5 // pred_fallthru
      _
    %p138 = scmp.lt.s32.totalorder %s8, 2
    // Predicated region
    $region17: #{pdarts_cnn_forward.269} parent=5 // pred_check
      %p139 = pneg %p138
    $region18: #{pdarts_cnn_forward.269} parent=5 // pred_check_branch
      %141 = sbr.rel (%p139) target = $region20
    $region19: #{pdarts_cnn_forward.269} parent=5 // pred_region
      // Predicated region
      $region21: #{pdarts_cnn_forward.269} parent=19 // pred_check
        %p142 = pneg %p49
      $region22: #{pdarts_cnn_forward.269} parent=19 // pred_check_branch
        %144 = sbr.rel (%p142) target = $region24
      $region23: #{pdarts_cnn_forward.269} parent=19 // pred_region
        %s145 = smul.u32 32, %s15
        %p146 = scmp.lt.s32.totalorder %s145, 63
        %s147 = scalar_select %p146, %s145, 63
        %p148 = scmp.lt.s32.totalorder %s17, 0
        %s149 = scalar_select %p148, %s17, 0
        %s150 = sadd.s32 %s149, %s147
        %s151 = smul.addr %s150, 4
        %s152 = scalar_lea.vmem %s0, %s151
        %s153 = smul.u32 32, %s15
      $region24: #{pdarts_cnn_forward.269} parent=19 // pred_fallthru
        _
    $region20: #{pdarts_cnn_forward.269} parent=5 // pred_fallthru
      _
    %p154 = scmp.le.s32.totalorder 1, %s8
    %p155 = scmp.lt.s32.totalorder %s8, 3
    %p156 = pnand %p154, %p155
    %p157 = pneg %p156
    // Predicated region
    $region25: #{pdarts_cnn_forward.269} parent=5 // pred_check
      _
    $region26: #{pdarts_cnn_forward.269} parent=5 // pred_check_branch
      %159 = sbr.rel (%p156) target = $region28
    $region27: #{pdarts_cnn_forward.269} parent=5 // pred_region
      %s160 = ssub.s32 %s8, 1
      %s161 = smul.u32 32, %s18
      %p162 = scmp.lt.s32.totalorder %s161, 63
      %s163 = scalar_select %p162, %s161, 63
      %p164 = scmp.lt.s32.totalorder %s20, 0
      %s165 = scalar_select %p164, %s20, 0
      %s166 = sadd.s32 %s165, %s163
      %s167 = smul.addr %s166, 4
      %s168 = scalar_lea.vmem %s0, %s167
      %p169 = pneg %p55
      %p170 = pneg %p52
      %s171 = smul.u32 2, %s20
      %p172 = scmp.lt.s32.totalorder %s171, 1
      %s173 = scalar_select %p172, %s171, 1
      %p174 = scmp.lt.s32.totalorder %s19, 0
      %s175 = scalar_select %p174, %s19, 0
      %s176 = sadd.s32 %s175, %s173
      %s177 = smul.addr %s176, 4
      %s178 = scalar_lea.vmem %s1, %s177
      %p179 = pneg %p83
      %p180 = pneg %p80
      %p181 = pneg %p111
      %p182 = pneg %p108
      %s183 = smul.u32 32, %s18
      %p184 = scmp.lt.s32.totalorder %s183, 63
      %s185 = scalar_select %p184, %s183, 63
      %p186 = scmp.lt.s32.totalorder %s19, 0
      %s187 = scalar_select %p186, %s19, 0
      %s188 = sadd.s32 %s187, %s185
      %s189 = smul.addr %s188, 8
      %s190 = scalar_lea.vmem %s2, %s189
      %s191 = smul.u32 32, %s18
      %p192 = scmp.lt.s32.totalorder %s191, 63
      %s193 = scalar_select %p192, %s191, 63
      %p194 = scmp.lt.s32.totalorder %s20, 0
      %s195 = scalar_select %p194, %s20, 0
      %s196 = sadd.s32 %s195, %s193
      %s197 = smul.addr %s196, 4
      %s198 = scalar_lea.vmem %s0, %s197
      %s199 = smul.u32 32, %s18
      %s200 = smul.u32 2, %s20
      %p201 = scmp.lt.s32.totalorder %s200, 1
      %s202 = scalar_select %p201, %s200, 1
      %p203 = scmp.lt.s32.totalorder %s19, 0
      %s204 = scalar_select %p203, %s19, 0
      %s205 = sadd.s32 %s204, %s202
      %s206 = smul.addr %s205, 4
      %s207 = scalar_lea.vmem %s1, %s206
      %s208 = smul.u32 2, %s20
      %s209 = smul.u32 32, %s18
      %p210 = scmp.lt.s32.totalorder %s209, 63
      %s211 = scalar_select %p210, %s209, 63
      %p212 = scmp.lt.s32.totalorder %s19, 0
      %s213 = scalar_select %p212, %s19, 0
      %s214 = sadd.s32 %s213, %s211
      %s215 = smul.addr %s214, 8
      %s216 = scalar_lea.vmem %s2, %s215
      %s217 = smul.u32 32, %s18
      %v219 = vld [vmem:[%s198] sm:$0xf]
      %v220 = vld [vmem:[%s198 + $0x4] sm:$0xf]
      %v221 = vld [vmem:[%s198 + $0x8] sm:$0xf]
      %v222 = vld [vmem:[%s198 + $0xc] sm:$0xf]
      %v223 = vld [vmem:[%s198 + $0x10] sm:$0xf]
      %v224 = vld [vmem:[%s198 + $0x14] sm:$0xf]
      %v225 = vld [vmem:[%s198 + $0x18] sm:$0xf]
      %v226 = vld [vmem:[%s198 + $0x1c] sm:$0xf]
      %v227 = vld [vmem:[%s198 + $0x20] sm:$0xf]
      %v228 = vld [vmem:[%s198 + $0x24] sm:$0xf]
      %v229 = vld [vmem:[%s198 + $0x28] sm:$0xf]
      %v230 = vld [vmem:[%s198 + $0x2c] sm:$0xf]
      %v231 = vld [vmem:[%s198 + $0x30] sm:$0xf]
      %v232 = vld [vmem:[%s198 + $0x34] sm:$0xf]
      %v233 = vld [vmem:[%s198 + $0x38] sm:$0xf]
      %v234 = vld [vmem:[%s198 + $0x3c] sm:$0xf]
      %v235 = vld [vmem:[%s198 + $0x40] sm:$0xf]
      %v236 = vld [vmem:[%s198 + $0x44] sm:$0xf]
      %v237 = vld [vmem:[%s198 + $0x48] sm:$0xf]
      %v238 = vld [vmem:[%s198 + $0x4c] sm:$0xf]
      %v239 = vld [vmem:[%s198 + $0x50] sm:$0xf]
      %v240 = vld [vmem:[%s198 + $0x54] sm:$0xf]
      %v241 = vld [vmem:[%s198 + $0x58] sm:$0xf]
      %v242 = vld [vmem:[%s198 + $0x5c] sm:$0xf]
      %v243 = vld [vmem:[%s198 + $0x60] sm:$0xf]
      %v244 = vld [vmem:[%s198 + $0x64] sm:$0xf]
      %v245 = vld [vmem:[%s198 + $0x68] sm:$0xf]
      %v246 = vld [vmem:[%s198 + $0x6c] sm:$0xf]
      %v247 = vld [vmem:[%s198 + $0x70] sm:$0xf]
      %v248 = vld [vmem:[%s198 + $0x74] sm:$0xf]
      %v249 = vld [vmem:[%s198 + $0x78] sm:$0xf]
      %v250 = vld [vmem:[%s198 + $0x7c] sm:$0xf]
      %v251 = vmax.bf16 %v219, 0
      %v252 = vmax.bf16 %v220, 0
      %v253 = vmax.bf16 %v221, 0
      %v254 = vmax.bf16 %v222, 0
      %v255 = vmax.bf16 %v223, 0
      %v256 = vmax.bf16 %v224, 0
      %v257 = vmax.bf16 %v225, 0
      %v258 = vmax.bf16 %v226, 0
      %v259 = vmax.bf16 %v227, 0
      %v260 = vmax.bf16 %v228, 0
      %v261 = vmax.bf16 %v229, 0
      %v262 = vmax.bf16 %v230, 0
      %v263 = vmax.bf16 %v231, 0
      %v264 = vmax.bf16 %v232, 0
      %v265 = vmax.bf16 %v233, 0
      %v266 = vmax.bf16 %v234, 0
      %v267 = vmax.bf16 %v235, 0
      %v268 = vmax.bf16 %v236, 0
      %v269 = vmax.bf16 %v237, 0
      %v270 = vmax.bf16 %v238, 0
      %v271 = vmax.bf16 %v239, 0
      %v272 = vmax.bf16 %v240, 0
      %v273 = vmax.bf16 %v241, 0
      %v274 = vmax.bf16 %v242, 0
      %v275 = vmax.bf16 %v243, 0
      %v276 = vmax.bf16 %v244, 0
      %v277 = vmax.bf16 %v245, 0
      %v278 = vmax.bf16 %v246, 0
      %v279 = vmax.bf16 %v247, 0
      %v280 = vmax.bf16 %v248, 0
      %v281 = vmax.bf16 %v249, 0
      %v282 = vmax.bf16 %v250, 0
      %v283 = vld [vmem:[%s207] sm:$0xf]
      %v284 = vld [vmem:[%s207 + $0x4] sm:$0xf]
      %v317 = vunpack.c.l.b16 %v251
      %v318 = vunpack.c.l.b16 %v252
      %v319 = vunpack.c.l.b16 %v253
      %v320 = vunpack.c.l.b16 %v254
      %v321 = vunpack.c.l.b16 %v255
      %v322 = vunpack.c.l.b16 %v256
      %v323 = vunpack.c.l.b16 %v257
      %v324 = vunpack.c.l.b16 %v258
      %v325 = vunpack.c.l.b16 %v259
      %v326 = vunpack.c.l.b16 %v260
      %v327 = vunpack.c.l.b16 %v261
      %v328 = vunpack.c.l.b16 %v262
      %v329 = vunpack.c.l.b16 %v263
      %v330 = vunpack.c.l.b16 %v264
      %v331 = vunpack.c.l.b16 %v265
      %v332 = vunpack.c.l.b16 %v266
      %v333 = vunpack.c.l.b16 %v267
      %v334 = vunpack.c.l.b16 %v268
      %v335 = vunpack.c.l.b16 %v269
      %v336 = vunpack.c.l.b16 %v270
      %v337 = vunpack.c.l.b16 %v271
      %v338 = vunpack.c.l.b16 %v272
      %v339 = vunpack.c.l.b16 %v273
      %v340 = vunpack.c.l.b16 %v274
      %v341 = vunpack.c.l.b16 %v275
      %v342 = vunpack.c.l.b16 %v276
      %v343 = vunpack.c.l.b16 %v277
      %v344 = vunpack.c.l.b16 %v278
      %v345 = vunpack.c.l.b16 %v279
      %v346 = vunpack.c.l.b16 %v280
      %v347 = vunpack.c.l.b16 %v281
      %v348 = vunpack.c.l.b16 %v282
      %v349 = vpack.c.b16 %v318, %v317
      %v350 = vpack.c.b16 %v320, %v319
      %v351 = vpack.c.b16 %v322, %v321
      %v352 = vpack.c.b16 %v324, %v323
      %v353 = vpack.c.b16 %v326, %v325
      %v354 = vpack.c.b16 %v328, %v327
      %v355 = vpack.c.b16 %v330, %v329
      %v356 = vpack.c.b16 %v332, %v331
      %v357 = vpack.c.b16 %v334, %v333
      %v358 = vpack.c.b16 %v336, %v335
      %v359 = vpack.c.b16 %v338, %v337
      %v360 = vpack.c.b16 %v340, %v339
      %v361 = vpack.c.b16 %v342, %v341
      %v362 = vpack.c.b16 %v344, %v343
      %v363 = vpack.c.b16 %v346, %v345
      %v364 = vpack.c.b16 %v348, %v347
      %v367 = vunpack.c.l.b16 %v283
      %v368 = vunpack.c.l.b16 %v284
      %v369 = vpack.c.b16 %v368, %v367
      %vm371 = vcmask 130048
      %v373 = vsel %vm371, %v349, 0
      %v376 = vsel %vm371, %v350, 0
      %v379 = vsel %vm371, %v351, 0
      %v382 = vsel %vm371, %v352, 0
      %v385 = vsel %vm371, %v353, 0
      %v388 = vsel %vm371, %v354, 0
      %v391 = vsel %vm371, %v355, 0
      %v394 = vsel %vm371, %v356, 0
      %v397 = vsel %vm371, %v357, 0
      %v400 = vsel %vm371, %v358, 0
      %v403 = vsel %vm371, %v359, 0
      %v406 = vsel %vm371, %v360, 0
      %v409 = vsel %vm371, %v361, 0
      %v412 = vsel %vm371, %v362, 0
      %v415 = vsel %vm371, %v363, 0
      %v418 = vsel %vm371, %v364, 0
      %420 = vmatprep.subr.bf16.mxu0 0
      %421 = vmatpush1.bf16.msra.mxu0 0
      %422 = vmatprep.subr.bf16.mxu0 0
      %423 = vmatpush1.bf16.msra.mxu0 0
      %424 = vmatprep.subr.bf16.mxu0 0
      %425 = vmatpush1.bf16.msra.mxu0 0
      %426 = vmatprep.subr.bf16.mxu0 0
      %427 = vmatpush1.bf16.msra.mxu0 0
      %428 = vmatprep.subr.bf16.mxu0 0
      %429 = vmatpush1.bf16.msra.mxu0 0
      %430 = vmatprep.subr.bf16.mxu0 0
      %431 = vmatpush1.bf16.msra.mxu0 0
      %432 = vmatprep.subr.bf16.mxu0 0
      %433 = vmatpush1.bf16.msra.mxu0 0
      %434 = vmatprep.subr.bf16.mxu0 0
      %435 = vmatpush1.bf16.msra.mxu0 %v369
      %436 = vmatprep.subr.bf16.mxu0 0
      %437 = vmatpush2.bf16.msra.mxu0 0
      %438 = vmatprep.subr.bf16.mxu0 0
      %439 = vmatpush2.bf16.msra.mxu0 0
      %440 = vmatprep.subr.bf16.mxu0 0
      %441 = vmatpush2.bf16.msra.mxu0 0
      %442 = vmatprep.subr.bf16.mxu0 0
      %443 = vmatpush2.bf16.msra.mxu0 0
      %444 = vmatprep.subr.bf16.mxu0 0
      %445 = vmatpush2.bf16.msra.mxu0 0
      %446 = vmatprep.subr.bf16.mxu0 0
      %447 = vmatpush2.bf16.msra.mxu0 0
      %448 = vmatprep.subr.bf16.mxu0 0
      %449 = vmatpush2.bf16.msra.mxu0 0
      %450 = vmatprep.subr.bf16.mxu0 0
      %451 = vmatpush2.bf16.msra.mxu0 0
      %452 = vmatprep.mubr.bf16.mxu0 0
      %453 = vmatmul.mubr.bf16.gmra.mxu0 %v373
      %v454 = vpop.f32.mrf.mxu0
      %v455 = vadd.f32 0.0, %v454
      %v456 = vpop.f32.mrf.mxu0
      %v457 = vpop.f32.mrf.mxu0
      %v458 = vadd.f32 0.0, %v457
      %v459 = vpop.f32.mrf.mxu0
      %460 = vmatprep.mubr.bf16.mxu0 0
      %461 = vmatmul.mubr.bf16.gmra.mxu0 %v376
      %v462 = vpop.f32.mrf.mxu0
      %v463 = vadd.f32 0.0, %v462
      %v464 = vpop.f32.mrf.mxu0
      %v465 = vpop.f32.mrf.mxu0
      %v466 = vadd.f32 0.0, %v465
      %v467 = vpop.f32.mrf.mxu0
      %468 = vmatprep.mubr.bf16.mxu0 0
      %469 = vmatmul.mubr.bf16.gmra.mxu0 %v379
      %v470 = vpop.f32.mrf.mxu0
      %v471 = vadd.f32 0.0, %v470
      %v472 = vpop.f32.mrf.mxu0
      %v473 = vpop.f32.mrf.mxu0
      %v474 = vadd.f32 0.0, %v473
      %v475 = vpop.f32.mrf.mxu0
      %476 = vmatprep.mubr.bf16.mxu0 0
      %477 = vmatmul.mubr.bf16.gmra.mxu0 %v382
      %v478 = vpop.f32.mrf.mxu0
      %v479 = vadd.f32 0.0, %v478
      %v480 = vpop.f32.mrf.mxu0
      %v481 = vpop.f32.mrf.mxu0
      %v482 = vadd.f32 0.0, %v481
      %v483 = vpop.f32.mrf.mxu0
      %484 = vmatprep.mubr.bf16.mxu0 0
      %485 = vmatmul.mubr.bf16.gmra.mxu0 %v385
      %v486 = vpop.f32.mrf.mxu0
      %v487 = vadd.f32 0.0, %v486
      %v488 = vpop.f32.mrf.mxu0
      %v489 = vpop.f32.mrf.mxu0
      %v490 = vadd.f32 0.0, %v489
      %v491 = vpop.f32.mrf.mxu0
      %492 = vmatprep.mubr.bf16.mxu0 0
      %493 = vmatmul.mubr.bf16.gmra.mxu0 %v388
      %v494 = vpop.f32.mrf.mxu0
      %v495 = vadd.f32 0.0, %v494
      %v496 = vpop.f32.mrf.mxu0
      %v497 = vpop.f32.mrf.mxu0
      %v498 = vadd.f32 0.0, %v497
      %v499 = vpop.f32.mrf.mxu0
      %500 = vmatprep.mubr.bf16.mxu0 0
      %501 = vmatmul.mubr.bf16.gmra.mxu0 %v391
      %v502 = vpop.f32.mrf.mxu0
      %v503 = vadd.f32 0.0, %v502
      %v504 = vpop.f32.mrf.mxu0
      %v505 = vpop.f32.mrf.mxu0
      %v506 = vadd.f32 0.0, %v505
      %v507 = vpop.f32.mrf.mxu0
      %508 = vmatprep.mubr.bf16.mxu0 0
      %509 = vmatmul.mubr.bf16.gmra.mxu0 %v394
      %v510 = vpop.f32.mrf.mxu0
      %v511 = vadd.f32 0.0, %v510
      %v512 = vpop.f32.mrf.mxu0
      %v513 = vpop.f32.mrf.mxu0
      %v514 = vadd.f32 0.0, %v513
      %v515 = vpop.f32.mrf.mxu0
      %516 = vmatprep.mubr.bf16.mxu0 0
      %517 = vmatmul.mubr.bf16.gmra.mxu0 %v397
      %v518 = vpop.f32.mrf.mxu0
      %v519 = vadd.f32 0.0, %v518
      %v520 = vpop.f32.mrf.mxu0
      %v521 = vpop.f32.mrf.mxu0
      %v522 = vadd.f32 0.0, %v521
      %v523 = vpop.f32.mrf.mxu0
      %524 = vmatprep.mubr.bf16.mxu0 0
      %525 = vmatmul.mubr.bf16.gmra.mxu0 %v400
      %v526 = vpop.f32.mrf.mxu0
      %v527 = vadd.f32 0.0, %v526
      %v528 = vpop.f32.mrf.mxu0
      %v529 = vpop.f32.mrf.mxu0
      %v530 = vadd.f32 0.0, %v529
      %v531 = vpop.f32.mrf.mxu0
      %532 = vmatprep.mubr.bf16.mxu0 0
      %533 = vmatmul.mubr.bf16.gmra.mxu0 %v403
      %v534 = vpop.f32.mrf.mxu0
      %v535 = vadd.f32 0.0, %v534
      %v536 = vpop.f32.mrf.mxu0
      %v537 = vpop.f32.mrf.mxu0
      %v538 = vadd.f32 0.0, %v537
      %v539 = vpop.f32.mrf.mxu0
      %540 = vmatprep.mubr.bf16.mxu0 0
      %541 = vmatmul.mubr.bf16.gmra.mxu0 %v406
      %v542 = vpop.f32.mrf.mxu0
      %v543 = vadd.f32 0.0, %v542
      %v544 = vpop.f32.mrf.mxu0
      %v545 = vpop.f32.mrf.mxu0
      %v546 = vadd.f32 0.0, %v545
      %v547 = vpop.f32.mrf.mxu0
      %548 = vmatprep.mubr.bf16.mxu0 0
      %549 = vmatmul.mubr.bf16.gmra.mxu0 %v409
      %v550 = vpop.f32.mrf.mxu0
      %v551 = vadd.f32 0.0, %v550
      %v552 = vpop.f32.mrf.mxu0
      %v553 = vpop.f32.mrf.mxu0
      %v554 = vadd.f32 0.0, %v553
      %v555 = vpop.f32.mrf.mxu0
      %556 = vmatprep.mubr.bf16.mxu0 0
      %557 = vmatmul.mubr.bf16.gmra.mxu0 %v412
      %v558 = vpop.f32.mrf.mxu0
      %v559 = vadd.f32 0.0, %v558
      %v560 = vpop.f32.mrf.mxu0
      %v561 = vpop.f32.mrf.mxu0
      %v562 = vadd.f32 0.0, %v561
      %v563 = vpop.f32.mrf.mxu0
      %564 = vmatprep.mubr.bf16.mxu0 0
      %565 = vmatmul.mubr.bf16.gmra.mxu0 %v415
      %v566 = vpop.f32.mrf.mxu0
      %v567 = vadd.f32 0.0, %v566
      %v568 = vpop.f32.mrf.mxu0
      %v569 = vpop.f32.mrf.mxu0
      %v570 = vadd.f32 0.0, %v569
      %v571 = vpop.f32.mrf.mxu0
      %572 = vmatprep.mubr.bf16.mxu0 0
      %573 = vmatmul.mubr.bf16.gmra.mxu0 %v418
      %v574 = vpop.f32.mrf.mxu0
      %v575 = vadd.f32 0.0, %v574
      %v576 = vpop.f32.mrf.mxu0
      %v577 = vpop.f32.mrf.mxu0
      %v578 = vadd.f32 0.0, %v577
      %v579 = vpop.f32.mrf.mxu0
      %580 = vdwg.mxu0
      %581 = vst.msk [vmem:[%s216] sm:$0xff] %vm371, %v455
      %582 = vst.msk [vmem:[%s216 + $0x8] sm:$0xff] %vm371, %v458
      %583 = vst.msk [vmem:[%s216 + $0x10] sm:$0xff] %vm371, %v463
      %584 = vst.msk [vmem:[%s216 + $0x18] sm:$0xff] %vm371, %v466
      %585 = vst.msk [vmem:[%s216 + $0x20] sm:$0xff] %vm371, %v471
      %586 = vst.msk [vmem:[%s216 + $0x28] sm:$0xff] %vm371, %v474
      %587 = vst.msk [vmem:[%s216 + $0x30] sm:$0xff] %vm371, %v479
      %588 = vst.msk [vmem:[%s216 + $0x38] sm:$0xff] %vm371, %v482
      %589 = vst.msk [vmem:[%s216 + $0x40] sm:$0xff] %vm371, %v487
      %590 = vst.msk [vmem:[%s216 + $0x48] sm:$0xff] %vm371, %v490
      %591 = vst.msk [vmem:[%s216 + $0x50] sm:$0xff] %vm371, %v495
      %592 = vst.msk [vmem:[%s216 + $0x58] sm:$0xff] %vm371, %v498
      %593 = vst.msk [vmem:[%s216 + $0x60] sm:$0xff] %vm371, %v503
      %594 = vst.msk [vmem:[%s216 + $0x68] sm:$0xff] %vm371, %v506
      %595 = vst.msk [vmem:[%s216 + $0x70] sm:$0xff] %vm371, %v511
      %596 = vst.msk [vmem:[%s216 + $0x78] sm:$0xff] %vm371, %v514
      %597 = vst.msk [vmem:[%s216 + $0x80] sm:$0xff] %vm371, %v519
      %598 = vst.msk [vmem:[%s216 + $0x88] sm:$0xff] %vm371, %v522
      %599 = vst.msk [vmem:[%s216 + $0x90] sm:$0xff] %vm371, %v527
      %600 = vst.msk [vmem:[%s216 + $0x98] sm:$0xff] %vm371, %v530
      %601 = vst.msk [vmem:[%s216 + $0xa0] sm:$0xff] %vm371, %v535
      %602 = vst.msk [vmem:[%s216 + $0xa8] sm:$0xff] %vm371, %v538
      %603 = vst.msk [vmem:[%s216 + $0xb0] sm:$0xff] %vm371, %v543
      %604 = vst.msk [vmem:[%s216 + $0xb8] sm:$0xff] %vm371, %v546
      %605 = vst.msk [vmem:[%s216 + $0xc0] sm:$0xff] %vm371, %v551
      %606 = vst.msk [vmem:[%s216 + $0xc8] sm:$0xff] %vm371, %v554
      %607 = vst.msk [vmem:[%s216 + $0xd0] sm:$0xff] %vm371, %v559
      %608 = vst.msk [vmem:[%s216 + $0xd8] sm:$0xff] %vm371, %v562
      %609 = vst.msk [vmem:[%s216 + $0xe0] sm:$0xff] %vm371, %v567
      %610 = vst.msk [vmem:[%s216 + $0xe8] sm:$0xff] %vm371, %v570
      %611 = vst.msk [vmem:[%s216 + $0xf0] sm:$0xff] %vm371, %v575
      %612 = vst.msk [vmem:[%s216 + $0xf8] sm:$0xff] %vm371, %v578
      %s613 = smul.u32 32, %s18
      %p614 = scmp.lt.s32.totalorder %s613, 63
      %s615 = scalar_select %p614, %s613, 63
      %p616 = scmp.lt.s32.totalorder %s19, 0
      %s617 = scalar_select %p616, %s19, 0
      %s618 = sadd.s32 %s617, %s615
      %s619 = smul.addr %s618, 8
      %s620 = scalar_lea.vmem %s2, %s619
      // Predicated region
      $region29: #{pdarts_cnn_forward.269} parent=27 // pred_check
        %p621 = pneg %p108
      $region30: #{pdarts_cnn_forward.269} parent=27 // pred_check_branch
        %623 = sbr.rel (%p621) target = $region32
      $region31: #{pdarts_cnn_forward.269} parent=27 // pred_region
        %s624 = smul.u32 32, %s18
      $region32: #{pdarts_cnn_forward.269} parent=27 // pred_fallthru
        _
    $region28: #{pdarts_cnn_forward.269} parent=5 // pred_fallthru
      _
    %p625 = scmp.le.s32.totalorder 2, %s8
    // Predicated region
    $region33: #{pdarts_cnn_forward.269} parent=5 // pred_check
      %p626 = pneg %p625
    $region34: #{pdarts_cnn_forward.269} parent=5 // pred_check_branch
      %628 = sbr.rel (%p626) target = $region36
    $region35: #{pdarts_cnn_forward.269} parent=5 // pred_region
      %s629 = ssub.s32 %s8, 2
      // Predicated region
      $region37: #{pdarts_cnn_forward.269} parent=35 // pred_check
        %p630 = pneg %p114
      $region38: #{pdarts_cnn_forward.269} parent=35 // pred_check_branch
        %632 = sbr.rel (%p630) target = $region40
      $region39: #{pdarts_cnn_forward.269} parent=35 // pred_region
        %s633 = smul.u32 32, %s21
        %p634 = scmp.lt.s32.totalorder %s633, 63
        %s635 = scalar_select %p634, %s633, 63
        %p636 = scmp.lt.s32.totalorder %s22, 0
        %s637 = scalar_select %p636, %s22, 0
        %s638 = sadd.s32 %s637, %s635
        %s639 = smul.addr %s638, 8
        %s640 = scalar_lea.vmem %s2, %s639
      $region40: #{pdarts_cnn_forward.269} parent=35 // pred_fallthru
        _
    $region36: #{pdarts_cnn_forward.269} parent=5 // pred_fallthru
      _
  $region6: #{pdarts_cnn_forward.269} parent=0 // loop_footer
    %s12 = sadd.s32 1, %s8
  $region7: #{pdarts_cnn_forward.269} parent=0 // loop_footer_branch
    %7 = sbr.rel target = $region3
  $region8: #{pdarts_cnn_forward.269} parent=0 // loop_exit
    _

// kernel: pdarts_cnn_forward.338
$region0: #{pdarts_cnn_forward.338}
  #allocation0 [shape = 'u32[]', space=smem, size = 0x4, offset = 0x4, fixed_abs, tag = 'smem constant byte address 0x4 - core index']
  #allocation1 [shape = 'u32[144,128]{1,0:T(1,128)}', space=vmem, size = 0x12000, scoped, tag = 'internal scratch']
  %s0 = inlined_call_operand.vmem [shape: bf16[128,16], index: 0, kind: input, shape index: {}]
  %s1 = inlined_call_operand.vmem [shape: bf16[16,16], index: 1, kind: input, shape index: {}]
  %s2 = inlined_call_operand.vmem [shape: f32[128,16], index: 2, kind: output, shape index: {}]
  %s3 = sld [smem:[#allocation0]]
  $region18: #{pdarts_cnn_forward.338} parent=0
    _
  %s5 = ssub.s32 1, %s3
  %s6 = scalar_select 0, %s5, %s3
  // Predicated region
  $region2: #{pdarts_cnn_forward.338} parent=0 // pred_check
    _
  $region3: #{pdarts_cnn_forward.338} parent=0 // pred_check_branch
    %8 = sbr.rel (0) target = $region5
  $region4: #{pdarts_cnn_forward.338} parent=0 // pred_region
    _
  $region5: #{pdarts_cnn_forward.338} parent=0 // pred_fallthru
    _
  // Predicated region
  $region6: #{pdarts_cnn_forward.338} parent=0 // pred_check
    _
  $region7: #{pdarts_cnn_forward.338} parent=0 // pred_check_branch
    %10 = sbr.rel (0) target = $region9
  $region8: #{pdarts_cnn_forward.338} parent=0 // pred_region
    _
  $region9: #{pdarts_cnn_forward.338} parent=0 // pred_fallthru
    _
  %v12 = vld [vmem:[%s0] sm:$0xf]
  %v13 = vld [vmem:[%s0 + $0x4] sm:$0xf]
  %v14 = vld [vmem:[%s0 + $0x8] sm:$0xf]
  %v15 = vld [vmem:[%s0 + $0xc] sm:$0xf]
  %v16 = vld [vmem:[%s0 + $0x10] sm:$0xf]
  %v17 = vld [vmem:[%s0 + $0x14] sm:$0xf]
  %v18 = vld [vmem:[%s0 + $0x18] sm:$0xf]
  %v19 = vld [vmem:[%s0 + $0x1c] sm:$0xf]
  %v20 = vld [vmem:[%s0 + $0x20] sm:$0xf]
  %v21 = vld [vmem:[%s0 + $0x24] sm:$0xf]
  %v22 = vld [vmem:[%s0 + $0x28] sm:$0xf]
  %v23 = vld [vmem:[%s0 + $0x2c] sm:$0xf]
  %v24 = vld [vmem:[%s0 + $0x30] sm:$0xf]
  %v25 = vld [vmem:[%s0 + $0x34] sm:$0xf]
  %v26 = vld [vmem:[%s0 + $0x38] sm:$0xf]
  %v27 = vld [vmem:[%s0 + $0x3c] sm:$0xf]
  %v28 = vmax.bf16 %v12, 0
  %v29 = vmax.bf16 %v13, 0
  %v30 = vmax.bf16 %v14, 0
  %v31 = vmax.bf16 %v15, 0
  %v32 = vmax.bf16 %v16, 0
  %v33 = vmax.bf16 %v17, 0
  %v34 = vmax.bf16 %v18, 0
  %v35 = vmax.bf16 %v19, 0
  %v36 = vmax.bf16 %v20, 0
  %v37 = vmax.bf16 %v21, 0
  %v38 = vmax.bf16 %v22, 0
  %v39 = vmax.bf16 %v23, 0
  %v40 = vmax.bf16 %v24, 0
  %v41 = vmax.bf16 %v25, 0
  %v42 = vmax.bf16 %v26, 0
  %v43 = vmax.bf16 %v27, 0
  %v44 = vld [vmem:[%s1] sm:$0xf]
  %v45 = vld [vmem:[%s1 + $0x4] sm:$0xf]
  %v62 = vunpack.c.l.b16 %v28
  %v63 = vunpack.c.l.b16 %v29
  %v64 = vunpack.c.l.b16 %v30
  %v65 = vunpack.c.l.b16 %v31
  %v66 = vunpack.c.l.b16 %v32
  %v67 = vunpack.c.l.b16 %v33
  %v68 = vunpack.c.l.b16 %v34
  %v69 = vunpack.c.l.b16 %v35
  %v70 = vunpack.c.l.b16 %v36
  %v71 = vunpack.c.l.b16 %v37
  %v72 = vunpack.c.l.b16 %v38
  %v73 = vunpack.c.l.b16 %v39
  %v74 = vunpack.c.l.b16 %v40
  %v75 = vunpack.c.l.b16 %v41
  %v76 = vunpack.c.l.b16 %v42
  %v77 = vunpack.c.l.b16 %v43
  %v78 = vpack.c.b16 %v63, %v62
  %v79 = vpack.c.b16 %v65, %v64
  %v80 = vpack.c.b16 %v67, %v66
  %v81 = vpack.c.b16 %v69, %v68
  %v82 = vpack.c.b16 %v71, %v70
  %v83 = vpack.c.b16 %v73, %v72
  %v84 = vpack.c.b16 %v75, %v74
  %v85 = vpack.c.b16 %v77, %v76
  %v88 = vunpack.c.l.b16 %v44
  %v89 = vunpack.c.l.b16 %v45
  %v90 = vpack.c.b16 %v89, %v88
  %vm92 = vcmask 130048
  %v94 = vsel %vm92, %v78, 0
  %v97 = vsel %vm92, %v79, 0
  %v100 = vsel %vm92, %v80, 0
  %v103 = vsel %vm92, %v81, 0
  %v106 = vsel %vm92, %v82, 0
  %v109 = vsel %vm92, %v83, 0
  %v112 = vsel %vm92, %v84, 0
  %v115 = vsel %vm92, %v85, 0
  %117 = vmatprep.subr.bf16.mxu0 0
  %118 = vmatpush1.bf16.msra.mxu0 0
  %119 = vmatprep.subr.bf16.mxu0 0
  %120 = vmatpush1.bf16.msra.mxu0 0
  %121 = vmatprep.subr.bf16.mxu0 0
  %122 = vmatpush1.bf16.msra.mxu0 0
  %123 = vmatprep.subr.bf16.mxu0 0
  %124 = vmatpush1.bf16.msra.mxu0 0
  %125 = vmatprep.subr.bf16.mxu0 0
  %126 = vmatpush1.bf16.msra.mxu0 0
  %127 = vmatprep.subr.bf16.mxu0 0
  %128 = vmatpush1.bf16.msra.mxu0 0
  %129 = vmatprep.subr.bf16.mxu0 0
  %130 = vmatpush1.bf16.msra.mxu0 0
  %131 = vmatprep.subr.bf16.mxu0 0
  %132 = vmatpush1.bf16.msra.mxu0 %v90
  %133 = vmatprep.subr.bf16.mxu0 0
  %134 = vmatpush2.bf16.msra.mxu0 0
  %135 = vmatprep.subr.bf16.mxu0 0
  %136 = vmatpush2.bf16.msra.mxu0 0
  %137 = vmatprep.subr.bf16.mxu0 0
  %138 = vmatpush2.bf16.msra.mxu0 0
  %139 = vmatprep.subr.bf16.mxu0 0
  %140 = vmatpush2.bf16.msra.mxu0 0
  %141 = vmatprep.subr.bf16.mxu0 0
  %142 = vmatpush2.bf16.msra.mxu0 0
  %143 = vmatprep.subr.bf16.mxu0 0
  %144 = vmatpush2.bf16.msra.mxu0 0
  %145 = vmatprep.subr.bf16.mxu0 0
  %146 = vmatpush2.bf16.msra.mxu0 0
  %147 = vmatprep.subr.bf16.mxu0 0
  %148 = vmatpush2.bf16.msra.mxu0 0
  %149 = vmatprep.mubr.bf16.mxu0 0
  %150 = vmatmul.mubr.bf16.gmra.mxu0 %v94
  %v151 = vpop.f32.mrf.mxu0
  %v152 = vadd.f32 0.0, %v151
  %v153 = vpop.f32.mrf.mxu0
  %v154 = vpop.f32.mrf.mxu0
  %v155 = vadd.f32 0.0, %v154
  %v156 = vpop.f32.mrf.mxu0
  %157 = vmatprep.mubr.bf16.mxu0 0
  %158 = vmatmul.mubr.bf16.gmra.mxu0 %v97
  %v159 = vpop.f32.mrf.mxu0
  %v160 = vadd.f32 0.0, %v159
  %v161 = vpop.f32.mrf.mxu0
  %v162 = vpop.f32.mrf.mxu0
  %v163 = vadd.f32 0.0, %v162
  %v164 = vpop.f32.mrf.mxu0
  %165 = vmatprep.mubr.bf16.mxu0 0
  %166 = vmatmul.mubr.bf16.gmra.mxu0 %v100
  %v167 = vpop.f32.mrf.mxu0
  %v168 = vadd.f32 0.0, %v167
  %v169 = vpop.f32.mrf.mxu0
  %v170 = vpop.f32.mrf.mxu0
  %v171 = vadd.f32 0.0, %v170
  %v172 = vpop.f32.mrf.mxu0
  %173 = vmatprep.mubr.bf16.mxu0 0
  %174 = vmatmul.mubr.bf16.gmra.mxu0 %v103
  %v175 = vpop.f32.mrf.mxu0
  %v176 = vadd.f32 0.0, %v175
  %v177 = vpop.f32.mrf.mxu0
  %v178 = vpop.f32.mrf.mxu0
  %v179 = vadd.f32 0.0, %v178
  %v180 = vpop.f32.mrf.mxu0
  %181 = vmatprep.mubr.bf16.mxu0 0
  %182 = vmatmul.mubr.bf16.gmra.mxu0 %v106
  %v183 = vpop.f32.mrf.mxu0
  %v184 = vadd.f32 0.0, %v183
  %v185 = vpop.f32.mrf.mxu0
  %v186 = vpop.f32.mrf.mxu0
  %v187 = vadd.f32 0.0, %v186
  %v188 = vpop.f32.mrf.mxu0
  %189 = vmatprep.mubr.bf16.mxu0 0
  %190 = vmatmul.mubr.bf16.gmra.mxu0 %v109
  %v191 = vpop.f32.mrf.mxu0
  %v192 = vadd.f32 0.0, %v191
  %v193 = vpop.f32.mrf.mxu0
  %v194 = vpop.f32.mrf.mxu0
  %v195 = vadd.f32 0.0, %v194
  %v196 = vpop.f32.mrf.mxu0
  %197 = vmatprep.mubr.bf16.mxu0 0
  %198 = vmatmul.mubr.bf16.gmra.mxu0 %v112
  %v199 = vpop.f32.mrf.mxu0
  %v200 = vadd.f32 0.0, %v199
  %v201 = vpop.f32.mrf.mxu0
  %v202 = vpop.f32.mrf.mxu0
  %v203 = vadd.f32 0.0, %v202
  %v204 = vpop.f32.mrf.mxu0
  %205 = vmatprep.mubr.bf16.mxu0 0
  %206 = vmatmul.mubr.bf16.gmra.mxu0 %v115
  %v207 = vpop.f32.mrf.mxu0
  %v208 = vadd.f32 0.0, %v207
  %v209 = vpop.f32.mrf.mxu0
  %v210 = vpop.f32.mrf.mxu0
  %v211 = vadd.f32 0.0, %v210
  %v212 = vpop.f32.mrf.mxu0
  %213 = vdwg.mxu0
  %214 = vst.msk [vmem:[%s2] sm:$0xff] %vm92, %v152
  %215 = vst.msk [vmem:[%s2 + $0x8] sm:$0xff] %vm92, %v155
  %216 = vst.msk [vmem:[%s2 + $0x10] sm:$0xff] %vm92, %v160
  %217 = vst.msk [vmem:[%s2 + $0x18] sm:$0xff] %vm92, %v163
  %218 = vst.msk [vmem:[%s2 + $0x20] sm:$0xff] %vm92, %v168
  %219 = vst.msk [vmem:[%s2 + $0x28] sm:$0xff] %vm92, %v171
  %220 = vst.msk [vmem:[%s2 + $0x30] sm:$0xff] %vm92, %v176
  %221 = vst.msk [vmem:[%s2 + $0x38] sm:$0xff] %vm92, %v179
  %222 = vst.msk [vmem:[%s2 + $0x40] sm:$0xff] %vm92, %v184
  %223 = vst.msk [vmem:[%s2 + $0x48] sm:$0xff] %vm92, %v187
  %224 = vst.msk [vmem:[%s2 + $0x50] sm:$0xff] %vm92, %v192
  %225 = vst.msk [vmem:[%s2 + $0x58] sm:$0xff] %vm92, %v195
  %226 = vst.msk [vmem:[%s2 + $0x60] sm:$0xff] %vm92, %v200
  %227 = vst.msk [vmem:[%s2 + $0x68] sm:$0xff] %vm92, %v203
  %228 = vst.msk [vmem:[%s2 + $0x70] sm:$0xff] %vm92, %v208
  %229 = vst.msk [vmem:[%s2 + $0x78] sm:$0xff] %vm92, %v211
  // Predicated region
  $region10: #{pdarts_cnn_forward.338} parent=0 // pred_check
    _
  $region11: #{pdarts_cnn_forward.338} parent=0 // pred_check_branch
    %231 = sbr.rel (0) target = $region13
  $region12: #{pdarts_cnn_forward.338} parent=0 // pred_region
    _
  $region13: #{pdarts_cnn_forward.338} parent=0 // pred_fallthru
    _
  // Predicated region
  $region14: #{pdarts_cnn_forward.338} parent=0 // pred_check
    _
  $region15: #{pdarts_cnn_forward.338} parent=0 // pred_check_branch
    %233 = sbr.rel (0) target = $region17
  $region16: #{pdarts_cnn_forward.338} parent=0 // pred_region
    _
  $region17: #{pdarts_cnn_forward.338} parent=0 // pred_fallthru
    _

// kernel: pdarts_cnn_forward.341
$region0: #{pdarts_cnn_forward.341}
  #allocation0 [shape = 'u32[]', space=smem, size = 0x4, offset = 0x4, fixed_abs, tag = 'smem constant byte address 0x4 - core index']
  #allocation1 [shape = 'u32[144,128]{1,0:T(1,128)}', space=vmem, size = 0x12000, scoped, tag = 'internal scratch']
  %s0 = inlined_call_operand.vmem [shape: bf16[32,32], index: 0, kind: input, shape index: {}]
  %s1 = inlined_call_operand.vmem [shape: bf16[32,16], index: 1, kind: input, shape index: {}]
  %s2 = inlined_call_operand.vmem [shape: f32[32,16], index: 2, kind: output, shape index: {}]
  %s3 = sld [smem:[#allocation0]]
  $region18: #{pdarts_cnn_forward.341} parent=0
    _
  %s5 = ssub.s32 1, %s3
  %s6 = scalar_select 0, %s5, %s3
  // Predicated region
  $region2: #{pdarts_cnn_forward.341} parent=0 // pred_check
    _
  $region3: #{pdarts_cnn_forward.341} parent=0 // pred_check_branch
    %8 = sbr.rel (0) target = $region5
  $region4: #{pdarts_cnn_forward.341} parent=0 // pred_region
    _
  $region5: #{pdarts_cnn_forward.341} parent=0 // pred_fallthru
    _
  // Predicated region
  $region6: #{pdarts_cnn_forward.341} parent=0 // pred_check
    _
  $region7: #{pdarts_cnn_forward.341} parent=0 // pred_check_branch
    %10 = sbr.rel (0) target = $region9
  $region8: #{pdarts_cnn_forward.341} parent=0 // pred_region
    _
  $region9: #{pdarts_cnn_forward.341} parent=0 // pred_fallthru
    _
  %v12 = vld [vmem:[%s0] sm:$0xf]
  %v13 = vld [vmem:[%s0 + $0x4] sm:$0xf]
  %v14 = vld [vmem:[%s0 + $0x8] sm:$0xf]
  %v15 = vld [vmem:[%s0 + $0xc] sm:$0xf]
  %v16 = vmax.bf16 %v12, 0
  %v17 = vmax.bf16 %v13, 0
  %v18 = vmax.bf16 %v14, 0
  %v19 = vmax.bf16 %v15, 0
  %v20 = vld [vmem:[%s1] sm:$0xf]
  %v21 = vld [vmem:[%s1 + $0x4] sm:$0xf]
  %v22 = vld [vmem:[%s1 + $0x8] sm:$0xf]
  %v23 = vld [vmem:[%s1 + $0xc] sm:$0xf]
  %v28 = vunpack.c.l.b16 %v16
  %v29 = vunpack.c.l.b16 %v17
  %v30 = vunpack.c.l.b16 %v18
  %v31 = vunpack.c.l.b16 %v19
  %v32 = vpack.c.b16 %v29, %v28
  %v33 = vpack.c.b16 %v31, %v30
  %v38 = vunpack.c.l.b16 %v20
  %v39 = vunpack.c.l.b16 %v21
  %v40 = vunpack.c.l.b16 %v22
  %v41 = vunpack.c.l.b16 %v23
  %v42 = vpack.c.b16 %v39, %v38
  %v43 = vpack.c.b16 %v41, %v40
  %vm46 = vcmask 261120
  %v48 = vsel %vm46, %v32, 0
  %v51 = vsel %vm46, %v33, 0
  %53 = vmatprep.subr.bf16.mxu0 0
  %54 = vmatpush1.bf16.msra.mxu0 0
  %55 = vmatprep.subr.bf16.mxu0 0
  %56 = vmatpush1.bf16.msra.mxu0 0
  %57 = vmatprep.subr.bf16.mxu0 0
  %58 = vmatpush1.bf16.msra.mxu0 0
  %59 = vmatprep.subr.bf16.mxu0 0
  %60 = vmatpush1.bf16.msra.mxu0 0
  %61 = vmatprep.subr.bf16.mxu0 0
  %62 = vmatpush1.bf16.msra.mxu0 0
  %63 = vmatprep.subr.bf16.mxu0 0
  %64 = vmatpush1.bf16.msra.mxu0 0
  %65 = vmatprep.subr.bf16.mxu0 0
  %66 = vmatpush1.bf16.msra.mxu0 %v43
  %67 = vmatprep.subr.bf16.mxu0 0
  %68 = vmatpush1.bf16.msra.mxu0 %v42
  %69 = vmatprep.subr.bf16.mxu0 0
  %70 = vmatpush2.bf16.msra.mxu0 0
  %71 = vmatprep.subr.bf16.mxu0 0
  %72 = vmatpush2.bf16.msra.mxu0 0
  %73 = vmatprep.subr.bf16.mxu0 0
  %74 = vmatpush2.bf16.msra.mxu0 0
  %75 = vmatprep.subr.bf16.mxu0 0
  %76 = vmatpush2.bf16.msra.mxu0 0
  %77 = vmatprep.subr.bf16.mxu0 0
  %78 = vmatpush2.bf16.msra.mxu0 0
  %79 = vmatprep.subr.bf16.mxu0 0
  %80 = vmatpush2.bf16.msra.mxu0 0
  %81 = vmatprep.subr.bf16.mxu0 0
  %82 = vmatpush2.bf16.msra.mxu0 0
  %83 = vmatprep.subr.bf16.mxu0 0
  %84 = vmatpush2.bf16.msra.mxu0 0
  %85 = vmatprep.mubr.bf16.mxu0 0
  %86 = vmatmul.mubr.bf16.gmra.mxu0 %v48
  %v87 = vpop.f32.mrf.mxu0
  %v88 = vadd.f32 0.0, %v87
  %v89 = vpop.f32.mrf.mxu0
  %v90 = vpop.f32.mrf.mxu0
  %v91 = vadd.f32 0.0, %v90
  %v92 = vpop.f32.mrf.mxu0
  %93 = vmatprep.mubr.bf16.mxu0 0
  %94 = vmatmul.mubr.bf16.gmra.mxu0 %v51
  %v95 = vpop.f32.mrf.mxu0
  %v96 = vadd.f32 0.0, %v95
  %v97 = vpop.f32.mrf.mxu0
  %v98 = vpop.f32.mrf.mxu0
  %v99 = vadd.f32 0.0, %v98
  %v100 = vpop.f32.mrf.mxu0
  %101 = vdwg.mxu0
  %vm102 = vcmask 130048
  %103 = vst.msk [vmem:[%s2] sm:$0xff] %vm102, %v88
  %104 = vst.msk [vmem:[%s2 + $0x8] sm:$0xff] %vm102, %v91
  %105 = vst.msk [vmem:[%s2 + $0x10] sm:$0xff] %vm102, %v96
  %106 = vst.msk [vmem:[%s2 + $0x18] sm:$0xff] %vm102, %v99
  // Predicated region
  $region10: #{pdarts_cnn_forward.341} parent=0 // pred_check
    _
  $region11: #{pdarts_cnn_forward.341} parent=0 // pred_check_branch
    %108 = sbr.rel (0) target = $region13
  $region12: #{pdarts_cnn_forward.341} parent=0 // pred_region
    _
  $region13: #{pdarts_cnn_forward.341} parent=0 // pred_fallthru
    _
  // Predicated region
  $region14: #{pdarts_cnn_forward.341} parent=0 // pred_check
    _
  $region15: #{pdarts_cnn_forward.341} parent=0 // pred_check_branch
    %110 = sbr.rel (0) target = $region17
  $region16: #{pdarts_cnn_forward.341} parent=0 // pred_region
    _
  $region17: #{pdarts_cnn_forward.341} parent=0 // pred_fallthru
    _

// kernel: pdarts_cnn_forward.344
$region0: #{pdarts_cnn_forward.344}
  #allocation0 [shape = 'u32[]', space=smem, size = 0x4, offset = 0x4, fixed_abs, tag = 'smem constant byte address 0x4 - core index']
  #allocation1 [shape = 'u32[144,128]{1,0:T(1,128)}', space=vmem, size = 0x12000, scoped, tag = 'internal scratch']
  %s0 = inlined_call_operand.vmem [shape: bf16[32,32], index: 0, kind: input, shape index: {}]
  %s1 = inlined_call_operand.vmem [shape: bf16[32,32], index: 1, kind: input, shape index: {}]
  %s2 = inlined_call_operand.vmem [shape: f32[32,32], index: 2, kind: output, shape index: {}]
  %s3 = sld [smem:[#allocation0]]
  $region18: #{pdarts_cnn_forward.344} parent=0
    _
  %s5 = ssub.s32 1, %s3
  %s6 = scalar_select 0, %s5, %s3
  // Predicated region
  $region2: #{pdarts_cnn_forward.344} parent=0 // pred_check
    _
  $region3: #{pdarts_cnn_forward.344} parent=0 // pred_check_branch
    %8 = sbr.rel (0) target = $region5
  $region4: #{pdarts_cnn_forward.344} parent=0 // pred_region
    _
  $region5: #{pdarts_cnn_forward.344} parent=0 // pred_fallthru
    _
  // Predicated region
  $region6: #{pdarts_cnn_forward.344} parent=0 // pred_check
    _
  $region7: #{pdarts_cnn_forward.344} parent=0 // pred_check_branch
    %10 = sbr.rel (0) target = $region9
  $region8: #{pdarts_cnn_forward.344} parent=0 // pred_region
    _
  $region9: #{pdarts_cnn_forward.344} parent=0 // pred_fallthru
    _
  %v12 = vld [vmem:[%s0] sm:$0xf]
  %v13 = vld [vmem:[%s0 + $0x4] sm:$0xf]
  %v14 = vld [vmem:[%s0 + $0x8] sm:$0xf]
  %v15 = vld [vmem:[%s0 + $0xc] sm:$0xf]
  %v16 = vld [vmem:[%s1] sm:$0xf]
  %v17 = vld [vmem:[%s1 + $0x4] sm:$0xf]
  %v18 = vld [vmem:[%s1 + $0x8] sm:$0xf]
  %v19 = vld [vmem:[%s1 + $0xc] sm:$0xf]
  %v24 = vunpack.c.l.b16 %v12
  %v25 = vunpack.c.l.b16 %v13
  %v26 = vunpack.c.l.b16 %v14
  %v27 = vunpack.c.l.b16 %v15
  %v28 = vpack.c.b16 %v25, %v24
  %v29 = vpack.c.b16 %v27, %v26
  %v34 = vunpack.c.l.b16 %v16
  %v35 = vunpack.c.l.b16 %v17
  %v36 = vunpack.c.l.b16 %v18
  %v37 = vunpack.c.l.b16 %v19
  %v38 = vpack.c.b16 %v35, %v34
  %v39 = vpack.c.b16 %v37, %v36
  %vm42 = vcmask 261120
  %v44 = vsel %vm42, %v28, 0
  %v47 = vsel %vm42, %v29, 0
  %49 = vmatprep.subr.bf16.mxu0 0
  %50 = vmatpush1.bf16.msra.mxu0 0
  %51 = vmatprep.subr.bf16.mxu0 0
  %52 = vmatpush1.bf16.msra.mxu0 0
  %53 = vmatprep.subr.bf16.mxu0 0
  %54 = vmatpush1.bf16.msra.mxu0 0
  %55 = vmatprep.subr.bf16.mxu0 0
  %56 = vmatpush1.bf16.msra.mxu0 0
  %57 = vmatprep.subr.bf16.mxu0 0
  %58 = vmatpush1.bf16.msra.mxu0 0
  %59 = vmatprep.subr.bf16.mxu0 0
  %60 = vmatpush1.bf16.msra.mxu0 0
  %61 = vmatprep.subr.bf16.mxu0 0
  %62 = vmatpush1.bf16.msra.mxu0 %v39
  %63 = vmatprep.subr.bf16.mxu0 0
  %64 = vmatpush1.bf16.msra.mxu0 %v38
  %65 = vmatprep.subr.bf16.mxu0 0
  %66 = vmatpush2.bf16.msra.mxu0 0
  %67 = vmatprep.subr.bf16.mxu0 0
  %68 = vmatpush2.bf16.msra.mxu0 0
  %69 = vmatprep.subr.bf16.mxu0 0
  %70 = vmatpush2.bf16.msra.mxu0 0
  %71 = vmatprep.subr.bf16.mxu0 0
  %72 = vmatpush2.bf16.msra.mxu0 0
  %73 = vmatprep.subr.bf16.mxu0 0
  %74 = vmatpush2.bf16.msra.mxu0 0
  %75 = vmatprep.subr.bf16.mxu0 0
  %76 = vmatpush2.bf16.msra.mxu0 0
  %77 = vmatprep.subr.bf16.mxu0 0
  %78 = vmatpush2.bf16.msra.mxu0 0
  %79 = vmatprep.subr.bf16.mxu0 0
  %80 = vmatpush2.bf16.msra.mxu0 0
  %81 = vmatprep.mubr.bf16.mxu0 0
  %82 = vmatmul.mubr.bf16.gmra.mxu0 %v44
  %v83 = vpop.f32.mrf.mxu0
  %v84 = vadd.f32 0.0, %v83
  %v85 = vpop.f32.mrf.mxu0
  %v86 = vpop.f32.mrf.mxu0
  %v87 = vadd.f32 0.0, %v86
  %v88 = vpop.f32.mrf.mxu0
  %89 = vmatprep.mubr.bf16.mxu0 0
  %90 = vmatmul.mubr.bf16.gmra.mxu0 %v47
  %v91 = vpop.f32.mrf.mxu0
  %v92 = vadd.f32 0.0, %v91
  %v93 = vpop.f32.mrf.mxu0
  %v94 = vpop.f32.mrf.mxu0
  %v95 = vadd.f32 0.0, %v94
  %v96 = vpop.f32.mrf.mxu0
  %97 = vdwg.mxu0
  %98 = vst.msk [vmem:[%s2] sm:$0xff] %vm42, %v84
  %99 = vst.msk [vmem:[%s2 + $0x8] sm:$0xff] %vm42, %v87
  %100 = vst.msk [vmem:[%s2 + $0x10] sm:$0xff] %vm42, %v92
  %101 = vst.msk [vmem:[%s2 + $0x18] sm:$0xff] %vm42, %v95
  // Predicated region
  $region10: #{pdarts_cnn_forward.344} parent=0 // pred_check
    _
  $region11: #{pdarts_cnn_forward.344} parent=0 // pred_check_branch
    %103 = sbr.rel (0) target = $region13
  $region12: #{pdarts_cnn_forward.344} parent=0 // pred_region
    _
  $region13: #{pdarts_cnn_forward.344} parent=0 // pred_fallthru
    _
  // Predicated region
  $region14: #{pdarts_cnn_forward.344} parent=0 // pred_check
    _
  $region15: #{pdarts_cnn_forward.344} parent=0 // pred_check_branch
    %105 = sbr.rel (0) target = $region17
  $region16: #{pdarts_cnn_forward.344} parent=0 // pred_region
    _
  $region17: #{pdarts_cnn_forward.344} parent=0 // pred_fallthru
    _

// kernel: pdarts_cnn_forward.371
$region0: #{pdarts_cnn_forward.371}
  #allocation0 [shape = 'u32[]', space=smem, size = 0x4, offset = 0x4, fixed_abs, tag = 'smem constant byte address 0x4 - core index']
  #allocation1 [shape = 'u32[144,128]{1,0:T(1,128)}', space=vmem, size = 0x12000, scoped, tag = 'internal scratch']
  %s0 = inlined_call_operand.vmem [shape: bf16[9,8,128], index: 0, kind: input, shape index: {}]
  %s1 = inlined_call_operand.vmem [shape: f32[9,1,128], index: 1, kind: input, shape index: {}]
  %s2 = inlined_call_operand.vmem [shape: f32[8,128], index: 2, kind: output, shape index: {}]
  %s3 = sld [smem:[#allocation0]]
  $region18: #{pdarts_cnn_forward.371} parent=0
    _
  %s5 = ssub.s32 1, %s3
  %s6 = scalar_select 0, %s5, %s3
  // Predicated region
  $region2: #{pdarts_cnn_forward.371} parent=0 // pred_check
    _
  $region3: #{pdarts_cnn_forward.371} parent=0 // pred_check_branch
    %8 = sbr.rel (0) target = $region5
  $region4: #{pdarts_cnn_forward.371} parent=0 // pred_region
    _
  $region5: #{pdarts_cnn_forward.371} parent=0 // pred_fallthru
    _
  // Predicated region
  $region6: #{pdarts_cnn_forward.371} parent=0 // pred_check
    _
  $region7: #{pdarts_cnn_forward.371} parent=0 // pred_check_branch
    %10 = sbr.rel (0) target = $region9
  $region8: #{pdarts_cnn_forward.371} parent=0 // pred_region
    _
  $region9: #{pdarts_cnn_forward.371} parent=0 // pred_fallthru
    _
  %v11 = vld [vmem:[%s0] sm:$0xf]
  %v12 = vunpack.c.l.bf16 %v11
  %v13 = vmax.f32 %v12, 0.0
  %v14 = vld [vmem:[%s1] sm:$0x1]
  %v16 = vlaneseq
  %v17 = vshrl.u32 %v16, 7
  %v18 = vsub.s32 0, %v17
  %v19 = vrot.slane %v14, %v18
  %v21 = vmul.f32 %v13, %v19
  %v22 = vadd.f32 %v21, 0.0
  %s23 = scalar_lea.vmem %s0, 4
  %v24 = vld [vmem:[%s23] sm:$0xf]
  %v25 = vunpack.c.l.bf16 %v24
  %v26 = vmax.f32 %v25, 0.0
  %s27 = scalar_lea.vmem %s1, 1
  %v28 = vld [vmem:[%s27] sm:$0x1]
  %v30 = vlaneseq
  %v31 = vshrl.u32 %v30, 7
  %v32 = vsub.s32 0, %v31
  %v33 = vrot.slane %v28, %v32
  %v35 = vmul.f32 %v26, %v33
  %v36 = vadd.f32 %v22, %v35
  %s37 = scalar_lea.vmem %s0, 8
  %v38 = vld [vmem:[%s37] sm:$0xf]
  %v39 = vunpack.c.l.bf16 %v38
  %v40 = vmax.f32 %v39, 0.0
  %s41 = scalar_lea.vmem %s1, 2
  %v42 = vld [vmem:[%s41] sm:$0x1]
  %v44 = vlaneseq
  %v45 = vshrl.u32 %v44, 7
  %v46 = vsub.s32 0, %v45
  %v47 = vrot.slane %v42, %v46
  %v49 = vmul.f32 %v40, %v47
  %v50 = vadd.f32 %v36, %v49
  %s51 = scalar_lea.vmem %s0, 12
  %v52 = vld [vmem:[%s51] sm:$0xf]
  %v53 = vunpack.c.l.bf16 %v52
  %v54 = vmax.f32 %v53, 0.0
  %s55 = scalar_lea.vmem %s1, 3
  %v56 = vld [vmem:[%s55] sm:$0x1]
  %v58 = vlaneseq
  %v59 = vshrl.u32 %v58, 7
  %v60 = vsub.s32 0, %v59
  %v61 = vrot.slane %v56, %v60
  %v63 = vmul.f32 %v54, %v61
  %v64 = vadd.f32 %v50, %v63
  %s65 = scalar_lea.vmem %s0, 16
  %v66 = vld [vmem:[%s65] sm:$0xf]
  %v67 = vunpack.c.l.bf16 %v66
  %v68 = vmax.f32 %v67, 0.0
  %s69 = scalar_lea.vmem %s1, 4
  %v70 = vld [vmem:[%s69] sm:$0x1]
  %v72 = vlaneseq
  %v73 = vshrl.u32 %v72, 7
  %v74 = vsub.s32 0, %v73
  %v75 = vrot.slane %v70, %v74
  %v77 = vmul.f32 %v68, %v75
  %v78 = vadd.f32 %v64, %v77
  %s79 = scalar_lea.vmem %s0, 20
  %v80 = vld [vmem:[%s79] sm:$0xf]
  %v81 = vunpack.c.l.bf16 %v80
  %v82 = vmax.f32 %v81, 0.0
  %s83 = scalar_lea.vmem %s1, 5
  %v84 = vld [vmem:[%s83] sm:$0x1]
  %v86 = vlaneseq
  %v87 = vshrl.u32 %v86, 7
  %v88 = vsub.s32 0, %v87
  %v89 = vrot.slane %v84, %v88
  %v91 = vmul.f32 %v82, %v89
  %v92 = vadd.f32 %v78, %v91
  %s93 = scalar_lea.vmem %s0, 24
  %v94 = vld [vmem:[%s93] sm:$0xf]
  %v95 = vunpack.c.l.bf16 %v94
  %v96 = vmax.f32 %v95, 0.0
  %s97 = scalar_lea.vmem %s1, 6
  %v98 = vld [vmem:[%s97] sm:$0x1]
  %v100 = vlaneseq
  %v101 = vshrl.u32 %v100, 7
  %v102 = vsub.s32 0, %v101
  %v103 = vrot.slane %v98, %v102
  %v105 = vmul.f32 %v96, %v103
  %v106 = vadd.f32 %v92, %v105
  %s107 = scalar_lea.vmem %s0, 28
  %v108 = vld [vmem:[%s107] sm:$0xf]
  %v109 = vunpack.c.l.bf16 %v108
  %v110 = vmax.f32 %v109, 0.0
  %s111 = scalar_lea.vmem %s1, 7
  %v112 = vld [vmem:[%s111] sm:$0x1]
  %v114 = vlaneseq
  %v115 = vshrl.u32 %v114, 7
  %v116 = vsub.s32 0, %v115
  %v117 = vrot.slane %v112, %v116
  %v119 = vmul.f32 %v110, %v117
  %v120 = vadd.f32 %v106, %v119
  %s121 = scalar_lea.vmem %s0, 32
  %v122 = vld [vmem:[%s121] sm:$0xf]
  %v123 = vunpack.c.l.bf16 %v122
  %v124 = vmax.f32 %v123, 0.0
  %s125 = scalar_lea.vmem %s1, 8
  %v126 = vld [vmem:[%s125] sm:$0x1]
  %v128 = vlaneseq
  %v129 = vshrl.u32 %v128, 7
  %v130 = vsub.s32 0, %v129
  %v131 = vrot.slane %v126, %v130
  %v133 = vmul.f32 %v124, %v131
  %v134 = vadd.f32 %v120, %v133
  %135 = vst [vmem:[%s2] sm:$0xff] %v134
  // Predicated region
  $region10: #{pdarts_cnn_forward.371} parent=0 // pred_check
    _
  $region11: #{pdarts_cnn_forward.371} parent=0 // pred_check_branch
    %137 = sbr.rel (0) target = $region13
  $region12: #{pdarts_cnn_forward.371} parent=0 // pred_region
    _
  $region13: #{pdarts_cnn_forward.371} parent=0 // pred_fallthru
    _
  // Predicated region
  $region14: #{pdarts_cnn_forward.371} parent=0 // pred_check
    _
  $region15: #{pdarts_cnn_forward.371} parent=0 // pred_check_branch
    %139 = sbr.rel (0) target = $region17
  $region16: #{pdarts_cnn_forward.371} parent=0 // pred_region
    _
  $region17: #{pdarts_cnn_forward.371} parent=0 // pred_fallthru
    _

// kernel: pdarts_cnn_forward.381
$region0: #{pdarts_cnn_forward.381}
  #allocation0 [shape = 'u32[]', space=smem, size = 0x4, offset = 0x4, fixed_abs, tag = 'smem constant byte address 0x4 - core index']
  #allocation1 [shape = 'u32[144,128]{1,0:T(1,128)}', space=vmem, size = 0x12000, scoped, tag = 'internal scratch']
  %s0 = inlined_call_operand.vmem [shape: bf16[25,8,128], index: 0, kind: input, shape index: {}]
  %s1 = inlined_call_operand.vmem [shape: f32[25,1,128], index: 1, kind: input, shape index: {}]
  %s2 = inlined_call_operand.vmem [shape: f32[8,128], index: 2, kind: output, shape index: {}]
  %s3 = sld [smem:[#allocation0]]
  $region18: #{pdarts_cnn_forward.381} parent=0
    _
  %s5 = ssub.s32 1, %s3
  %s6 = scalar_select 0, %s5, %s3
  // Predicated region
  $region2: #{pdarts_cnn_forward.381} parent=0 // pred_check
    _
  $region3: #{pdarts_cnn_forward.381} parent=0 // pred_check_branch
    %8 = sbr.rel (0) target = $region5
  $region4: #{pdarts_cnn_forward.381} parent=0 // pred_region
    _
  $region5: #{pdarts_cnn_forward.381} parent=0 // pred_fallthru
    _
  // Predicated region
  $region6: #{pdarts_cnn_forward.381} parent=0 // pred_check
    _
  $region7: #{pdarts_cnn_forward.381} parent=0 // pred_check_branch
    %10 = sbr.rel (0) target = $region9
  $region8: #{pdarts_cnn_forward.381} parent=0 // pred_region
    _
  $region9: #{pdarts_cnn_forward.381} parent=0 // pred_fallthru
    _
  %v11 = vld [vmem:[%s0] sm:$0xf]
  %v12 = vunpack.c.l.bf16 %v11
  %v13 = vmax.f32 %v12, 0.0
  %v14 = vld [vmem:[%s1] sm:$0x1]
  %v16 = vlaneseq
  %v17 = vshrl.u32 %v16, 7
  %v18 = vsub.s32 0, %v17
  %v19 = vrot.slane %v14, %v18
  %v21 = vmul.f32 %v13, %v19
  %v22 = vadd.f32 %v21, 0.0
  %s23 = scalar_lea.vmem %s0, 4
  %v24 = vld [vmem:[%s23] sm:$0xf]
  %v25 = vunpack.c.l.bf16 %v24
  %v26 = vmax.f32 %v25, 0.0
  %s27 = scalar_lea.vmem %s1, 1
  %v28 = vld [vmem:[%s27] sm:$0x1]
  %v30 = vlaneseq
  %v31 = vshrl.u32 %v30, 7
  %v32 = vsub.s32 0, %v31
  %v33 = vrot.slane %v28, %v32
  %v35 = vmul.f32 %v26, %v33
  %v36 = vadd.f32 %v22, %v35
  %s37 = scalar_lea.vmem %s0, 8
  %v38 = vld [vmem:[%s37] sm:$0xf]
  %v39 = vunpack.c.l.bf16 %v38
  %v40 = vmax.f32 %v39, 0.0
  %s41 = scalar_lea.vmem %s1, 2
  %v42 = vld [vmem:[%s41] sm:$0x1]
  %v44 = vlaneseq
  %v45 = vshrl.u32 %v44, 7
  %v46 = vsub.s32 0, %v45
  %v47 = vrot.slane %v42, %v46
  %v49 = vmul.f32 %v40, %v47
  %v50 = vadd.f32 %v36, %v49
  %s51 = scalar_lea.vmem %s0, 12
  %v52 = vld [vmem:[%s51] sm:$0xf]
  %v53 = vunpack.c.l.bf16 %v52
  %v54 = vmax.f32 %v53, 0.0
  %s55 = scalar_lea.vmem %s1, 3
  %v56 = vld [vmem:[%s55] sm:$0x1]
  %v58 = vlaneseq
  %v59 = vshrl.u32 %v58, 7
  %v60 = vsub.s32 0, %v59
  %v61 = vrot.slane %v56, %v60
  %v63 = vmul.f32 %v54, %v61
  %v64 = vadd.f32 %v50, %v63
  %s65 = scalar_lea.vmem %s0, 16
  %v66 = vld [vmem:[%s65] sm:$0xf]
  %v67 = vunpack.c.l.bf16 %v66
  %v68 = vmax.f32 %v67, 0.0
  %s69 = scalar_lea.vmem %s1, 4
  %v70 = vld [vmem:[%s69] sm:$0x1]
  %v72 = vlaneseq
  %v73 = vshrl.u32 %v72, 7
  %v74 = vsub.s32 0, %v73
  %v75 = vrot.slane %v70, %v74
  %v77 = vmul.f32 %v68, %v75
  %v78 = vadd.f32 %v64, %v77
  %s79 = scalar_lea.vmem %s0, 20
  %v80 = vld [vmem:[%s79] sm:$0xf]
  %v81 = vunpack.c.l.bf16 %v80
  %v82 = vmax.f32 %v81, 0.0
  %s83 = scalar_lea.vmem %s1, 5
  %v84 = vld [vmem:[%s83] sm:$0x1]
  %v86 = vlaneseq
  %v87 = vshrl.u32 %v86, 7
  %v88 = vsub.s32 0, %v87
  %v89 = vrot.slane %v84, %v88
  %v91 = vmul.f32 %v82, %v89
  %v92 = vadd.f32 %v78, %v91
  %s93 = scalar_lea.vmem %s0, 24
  %v94 = vld [vmem:[%s93] sm:$0xf]
  %v95 = vunpack.c.l.bf16 %v94
  %v96 = vmax.f32 %v95, 0.0
  %s97 = scalar_lea.vmem %s1, 6
  %v98 = vld [vmem:[%s97] sm:$0x1]
  %v100 = vlaneseq
  %v101 = vshrl.u32 %v100, 7
  %v102 = vsub.s32 0, %v101
  %v103 = vrot.slane %v98, %v102
  %v105 = vmul.f32 %v96, %v103
  %v106 = vadd.f32 %v92, %v105
  %s107 = scalar_lea.vmem %s0, 28
  %v108 = vld [vmem:[%s107] sm:$0xf]
  %v109 = vunpack.c.l.bf16 %v108
  %v110 = vmax.f32 %v109, 0.0
  %s111 = scalar_lea.vmem %s1, 7
  %v112 = vld [vmem:[%s111] sm:$0x1]
  %v114 = vlaneseq
  %v115 = vshrl.u32 %v114, 7
  %v116 = vsub.s32 0, %v115
  %v117 = vrot.slane %v112, %v116
  %v119 = vmul.f32 %v110, %v117
  %v120 = vadd.f32 %v106, %v119
  %s121 = scalar_lea.vmem %s0, 32
  %v122 = vld [vmem:[%s121] sm:$0xf]
  %v123 = vunpack.c.l.bf16 %v122
  %v124 = vmax.f32 %v123, 0.0
  %s125 = scalar_lea.vmem %s1, 8
  %v126 = vld [vmem:[%s125] sm:$0x1]
  %v128 = vlaneseq
  %v129 = vshrl.u32 %v128, 7
  %v130 = vsub.s32 0, %v129
  %v131 = vrot.slane %v126, %v130
  %v133 = vmul.f32 %v124, %v131
  %v134 = vadd.f32 %v120, %v133
  %s135 = scalar_lea.vmem %s0, 36
  %v136 = vld [vmem:[%s135] sm:$0xf]
  %v137 = vunpack.c.l.bf16 %v136
  %v138 = vmax.f32 %v137, 0.0
  %s139 = scalar_lea.vmem %s1, 9
  %v140 = vld [vmem:[%s139] sm:$0x1]
  %v142 = vlaneseq
  %v143 = vshrl.u32 %v142, 7
  %v144 = vsub.s32 0, %v143
  %v145 = vrot.slane %v140, %v144
  %v147 = vmul.f32 %v138, %v145
  %v148 = vadd.f32 %v134, %v147
  %s149 = scalar_lea.vmem %s0, 40
  %v150 = vld [vmem:[%s149] sm:$0xf]
  %v151 = vunpack.c.l.bf16 %v150
  %v152 = vmax.f32 %v151, 0.0
  %s153 = scalar_lea.vmem %s1, 10
  %v154 = vld [vmem:[%s153] sm:$0x1]
  %v156 = vlaneseq
  %v157 = vshrl.u32 %v156, 7
  %v158 = vsub.s32 0, %v157
  %v159 = vrot.slane %v154, %v158
  %v161 = vmul.f32 %v152, %v159
  %v162 = vadd.f32 %v148, %v161
  %s163 = scalar_lea.vmem %s0, 44
  %v164 = vld [vmem:[%s163] sm:$0xf]
  %v165 = vunpack.c.l.bf16 %v164
  %v166 = vmax.f32 %v165, 0.0
  %s167 = scalar_lea.vmem %s1, 11
  %v168 = vld [vmem:[%s167] sm:$0x1]
  %v170 = vlaneseq
  %v171 = vshrl.u32 %v170, 7
  %v172 = vsub.s32 0, %v171
  %v173 = vrot.slane %v168, %v172
  %v175 = vmul.f32 %v166, %v173
  %v176 = vadd.f32 %v162, %v175
  %s177 = scalar_lea.vmem %s0, 48
  %v178 = vld [vmem:[%s177] sm:$0xf]
  %v179 = vunpack.c.l.bf16 %v178
  %v180 = vmax.f32 %v179, 0.0
  %s181 = scalar_lea.vmem %s1, 12
  %v182 = vld [vmem:[%s181] sm:$0x1]
  %v184 = vlaneseq
  %v185 = vshrl.u32 %v184, 7
  %v186 = vsub.s32 0, %v185
  %v187 = vrot.slane %v182, %v186
  %v189 = vmul.f32 %v180, %v187
  %v190 = vadd.f32 %v176, %v189
  %s191 = scalar_lea.vmem %s0, 52
  %v192 = vld [vmem:[%s191] sm:$0xf]
  %v193 = vunpack.c.l.bf16 %v192
  %v194 = vmax.f32 %v193, 0.0
  %s195 = scalar_lea.vmem %s1, 13
  %v196 = vld [vmem:[%s195] sm:$0x1]
  %v198 = vlaneseq
  %v199 = vshrl.u32 %v198, 7
  %v200 = vsub.s32 0, %v199
  %v201 = vrot.slane %v196, %v200
  %v203 = vmul.f32 %v194, %v201
  %v204 = vadd.f32 %v190, %v203
  %s205 = scalar_lea.vmem %s0, 56
  %v206 = vld [vmem:[%s205] sm:$0xf]
  %v207 = vunpack.c.l.bf16 %v206
  %v208 = vmax.f32 %v207, 0.0
  %s209 = scalar_lea.vmem %s1, 14
  %v210 = vld [vmem:[%s209] sm:$0x1]
  %v212 = vlaneseq
  %v213 = vshrl.u32 %v212, 7
  %v214 = vsub.s32 0, %v213
  %v215 = vrot.slane %v210, %v214
  %v217 = vmul.f32 %v208, %v215
  %v218 = vadd.f32 %v204, %v217
  %s219 = scalar_lea.vmem %s0, 60
  %v220 = vld [vmem:[%s219] sm:$0xf]
  %v221 = vunpack.c.l.bf16 %v220
  %v222 = vmax.f32 %v221, 0.0
  %s223 = scalar_lea.vmem %s1, 15
  %v224 = vld [vmem:[%s223] sm:$0x1]
  %v226 = vlaneseq
  %v227 = vshrl.u32 %v226, 7
  %v228 = vsub.s32 0, %v227
  %v229 = vrot.slane %v224, %v228
  %v231 = vmul.f32 %v222, %v229
  %v232 = vadd.f32 %v218, %v231
  %s233 = scalar_lea.vmem %s0, 64
  %v234 = vld [vmem:[%s233] sm:$0xf]
  %v235 = vunpack.c.l.bf16 %v234
  %v236 = vmax.f32 %v235, 0.0
  %s237 = scalar_lea.vmem %s1, 16
  %v238 = vld [vmem:[%s237] sm:$0x1]
  %v240 = vlaneseq
  %v241 = vshrl.u32 %v240, 7
  %v242 = vsub.s32 0, %v241
  %v243 = vrot.slane %v238, %v242
  %v245 = vmul.f32 %v236, %v243
  %v246 = vadd.f32 %v232, %v245
  %s247 = scalar_lea.vmem %s0, 68
  %v248 = vld [vmem:[%s247] sm:$0xf]
  %v249 = vunpack.c.l.bf16 %v248
  %v250 = vmax.f32 %v249, 0.0
  %s251 = scalar_lea.vmem %s1, 17
  %v252 = vld [vmem:[%s251] sm:$0x1]
  %v254 = vlaneseq
  %v255 = vshrl.u32 %v254, 7
  %v256 = vsub.s32 0, %v255
  %v257 = vrot.slane %v252, %v256
  %v259 = vmul.f32 %v250, %v257
  %v260 = vadd.f32 %v246, %v259
  %s261 = scalar_lea.vmem %s0, 72
  %v262 = vld [vmem:[%s261] sm:$0xf]
  %v263 = vunpack.c.l.bf16 %v262
  %v264 = vmax.f32 %v263, 0.0
  %s265 = scalar_lea.vmem %s1, 18
  %v266 = vld [vmem:[%s265] sm:$0x1]
  %v268 = vlaneseq
  %v269 = vshrl.u32 %v268, 7
  %v270 = vsub.s32 0, %v269
  %v271 = vrot.slane %v266, %v270
  %v273 = vmul.f32 %v264, %v271
  %v274 = vadd.f32 %v260, %v273
  %s275 = scalar_lea.vmem %s0, 76
  %v276 = vld [vmem:[%s275] sm:$0xf]
  %v277 = vunpack.c.l.bf16 %v276
  %v278 = vmax.f32 %v277, 0.0
  %s279 = scalar_lea.vmem %s1, 19
  %v280 = vld [vmem:[%s279] sm:$0x1]
  %v282 = vlaneseq
  %v283 = vshrl.u32 %v282, 7
  %v284 = vsub.s32 0, %v283
  %v285 = vrot.slane %v280, %v284
  %v287 = vmul.f32 %v278, %v285
  %v288 = vadd.f32 %v274, %v287
  %s289 = scalar_lea.vmem %s0, 80
  %v290 = vld [vmem:[%s289] sm:$0xf]
  %v291 = vunpack.c.l.bf16 %v290
  %v292 = vmax.f32 %v291, 0.0
  %s293 = scalar_lea.vmem %s1, 20
  %v294 = vld [vmem:[%s293] sm:$0x1]
  %v296 = vlaneseq
  %v297 = vshrl.u32 %v296, 7
  %v298 = vsub.s32 0, %v297
  %v299 = vrot.slane %v294, %v298
  %v301 = vmul.f32 %v292, %v299
  %v302 = vadd.f32 %v288, %v301
  %s303 = scalar_lea.vmem %s0, 84
  %v304 = vld [vmem:[%s303] sm:$0xf]
  %v305 = vunpack.c.l.bf16 %v304
  %v306 = vmax.f32 %v305, 0.0
  %s307 = scalar_lea.vmem %s1, 21
  %v308 = vld [vmem:[%s307] sm:$0x1]
  %v310 = vlaneseq
  %v311 = vshrl.u32 %v310, 7
  %v312 = vsub.s32 0, %v311
  %v313 = vrot.slane %v308, %v312
  %v315 = vmul.f32 %v306, %v313
  %v316 = vadd.f32 %v302, %v315
  %s317 = scalar_lea.vmem %s0, 88
  %v318 = vld [vmem:[%s317] sm:$0xf]
  %v319 = vunpack.c.l.bf16 %v318
  %v320 = vmax.f32 %v319, 0.0
  %s321 = scalar_lea.vmem %s1, 22
  %v322 = vld [vmem:[%s321] sm:$0x1]
  %v324 = vlaneseq
  %v325 = vshrl.u32 %v324, 7
  %v326 = vsub.s32 0, %v325
  %v327 = vrot.slane %v322, %v326
  %v329 = vmul.f32 %v320, %v327
  %v330 = vadd.f32 %v316, %v329
  %s331 = scalar_lea.vmem %s0, 92
  %v332 = vld [vmem:[%s331] sm:$0xf]
  %v333 = vunpack.c.l.bf16 %v332
  %v334 = vmax.f32 %v333, 0.0
  %s335 = scalar_lea.vmem %s1, 23
  %v336 = vld [vmem:[%s335] sm:$0x1]
  %v338 = vlaneseq
  %v339 = vshrl.u32 %v338, 7
  %v340 = vsub.s32 0, %v339
  %v341 = vrot.slane %v336, %v340
  %v343 = vmul.f32 %v334, %v341
  %v344 = vadd.f32 %v330, %v343
  %s345 = scalar_lea.vmem %s0, 96
  %v346 = vld [vmem:[%s345] sm:$0xf]
  %v347 = vunpack.c.l.bf16 %v346
  %v348 = vmax.f32 %v347, 0.0
  %s349 = scalar_lea.vmem %s1, 24
  %v350 = vld [vmem:[%s349] sm:$0x1]
  %v352 = vlaneseq
  %v353 = vshrl.u32 %v352, 7
  %v354 = vsub.s32 0, %v353
  %v355 = vrot.slane %v350, %v354
  %v357 = vmul.f32 %v348, %v355
  %v358 = vadd.f32 %v344, %v357
  %359 = vst [vmem:[%s2] sm:$0xff] %v358
  // Predicated region
  $region10: #{pdarts_cnn_forward.381} parent=0 // pred_check
    _
  $region11: #{pdarts_cnn_forward.381} parent=0 // pred_check_branch
    %361 = sbr.rel (0) target = $region13
  $region12: #{pdarts_cnn_forward.381} parent=0 // pred_region
    _
  $region13: #{pdarts_cnn_forward.381} parent=0 // pred_fallthru
    _
  // Predicated region
  $region14: #{pdarts_cnn_forward.381} parent=0 // pred_check
    _
  $region15: #{pdarts_cnn_forward.381} parent=0 // pred_check_branch
    %363 = sbr.rel (0) target = $region17
  $region16: #{pdarts_cnn_forward.381} parent=0 // pred_region
    _
  $region17: #{pdarts_cnn_forward.381} parent=0 // pred_fallthru
    _

// kernel: pdarts_cnn_forward.340
$region0: #{pdarts_cnn_forward.340}
  #allocation0 [shape = 'u32[]', space=smem, size = 0x4, offset = 0x4, fixed_abs, tag = 'smem constant byte address 0x4 - core index']
  #allocation1 [shape = 'u32[144,128]{1,0:T(1,128)}', space=vmem, size = 0x12000, scoped, tag = 'internal scratch']
  %s0 = inlined_call_operand.vmem [shape: bf16[128,32], index: 0, kind: input, shape index: {}]
  %s1 = inlined_call_operand.vmem [shape: bf16[32,32], index: 1, kind: input, shape index: {}]
  %s2 = inlined_call_operand.vmem [shape: f32[128,32], index: 2, kind: output, shape index: {}]
  %s3 = sld [smem:[#allocation0]]
  $region18: #{pdarts_cnn_forward.340} parent=0
    _
  %s5 = ssub.s32 1, %s3
  %s6 = scalar_select 0, %s5, %s3
  // Predicated region
  $region2: #{pdarts_cnn_forward.340} parent=0 // pred_check
    _
  $region3: #{pdarts_cnn_forward.340} parent=0 // pred_check_branch
    %8 = sbr.rel (0) target = $region5
  $region4: #{pdarts_cnn_forward.340} parent=0 // pred_region
    _
  $region5: #{pdarts_cnn_forward.340} parent=0 // pred_fallthru
    _
  // Predicated region
  $region6: #{pdarts_cnn_forward.340} parent=0 // pred_check
    _
  $region7: #{pdarts_cnn_forward.340} parent=0 // pred_check_branch
    %10 = sbr.rel (0) target = $region9
  $region8: #{pdarts_cnn_forward.340} parent=0 // pred_region
    _
  $region9: #{pdarts_cnn_forward.340} parent=0 // pred_fallthru
    _
  %v12 = vld [vmem:[%s0] sm:$0xf]
  %v13 = vld [vmem:[%s0 + $0x4] sm:$0xf]
  %v14 = vld [vmem:[%s0 + $0x8] sm:$0xf]
  %v15 = vld [vmem:[%s0 + $0xc] sm:$0xf]
  %v16 = vld [vmem:[%s0 + $0x10] sm:$0xf]
  %v17 = vld [vmem:[%s0 + $0x14] sm:$0xf]
  %v18 = vld [vmem:[%s0 + $0x18] sm:$0xf]
  %v19 = vld [vmem:[%s0 + $0x1c] sm:$0xf]
  %v20 = vld [vmem:[%s0 + $0x20] sm:$0xf]
  %v21 = vld [vmem:[%s0 + $0x24] sm:$0xf]
  %v22 = vld [vmem:[%s0 + $0x28] sm:$0xf]
  %v23 = vld [vmem:[%s0 + $0x2c] sm:$0xf]
  %v24 = vld [vmem:[%s0 + $0x30] sm:$0xf]
  %v25 = vld [vmem:[%s0 + $0x34] sm:$0xf]
  %v26 = vld [vmem:[%s0 + $0x38] sm:$0xf]
  %v27 = vld [vmem:[%s0 + $0x3c] sm:$0xf]
  %v28 = vmax.bf16 %v12, 0
  %v29 = vmax.bf16 %v13, 0
  %v30 = vmax.bf16 %v14, 0
  %v31 = vmax.bf16 %v15, 0
  %v32 = vmax.bf16 %v16, 0
  %v33 = vmax.bf16 %v17, 0
  %v34 = vmax.bf16 %v18, 0
  %v35 = vmax.bf16 %v19, 0
  %v36 = vmax.bf16 %v20, 0
  %v37 = vmax.bf16 %v21, 0
  %v38 = vmax.bf16 %v22, 0
  %v39 = vmax.bf16 %v23, 0
  %v40 = vmax.bf16 %v24, 0
  %v41 = vmax.bf16 %v25, 0
  %v42 = vmax.bf16 %v26, 0
  %v43 = vmax.bf16 %v27, 0
  %v44 = vld [vmem:[%s1] sm:$0xf]
  %v45 = vld [vmem:[%s1 + $0x4] sm:$0xf]
  %v46 = vld [vmem:[%s1 + $0x8] sm:$0xf]
  %v47 = vld [vmem:[%s1 + $0xc] sm:$0xf]
  %v64 = vunpack.c.l.b16 %v28
  %v65 = vunpack.c.l.b16 %v29
  %v66 = vunpack.c.l.b16 %v30
  %v67 = vunpack.c.l.b16 %v31
  %v68 = vunpack.c.l.b16 %v32
  %v69 = vunpack.c.l.b16 %v33
  %v70 = vunpack.c.l.b16 %v34
  %v71 = vunpack.c.l.b16 %v35
  %v72 = vunpack.c.l.b16 %v36
  %v73 = vunpack.c.l.b16 %v37
  %v74 = vunpack.c.l.b16 %v38
  %v75 = vunpack.c.l.b16 %v39
  %v76 = vunpack.c.l.b16 %v40
  %v77 = vunpack.c.l.b16 %v41
  %v78 = vunpack.c.l.b16 %v42
  %v79 = vunpack.c.l.b16 %v43
  %v80 = vpack.c.b16 %v65, %v64
  %v81 = vpack.c.b16 %v67, %v66
  %v82 = vpack.c.b16 %v69, %v68
  %v83 = vpack.c.b16 %v71, %v70
  %v84 = vpack.c.b16 %v73, %v72
  %v85 = vpack.c.b16 %v75, %v74
  %v86 = vpack.c.b16 %v77, %v76
  %v87 = vpack.c.b16 %v79, %v78
  %v92 = vunpack.c.l.b16 %v44
  %v93 = vunpack.c.l.b16 %v45
  %v94 = vunpack.c.l.b16 %v46
  %v95 = vunpack.c.l.b16 %v47
  %v96 = vpack.c.b16 %v93, %v92
  %v97 = vpack.c.b16 %v95, %v94
  %vm100 = vcmask 261120
  %v102 = vsel %vm100, %v80, 0
  %v105 = vsel %vm100, %v81, 0
  %v108 = vsel %vm100, %v82, 0
  %v111 = vsel %vm100, %v83, 0
  %v114 = vsel %vm100, %v84, 0
  %v117 = vsel %vm100, %v85, 0
  %v120 = vsel %vm100, %v86, 0
  %v123 = vsel %vm100, %v87, 0
  %125 = vmatprep.subr.bf16.mxu0 0
  %126 = vmatpush1.bf16.msra.mxu0 0
  %127 = vmatprep.subr.bf16.mxu0 0
  %128 = vmatpush1.bf16.msra.mxu0 0
  %129 = vmatprep.subr.bf16.mxu0 0
  %130 = vmatpush1.bf16.msra.mxu0 0
  %131 = vmatprep.subr.bf16.mxu0 0
  %132 = vmatpush1.bf16.msra.mxu0 0
  %133 = vmatprep.subr.bf16.mxu0 0
  %134 = vmatpush1.bf16.msra.mxu0 0
  %135 = vmatprep.subr.bf16.mxu0 0
  %136 = vmatpush1.bf16.msra.mxu0 0
  %137 = vmatprep.subr.bf16.mxu0 0
  %138 = vmatpush1.bf16.msra.mxu0 %v97
  %139 = vmatprep.subr.bf16.mxu0 0
  %140 = vmatpush1.bf16.msra.mxu0 %v96
  %141 = vmatprep.subr.bf16.mxu0 0
  %142 = vmatpush2.bf16.msra.mxu0 0
  %143 = vmatprep.subr.bf16.mxu0 0
  %144 = vmatpush2.bf16.msra.mxu0 0
  %145 = vmatprep.subr.bf16.mxu0 0
  %146 = vmatpush2.bf16.msra.mxu0 0
  %147 = vmatprep.subr.bf16.mxu0 0
  %148 = vmatpush2.bf16.msra.mxu0 0
  %149 = vmatprep.subr.bf16.mxu0 0
  %150 = vmatpush2.bf16.msra.mxu0 0
  %151 = vmatprep.subr.bf16.mxu0 0
  %152 = vmatpush2.bf16.msra.mxu0 0
  %153 = vmatprep.subr.bf16.mxu0 0
  %154 = vmatpush2.bf16.msra.mxu0 0
  %155 = vmatprep.subr.bf16.mxu0 0
  %156 = vmatpush2.bf16.msra.mxu0 0
  %157 = vmatprep.mubr.bf16.mxu0 0
  %158 = vmatmul.mubr.bf16.gmra.mxu0 %v102
  %v159 = vpop.f32.mrf.mxu0
  %v160 = vadd.f32 0.0, %v159
  %v161 = vpop.f32.mrf.mxu0
  %v162 = vpop.f32.mrf.mxu0
  %v163 = vadd.f32 0.0, %v162
  %v164 = vpop.f32.mrf.mxu0
  %165 = vmatprep.mubr.bf16.mxu0 0
  %166 = vmatmul.mubr.bf16.gmra.mxu0 %v105
  %v167 = vpop.f32.mrf.mxu0
  %v168 = vadd.f32 0.0, %v167
  %v169 = vpop.f32.mrf.mxu0
  %v170 = vpop.f32.mrf.mxu0
  %v171 = vadd.f32 0.0, %v170
  %v172 = vpop.f32.mrf.mxu0
  %173 = vmatprep.mubr.bf16.mxu0 0
  %174 = vmatmul.mubr.bf16.gmra.mxu0 %v108
  %v175 = vpop.f32.mrf.mxu0
  %v176 = vadd.f32 0.0, %v175
  %v177 = vpop.f32.mrf.mxu0
  %v178 = vpop.f32.mrf.mxu0
  %v179 = vadd.f32 0.0, %v178
  %v180 = vpop.f32.mrf.mxu0
  %181 = vmatprep.mubr.bf16.mxu0 0
  %182 = vmatmul.mubr.bf16.gmra.mxu0 %v111
  %v183 = vpop.f32.mrf.mxu0
  %v184 = vadd.f32 0.0, %v183
  %v185 = vpop.f32.mrf.mxu0
  %v186 = vpop.f32.mrf.mxu0
  %v187 = vadd.f32 0.0, %v186
  %v188 = vpop.f32.mrf.mxu0
  %189 = vmatprep.mubr.bf16.mxu0 0
  %190 = vmatmul.mubr.bf16.gmra.mxu0 %v114
  %v191 = vpop.f32.mrf.mxu0
  %v192 = vadd.f32 0.0, %v191
  %v193 = vpop.f32.mrf.mxu0
  %v194 = vpop.f32.mrf.mxu0
  %v195 = vadd.f32 0.0, %v194
  %v196 = vpop.f32.mrf.mxu0
  %197 = vmatprep.mubr.bf16.mxu0 0
  %198 = vmatmul.mubr.bf16.gmra.mxu0 %v117
  %v199 = vpop.f32.mrf.mxu0
  %v200 = vadd.f32 0.0, %v199
  %v201 = vpop.f32.mrf.mxu0
  %v202 = vpop.f32.mrf.mxu0
  %v203 = vadd.f32 0.0, %v202
  %v204 = vpop.f32.mrf.mxu0
  %205 = vmatprep.mubr.bf16.mxu0 0
  %206 = vmatmul.mubr.bf16.gmra.mxu0 %v120
  %v207 = vpop.f32.mrf.mxu0
  %v208 = vadd.f32 0.0, %v207
  %v209 = vpop.f32.mrf.mxu0
  %v210 = vpop.f32.mrf.mxu0
  %v211 = vadd.f32 0.0, %v210
  %v212 = vpop.f32.mrf.mxu0
  %213 = vmatprep.mubr.bf16.mxu0 0
  %214 = vmatmul.mubr.bf16.gmra.mxu0 %v123
  %v215 = vpop.f32.mrf.mxu0
  %v216 = vadd.f32 0.0, %v215
  %v217 = vpop.f32.mrf.mxu0
  %v218 = vpop.f32.mrf.mxu0
  %v219 = vadd.f32 0.0, %v218
  %v220 = vpop.f32.mrf.mxu0
  %221 = vdwg.mxu0
  %222 = vst.msk [vmem:[%s2] sm:$0xff] %vm100, %v160
  %223 = vst.msk [vmem:[%s2 + $0x8] sm:$0xff] %vm100, %v163
  %224 = vst.msk [vmem:[%s2 + $0x10] sm:$0xff] %vm100, %v168
  %225 = vst.msk [vmem:[%s2 + $0x18] sm:$0xff] %vm100, %v171
  %226 = vst.msk [vmem:[%s2 + $0x20] sm:$0xff] %vm100, %v176
  %227 = vst.msk [vmem:[%s2 + $0x28] sm:$0xff] %vm100, %v179
  %228 = vst.msk [vmem:[%s2 + $0x30] sm:$0xff] %vm100, %v184
  %229 = vst.msk [vmem:[%s2 + $0x38] sm:$0xff] %vm100, %v187
  %230 = vst.msk [vmem:[%s2 + $0x40] sm:$0xff] %vm100, %v192
  %231 = vst.msk [vmem:[%s2 + $0x48] sm:$0xff] %vm100, %v195
  %232 = vst.msk [vmem:[%s2 + $0x50] sm:$0xff] %vm100, %v200
  %233 = vst.msk [vmem:[%s2 + $0x58] sm:$0xff] %vm100, %v203
  %234 = vst.msk [vmem:[%s2 + $0x60] sm:$0xff] %vm100, %v208
  %235 = vst.msk [vmem:[%s2 + $0x68] sm:$0xff] %vm100, %v211
  %236 = vst.msk [vmem:[%s2 + $0x70] sm:$0xff] %vm100, %v216
  %237 = vst.msk [vmem:[%s2 + $0x78] sm:$0xff] %vm100, %v219
  // Predicated region
  $region10: #{pdarts_cnn_forward.340} parent=0 // pred_check
    _
  $region11: #{pdarts_cnn_forward.340} parent=0 // pred_check_branch
    %239 = sbr.rel (0) target = $region13
  $region12: #{pdarts_cnn_forward.340} parent=0 // pred_region
    _
  $region13: #{pdarts_cnn_forward.340} parent=0 // pred_fallthru
    _
  // Predicated region
  $region14: #{pdarts_cnn_forward.340} parent=0 // pred_check
    _
  $region15: #{pdarts_cnn_forward.340} parent=0 // pred_check_branch
    %241 = sbr.rel (0) target = $region17
  $region16: #{pdarts_cnn_forward.340} parent=0 // pred_region
    _
  $region17: #{pdarts_cnn_forward.340} parent=0 // pred_fallthru
    _

// kernel: pdarts_cnn_forward.409
$region0: #{pdarts_cnn_forward.409}
  #allocation0 [shape = 'u32[]', space=smem, size = 0x4, offset = 0x4, fixed_abs, tag = 'smem constant byte address 0x4 - core index']
  #allocation1 [shape = 'u32[144,128]{1,0:T(1,128)}', space=vmem, size = 0x12000, scoped, tag = 'internal scratch']
  %s0 = inlined_call_operand.vmem [shape: bf16[16,64], index: 0, kind: input, shape index: {}]
  %s1 = inlined_call_operand.vmem [shape: bf16[64,10], index: 1, kind: input, shape index: {}]
  %s2 = inlined_call_operand.vmem [shape: f32[16,10], index: 2, kind: output, shape index: {}]
  %s3 = sld [smem:[#allocation0]]
  $region18: #{pdarts_cnn_forward.409} parent=0
    _
  %s5 = ssub.s32 1, %s3
  %s6 = scalar_select 0, %s5, %s3
  // Predicated region
  $region2: #{pdarts_cnn_forward.409} parent=0 // pred_check
    _
  $region3: #{pdarts_cnn_forward.409} parent=0 // pred_check_branch
    %8 = sbr.rel (0) target = $region5
  $region4: #{pdarts_cnn_forward.409} parent=0 // pred_region
    _
  $region5: #{pdarts_cnn_forward.409} parent=0 // pred_fallthru
    _
  // Predicated region
  $region6: #{pdarts_cnn_forward.409} parent=0 // pred_check
    _
  $region7: #{pdarts_cnn_forward.409} parent=0 // pred_check_branch
    %10 = sbr.rel (0) target = $region9
  $region8: #{pdarts_cnn_forward.409} parent=0 // pred_region
    _
  $region9: #{pdarts_cnn_forward.409} parent=0 // pred_fallthru
    _
  %v12 = vld [vmem:[%s0] sm:$0xf]
  %v13 = vld [vmem:[%s0 + $0x4] sm:$0xf]
  %v14 = vld [vmem:[%s1] sm:$0xf]
  %v15 = vld [vmem:[%s1 + $0x4] sm:$0xf]
  %v16 = vld [vmem:[%s1 + $0x8] sm:$0xf]
  %v17 = vld [vmem:[%s1 + $0xc] sm:$0xf]
  %v18 = vld [vmem:[%s1 + $0x10] sm:$0xf]
  %v19 = vld [vmem:[%s1 + $0x14] sm:$0xf]
  %v20 = vld [vmem:[%s1 + $0x18] sm:$0xf]
  %v21 = vld [vmem:[%s1 + $0x1c] sm:$0xf]
  %v24 = vunpack.c.l.b16 %v12
  %v25 = vunpack.c.l.b16 %v13
  %v26 = vpack.c.b16 %v25, %v24
  %v35 = vunpack.c.l.b16 %v14
  %v36 = vunpack.c.l.b16 %v15
  %v37 = vunpack.c.l.b16 %v16
  %v38 = vunpack.c.l.b16 %v17
  %v39 = vunpack.c.l.b16 %v18
  %v40 = vunpack.c.l.b16 %v19
  %v41 = vunpack.c.l.b16 %v20
  %v42 = vunpack.c.l.b16 %v21
  %v43 = vpack.c.b16 %v36, %v35
  %v44 = vpack.c.b16 %v38, %v37
  %v45 = vpack.c.b16 %v40, %v39
  %v46 = vpack.c.b16 %v42, %v41
  %vm51 = vcmask 523264
  %v53 = vsel %vm51, %v26, 0
  %55 = vmatprep.subr.bf16.mxu0 0
  %56 = vmatpush1.bf16.msra.mxu0 0
  %57 = vmatprep.subr.bf16.mxu0 0
  %58 = vmatpush1.bf16.msra.mxu0 0
  %59 = vmatprep.subr.bf16.mxu0 0
  %60 = vmatpush1.bf16.msra.mxu0 0
  %61 = vmatprep.subr.bf16.mxu0 0
  %62 = vmatpush1.bf16.msra.mxu0 0
  %63 = vmatprep.subr.bf16.mxu0 0
  %64 = vmatpush1.bf16.msra.mxu0 %v46
  %65 = vmatprep.subr.bf16.mxu0 0
  %66 = vmatpush1.bf16.msra.mxu0 %v45
  %67 = vmatprep.subr.bf16.mxu0 0
  %68 = vmatpush1.bf16.msra.mxu0 %v44
  %69 = vmatprep.subr.bf16.mxu0 0
  %70 = vmatpush1.bf16.msra.mxu0 %v43
  %71 = vmatprep.subr.bf16.mxu0 0
  %72 = vmatpush2.bf16.msra.mxu0 0
  %73 = vmatprep.subr.bf16.mxu0 0
  %74 = vmatpush2.bf16.msra.mxu0 0
  %75 = vmatprep.subr.bf16.mxu0 0
  %76 = vmatpush2.bf16.msra.mxu0 0
  %77 = vmatprep.subr.bf16.mxu0 0
  %78 = vmatpush2.bf16.msra.mxu0 0
  %79 = vmatprep.subr.bf16.mxu0 0
  %80 = vmatpush2.bf16.msra.mxu0 0
  %81 = vmatprep.subr.bf16.mxu0 0
  %82 = vmatpush2.bf16.msra.mxu0 0
  %83 = vmatprep.subr.bf16.mxu0 0
  %84 = vmatpush2.bf16.msra.mxu0 0
  %85 = vmatprep.subr.bf16.mxu0 0
  %86 = vmatpush2.bf16.msra.mxu0 0
  %87 = vmatprep.mubr.bf16.mxu0 0
  %88 = vmatmul.mubr.bf16.gmra.mxu0 %v53
  %v89 = vpop.f32.mrf.mxu0
  %v90 = vadd.f32 0.0, %v89
  %v91 = vpop.f32.mrf.mxu0
  %v92 = vpop.f32.mrf.mxu0
  %v93 = vadd.f32 0.0, %v92
  %v94 = vpop.f32.mrf.mxu0
  %95 = vdwg.mxu0
  %vm96 = vcmask 80896
  %97 = vst.msk [vmem:[%s2] sm:$0xff] %vm96, %v90
  %98 = vst.msk [vmem:[%s2 + $0x8] sm:$0xff] %vm96, %v93
  // Predicated region
  $region10: #{pdarts_cnn_forward.409} parent=0 // pred_check
    _
  $region11: #{pdarts_cnn_forward.409} parent=0 // pred_check_branch
    %100 = sbr.rel (0) target = $region13
  $region12: #{pdarts_cnn_forward.409} parent=0 // pred_region
    _
  $region13: #{pdarts_cnn_forward.409} parent=0 // pred_fallthru
    _
  // Predicated region
  $region14: #{pdarts_cnn_forward.409} parent=0 // pred_check
    _
  $region15: #{pdarts_cnn_forward.409} parent=0 // pred_check_branch
    %102 = sbr.rel (0) target = $region17
  $region16: #{pdarts_cnn_forward.409} parent=0 // pred_region
    _
  $region17: #{pdarts_cnn_forward.409} parent=0 // pred_fallthru
    _

</llo_original>
